<compile_context>
chip_gen: v5e
topology: v5e:2x2
jax: 0.10.0
libtpu: 0.0.40
codegen_flags: <defaults>
</compile_context>

<pallas_src>
import numpy as np
import jax
import jax.numpy as jnp
from jax.experimental import pallas as pl
from jax.experimental.pallas import tpu as pltpu

OUT_LANES = 128   # lane-dense output slab width


# ---------------------------------------------------------------------------
# shared math (used both inside the kernel and by the pure-JAX reference)
# ---------------------------------------------------------------------------
def _lin(x, w, b):
    return jnp.dot(x, w, preferred_element_type=jnp.float32) + b


def _inorm(y, eps=1e-5):
    # nn.InstanceNorm1d (affine=False) applied over the point/length axis.
    m = jnp.mean(y, axis=0, keepdims=True)
    v = jnp.mean((y - m) ** 2, axis=0, keepdims=True)
    return (y - m) * jax.lax.rsqrt(v + eps)


def _resmlp(x, w, b, sw, sb):
    return jnp.maximum(_inorm(_lin(x, w, b)), 0.0) + _lin(x, sw, sb)


# ---------------------------------------------------------------------------
# bilinear corner indices/weights (== F.grid_sample, align_corners=False,
# padding_mode='zeros'); tiny (N, 4) tables instead of dense one-hot matrices
# ---------------------------------------------------------------------------
def _corner_data(wh, H, W):
    # wh: (N, 2); wh[:,0] = x (width axis), wh[:,1] = y (height axis) in [-1,1]
    x = (wh[:, 0] + 1.0) * (W / 2.0) - 0.5
    y = (wh[:, 1] + 1.0) * (H / 2.0) - 0.5
    x0 = jnp.floor(x)
    y0 = jnp.floor(y)
    wx1 = x - x0
    wx0 = 1.0 - wx1
    wy1 = y - y0
    wy0 = 1.0 - wy1
    corners = [(x0, y0, wx0 * wy0), (x0 + 1.0, y0, wx1 * wy0),
               (x0, y0 + 1.0, wx0 * wy1), (x0 + 1.0, y0 + 1.0, wx1 * wy1)]
    idxs, ws = [], []
    for xc, yc, w in corners:
        valid = (xc >= 0) & (xc <= W - 1) & (yc >= 0) & (yc <= H - 1)
        xi = jnp.clip(xc, 0, W - 1).astype(jnp.int32)
        yi = jnp.clip(yc, 0, H - 1).astype(jnp.int32)
        idxs.append(yi * W + xi)
        ws.append(w * valid.astype(jnp.float32))
    return jnp.stack(idxs, axis=-1), jnp.stack(ws, axis=-1)   # (N,4) i32 / f32


# ---------------------------------------------------------------------------
# parameter packing: fuse decode1 main+shortcut weights (bf16), pad final
# projections to a lane-dense 128-wide output slab
# ---------------------------------------------------------------------------
def _pack_params(params, seg_classes):
    (e1w, e1b, e1sw, e1sb, e2w, e2b, e2sw, e2sb,
     d1w, d1b, d1sw, d1sb, d2w, d2b, d2sw, d2sb,
     d3w, d3b, d3sw, d3sb, gzw, gzb,
     c1w, c1b, c2w, c2b, c3w, c3b) = params
    # (960+64, 64) main || (960+64, 64) shortcut  ->  (1024, 128) bf16
    w1cat = jnp.concatenate([d1w, d1sw], axis=1).astype(jnp.bfloat16)
    b1cat = jnp.concatenate([d1b, d1sb], axis=1).astype(jnp.float32)   # (1,128)
    # lanes [0:3] -> gen_z xyz ; lanes [3:3+seg] -> c_decode logits
    gzw_pad = jnp.zeros((gzw.shape[0], OUT_LANES), jnp.float32).at[:, 0:3].set(gzw)
    gzb_pad = jnp.zeros((1, OUT_LANES), jnp.float32).at[:, 0:3].set(gzb)
    c3w_pad = jnp.zeros((c3w.shape[0], OUT_LANES),
                        jnp.float32).at[:, 3:3 + seg_classes].set(c3w)
    c3b_pad = jnp.zeros((1, OUT_LANES),
                        jnp.float32).at[:, 3:3 + seg_classes].set(c3b)
    return [e1w, e1b, e1sw, e1sb, e2w, e2b, e2sw, e2sb,
            w1cat, b1cat, d2w, d2b, d2sw, d2sb, d3w, d3b, d3sw, d3sb,
            gzw_pad, gzb_pad, c1w, c1b, c2w, c2b, c3w_pad, c3b_pad]


# ---------------------------------------------------------------------------
# Pallas wrapper + kernel
# ---------------------------------------------------------------------------
def ikea_depth_head_pallas(features, WH, random_prior, params, seg_classes,
                           *, batch_block=1):
    B, N, d_in = random_prior.shape
    L = len(features)
    chans = tuple(int(f.shape[1]) for f in features)
    hws = tuple(int(f.shape[2]) * int(f.shape[3]) for f in features)
    ch_total = sum(chans)
    assert B % batch_block == 0
    assert seg_classes + 3 <= OUT_LANES

    # ---- tiny host-side prep ---------------------------------------------
    corner_fn = jax.vmap(_corner_data, in_axes=(0, None, None))
    idx_list, w_list = [], []
    for f in features:
        idx_k, w_k = corner_fn(WH, int(f.shape[2]), int(f.shape[3]))
        idx_list.append(idx_k)
        w_list.append(w_k)
    idx_all = jnp.concatenate(idx_list, axis=-1)      # (B, N, 4L) int32
    w_all = jnp.concatenate(w_list, axis=-1)          # (B, N, 4L) f32

    feats_flat = [
        jnp.transpose(f, (0, 2, 3, 1)).reshape(B, hws[k], chans[k]).astype(jnp.bfloat16)
        for k, f in enumerate(features)
    ]
    packed = _pack_params(params, seg_classes)

    # static per-level choice: project-then-gather vs gather-then-project
    reassoc = tuple(
        (hws[k] * chans[k] * OUT_LANES + N * hws[k] * OUT_LANES)
        < (N * hws[k] * chans[k] + N * chans[k] * OUT_LANES)
        for k in range(L))

    def kernel(prior_ref, idx_ref, w4_ref, *rest):
        feat_refs = rest[:L]
        (e1w, e1b, e1sw, e1sb, e2w, e2b, e2sw, e2sb,
         w1cat, b1cat, d2w, d2b, d2sw, d2sb, d3w, d3b, d3sw, d3sb,
         gzw, gzb, c1w, c1b, c2w, c2b, c3w, c3b) = rest[L:-1]
        out_ref = rest[-1]

        for bi in range(batch_block):
            prior = prior_ref[bi]                                        # (N,d_in)
            z = _resmlp(prior, e1w[...], e1b[...], e1sw[...], e1sb[...])  # (N,32)
            z = _resmlp(z, e2w[...], e2b[...], e2sw[...], e2sb[...])      # (N,64)

            # z_decode1 pre-activation; main path lanes [0:64], shortcut [64:128]
            acc = jnp.dot(z.astype(jnp.bfloat16),
                          w1cat[pl.ds(ch_total, 64), :],
                          preferred_element_type=jnp.float32)             # (N,128)

            idx_b = idx_ref[bi]                                           # (N,4L)
            w4_b = w4_ref[bi]
            off = 0
            for k in range(L):
                hw, ck = hws[k], chans[k]
                w1_slice = w1cat[pl.ds(off, ck), :]                       # (ck,128)
                # bilinear interp matrix built on-chip from 4 sparse corners
                iota = jax.lax.broadcasted_iota(jnp.int32, (N, hw), 1)
                interp = jnp.zeros((N, hw), jnp.float32)
                for c in range(4):
                    col = 4 * k + c
                    interp = interp + jnp.where(
                        iota == idx_b[:, col:col + 1],
                        w4_b[:, col:col + 1], 0.0)
                interp = interp.astype(jnp.bfloat16)
                feat = feat_refs[k][bi]                                   # (hw,ck)
                if reassoc[k]:
                    # project features into decode1 space first, then gather
                    pk = jnp.dot(feat, w1_slice,
                                 preferred_element_type=jnp.float32)      # (hw,128)
                    acc = acc + jnp.dot(interp, pk.astype(jnp.bfloat16),
                                        preferred_element_type=jnp.float32)
                else:
                    # gather (sample) first, then project
                    sk = jnp.dot(interp, feat,
                                 preferred_element_type=jnp.float32)      # (N,ck)
                    acc = acc + jnp.dot(sk.astype(jnp.bfloat16), w1_slice,
                                        preferred_element_type=jnp.float32)
                off += ck

            pre = acc + b1cat[...]
            z = jnp.maximum(_inorm(pre[:, :64]), 0.0) + pre[:, 64:]       # (N,64)

            z = _resmlp(z, d2w[...], d2b[...], d2sw[...], d2sb[...])      # (N,32)
            zp = _resmlp(z, d3w[...], d3b[...], d3sw[...], d3sb[...])     # (N,16)
            zfull = _lin(zp, gzw[...], gzb[...])                          # (N,128)
            zfull = zfull - jnp.mean(zfull, axis=0, keepdims=True)        # center

            c = jnp.maximum(_lin(z, c1w[...], c1b[...]), 0.0)
            c = jnp.maximum(_lin(c, c2w[...], c2b[...]), 0.0)
            cfull = _lin(c, c3w[...], c3b[...])                           # (N,128)

            out_ref[bi] = zfull + cfull      # single lane-dense (N,128) store

    in_specs = [pl.BlockSpec((batch_block, N, d_in), lambda b: (b, 0, 0)),
                pl.BlockSpec((batch_block, N, 4 * L), lambda b: (b, 0, 0)),
                pl.BlockSpec((batch_block, N, 4 * L), lambda b: (b, 0, 0))]
    for k in range(L):
        in_specs.append(pl.BlockSpec((batch_block, hws[k], chans[k]),
                                     lambda b: (b, 0, 0)))
    in_specs += [pl.BlockSpec(p.shape, lambda b: (0, 0)) for p in packed]

    # Toy shapes use ~1 MiB of VMEM per step; at production H*W shrink
    # batch_block first (v7x has 64 MiB physical VMEM vs 128 MiB on v5e/v6e).
    out = pl.pallas_call(
        kernel,
        out_shape=jax.ShapeDtypeStruct((B, N, OUT_LANES), jnp.float32),
        grid=(B // batch_block,),
        in_specs=in_specs,
        out_specs=pl.BlockSpec((batch_block, N, OUT_LANES), lambda b: (b, 0, 0)),
        compiler_params=pltpu.CompilerParams(
            dimension_semantics=("parallel",),
            vmem_limit_bytes=64 << 20),
    )(random_prior, idx_all, w_all, *feats_flat, *packed)

    pointclouds = out[..., 0:3]
    labels = out[..., 3:3 + seg_classes]
    # PyTorch returns python lists of per-sample tensors; here stacked (B, N, .)
    return pointclouds, labels


# ---------------------------------------------------------------------------
# pure-JAX f32 reference (same math, no Pallas / no bf16) for a sanity check
# ---------------------------------------------------------------------------
def _reference(features, WH, random_prior, params):
    (e1w, e1b, e1sw, e1sb, e2w, e2b, e2sw, e2sb,
     d1w, d1b, d1sw, d1sb, d2w, d2b, d2sw, d2sb,
     d3w, d3b, d3sw, d3sb, gzw, gzb,
     c1w, c1b, c2w, c2b, c3w, c3b) = params
    B = random_prior.shape[0]
    feats_flat = [jnp.transpose(f, (0, 2, 3, 1)).reshape(f.shape[0], -1, f.shape[1])
                  for f in features]
    zs, cs = [], []
    for i in range(B):
        z = _resmlp(random_prior[i], e1w, e1b, e1sw, e1sb)
        z = _resmlp(z, e2w, e2b, e2sw, e2sb)
        samp = []
        for k, f in enumerate(features):
            H, W = int(f.shape[2]), int(f.shape[3])
            idx, w4 = _corner_data(WH[i], H, W)
            oh = jax.nn.one_hot(idx, H * W, dtype=jnp.float32)       # (N,4,HW)
            interp = jnp.einsum('ncH,nc->nH', oh, w4)
            samp.append(interp @ feats_flat[k][i])
        x = jnp.concatenate(samp + [z], axis=-1)
        z = _resmlp(x, d1w, d1b, d1sw, d1sb)
        z = _resmlp(z, d2w, d2b, d2sw, d2sb)
        zp = _resmlp(z, d3w, d3b, d3sw, d3sb)
        zp = _lin(zp, gzw, gzb)
        zp = zp - jnp.mean(zp, axis=0, keepdims=True)
        c = jnp.maximum(_lin(z, c1w, c1b), 0.0)
        c = jnp.maximum(_lin(c, c2w, c2b), 0.0)
        c = _lin(c, c3w, c3b)
        zs.append(zp)
        cs.append(c)
    return jnp.stack(zs), jnp.stack(cs)


# ---------------------------------------------------------------------------
# deterministic parameter init (synthetic; module shapes from __init__)
# ---------------------------------------------------------------------------
def init_params(key, d_in, seg_classes, channels):
    keys = iter(jax.random.split(key, 64))

    def lin_p(i, o):
        w = jax.random.normal(next(keys), (i, o), jnp.float32) / np.sqrt(i)
        b = jax.random.normal(next(keys), (1, o), jnp.float32) * 0.01
        return [w, b]

    def resmlp_p(i, o):
        return lin_p(i, o) + lin_p(i, o)     # main + shortcut

    params = []
    params += resmlp_p(d_in, 32)                       # z_encode1
    params += resmlp_p(32, 64)                         # z_encode2
    params += resmlp_p(sum(channels) + 64, 64)         # z_decode1 (960 + 64 = 1024)
    params += resmlp_p(64, 32)                         # z_decode2
    params += resmlp_p(32, 16)                         # z_decode3
    params += lin_p(16, 3)                             # gen_z
    params += lin_p(32, 32)                            # c_decode[0]
    params += lin_p(32, 32)                            # c_decode[2]
    params += lin_p(32, seg_classes)                   # c_decode[4]
    return params


if __name__ == "__main__":
    B = 2
    N = 128                    # number of sampled points
    EMB_DIM = 8
    INCLUDE_PRIOR = True
    D_IN = EMB_DIM + 1 if INCLUDE_PRIOR else EMB_DIM
    SEG_CLASSES = 4
    # z_decode1 = ResMLP(512+256+128+64 + 64, 64); the +64 is z_encode2 output.
    CHANNELS = (512, 256, 128, 64)
    SPATIALS = ((4, 4), (8, 8), (16, 16), (16, 16))

    key = jax.random.PRNGKey(0)
    kf, kwh, kp, kparams = jax.random.split(key, 4)

    feat_keys = jax.random.split(kf, len(CHANNELS))
    features = [jax.random.normal(feat_keys[k], (B, CHANNELS[k]) + SPATIALS[k], jnp.float32)
                for k in range(len(CHANNELS))]
    WH = jax.random.uniform(kwh, (B, N, 2), jnp.float32, minval=-1.0, maxval=1.0)
    random_prior = jax.random.normal(kp, (B, N, D_IN), jnp.float32)
    params = init_params(kparams, D_IN, SEG_CLASSES, CHANNELS)

    pointclouds, labels = ikea_depth_head_pallas(
        features, WH, random_prior, params, SEG_CLASSES, batch_block=1)
    jax.block_until_ready((pointclouds, labels))

    ref_pc, ref_lab = _reference(features, WH, random_prior, params)
    # bf16 operands on the 1024-wide decode1 contraction -> ~1% relative error
    np.testing.assert_allclose(np.asarray(pointclouds), np.asarray(ref_pc),
                               rtol=5e-2, atol=1e-1)
    np.testing.assert_allclose(np.asarray(labels), np.asarray(ref_lab),
                               rtol=5e-2, atol=1e-1)
    # predicted depths are mean-centered over points (done in f32 in-kernel)
    assert np.abs(np.asarray(pointclouds).mean(axis=1)).max() < 1e-3

    print("KERNEL_OK")
</pallas_src>

<mosaic_0001>
module attributes {stable_mosaic.version = 11 : i64} {
  func.func @kernel(%arg0: i32, %arg1: memref<1x128x9xf32, #tpu.memory_space<vmem>>, %arg2: memref<1x128x16xi32, #tpu.memory_space<vmem>>, %arg3: memref<1x128x16xf32, #tpu.memory_space<vmem>>, %arg4: memref<1x16x512xbf16, #tpu.memory_space<vmem>>, %arg5: memref<1x64x256xbf16, #tpu.memory_space<vmem>>, %arg6: memref<1x256x128xbf16, #tpu.memory_space<vmem>>, %arg7: memref<1x256x64xbf16, #tpu.memory_space<vmem>>, %arg8: memref<9x32xf32, #tpu.memory_space<vmem>>, %arg9: memref<1x32xf32, #tpu.memory_space<vmem>>, %arg10: memref<9x32xf32, #tpu.memory_space<vmem>>, %arg11: memref<1x32xf32, #tpu.memory_space<vmem>>, %arg12: memref<32x64xf32, #tpu.memory_space<vmem>>, %arg13: memref<1x64xf32, #tpu.memory_space<vmem>>, %arg14: memref<32x64xf32, #tpu.memory_space<vmem>>, %arg15: memref<1x64xf32, #tpu.memory_space<vmem>>, %arg16: memref<1024x128xbf16, #tpu.memory_space<vmem>>, %arg17: memref<1x128xf32, #tpu.memory_space<vmem>>, %arg18: memref<64x32xf32, #tpu.memory_space<vmem>>, %arg19: memref<1x32xf32, #tpu.memory_space<vmem>>, %arg20: memref<64x32xf32, #tpu.memory_space<vmem>>, %arg21: memref<1x32xf32, #tpu.memory_space<vmem>>, %arg22: memref<32x16xf32, #tpu.memory_space<vmem>>, %arg23: memref<1x16xf32, #tpu.memory_space<vmem>>, %arg24: memref<32x16xf32, #tpu.memory_space<vmem>>, %arg25: memref<1x16xf32, #tpu.memory_space<vmem>>, %arg26: memref<16x128xf32, #tpu.memory_space<vmem>>, %arg27: memref<1x128xf32, #tpu.memory_space<vmem>>, %arg28: memref<32x32xf32, #tpu.memory_space<vmem>>, %arg29: memref<1x32xf32, #tpu.memory_space<vmem>>, %arg30: memref<32x32xf32, #tpu.memory_space<vmem>>, %arg31: memref<1x32xf32, #tpu.memory_space<vmem>>, %arg32: memref<32x128xf32, #tpu.memory_space<vmem>>, %arg33: memref<1x128xf32, #tpu.memory_space<vmem>>, %arg34: memref<1x128x128xf32, #tpu.memory_space<vmem>>) attributes {dimension_semantics = [#tpu.dimension_semantics<parallel>], iteration_bounds = array<i64: 2>, scalar_prefetch = 0 : i64, scratch_operands = 0 : i64, tpu.core_type = #tpu.core_type<tc>, window_params = [{transform_indices = @transform_0, window_bounds = array<i64: 1, 128, 9>}, {transform_indices = @transform_1, window_bounds = array<i64: 1, 128, 16>}, {transform_indices = @transform_2, window_bounds = array<i64: 1, 128, 16>}, {transform_indices = @transform_3, window_bounds = array<i64: 1, 16, 512>}, {transform_indices = @transform_4, window_bounds = array<i64: 1, 64, 256>}, {transform_indices = @transform_5, window_bounds = array<i64: 1, 256, 128>}, {transform_indices = @transform_6, window_bounds = array<i64: 1, 256, 64>}, {pipeline_mode = #tpu.pipeline_mode<synchronous>, transform_indices = @transform_7, window_bounds = array<i64: 9, 32>}, {pipeline_mode = #tpu.pipeline_mode<synchronous>, transform_indices = @transform_8, window_bounds = array<i64: 1, 32>}, {pipeline_mode = #tpu.pipeline_mode<synchronous>, transform_indices = @transform_9, window_bounds = array<i64: 9, 32>}, {pipeline_mode = #tpu.pipeline_mode<synchronous>, transform_indices = @transform_10, window_bounds = array<i64: 1, 32>}, {pipeline_mode = #tpu.pipeline_mode<synchronous>, transform_indices = @transform_11, window_bounds = array<i64: 32, 64>}, {pipeline_mode = #tpu.pipeline_mode<synchronous>, transform_indices = @transform_12, window_bounds = array<i64: 1, 64>}, {pipeline_mode = #tpu.pipeline_mode<synchronous>, transform_indices = @transform_13, window_bounds = array<i64: 32, 64>}, {pipeline_mode = #tpu.pipeline_mode<synchronous>, transform_indices = @transform_14, window_bounds = array<i64: 1, 64>}, {pipeline_mode = #tpu.pipeline_mode<synchronous>, transform_indices = @transform_15, window_bounds = array<i64: 1024, 128>}, {pipeline_mode = #tpu.pipeline_mode<synchronous>, transform_indices = @transform_16, window_bounds = array<i64: 1, 128>}, {pipeline_mode = #tpu.pipeline_mode<synchronous>, transform_indices = @transform_17, window_bounds = array<i64: 64, 32>}, {pipeline_mode = #tpu.pipeline_mode<synchronous>, transform_indices = @transform_18, window_bounds = array<i64: 1, 32>}, {pipeline_mode = #tpu.pipeline_mode<synchronous>, transform_indices = @transform_19, window_bounds = array<i64: 64, 32>}, {pipeline_mode = #tpu.pipeline_mode<synchronous>, transform_indices = @transform_20, window_bounds = array<i64: 1, 32>}, {pipeline_mode = #tpu.pipeline_mode<synchronous>, transform_indices = @transform_21, window_bounds = array<i64: 32, 16>}, {pipeline_mode = #tpu.pipeline_mode<synchronous>, transform_indices = @transform_22, window_bounds = array<i64: 1, 16>}, {pipeline_mode = #tpu.pipeline_mode<synchronous>, transform_indices = @transform_23, window_bounds = array<i64: 32, 16>}, {pipeline_mode = #tpu.pipeline_mode<synchronous>, transform_indices = @transform_24, window_bounds = array<i64: 1, 16>}, {pipeline_mode = #tpu.pipeline_mode<synchronous>, transform_indices = @transform_25, window_bounds = array<i64: 16, 128>}, {pipeline_mode = #tpu.pipeline_mode<synchronous>, transform_indices = @transform_26, window_bounds = array<i64: 1, 128>}, {pipeline_mode = #tpu.pipeline_mode<synchronous>, transform_indices = @transform_27, window_bounds = array<i64: 32, 32>}, {pipeline_mode = #tpu.pipeline_mode<synchronous>, transform_indices = @transform_28, window_bounds = array<i64: 1, 32>}, {pipeline_mode = #tpu.pipeline_mode<synchronous>, transform_indices = @transform_29, window_bounds = array<i64: 32, 32>}, {pipeline_mode = #tpu.pipeline_mode<synchronous>, transform_indices = @transform_30, window_bounds = array<i64: 1, 32>}, {pipeline_mode = #tpu.pipeline_mode<synchronous>, transform_indices = @transform_31, window_bounds = array<i64: 32, 128>}, {pipeline_mode = #tpu.pipeline_mode<synchronous>, transform_indices = @transform_32, window_bounds = array<i64: 1, 128>}, {transform_indices = @transform_33, window_bounds = array<i64: 1, 128, 128>}]} {
    %c0 = arith.constant 0 : index
    %c0_0 = arith.constant 0 : index
    %c0_1 = arith.constant 0 : index
    %0 = vector.load %arg1[%c0, %c0_0, %c0_1] : memref<1x128x9xf32, #tpu.memory_space<vmem>>, vector<1x128x9xf32>
    %1 = vector.shape_cast %0 : vector<1x128x9xf32> to vector<128x9xf32>
    %c0_2 = arith.constant 0 : index
    %c0_3 = arith.constant 0 : index
    %2 = vector.load %arg8[%c0_2, %c0_3] : memref<9x32xf32, #tpu.memory_space<vmem>>, vector<9x32xf32>
    %c0_4 = arith.constant 0 : index
    %c0_5 = arith.constant 0 : index
    %3 = vector.load %arg9[%c0_4, %c0_5] : memref<1x32xf32, #tpu.memory_space<vmem>>, vector<1x32xf32>
    %c0_6 = arith.constant 0 : index
    %c0_7 = arith.constant 0 : index
    %4 = vector.load %arg10[%c0_6, %c0_7] : memref<9x32xf32, #tpu.memory_space<vmem>>, vector<9x32xf32>
    %c0_8 = arith.constant 0 : index
    %c0_9 = arith.constant 0 : index
    %5 = vector.load %arg11[%c0_8, %c0_9] : memref<1x32xf32, #tpu.memory_space<vmem>>, vector<1x32xf32>
    %cst = arith.constant dense<0.000000e+00> : vector<128x32xf32>
    %6 = tpu.matmul %1, %2, %cst {dimension_numbers = #tpu.dot_dimension_numbers<[1], [0], [0], [1], [0, 0, 1, 1], [], []>} : vector<128x9xf32>, vector<9x32xf32>, vector<128x32xf32> -> vector<128x32xf32>
    %7 = vector.broadcast %3 : vector<1x32xf32> to vector<128x32xf32>
    %8 = arith.addf %6, %7 : vector<128x32xf32>
    %cst_10 = arith.constant dense<0.000000e+00> : vector<32xf32>
    %9 = vector.multi_reduction <add>, %8, %cst_10 [0] : vector<128x32xf32> to vector<32xf32>
    %10 = vector.shape_cast %9 : vector<32xf32> to vector<1x32xf32>
    %cst_11 = arith.constant 1.280000e+02 : f32
    %11 = vector.broadcast %cst_11 : f32 to vector<1x32xf32>
    %12 = arith.divf %10, %11 : vector<1x32xf32>
    %13 = vector.broadcast %12 : vector<1x32xf32> to vector<128x32xf32>
    %14 = arith.subf %8, %13 : vector<128x32xf32>
    %15 = arith.mulf %14, %14 : vector<128x32xf32>
    %cst_12 = arith.constant dense<0.000000e+00> : vector<32xf32>
    %16 = vector.multi_reduction <add>, %15, %cst_12 [0] : vector<128x32xf32> to vector<32xf32>
    %17 = vector.shape_cast %16 : vector<32xf32> to vector<1x32xf32>
    %cst_13 = arith.constant 1.280000e+02 : f32
    %18 = vector.broadcast %cst_13 : f32 to vector<1x32xf32>
    %19 = arith.divf %17, %18 : vector<1x32xf32>
    %20 = vector.broadcast %12 : vector<1x32xf32> to vector<128x32xf32>
    %21 = arith.subf %8, %20 : vector<128x32xf32>
    %cst_14 = arith.constant 9.99999974E-6 : f32
    %22 = vector.broadcast %cst_14 : f32 to vector<1x32xf32>
    %23 = arith.addf %19, %22 : vector<1x32xf32>
    %24 = math.rsqrt %23 : vector<1x32xf32>
    %25 = vector.broadcast %24 : vector<1x32xf32> to vector<128x32xf32>
    %26 = arith.mulf %21, %25 : vector<128x32xf32>
    %cst_15 = arith.constant 0.000000e+00 : f32
    %27 = vector.broadcast %cst_15 : f32 to vector<128x32xf32>
    %28 = arith.maximumf %26, %27 : vector<128x32xf32>
    %cst_16 = arith.constant dense<0.000000e+00> : vector<128x32xf32>
    %29 = tpu.matmul %1, %4, %cst_16 {dimension_numbers = #tpu.dot_dimension_numbers<[1], [0], [0], [1], [0, 0, 1, 1], [], []>} : vector<128x9xf32>, vector<9x32xf32>, vector<128x32xf32> -> vector<128x32xf32>
    %30 = vector.broadcast %5 : vector<1x32xf32> to vector<128x32xf32>
    %31 = arith.addf %29, %30 : vector<128x32xf32>
    %32 = arith.addf %28, %31 : vector<128x32xf32>
    %c0_17 = arith.constant 0 : index
    %c0_18 = arith.constant 0 : index
    %33 = vector.load %arg12[%c0_17, %c0_18] : memref<32x64xf32, #tpu.memory_space<vmem>>, vector<32x64xf32>
    %c0_19 = arith.constant 0 : index
    %c0_20 = arith.constant 0 : index
    %34 = vector.load %arg13[%c0_19, %c0_20] : memref<1x64xf32, #tpu.memory_space<vmem>>, vector<1x64xf32>
    %c0_21 = arith.constant 0 : index
    %c0_22 = arith.constant 0 : index
    %35 = vector.load %arg14[%c0_21, %c0_22] : memref<32x64xf32, #tpu.memory_space<vmem>>, vector<32x64xf32>
    %c0_23 = arith.constant 0 : index
    %c0_24 = arith.constant 0 : index
    %36 = vector.load %arg15[%c0_23, %c0_24] : memref<1x64xf32, #tpu.memory_space<vmem>>, vector<1x64xf32>
    %cst_25 = arith.constant dense<0.000000e+00> : vector<128x64xf32>
    %37 = tpu.matmul %32, %33, %cst_25 {dimension_numbers = #tpu.dot_dimension_numbers<[1], [0], [0], [1], [0, 0, 1, 1], [], []>} : vector<128x32xf32>, vector<32x64xf32>, vector<128x64xf32> -> vector<128x64xf32>
    %38 = vector.broadcast %34 : vector<1x64xf32> to vector<128x64xf32>
    %39 = arith.addf %37, %38 : vector<128x64xf32>
    %cst_26 = arith.constant dense<0.000000e+00> : vector<64xf32>
    %40 = vector.multi_reduction <add>, %39, %cst_26 [0] : vector<128x64xf32> to vector<64xf32>
    %41 = vector.shape_cast %40 : vector<64xf32> to vector<1x64xf32>
    %cst_27 = arith.constant 1.280000e+02 : f32
    %42 = vector.broadcast %cst_27 : f32 to vector<1x64xf32>
    %43 = arith.divf %41, %42 : vector<1x64xf32>
    %44 = vector.broadcast %43 : vector<1x64xf32> to vector<128x64xf32>
    %45 = arith.subf %39, %44 : vector<128x64xf32>
    %46 = arith.mulf %45, %45 : vector<128x64xf32>
    %cst_28 = arith.constant dense<0.000000e+00> : vector<64xf32>
    %47 = vector.multi_reduction <add>, %46, %cst_28 [0] : vector<128x64xf32> to vector<64xf32>
    %48 = vector.shape_cast %47 : vector<64xf32> to vector<1x64xf32>
    %cst_29 = arith.constant 1.280000e+02 : f32
    %49 = vector.broadcast %cst_29 : f32 to vector<1x64xf32>
    %50 = arith.divf %48, %49 : vector<1x64xf32>
    %51 = vector.broadcast %43 : vector<1x64xf32> to vector<128x64xf32>
    %52 = arith.subf %39, %51 : vector<128x64xf32>
    %cst_30 = arith.constant 9.99999974E-6 : f32
    %53 = vector.broadcast %cst_30 : f32 to vector<1x64xf32>
    %54 = arith.addf %50, %53 : vector<1x64xf32>
    %55 = math.rsqrt %54 : vector<1x64xf32>
    %56 = vector.broadcast %55 : vector<1x64xf32> to vector<128x64xf32>
    %57 = arith.mulf %52, %56 : vector<128x64xf32>
    %cst_31 = arith.constant 0.000000e+00 : f32
    %58 = vector.broadcast %cst_31 : f32 to vector<128x64xf32>
    %59 = arith.maximumf %57, %58 : vector<128x64xf32>
    %cst_32 = arith.constant dense<0.000000e+00> : vector<128x64xf32>
    %60 = tpu.matmul %32, %35, %cst_32 {dimension_numbers = #tpu.dot_dimension_numbers<[1], [0], [0], [1], [0, 0, 1, 1], [], []>} : vector<128x32xf32>, vector<32x64xf32>, vector<128x64xf32> -> vector<128x64xf32>
    %61 = vector.broadcast %36 : vector<1x64xf32> to vector<128x64xf32>
    %62 = arith.addf %60, %61 : vector<128x64xf32>
    %63 = arith.addf %59, %62 : vector<128x64xf32>
    %64 = arith.truncf %63 : vector<128x64xf32> to vector<128x64xbf16>
    %c960 = arith.constant 960 : index
    %c0_33 = arith.constant 0 : index
    %65 = vector.load %arg16[%c960, %c0_33] : memref<1024x128xbf16, #tpu.memory_space<vmem>>, vector<64x128xbf16>
    %cst_34 = arith.constant dense<0.000000e+00> : vector<128x128xf32>
    %66 = tpu.matmul %64, %65, %cst_34 {dimension_numbers = #tpu.dot_dimension_numbers<[1], [0], [0], [1], [0, 0, 1, 1], [], []>} : vector<128x64xbf16>, vector<64x128xbf16>, vector<128x128xf32> -> vector<128x128xf32>
    %c0_35 = arith.constant 0 : index
    %c0_36 = arith.constant 0 : index
    %c0_37 = arith.constant 0 : index
    %67 = vector.load %arg2[%c0_35, %c0_36, %c0_37] : memref<1x128x16xi32, #tpu.memory_space<vmem>>, vector<1x128x16xi32>
    %68 = vector.shape_cast %67 : vector<1x128x16xi32> to vector<128x16xi32>
    %c0_38 = arith.constant 0 : index
    %c0_39 = arith.constant 0 : index
    %c0_40 = arith.constant 0 : index
    %69 = vector.load %arg3[%c0_38, %c0_39, %c0_40] : memref<1x128x16xf32, #tpu.memory_space<vmem>>, vector<1x128x16xf32>
    %70 = vector.shape_cast %69 : vector<1x128x16xf32> to vector<128x16xf32>
    %c0_41 = arith.constant 0 : index
    %c0_42 = arith.constant 0 : index
    %71 = vector.load %arg16[%c0_41, %c0_42] : memref<1024x128xbf16, #tpu.memory_space<vmem>>, vector<512x128xbf16>
    %72 = tpu.iota {dimensions = array<i32: 1>} : vector<128x16xi32>
    %cst_43 = arith.constant 0.000000e+00 : f32
    %73 = vector.broadcast %cst_43 : f32 to vector<128x16xf32>
    %74 = vector.extract_strided_slice %68 {offsets = [0, 0], sizes = [128, 1], strides = [1, 1]} : vector<128x16xi32> to vector<128x1xi32>
    %75 = vector.broadcast %74 : vector<128x1xi32> to vector<128x16xi32>
    %76 = arith.cmpi eq, %72, %75 : vector<128x16xi32>
    %77 = vector.extract_strided_slice %70 {offsets = [0, 0], sizes = [128, 1], strides = [1, 1]} : vector<128x16xf32> to vector<128x1xf32>
    %cst_44 = arith.constant 0.000000e+00 : f32
    %78 = vector.shape_cast %77 : vector<128x1xf32> to vector<128x1xf32>
    %79 = vector.broadcast %78 : vector<128x1xf32> to vector<128x16xf32>
    %80 = vector.broadcast %cst_44 : f32 to vector<128x16xf32>
    %81 = arith.select %76, %79, %80 : vector<128x16xi1>, vector<128x16xf32>
    %82 = arith.addf %73, %81 : vector<128x16xf32>
    %83 = vector.extract_strided_slice %68 {offsets = [0, 1], sizes = [128, 1], strides = [1, 1]} : vector<128x16xi32> to vector<128x1xi32>
    %84 = vector.broadcast %83 : vector<128x1xi32> to vector<128x16xi32>
    %85 = arith.cmpi eq, %72, %84 : vector<128x16xi32>
    %86 = vector.extract_strided_slice %70 {offsets = [0, 1], sizes = [128, 1], strides = [1, 1]} : vector<128x16xf32> to vector<128x1xf32>
    %cst_45 = arith.constant 0.000000e+00 : f32
    %87 = vector.shape_cast %86 : vector<128x1xf32> to vector<128x1xf32>
    %88 = vector.broadcast %87 : vector<128x1xf32> to vector<128x16xf32>
    %89 = vector.broadcast %cst_45 : f32 to vector<128x16xf32>
    %90 = arith.select %85, %88, %89 : vector<128x16xi1>, vector<128x16xf32>
    %91 = arith.addf %82, %90 : vector<128x16xf32>
    %92 = vector.extract_strided_slice %68 {offsets = [0, 2], sizes = [128, 1], strides = [1, 1]} : vector<128x16xi32> to vector<128x1xi32>
    %93 = vector.broadcast %92 : vector<128x1xi32> to vector<128x16xi32>
    %94 = arith.cmpi eq, %72, %93 : vector<128x16xi32>
    %95 = vector.extract_strided_slice %70 {offsets = [0, 2], sizes = [128, 1], strides = [1, 1]} : vector<128x16xf32> to vector<128x1xf32>
    %cst_46 = arith.constant 0.000000e+00 : f32
    %96 = vector.shape_cast %95 : vector<128x1xf32> to vector<128x1xf32>
    %97 = vector.broadcast %96 : vector<128x1xf32> to vector<128x16xf32>
    %98 = vector.broadcast %cst_46 : f32 to vector<128x16xf32>
    %99 = arith.select %94, %97, %98 : vector<128x16xi1>, vector<128x16xf32>
    %100 = arith.addf %91, %99 : vector<128x16xf32>
    %101 = vector.extract_strided_slice %68 {offsets = [0, 3], sizes = [128, 1], strides = [1, 1]} : vector<128x16xi32> to vector<128x1xi32>
    %102 = vector.broadcast %101 : vector<128x1xi32> to vector<128x16xi32>
    %103 = arith.cmpi eq, %72, %102 : vector<128x16xi32>
    %104 = vector.extract_strided_slice %70 {offsets = [0, 3], sizes = [128, 1], strides = [1, 1]} : vector<128x16xf32> to vector<128x1xf32>
    %cst_47 = arith.constant 0.000000e+00 : f32
    %105 = vector.shape_cast %104 : vector<128x1xf32> to vector<128x1xf32>
    %106 = vector.broadcast %105 : vector<128x1xf32> to vector<128x16xf32>
    %107 = vector.broadcast %cst_47 : f32 to vector<128x16xf32>
    %108 = arith.select %103, %106, %107 : vector<128x16xi1>, vector<128x16xf32>
    %109 = arith.addf %100, %108 : vector<128x16xf32>
    %110 = arith.truncf %109 : vector<128x16xf32> to vector<128x16xbf16>
    %c0_48 = arith.constant 0 : index
    %c0_49 = arith.constant 0 : index
    %c0_50 = arith.constant 0 : index
    %111 = vector.load %arg4[%c0_48, %c0_49, %c0_50] : memref<1x16x512xbf16, #tpu.memory_space<vmem>>, vector<1x16x512xbf16>
    %112 = vector.shape_cast %111 : vector<1x16x512xbf16> to vector<16x512xbf16>
    %cst_51 = arith.constant dense<0.000000e+00> : vector<16x128xf32>
    %113 = tpu.matmul %112, %71, %cst_51 {dimension_numbers = #tpu.dot_dimension_numbers<[1], [0], [0], [1], [0, 0, 1, 1], [], []>} : vector<16x512xbf16>, vector<512x128xbf16>, vector<16x128xf32> -> vector<16x128xf32>
    %114 = arith.truncf %113 : vector<16x128xf32> to vector<16x128xbf16>
    %cst_52 = arith.constant dense<0.000000e+00> : vector<128x128xf32>
    %115 = tpu.matmul %110, %114, %cst_52 {dimension_numbers = #tpu.dot_dimension_numbers<[1], [0], [0], [1], [0, 0, 1, 1], [], []>} : vector<128x16xbf16>, vector<16x128xbf16>, vector<128x128xf32> -> vector<128x128xf32>
    %116 = arith.addf %66, %115 : vector<128x128xf32>
    %c512 = arith.constant 512 : index
    %c0_53 = arith.constant 0 : index
    %117 = vector.load %arg16[%c512, %c0_53] : memref<1024x128xbf16, #tpu.memory_space<vmem>>, vector<256x128xbf16>
    %118 = tpu.iota {dimensions = array<i32: 1>} : vector<128x64xi32>
    %cst_54 = arith.constant 0.000000e+00 : f32
    %119 = vector.broadcast %cst_54 : f32 to vector<128x64xf32>
    %120 = vector.extract_strided_slice %68 {offsets = [0, 4], sizes = [128, 1], strides = [1, 1]} : vector<128x16xi32> to vector<128x1xi32>
    %121 = vector.broadcast %120 : vector<128x1xi32> to vector<128x64xi32>
    %122 = arith.cmpi eq, %118, %121 : vector<128x64xi32>
    %123 = vector.extract_strided_slice %70 {offsets = [0, 4], sizes = [128, 1], strides = [1, 1]} : vector<128x16xf32> to vector<128x1xf32>
    %cst_55 = arith.constant 0.000000e+00 : f32
    %124 = vector.shape_cast %123 : vector<128x1xf32> to vector<128x1xf32>
    %125 = vector.broadcast %124 : vector<128x1xf32> to vector<128x64xf32>
    %126 = vector.broadcast %cst_55 : f32 to vector<128x64xf32>
    %127 = arith.select %122, %125, %126 : vector<128x64xi1>, vector<128x64xf32>
    %128 = arith.addf %119, %127 : vector<128x64xf32>
    %129 = vector.extract_strided_slice %68 {offsets = [0, 5], sizes = [128, 1], strides = [1, 1]} : vector<128x16xi32> to vector<128x1xi32>
    %130 = vector.broadcast %129 : vector<128x1xi32> to vector<128x64xi32>
    %131 = arith.cmpi eq, %118, %130 : vector<128x64xi32>
    %132 = vector.extract_strided_slice %70 {offsets = [0, 5], sizes = [128, 1], strides = [1, 1]} : vector<128x16xf32> to vector<128x1xf32>
    %cst_56 = arith.constant 0.000000e+00 : f32
    %133 = vector.shape_cast %132 : vector<128x1xf32> to vector<128x1xf32>
    %134 = vector.broadcast %133 : vector<128x1xf32> to vector<128x64xf32>
    %135 = vector.broadcast %cst_56 : f32 to vector<128x64xf32>
    %136 = arith.select %131, %134, %135 : vector<128x64xi1>, vector<128x64xf32>
    %137 = arith.addf %128, %136 : vector<128x64xf32>
    %138 = vector.extract_strided_slice %68 {offsets = [0, 6], sizes = [128, 1], strides = [1, 1]} : vector<128x16xi32> to vector<128x1xi32>
    %139 = vector.broadcast %138 : vector<128x1xi32> to vector<128x64xi32>
    %140 = arith.cmpi eq, %118, %139 : vector<128x64xi32>
    %141 = vector.extract_strided_slice %70 {offsets = [0, 6], sizes = [128, 1], strides = [1, 1]} : vector<128x16xf32> to vector<128x1xf32>
    %cst_57 = arith.constant 0.000000e+00 : f32
    %142 = vector.shape_cast %141 : vector<128x1xf32> to vector<128x1xf32>
    %143 = vector.broadcast %142 : vector<128x1xf32> to vector<128x64xf32>
    %144 = vector.broadcast %cst_57 : f32 to vector<128x64xf32>
    %145 = arith.select %140, %143, %144 : vector<128x64xi1>, vector<128x64xf32>
    %146 = arith.addf %137, %145 : vector<128x64xf32>
    %147 = vector.extract_strided_slice %68 {offsets = [0, 7], sizes = [128, 1], strides = [1, 1]} : vector<128x16xi32> to vector<128x1xi32>
    %148 = vector.broadcast %147 : vector<128x1xi32> to vector<128x64xi32>
    %149 = arith.cmpi eq, %118, %148 : vector<128x64xi32>
    %150 = vector.extract_strided_slice %70 {offsets = [0, 7], sizes = [128, 1], strides = [1, 1]} : vector<128x16xf32> to vector<128x1xf32>
    %cst_58 = arith.constant 0.000000e+00 : f32
    %151 = vector.shape_cast %150 : vector<128x1xf32> to vector<128x1xf32>
    %152 = vector.broadcast %151 : vector<128x1xf32> to vector<128x64xf32>
    %153 = vector.broadcast %cst_58 : f32 to vector<128x64xf32>
    %154 = arith.select %149, %152, %153 : vector<128x64xi1>, vector<128x64xf32>
    %155 = arith.addf %146, %154 : vector<128x64xf32>
    %156 = arith.truncf %155 : vector<128x64xf32> to vector<128x64xbf16>
    %c0_59 = arith.constant 0 : index
    %c0_60 = arith.constant 0 : index
    %c0_61 = arith.constant 0 : index
    %157 = vector.load %arg5[%c0_59, %c0_60, %c0_61] : memref<1x64x256xbf16, #tpu.memory_space<vmem>>, vector<1x64x256xbf16>
    %158 = vector.shape_cast %157 : vector<1x64x256xbf16> to vector<64x256xbf16>
    %cst_62 = arith.constant dense<0.000000e+00> : vector<64x128xf32>
    %159 = tpu.matmul %158, %117, %cst_62 {dimension_numbers = #tpu.dot_dimension_numbers<[1], [0], [0], [1], [0, 0, 1, 1], [], []>} : vector<64x256xbf16>, vector<256x128xbf16>, vector<64x128xf32> -> vector<64x128xf32>
    %160 = arith.truncf %159 : vector<64x128xf32> to vector<64x128xbf16>
    %cst_63 = arith.constant dense<0.000000e+00> : vector<128x128xf32>
    %161 = tpu.matmul %156, %160, %cst_63 {dimension_numbers = #tpu.dot_dimension_numbers<[1], [0], [0], [1], [0, 0, 1, 1], [], []>} : vector<128x64xbf16>, vector<64x128xbf16>, vector<128x128xf32> -> vector<128x128xf32>
    %162 = arith.addf %116, %161 : vector<128x128xf32>
    %c768 = arith.constant 768 : index
    %c0_64 = arith.constant 0 : index
    %163 = vector.load %arg16[%c768, %c0_64] : memref<1024x128xbf16, #tpu.memory_space<vmem>>, vector<128x128xbf16>
    %164 = tpu.iota {dimensions = array<i32: 1>} : vector<128x256xi32>
    %cst_65 = arith.constant 0.000000e+00 : f32
    %165 = vector.broadcast %cst_65 : f32 to vector<128x256xf32>
    %166 = vector.extract_strided_slice %68 {offsets = [0, 8], sizes = [128, 1], strides = [1, 1]} : vector<128x16xi32> to vector<128x1xi32>
    %167 = vector.broadcast %166 : vector<128x1xi32> to vector<128x256xi32>
    %168 = arith.cmpi eq, %164, %167 : vector<128x256xi32>
    %169 = vector.extract_strided_slice %70 {offsets = [0, 8], sizes = [128, 1], strides = [1, 1]} : vector<128x16xf32> to vector<128x1xf32>
    %cst_66 = arith.constant 0.000000e+00 : f32
    %170 = vector.shape_cast %169 : vector<128x1xf32> to vector<128x1xf32>
    %171 = vector.broadcast %170 : vector<128x1xf32> to vector<128x256xf32>
    %172 = vector.broadcast %cst_66 : f32 to vector<128x256xf32>
    %173 = arith.select %168, %171, %172 : vector<128x256xi1>, vector<128x256xf32>
    %174 = arith.addf %165, %173 : vector<128x256xf32>
    %175 = vector.extract_strided_slice %68 {offsets = [0, 9], sizes = [128, 1], strides = [1, 1]} : vector<128x16xi32> to vector<128x1xi32>
    %176 = vector.broadcast %175 : vector<128x1xi32> to vector<128x256xi32>
    %177 = arith.cmpi eq, %164, %176 : vector<128x256xi32>
    %178 = vector.extract_strided_slice %70 {offsets = [0, 9], sizes = [128, 1], strides = [1, 1]} : vector<128x16xf32> to vector<128x1xf32>
    %cst_67 = arith.constant 0.000000e+00 : f32
    %179 = vector.shape_cast %178 : vector<128x1xf32> to vector<128x1xf32>
    %180 = vector.broadcast %179 : vector<128x1xf32> to vector<128x256xf32>
    %181 = vector.broadcast %cst_67 : f32 to vector<128x256xf32>
    %182 = arith.select %177, %180, %181 : vector<128x256xi1>, vector<128x256xf32>
    %183 = arith.addf %174, %182 : vector<128x256xf32>
    %184 = vector.extract_strided_slice %68 {offsets = [0, 10], sizes = [128, 1], strides = [1, 1]} : vector<128x16xi32> to vector<128x1xi32>
    %185 = vector.broadcast %184 : vector<128x1xi32> to vector<128x256xi32>
    %186 = arith.cmpi eq, %164, %185 : vector<128x256xi32>
    %187 = vector.extract_strided_slice %70 {offsets = [0, 10], sizes = [128, 1], strides = [1, 1]} : vector<128x16xf32> to vector<128x1xf32>
    %cst_68 = arith.constant 0.000000e+00 : f32
    %188 = vector.shape_cast %187 : vector<128x1xf32> to vector<128x1xf32>
    %189 = vector.broadcast %188 : vector<128x1xf32> to vector<128x256xf32>
    %190 = vector.broadcast %cst_68 : f32 to vector<128x256xf32>
    %191 = arith.select %186, %189, %190 : vector<128x256xi1>, vector<128x256xf32>
    %192 = arith.addf %183, %191 : vector<128x256xf32>
    %193 = vector.extract_strided_slice %68 {offsets = [0, 11], sizes = [128, 1], strides = [1, 1]} : vector<128x16xi32> to vector<128x1xi32>
    %194 = vector.broadcast %193 : vector<128x1xi32> to vector<128x256xi32>
    %195 = arith.cmpi eq, %164, %194 : vector<128x256xi32>
    %196 = vector.extract_strided_slice %70 {offsets = [0, 11], sizes = [128, 1], strides = [1, 1]} : vector<128x16xf32> to vector<128x1xf32>
    %cst_69 = arith.constant 0.000000e+00 : f32
    %197 = vector.shape_cast %196 : vector<128x1xf32> to vector<128x1xf32>
    %198 = vector.broadcast %197 : vector<128x1xf32> to vector<128x256xf32>
    %199 = vector.broadcast %cst_69 : f32 to vector<128x256xf32>
    %200 = arith.select %195, %198, %199 : vector<128x256xi1>, vector<128x256xf32>
    %201 = arith.addf %192, %200 : vector<128x256xf32>
    %202 = arith.truncf %201 : vector<128x256xf32> to vector<128x256xbf16>
    %c0_70 = arith.constant 0 : index
    %c0_71 = arith.constant 0 : index
    %c0_72 = arith.constant 0 : index
    %203 = vector.load %arg6[%c0_70, %c0_71, %c0_72] : memref<1x256x128xbf16, #tpu.memory_space<vmem>>, vector<1x256x128xbf16>
    %204 = vector.shape_cast %203 : vector<1x256x128xbf16> to vector<256x128xbf16>
    %cst_73 = arith.constant dense<0.000000e+00> : vector<128x128xf32>
    %205 = tpu.matmul %202, %204, %cst_73 {dimension_numbers = #tpu.dot_dimension_numbers<[1], [0], [0], [1], [0, 0, 1, 1], [], []>} : vector<128x256xbf16>, vector<256x128xbf16>, vector<128x128xf32> -> vector<128x128xf32>
    %206 = arith.truncf %205 : vector<128x128xf32> to vector<128x128xbf16>
    %cst_74 = arith.constant dense<0.000000e+00> : vector<128x128xf32>
    %207 = tpu.matmul %206, %163, %cst_74 {dimension_numbers = #tpu.dot_dimension_numbers<[1], [0], [0], [1], [0, 0, 1, 1], [], []>} : vector<128x128xbf16>, vector<128x128xbf16>, vector<128x128xf32> -> vector<128x128xf32>
    %208 = arith.addf %162, %207 : vector<128x128xf32>
    %c896 = arith.constant 896 : index
    %c0_75 = arith.constant 0 : index
    %209 = vector.load %arg16[%c896, %c0_75] : memref<1024x128xbf16, #tpu.memory_space<vmem>>, vector<64x128xbf16>
    %210 = tpu.iota {dimensions = array<i32: 1>} : vector<128x256xi32>
    %cst_76 = arith.constant 0.000000e+00 : f32
    %211 = vector.broadcast %cst_76 : f32 to vector<128x256xf32>
    %212 = vector.extract_strided_slice %68 {offsets = [0, 12], sizes = [128, 1], strides = [1, 1]} : vector<128x16xi32> to vector<128x1xi32>
    %213 = vector.broadcast %212 : vector<128x1xi32> to vector<128x256xi32>
    %214 = arith.cmpi eq, %210, %213 : vector<128x256xi32>
    %215 = vector.extract_strided_slice %70 {offsets = [0, 12], sizes = [128, 1], strides = [1, 1]} : vector<128x16xf32> to vector<128x1xf32>
    %cst_77 = arith.constant 0.000000e+00 : f32
    %216 = vector.shape_cast %215 : vector<128x1xf32> to vector<128x1xf32>
    %217 = vector.broadcast %216 : vector<128x1xf32> to vector<128x256xf32>
    %218 = vector.broadcast %cst_77 : f32 to vector<128x256xf32>
    %219 = arith.select %214, %217, %218 : vector<128x256xi1>, vector<128x256xf32>
    %220 = arith.addf %211, %219 : vector<128x256xf32>
    %221 = vector.extract_strided_slice %68 {offsets = [0, 13], sizes = [128, 1], strides = [1, 1]} : vector<128x16xi32> to vector<128x1xi32>
    %222 = vector.broadcast %221 : vector<128x1xi32> to vector<128x256xi32>
    %223 = arith.cmpi eq, %210, %222 : vector<128x256xi32>
    %224 = vector.extract_strided_slice %70 {offsets = [0, 13], sizes = [128, 1], strides = [1, 1]} : vector<128x16xf32> to vector<128x1xf32>
    %cst_78 = arith.constant 0.000000e+00 : f32
    %225 = vector.shape_cast %224 : vector<128x1xf32> to vector<128x1xf32>
    %226 = vector.broadcast %225 : vector<128x1xf32> to vector<128x256xf32>
    %227 = vector.broadcast %cst_78 : f32 to vector<128x256xf32>
    %228 = arith.select %223, %226, %227 : vector<128x256xi1>, vector<128x256xf32>
    %229 = arith.addf %220, %228 : vector<128x256xf32>
    %230 = vector.extract_strided_slice %68 {offsets = [0, 14], sizes = [128, 1], strides = [1, 1]} : vector<128x16xi32> to vector<128x1xi32>
    %231 = vector.broadcast %230 : vector<128x1xi32> to vector<128x256xi32>
    %232 = arith.cmpi eq, %210, %231 : vector<128x256xi32>
    %233 = vector.extract_strided_slice %70 {offsets = [0, 14], sizes = [128, 1], strides = [1, 1]} : vector<128x16xf32> to vector<128x1xf32>
    %cst_79 = arith.constant 0.000000e+00 : f32
    %234 = vector.shape_cast %233 : vector<128x1xf32> to vector<128x1xf32>
    %235 = vector.broadcast %234 : vector<128x1xf32> to vector<128x256xf32>
    %236 = vector.broadcast %cst_79 : f32 to vector<128x256xf32>
    %237 = arith.select %232, %235, %236 : vector<128x256xi1>, vector<128x256xf32>
    %238 = arith.addf %229, %237 : vector<128x256xf32>
    %239 = vector.extract_strided_slice %68 {offsets = [0, 15], sizes = [128, 1], strides = [1, 1]} : vector<128x16xi32> to vector<128x1xi32>
    %240 = vector.broadcast %239 : vector<128x1xi32> to vector<128x256xi32>
    %241 = arith.cmpi eq, %210, %240 : vector<128x256xi32>
    %242 = vector.extract_strided_slice %70 {offsets = [0, 15], sizes = [128, 1], strides = [1, 1]} : vector<128x16xf32> to vector<128x1xf32>
    %cst_80 = arith.constant 0.000000e+00 : f32
    %243 = vector.shape_cast %242 : vector<128x1xf32> to vector<128x1xf32>
    %244 = vector.broadcast %243 : vector<128x1xf32> to vector<128x256xf32>
    %245 = vector.broadcast %cst_80 : f32 to vector<128x256xf32>
    %246 = arith.select %241, %244, %245 : vector<128x256xi1>, vector<128x256xf32>
    %247 = arith.addf %238, %246 : vector<128x256xf32>
    %248 = arith.truncf %247 : vector<128x256xf32> to vector<128x256xbf16>
    %c0_81 = arith.constant 0 : index
    %c0_82 = arith.constant 0 : index
    %c0_83 = arith.constant 0 : index
    %249 = vector.load %arg7[%c0_81, %c0_82, %c0_83] : memref<1x256x64xbf16, #tpu.memory_space<vmem>>, vector<1x256x64xbf16>
    %250 = vector.shape_cast %249 : vector<1x256x64xbf16> to vector<256x64xbf16>
    %cst_84 = arith.constant dense<0.000000e+00> : vector<128x64xf32>
    %251 = tpu.matmul %248, %250, %cst_84 {dimension_numbers = #tpu.dot_dimension_numbers<[1], [0], [0], [1], [0, 0, 1, 1], [], []>} : vector<128x256xbf16>, vector<256x64xbf16>, vector<128x64xf32> -> vector<128x64xf32>
    %252 = arith.truncf %251 : vector<128x64xf32> to vector<128x64xbf16>
    %cst_85 = arith.constant dense<0.000000e+00> : vector<128x128xf32>
    %253 = tpu.matmul %252, %209, %cst_85 {dimension_numbers = #tpu.dot_dimension_numbers<[1], [0], [0], [1], [0, 0, 1, 1], [], []>} : vector<128x64xbf16>, vector<64x128xbf16>, vector<128x128xf32> -> vector<128x128xf32>
    %254 = arith.addf %208, %253 : vector<128x128xf32>
    %c0_86 = arith.constant 0 : index
    %c0_87 = arith.constant 0 : index
    %255 = vector.load %arg17[%c0_86, %c0_87] : memref<1x128xf32, #tpu.memory_space<vmem>>, vector<1x128xf32>
    %256 = vector.broadcast %255 : vector<1x128xf32> to vector<128x128xf32>
    %257 = arith.addf %254, %256 : vector<128x128xf32>
    %258 = vector.extract_strided_slice %257 {offsets = [0, 0], sizes = [128, 64], strides = [1, 1]} : vector<128x128xf32> to vector<128x64xf32>
    %cst_88 = arith.constant dense<0.000000e+00> : vector<64xf32>
    %259 = vector.multi_reduction <add>, %258, %cst_88 [0] : vector<128x64xf32> to vector<64xf32>
    %260 = vector.shape_cast %259 : vector<64xf32> to vector<1x64xf32>
    %cst_89 = arith.constant 1.280000e+02 : f32
    %261 = vector.broadcast %cst_89 : f32 to vector<1x64xf32>
    %262 = arith.divf %260, %261 : vector<1x64xf32>
    %263 = vector.broadcast %262 : vector<1x64xf32> to vector<128x64xf32>
    %264 = arith.subf %258, %263 : vector<128x64xf32>
    %265 = arith.mulf %264, %264 : vector<128x64xf32>
    %cst_90 = arith.constant dense<0.000000e+00> : vector<64xf32>
    %266 = vector.multi_reduction <add>, %265, %cst_90 [0] : vector<128x64xf32> to vector<64xf32>
    %267 = vector.shape_cast %266 : vector<64xf32> to vector<1x64xf32>
    %cst_91 = arith.constant 1.280000e+02 : f32
    %268 = vector.broadcast %cst_91 : f32 to vector<1x64xf32>
    %269 = arith.divf %267, %268 : vector<1x64xf32>
    %270 = vector.broadcast %262 : vector<1x64xf32> to vector<128x64xf32>
    %271 = arith.subf %258, %270 : vector<128x64xf32>
    %cst_92 = arith.constant 9.99999974E-6 : f32
    %272 = vector.broadcast %cst_92 : f32 to vector<1x64xf32>
    %273 = arith.addf %269, %272 : vector<1x64xf32>
    %274 = math.rsqrt %273 : vector<1x64xf32>
    %275 = vector.broadcast %274 : vector<1x64xf32> to vector<128x64xf32>
    %276 = arith.mulf %271, %275 : vector<128x64xf32>
    %cst_93 = arith.constant 0.000000e+00 : f32
    %277 = vector.broadcast %cst_93 : f32 to vector<128x64xf32>
    %278 = arith.maximumf %276, %277 : vector<128x64xf32>
    %279 = vector.extract_strided_slice %257 {offsets = [0, 64], sizes = [128, 64], strides = [1, 1]} : vector<128x128xf32> to vector<128x64xf32>
    %280 = arith.addf %278, %279 : vector<128x64xf32>
    %c0_94 = arith.constant 0 : index
    %c0_95 = arith.constant 0 : index
    %281 = vector.load %arg18[%c0_94, %c0_95] : memref<64x32xf32, #tpu.memory_space<vmem>>, vector<64x32xf32>
    %c0_96 = arith.constant 0 : index
    %c0_97 = arith.constant 0 : index
    %282 = vector.load %arg19[%c0_96, %c0_97] : memref<1x32xf32, #tpu.memory_space<vmem>>, vector<1x32xf32>
    %c0_98 = arith.constant 0 : index
    %c0_99 = arith.constant 0 : index
    %283 = vector.load %arg20[%c0_98, %c0_99] : memref<64x32xf32, #tpu.memory_space<vmem>>, vector<64x32xf32>
    %c0_100 = arith.constant 0 : index
    %c0_101 = arith.constant 0 : index
    %284 = vector.load %arg21[%c0_100, %c0_101] : memref<1x32xf32, #tpu.memory_space<vmem>>, vector<1x32xf32>
    %cst_102 = arith.constant dense<0.000000e+00> : vector<128x32xf32>
    %285 = tpu.matmul %280, %281, %cst_102 {dimension_numbers = #tpu.dot_dimension_numbers<[1], [0], [0], [1], [0, 0, 1, 1], [], []>} : vector<128x64xf32>, vector<64x32xf32>, vector<128x32xf32> -> vector<128x32xf32>
    %286 = vector.broadcast %282 : vector<1x32xf32> to vector<128x32xf32>
    %287 = arith.addf %285, %286 : vector<128x32xf32>
    %cst_103 = arith.constant dense<0.000000e+00> : vector<32xf32>
    %288 = vector.multi_reduction <add>, %287, %cst_103 [0] : vector<128x32xf32> to vector<32xf32>
    %289 = vector.shape_cast %288 : vector<32xf32> to vector<1x32xf32>
    %cst_104 = arith.constant 1.280000e+02 : f32
    %290 = vector.broadcast %cst_104 : f32 to vector<1x32xf32>
    %291 = arith.divf %289, %290 : vector<1x32xf32>
    %292 = vector.broadcast %291 : vector<1x32xf32> to vector<128x32xf32>
    %293 = arith.subf %287, %292 : vector<128x32xf32>
    %294 = arith.mulf %293, %293 : vector<128x32xf32>
    %cst_105 = arith.constant dense<0.000000e+00> : vector<32xf32>
    %295 = vector.multi_reduction <add>, %294, %cst_105 [0] : vector<128x32xf32> to vector<32xf32>
    %296 = vector.shape_cast %295 : vector<32xf32> to vector<1x32xf32>
    %cst_106 = arith.constant 1.280000e+02 : f32
    %297 = vector.broadcast %cst_106 : f32 to vector<1x32xf32>
    %298 = arith.divf %296, %297 : vector<1x32xf32>
    %299 = vector.broadcast %291 : vector<1x32xf32> to vector<128x32xf32>
    %300 = arith.subf %287, %299 : vector<128x32xf32>
    %cst_107 = arith.constant 9.99999974E-6 : f32
    %301 = vector.broadcast %cst_107 : f32 to vector<1x32xf32>
    %302 = arith.addf %298, %301 : vector<1x32xf32>
    %303 = math.rsqrt %302 : vector<1x32xf32>
    %304 = vector.broadcast %303 : vector<1x32xf32> to vector<128x32xf32>
    %305 = arith.mulf %300, %304 : vector<128x32xf32>
    %cst_108 = arith.constant 0.000000e+00 : f32
    %306 = vector.broadcast %cst_108 : f32 to vector<128x32xf32>
    %307 = arith.maximumf %305, %306 : vector<128x32xf32>
    %cst_109 = arith.constant dense<0.000000e+00> : vector<128x32xf32>
    %308 = tpu.matmul %280, %283, %cst_109 {dimension_numbers = #tpu.dot_dimension_numbers<[1], [0], [0], [1], [0, 0, 1, 1], [], []>} : vector<128x64xf32>, vector<64x32xf32>, vector<128x32xf32> -> vector<128x32xf32>
    %309 = vector.broadcast %284 : vector<1x32xf32> to vector<128x32xf32>
    %310 = arith.addf %308, %309 : vector<128x32xf32>
    %311 = arith.addf %307, %310 : vector<128x32xf32>
    %c0_110 = arith.constant 0 : index
    %c0_111 = arith.constant 0 : index
    %312 = vector.load %arg22[%c0_110, %c0_111] : memref<32x16xf32, #tpu.memory_space<vmem>>, vector<32x16xf32>
    %c0_112 = arith.constant 0 : index
    %c0_113 = arith.constant 0 : index
    %313 = vector.load %arg23[%c0_112, %c0_113] : memref<1x16xf32, #tpu.memory_space<vmem>>, vector<1x16xf32>
    %c0_114 = arith.constant 0 : index
    %c0_115 = arith.constant 0 : index
    %314 = vector.load %arg24[%c0_114, %c0_115] : memref<32x16xf32, #tpu.memory_space<vmem>>, vector<32x16xf32>
    %c0_116 = arith.constant 0 : index
    %c0_117 = arith.constant 0 : index
    %315 = vector.load %arg25[%c0_116, %c0_117] : memref<1x16xf32, #tpu.memory_space<vmem>>, vector<1x16xf32>
    %cst_118 = arith.constant dense<0.000000e+00> : vector<128x16xf32>
    %316 = tpu.matmul %311, %312, %cst_118 {dimension_numbers = #tpu.dot_dimension_numbers<[1], [0], [0], [1], [0, 0, 1, 1], [], []>} : vector<128x32xf32>, vector<32x16xf32>, vector<128x16xf32> -> vector<128x16xf32>
    %317 = vector.broadcast %313 : vector<1x16xf32> to vector<128x16xf32>
    %318 = arith.addf %316, %317 : vector<128x16xf32>
    %cst_119 = arith.constant dense<0.000000e+00> : vector<16xf32>
    %319 = vector.multi_reduction <add>, %318, %cst_119 [0] : vector<128x16xf32> to vector<16xf32>
    %320 = vector.shape_cast %319 : vector<16xf32> to vector<1x16xf32>
    %cst_120 = arith.constant 1.280000e+02 : f32
    %321 = vector.broadcast %cst_120 : f32 to vector<1x16xf32>
    %322 = arith.divf %320, %321 : vector<1x16xf32>
    %323 = vector.broadcast %322 : vector<1x16xf32> to vector<128x16xf32>
    %324 = arith.subf %318, %323 : vector<128x16xf32>
    %325 = arith.mulf %324, %324 : vector<128x16xf32>
    %cst_121 = arith.constant dense<0.000000e+00> : vector<16xf32>
    %326 = vector.multi_reduction <add>, %325, %cst_121 [0] : vector<128x16xf32> to vector<16xf32>
    %327 = vector.shape_cast %326 : vector<16xf32> to vector<1x16xf32>
    %cst_122 = arith.constant 1.280000e+02 : f32
    %328 = vector.broadcast %cst_122 : f32 to vector<1x16xf32>
    %329 = arith.divf %327, %328 : vector<1x16xf32>
    %330 = vector.broadcast %322 : vector<1x16xf32> to vector<128x16xf32>
    %331 = arith.subf %318, %330 : vector<128x16xf32>
    %cst_123 = arith.constant 9.99999974E-6 : f32
    %332 = vector.broadcast %cst_123 : f32 to vector<1x16xf32>
    %333 = arith.addf %329, %332 : vector<1x16xf32>
    %334 = math.rsqrt %333 : vector<1x16xf32>
    %335 = vector.broadcast %334 : vector<1x16xf32> to vector<128x16xf32>
    %336 = arith.mulf %331, %335 : vector<128x16xf32>
    %cst_124 = arith.constant 0.000000e+00 : f32
    %337 = vector.broadcast %cst_124 : f32 to vector<128x16xf32>
    %338 = arith.maximumf %336, %337 : vector<128x16xf32>
    %cst_125 = arith.constant dense<0.000000e+00> : vector<128x16xf32>
    %339 = tpu.matmul %311, %314, %cst_125 {dimension_numbers = #tpu.dot_dimension_numbers<[1], [0], [0], [1], [0, 0, 1, 1], [], []>} : vector<128x32xf32>, vector<32x16xf32>, vector<128x16xf32> -> vector<128x16xf32>
    %340 = vector.broadcast %315 : vector<1x16xf32> to vector<128x16xf32>
    %341 = arith.addf %339, %340 : vector<128x16xf32>
    %342 = arith.addf %338, %341 : vector<128x16xf32>
    %c0_126 = arith.constant 0 : index
    %c0_127 = arith.constant 0 : index
    %343 = vector.load %arg26[%c0_126, %c0_127] : memref<16x128xf32, #tpu.memory_space<vmem>>, vector<16x128xf32>
    %c0_128 = arith.constant 0 : index
    %c0_129 = arith.constant 0 : index
    %344 = vector.load %arg27[%c0_128, %c0_129] : memref<1x128xf32, #tpu.memory_space<vmem>>, vector<1x128xf32>
    %cst_130 = arith.constant dense<0.000000e+00> : vector<128x128xf32>
    %345 = tpu.matmul %342, %343, %cst_130 {dimension_numbers = #tpu.dot_dimension_numbers<[1], [0], [0], [1], [0, 0, 1, 1], [], []>} : vector<128x16xf32>, vector<16x128xf32>, vector<128x128xf32> -> vector<128x128xf32>
    %346 = vector.broadcast %344 : vector<1x128xf32> to vector<128x128xf32>
    %347 = arith.addf %345, %346 : vector<128x128xf32>
    %cst_131 = arith.constant dense<0.000000e+00> : vector<128xf32>
    %348 = vector.multi_reduction <add>, %347, %cst_131 [0] : vector<128x128xf32> to vector<128xf32>
    %349 = vector.shape_cast %348 : vector<128xf32> to vector<1x128xf32>
    %cst_132 = arith.constant 1.280000e+02 : f32
    %350 = vector.broadcast %cst_132 : f32 to vector<1x128xf32>
    %351 = arith.divf %349, %350 : vector<1x128xf32>
    %352 = vector.broadcast %351 : vector<1x128xf32> to vector<128x128xf32>
    %353 = arith.subf %347, %352 : vector<128x128xf32>
    %c0_133 = arith.constant 0 : index
    %c0_134 = arith.constant 0 : index
    %354 = vector.load %arg28[%c0_133, %c0_134] : memref<32x32xf32, #tpu.memory_space<vmem>>, vector<32x32xf32>
    %c0_135 = arith.constant 0 : index
    %c0_136 = arith.constant 0 : index
    %355 = vector.load %arg29[%c0_135, %c0_136] : memref<1x32xf32, #tpu.memory_space<vmem>>, vector<1x32xf32>
    %cst_137 = arith.constant dense<0.000000e+00> : vector<128x32xf32>
    %356 = tpu.matmul %311, %354, %cst_137 {dimension_numbers = #tpu.dot_dimension_numbers<[1], [0], [0], [1], [0, 0, 1, 1], [], []>} : vector<128x32xf32>, vector<32x32xf32>, vector<128x32xf32> -> vector<128x32xf32>
    %357 = vector.broadcast %355 : vector<1x32xf32> to vector<128x32xf32>
    %358 = arith.addf %356, %357 : vector<128x32xf32>
    %cst_138 = arith.constant 0.000000e+00 : f32
    %359 = vector.broadcast %cst_138 : f32 to vector<128x32xf32>
    %360 = arith.maximumf %358, %359 : vector<128x32xf32>
    %c0_139 = arith.constant 0 : index
    %c0_140 = arith.constant 0 : index
    %361 = vector.load %arg30[%c0_139, %c0_140] : memref<32x32xf32, #tpu.memory_space<vmem>>, vector<32x32xf32>
    %c0_141 = arith.constant 0 : index
    %c0_142 = arith.constant 0 : index
    %362 = vector.load %arg31[%c0_141, %c0_142] : memref<1x32xf32, #tpu.memory_space<vmem>>, vector<1x32xf32>
    %cst_143 = arith.constant dense<0.000000e+00> : vector<128x32xf32>
    %363 = tpu.matmul %360, %361, %cst_143 {dimension_numbers = #tpu.dot_dimension_numbers<[1], [0], [0], [1], [0, 0, 1, 1], [], []>} : vector<128x32xf32>, vector<32x32xf32>, vector<128x32xf32> -> vector<128x32xf32>
    %364 = vector.broadcast %362 : vector<1x32xf32> to vector<128x32xf32>
    %365 = arith.addf %363, %364 : vector<128x32xf32>
    %cst_144 = arith.constant 0.000000e+00 : f32
    %366 = vector.broadcast %cst_144 : f32 to vector<128x32xf32>
    %367 = arith.maximumf %365, %366 : vector<128x32xf32>
    %c0_145 = arith.constant 0 : index
    %c0_146 = arith.constant 0 : index
    %368 = vector.load %arg32[%c0_145, %c0_146] : memref<32x128xf32, #tpu.memory_space<vmem>>, vector<32x128xf32>
    %c0_147 = arith.constant 0 : index
    %c0_148 = arith.constant 0 : index
    %369 = vector.load %arg33[%c0_147, %c0_148] : memref<1x128xf32, #tpu.memory_space<vmem>>, vector<1x128xf32>
    %cst_149 = arith.constant dense<0.000000e+00> : vector<128x128xf32>
    %370 = tpu.matmul %367, %368, %cst_149 {dimension_numbers = #tpu.dot_dimension_numbers<[1], [0], [0], [1], [0, 0, 1, 1], [], []>} : vector<128x32xf32>, vector<32x128xf32>, vector<128x128xf32> -> vector<128x128xf32>
    %371 = vector.broadcast %369 : vector<1x128xf32> to vector<128x128xf32>
    %372 = arith.addf %370, %371 : vector<128x128xf32>
    %373 = arith.addf %353, %372 : vector<128x128xf32>
    %c0_150 = arith.constant 0 : index
    %c0_151 = arith.constant 0 : index
    %c0_152 = arith.constant 0 : index
    %374 = vector.load %arg34[%c0_150, %c0_151, %c0_152] : memref<1x128x128xf32, #tpu.memory_space<vmem>>, vector<1x128x128xf32>
    %375 = vector.shape_cast %374 : vector<1x128x128xf32> to vector<128x128xf32>
    %376 = vector.shape_cast %373 : vector<128x128xf32> to vector<1x128x128xf32>
    tpu.vector_store %arg34[%c0_150, %c0_151, %c0_152], %376 {strides = array<i32>} : memref<1x128x128xf32, #tpu.memory_space<vmem>>, vector<1x128x128xf32>,
    return
  }
  func.func @transform_0(%arg0: i32) -> (i32, i32, i32) {
    %c0_i32 = arith.constant 0 : i32
    %c0_i32_0 = arith.constant 0 : i32
    %c0_i32_1 = arith.constant 0 : i32
    return %arg0, %c0_i32, %c0_i32_0 : i32, i32, i32
  }
  func.func @transform_1(%arg0: i32) -> (i32, i32, i32) {
    %c0_i32 = arith.constant 0 : i32
    %c0_i32_0 = arith.constant 0 : i32
    %c0_i32_1 = arith.constant 0 : i32
    return %arg0, %c0_i32, %c0_i32_0 : i32, i32, i32
  }
  func.func @transform_2(%arg0: i32) -> (i32, i32, i32) {
    %c0_i32 = arith.constant 0 : i32
    %c0_i32_0 = arith.constant 0 : i32
    %c0_i32_1 = arith.constant 0 : i32
    return %arg0, %c0_i32, %c0_i32_0 : i32, i32, i32
  }
  func.func @transform_3(%arg0: i32) -> (i32, i32, i32) {
    %c0_i32 = arith.constant 0 : i32
    %c0_i32_0 = arith.constant 0 : i32
    %c0_i32_1 = arith.constant 0 : i32
    return %arg0, %c0_i32, %c0_i32_0 : i32, i32, i32
  }
  func.func @transform_4(%arg0: i32) -> (i32, i32, i32) {
    %c0_i32 = arith.constant 0 : i32
    %c0_i32_0 = arith.constant 0 : i32
    %c0_i32_1 = arith.constant 0 : i32
    return %arg0, %c0_i32, %c0_i32_0 : i32, i32, i32
  }
  func.func @transform_5(%arg0: i32) -> (i32, i32, i32) {
    %c0_i32 = arith.constant 0 : i32
    %c0_i32_0 = arith.constant 0 : i32
    %c0_i32_1 = arith.constant 0 : i32
    return %arg0, %c0_i32, %c0_i32_0 : i32, i32, i32
  }
  func.func @transform_6(%arg0: i32) -> (i32, i32, i32) {
    %c0_i32 = arith.constant 0 : i32
    %c0_i32_0 = arith.constant 0 : i32
    %c0_i32_1 = arith.constant 0 : i32
    return %arg0, %c0_i32, %c0_i32_0 : i32, i32, i32
  }
  func.func @transform_7(%arg0: i32) -> (i32, i32) {
    %c0_i32 = arith.constant 0 : i32
    %c0_i32_0 = arith.constant 0 : i32
    %c0_i32_1 = arith.constant 0 : i32
    return %c0_i32, %c0_i32_0 : i32, i32
  }
  func.func @transform_8(%arg0: i32) -> (i32, i32) {
    %c0_i32 = arith.constant 0 : i32
    %c0_i32_0 = arith.constant 0 : i32
    %c0_i32_1 = arith.constant 0 : i32
    return %c0_i32, %c0_i32_0 : i32, i32
  }
  func.func @transform_9(%arg0: i32) -> (i32, i32) {
    %c0_i32 = arith.constant 0 : i32
    %c0_i32_0 = arith.constant 0 : i32
    %c0_i32_1 = arith.constant 0 : i32
    return %c0_i32, %c0_i32_0 : i32, i32
  }
  func.func @transform_10(%arg0: i32) -> (i32, i32) {
    %c0_i32 = arith.constant 0 : i32
    %c0_i32_0 = arith.constant 0 : i32
    %c0_i32_1 = arith.constant 0 : i32
    return %c0_i32, %c0_i32_0 : i32, i32
  }
  func.func @transform_11(%arg0: i32) -> (i32, i32) {
    %c0_i32 = arith.constant 0 : i32
    %c0_i32_0 = arith.constant 0 : i32
    %c0_i32_1 = arith.constant 0 : i32
    return %c0_i32, %c0_i32_0 : i32, i32
  }
  func.func @transform_12(%arg0: i32) -> (i32, i32) {
    %c0_i32 = arith.constant 0 : i32
    %c0_i32_0 = arith.constant 0 : i32
    %c0_i32_1 = arith.constant 0 : i32
    return %c0_i32, %c0_i32_0 : i32, i32
  }
  func.func @transform_13(%arg0: i32) -> (i32, i32) {
    %c0_i32 = arith.constant 0 : i32
    %c0_i32_0 = arith.constant 0 : i32
    %c0_i32_1 = arith.constant 0 : i32
    return %c0_i32, %c0_i32_0 : i32, i32
  }
  func.func @transform_14(%arg0: i32) -> (i32, i32) {
    %c0_i32 = arith.constant 0 : i32
    %c0_i32_0 = arith.constant 0 : i32
    %c0_i32_1 = arith.constant 0 : i32
    return %c0_i32, %c0_i32_0 : i32, i32
  }
  func.func @transform_15(%arg0: i32) -> (i32, i32) {
    %c0_i32 = arith.constant 0 : i32
    %c0_i32_0 = arith.constant 0 : i32
    %c0_i32_1 = arith.constant 0 : i32
    return %c0_i32, %c0_i32_0 : i32, i32
  }
  func.func @transform_16(%arg0: i32) -> (i32, i32) {
    %c0_i32 = arith.constant 0 : i32
    %c0_i32_0 = arith.constant 0 : i32
    %c0_i32_1 = arith.constant 0 : i32
    return %c0_i32, %c0_i32_0 : i32, i32
  }
  func.func @transform_17(%arg0: i32) -> (i32, i32) {
    %c0_i32 = arith.constant 0 : i32
    %c0_i32_0 = arith.constant 0 : i32
    %c0_i32_1 = arith.constant 0 : i32
    return %c0_i32, %c0_i32_0 : i32, i32
  }
  func.func @transform_18(%arg0: i32) -> (i32, i32) {
    %c0_i32 = arith.constant 0 : i32
    %c0_i32_0 = arith.constant 0 : i32
    %c0_i32_1 = arith.constant 0 : i32
    return %c0_i32, %c0_i32_0 : i32, i32
  }
  func.func @transform_19(%arg0: i32) -> (i32, i32) {
    %c0_i32 = arith.constant 0 : i32
    %c0_i32_0 = arith.constant 0 : i32
    %c0_i32_1 = arith.constant 0 : i32
    return %c0_i32, %c0_i32_0 : i32, i32
  }
  func.func @transform_20(%arg0: i32) -> (i32, i32) {
    %c0_i32 = arith.constant 0 : i32
    %c0_i32_0 = arith.constant 0 : i32
    %c0_i32_1 = arith.constant 0 : i32
    return %c0_i32, %c0_i32_0 : i32, i32
  }
  func.func @transform_21(%arg0: i32) -> (i32, i32) {
    %c0_i32 = arith.constant 0 : i32
    %c0_i32_0 = arith.constant 0 : i32
    %c0_i32_1 = arith.constant 0 : i32
    return %c0_i32, %c0_i32_0 : i32, i32
  }
  func.func @transform_22(%arg0: i32) -> (i32, i32) {
    %c0_i32 = arith.constant 0 : i32
    %c0_i32_0 = arith.constant 0 : i32
    %c0_i32_1 = arith.constant 0 : i32
    return %c0_i32, %c0_i32_0 : i32, i32
  }
  func.func @transform_23(%arg0: i32) -> (i32, i32) {
    %c0_i32 = arith.constant 0 : i32
    %c0_i32_0 = arith.constant 0 : i32
    %c0_i32_1 = arith.constant 0 : i32
    return %c0_i32, %c0_i32_0 : i32, i32
  }
  func.func @transform_24(%arg0: i32) -> (i32, i32) {
    %c0_i32 = arith.constant 0 : i32
    %c0_i32_0 = arith.constant 0 : i32
    %c0_i32_1 = arith.constant 0 : i32
    return %c0_i32, %c0_i32_0 : i32, i32
  }
  func.func @transform_25(%arg0: i32) -> (i32, i32) {
    %c0_i32 = arith.constant 0 : i32
    %c0_i32_0 = arith.constant 0 : i32
    %c0_i32_1 = arith.constant 0 : i32
    return %c0_i32, %c0_i32_0 : i32, i32
  }
  func.func @transform_26(%arg0: i32) -> (i32, i32) {
    %c0_i32 = arith.constant 0 : i32
    %c0_i32_0 = arith.constant 0 : i32
    %c0_i32_1 = arith.constant 0 : i32
    return %c0_i32, %c0_i32_0 : i32, i32
  }
  func.func @transform_27(%arg0: i32) -> (i32, i32) {
    %c0_i32 = arith.constant 0 : i32
    %c0_i32_0 = arith.constant 0 : i32
    %c0_i32_1 = arith.constant 0 : i32
    return %c0_i32, %c0_i32_0 : i32, i32
  }
  func.func @transform_28(%arg0: i32) -> (i32, i32) {
    %c0_i32 = arith.constant 0 : i32
    %c0_i32_0 = arith.constant 0 : i32
    %c0_i32_1 = arith.constant 0 : i32
    return %c0_i32, %c0_i32_0 : i32, i32
  }
  func.func @transform_29(%arg0: i32) -> (i32, i32) {
    %c0_i32 = arith.constant 0 : i32
    %c0_i32_0 = arith.constant 0 : i32
    %c0_i32_1 = arith.constant 0 : i32
    return %c0_i32, %c0_i32_0 : i32, i32
  }
  func.func @transform_30(%arg0: i32) -> (i32, i32) {
    %c0_i32 = arith.constant 0 : i32
    %c0_i32_0 = arith.constant 0 : i32
    %c0_i32_1 = arith.constant 0 : i32
    return %c0_i32, %c0_i32_0 : i32, i32
  }
  func.func @transform_31(%arg0: i32) -> (i32, i32) {
    %c0_i32 = arith.constant 0 : i32
    %c0_i32_0 = arith.constant 0 : i32
    %c0_i32_1 = arith.constant 0 : i32
    return %c0_i32, %c0_i32_0 : i32, i32
  }
  func.func @transform_32(%arg0: i32) -> (i32, i32) {
    %c0_i32 = arith.constant 0 : i32
    %c0_i32_0 = arith.constant 0 : i32
    %c0_i32_1 = arith.constant 0 : i32
    return %c0_i32, %c0_i32_0 : i32, i32
  }
  func.func @transform_33(%arg0: i32) -> (i32, i32, i32) {
    %c0_i32 = arith.constant 0 : i32
    %c0_i32_0 = arith.constant 0 : i32
    %c0_i32_1 = arith.constant 0 : i32
    return %arg0, %c0_i32, %c0_i32_0 : i32, i32, i32
  }
}

</mosaic_0001>

<llo_original>
// kernel: tpu_custom_call.1
$region0: #{tpu_custom_call.1}
  #allocation0 [shape = 'u32[]', space=smem, size = 0x4, offset = 0x4, fixed_abs, tag = 'smem constant byte address 0x4 - core index']
  #allocation1 [shape = 'u32[72,128]{1,0:T(1,128)}', space=vmem, size = 0x9000, scoped, tag = 'internal scratch']
  %s0 = inlined_call_operand.smem [shape: u32[34], index: -1, kind: input, shape index: {}]
  %s1 = sld [smem:[%s0]]
  %s2 = scalar_lea.smem %s0, 1
  %s3 = sld [smem:[%s2]]
  %s4 = scalar_lea.smem %s0, 2
  %s5 = sld [smem:[%s4]]
  %s6 = scalar_lea.smem %s0, 3
  %s7 = sld [smem:[%s6]]
  %s8 = scalar_lea.smem %s0, 4
  %s9 = sld [smem:[%s8]]
  %s10 = scalar_lea.smem %s0, 5
  %s11 = sld [smem:[%s10]]
  %s12 = scalar_lea.smem %s0, 6
  %s13 = sld [smem:[%s12]]
  %s14 = scalar_lea.smem %s0, 7
  %s15 = sld [smem:[%s14]]
  %s16 = scalar_lea.smem %s0, 8
  %s17 = sld [smem:[%s16]]
  %s18 = scalar_lea.smem %s0, 9
  %s19 = sld [smem:[%s18]]
  %s20 = scalar_lea.smem %s0, 10
  %s21 = sld [smem:[%s20]]
  %s22 = scalar_lea.smem %s0, 11
  %s23 = sld [smem:[%s22]]
  %s24 = scalar_lea.smem %s0, 12
  %s25 = sld [smem:[%s24]]
  %s26 = scalar_lea.smem %s0, 13
  %s27 = sld [smem:[%s26]]
  %s28 = scalar_lea.smem %s0, 14
  %s29 = sld [smem:[%s28]]
  %s30 = scalar_lea.smem %s0, 15
  %s31 = sld [smem:[%s30]]
  %s32 = scalar_lea.smem %s0, 16
  %s33 = sld [smem:[%s32]]
  %s34 = scalar_lea.smem %s0, 17
  %s35 = sld [smem:[%s34]]
  %s36 = scalar_lea.smem %s0, 18
  %s37 = sld [smem:[%s36]]
  %s38 = scalar_lea.smem %s0, 19
  %s39 = sld [smem:[%s38]]
  %s40 = scalar_lea.smem %s0, 20
  %s41 = sld [smem:[%s40]]
  %s42 = scalar_lea.smem %s0, 21
  %s43 = sld [smem:[%s42]]
  %s44 = scalar_lea.smem %s0, 22
  %s45 = sld [smem:[%s44]]
  %s46 = scalar_lea.smem %s0, 23
  %s47 = sld [smem:[%s46]]
  %s48 = scalar_lea.smem %s0, 24
  %s49 = sld [smem:[%s48]]
  %s50 = scalar_lea.smem %s0, 25
  %s51 = sld [smem:[%s50]]
  %s52 = scalar_lea.smem %s0, 26
  %s53 = sld [smem:[%s52]]
  %s54 = scalar_lea.smem %s0, 27
  %s55 = sld [smem:[%s54]]
  %s56 = scalar_lea.smem %s0, 28
  %s57 = sld [smem:[%s56]]
  %s58 = scalar_lea.smem %s0, 29
  %s59 = sld [smem:[%s58]]
  %s60 = scalar_lea.smem %s0, 30
  %s61 = sld [smem:[%s60]]
  %s62 = scalar_lea.smem %s0, 31
  %s63 = sld [smem:[%s62]]
  %s64 = scalar_lea.smem %s0, 32
  %s65 = sld [smem:[%s64]]
  %s66 = scalar_lea.smem %s0, 33
  %s67 = sld [smem:[%s66]]
  %s68 = sld [smem:[#allocation0]]
  $region165: #{tpu_custom_call.1} parent=0
    _
  %s70 = ssub.s32 1, %s68
  %s71 = scalar_select 0, %s70, %s68
  $region1: #{tpu_custom_call.1} parent=0
    #allocation2 [shape = 'u8[131072]{0}', space=vmem, size = 0x20000, scoped, tag = 'output window, operand 0']
    #allocation3 [shape = 's32[2]{0}', space=sflag, size = 0x8, scoped, tag = 'scoped memory for tpu_custom_call.1']
    %72 = vsyncpa [#allocation3], 0
    %s73 = scalar_lea.sflag [#allocation3], 1
    %74 = vsyncpa %s73, 0
    loop: start=0, step=1, limit=4
    $region2: #{tpu_custom_call.1} parent=1 // loop_pre_header
      _
    $region3: #{tpu_custom_call.1} parent=1 // loop_header
      %s76 = sphi 0, %s80
      %p77 = scmp.ge.s32.totalorder %s76, 4
      %s86 = sphi 0, %s88
      %s89 = sphi 0, %s86
      %s90 = sphi 0, %s89
      %s106 = sphi 0, %s90
      %s112 = sphi 0, %s114
      %s115 = sphi 0, %s112
      %s116 = sphi 0, %s115
      %s132 = sphi 0, %s116
      %s138 = sphi 0, %s140
      %s141 = sphi 0, %s138
      %s142 = sphi 0, %s141
      %s158 = sphi 0, %s142
      %s164 = sphi 0, %s166
      %s167 = sphi 0, %s164
      %s168 = sphi 0, %s167
      %s184 = sphi 0, %s168
      %s190 = sphi 0, %s192
      %s193 = sphi 0, %s190
      %s194 = sphi 0, %s193
      %s210 = sphi 0, %s194
      %s216 = sphi 0, %s218
      %s219 = sphi 0, %s216
      %s220 = sphi 0, %s219
      %s236 = sphi 0, %s220
      %s242 = sphi 0, %s244
      %s245 = sphi 0, %s242
      %s246 = sphi 0, %s245
      %s262 = sphi 0, %s246
      %s266 = sphi 0, %s266
      %s268 = sphi 0, %s266
      %s269 = sphi 0, %s268
      %s283 = sphi 0, %s269
      %s287 = sphi 0, %s287
      %s289 = sphi 0, %s287
      %s290 = sphi 0, %s289
      %s304 = sphi 0, %s290
      %s308 = sphi 0, %s308
      %s310 = sphi 0, %s308
      %s311 = sphi 0, %s310
      %s325 = sphi 0, %s311
      %s329 = sphi 0, %s329
      %s331 = sphi 0, %s329
      %s332 = sphi 0, %s331
      %s346 = sphi 0, %s332
      %s350 = sphi 0, %s350
      %s352 = sphi 0, %s350
      %s353 = sphi 0, %s352
      %s367 = sphi 0, %s353
      %s371 = sphi 0, %s371
      %s373 = sphi 0, %s371
      %s374 = sphi 0, %s373
      %s388 = sphi 0, %s374
      %s392 = sphi 0, %s392
      %s394 = sphi 0, %s392
      %s395 = sphi 0, %s394
      %s409 = sphi 0, %s395
      %s413 = sphi 0, %s413
      %s415 = sphi 0, %s413
      %s416 = sphi 0, %s415
      %s430 = sphi 0, %s416
      %s434 = sphi 0, %s434
      %s436 = sphi 0, %s434
      %s437 = sphi 0, %s436
      %s451 = sphi 0, %s437
      %s455 = sphi 0, %s455
      %s457 = sphi 0, %s455
      %s458 = sphi 0, %s457
      %s472 = sphi 0, %s458
      %s476 = sphi 0, %s476
      %s478 = sphi 0, %s476
      %s479 = sphi 0, %s478
      %s493 = sphi 0, %s479
      %s497 = sphi 0, %s497
      %s499 = sphi 0, %s497
      %s500 = sphi 0, %s499
      %s514 = sphi 0, %s500
      %s518 = sphi 0, %s518
      %s520 = sphi 0, %s518
      %s521 = sphi 0, %s520
      %s535 = sphi 0, %s521
      %s539 = sphi 0, %s539
      %s541 = sphi 0, %s539
      %s542 = sphi 0, %s541
      %s556 = sphi 0, %s542
      %s560 = sphi 0, %s560
      %s562 = sphi 0, %s560
      %s563 = sphi 0, %s562
      %s577 = sphi 0, %s563
      %s581 = sphi 0, %s581
      %s583 = sphi 0, %s581
      %s584 = sphi 0, %s583
      %s598 = sphi 0, %s584
      %s602 = sphi 0, %s602
      %s604 = sphi 0, %s602
      %s605 = sphi 0, %s604
      %s619 = sphi 0, %s605
      %s623 = sphi 0, %s623
      %s625 = sphi 0, %s623
      %s626 = sphi 0, %s625
      %s640 = sphi 0, %s626
      %s644 = sphi 0, %s644
      %s646 = sphi 0, %s644
      %s647 = sphi 0, %s646
      %s661 = sphi 0, %s647
      %s665 = sphi 0, %s665
      %s667 = sphi 0, %s665
      %s668 = sphi 0, %s667
      %s682 = sphi 0, %s668
      %s686 = sphi 0, %s686
      %s688 = sphi 0, %s686
      %s689 = sphi 0, %s688
      %s703 = sphi 0, %s689
      %s707 = sphi 0, %s707
      %s709 = sphi 0, %s707
      %s710 = sphi 0, %s709
      %s724 = sphi 0, %s710
      %s728 = sphi 0, %s728
      %s730 = sphi 0, %s728
      %s731 = sphi 0, %s730
      %s745 = sphi 0, %s731
      %s749 = sphi 0, %s749
      %s751 = sphi 0, %s749
      %s752 = sphi 0, %s751
      %s766 = sphi 0, %s752
      %s770 = sphi 0, %s770
      %s772 = sphi 0, %s770
      %s773 = sphi 0, %s772
      %s787 = sphi 0, %s773
      %s791 = sphi 0, %s791
      %s793 = sphi 0, %s791
      %s794 = sphi 0, %s793
      %s808 = sphi 0, %s794
      %s814 = sphi 0, %s816
      %s817 = sphi 0, %s814
      %s818 = sphi 0, %s817
      %s834 = sphi 0, %s818
    $region4: #{tpu_custom_call.1} parent=1 // loop_header_branch
      %79 = sbr.rel (%p77) target = $region8
    $region5: #{tpu_custom_call.1} parent=1 // loop_body
      %s81 = ssub.s32 %s76, 1
      %s82 = ssub.s32 %s76, 2
      %s83 = sadd.s32 %s76, 1
      %s84 = ssub.s32 %s76, %s83
      %p85 = scmp.eq.s32.totalorder %s84, 0
      %s87 = sadd.s32 %s86, 1
      %s88 = scalar_select %p85, %s86, %s87
      %p91 = pneg %p85
      %p92 = scmp.eq.s32.totalorder %s76, 1
      %p93 = por %p91, %p92
      %p94 = scmp.ne.s32.totalorder %s86, %s89
      %p95 = scmp.eq.s32.totalorder %s76, 0
      %p96 = por %p94, %p95
      %p97 = scmp.ne.s32.totalorder %s86, %s89
      %p98 = scmp.eq.s32.totalorder %s81, 1
      %p99 = por %p97, %p98
      %p100 = scmp.ne.s32.totalorder %s89, %s90
      %p101 = scmp.eq.s32.totalorder %s81, 0
      %p102 = por %p100, %p101
      %p103 = scmp.ne.s32.totalorder %s89, %s90
      %p104 = scmp.eq.s32.totalorder %s82, 1
      %p105 = por %p103, %p104
      %p107 = scmp.ne.s32.totalorder %s90, %s106
      %p108 = scmp.eq.s32.totalorder %s82, 0
      %p109 = por %p107, %p108
      %s110 = ssub.s32 %s76, %s83
      %p111 = scmp.eq.s32.totalorder %s110, 0
      %s113 = sadd.s32 %s112, 1
      %s114 = scalar_select %p111, %s112, %s113
      %p117 = pneg %p111
      %p118 = scmp.eq.s32.totalorder %s76, 1
      %p119 = por %p117, %p118
      %p120 = scmp.ne.s32.totalorder %s112, %s115
      %p121 = scmp.eq.s32.totalorder %s76, 0
      %p122 = por %p120, %p121
      %p123 = scmp.ne.s32.totalorder %s112, %s115
      %p124 = scmp.eq.s32.totalorder %s81, 1
      %p125 = por %p123, %p124
      %p126 = scmp.ne.s32.totalorder %s115, %s116
      %p127 = scmp.eq.s32.totalorder %s81, 0
      %p128 = por %p126, %p127
      %p129 = scmp.ne.s32.totalorder %s115, %s116
      %p130 = scmp.eq.s32.totalorder %s82, 1
      %p131 = por %p129, %p130
      %p133 = scmp.ne.s32.totalorder %s116, %s132
      %p134 = scmp.eq.s32.totalorder %s82, 0
      %p135 = por %p133, %p134
      %s136 = ssub.s32 %s76, %s83
      %p137 = scmp.eq.s32.totalorder %s136, 0
      %s139 = sadd.s32 %s138, 1
      %s140 = scalar_select %p137, %s138, %s139
      %p143 = pneg %p137
      %p144 = scmp.eq.s32.totalorder %s76, 1
      %p145 = por %p143, %p144
      %p146 = scmp.ne.s32.totalorder %s138, %s141
      %p147 = scmp.eq.s32.totalorder %s76, 0
      %p148 = por %p146, %p147
      %p149 = scmp.ne.s32.totalorder %s138, %s141
      %p150 = scmp.eq.s32.totalorder %s81, 1
      %p151 = por %p149, %p150
      %p152 = scmp.ne.s32.totalorder %s141, %s142
      %p153 = scmp.eq.s32.totalorder %s81, 0
      %p154 = por %p152, %p153
      %p155 = scmp.ne.s32.totalorder %s141, %s142
      %p156 = scmp.eq.s32.totalorder %s82, 1
      %p157 = por %p155, %p156
      %p159 = scmp.ne.s32.totalorder %s142, %s158
      %p160 = scmp.eq.s32.totalorder %s82, 0
      %p161 = por %p159, %p160
      %s162 = ssub.s32 %s76, %s83
      %p163 = scmp.eq.s32.totalorder %s162, 0
      %s165 = sadd.s32 %s164, 1
      %s166 = scalar_select %p163, %s164, %s165
      %p169 = pneg %p163
      %p170 = scmp.eq.s32.totalorder %s76, 1
      %p171 = por %p169, %p170
      %p172 = scmp.ne.s32.totalorder %s164, %s167
      %p173 = scmp.eq.s32.totalorder %s76, 0
      %p174 = por %p172, %p173
      %p175 = scmp.ne.s32.totalorder %s164, %s167
      %p176 = scmp.eq.s32.totalorder %s81, 1
      %p177 = por %p175, %p176
      %p178 = scmp.ne.s32.totalorder %s167, %s168
      %p179 = scmp.eq.s32.totalorder %s81, 0
      %p180 = por %p178, %p179
      %p181 = scmp.ne.s32.totalorder %s167, %s168
      %p182 = scmp.eq.s32.totalorder %s82, 1
      %p183 = por %p181, %p182
      %p185 = scmp.ne.s32.totalorder %s168, %s184
      %p186 = scmp.eq.s32.totalorder %s82, 0
      %p187 = por %p185, %p186
      %s188 = ssub.s32 %s76, %s83
      %p189 = scmp.eq.s32.totalorder %s188, 0
      %s191 = sadd.s32 %s190, 1
      %s192 = scalar_select %p189, %s190, %s191
      %p195 = pneg %p189
      %p196 = scmp.eq.s32.totalorder %s76, 1
      %p197 = por %p195, %p196
      %p198 = scmp.ne.s32.totalorder %s190, %s193
      %p199 = scmp.eq.s32.totalorder %s76, 0
      %p200 = por %p198, %p199
      %p201 = scmp.ne.s32.totalorder %s190, %s193
      %p202 = scmp.eq.s32.totalorder %s81, 1
      %p203 = por %p201, %p202
      %p204 = scmp.ne.s32.totalorder %s193, %s194
      %p205 = scmp.eq.s32.totalorder %s81, 0
      %p206 = por %p204, %p205
      %p207 = scmp.ne.s32.totalorder %s193, %s194
      %p208 = scmp.eq.s32.totalorder %s82, 1
      %p209 = por %p207, %p208
      %p211 = scmp.ne.s32.totalorder %s194, %s210
      %p212 = scmp.eq.s32.totalorder %s82, 0
      %p213 = por %p211, %p212
      %s214 = ssub.s32 %s76, %s83
      %p215 = scmp.eq.s32.totalorder %s214, 0
      %s217 = sadd.s32 %s216, 1
      %s218 = scalar_select %p215, %s216, %s217
      %p221 = pneg %p215
      %p222 = scmp.eq.s32.totalorder %s76, 1
      %p223 = por %p221, %p222
      %p224 = scmp.ne.s32.totalorder %s216, %s219
      %p225 = scmp.eq.s32.totalorder %s76, 0
      %p226 = por %p224, %p225
      %p227 = scmp.ne.s32.totalorder %s216, %s219
      %p228 = scmp.eq.s32.totalorder %s81, 1
      %p229 = por %p227, %p228
      %p230 = scmp.ne.s32.totalorder %s219, %s220
      %p231 = scmp.eq.s32.totalorder %s81, 0
      %p232 = por %p230, %p231
      %p233 = scmp.ne.s32.totalorder %s219, %s220
      %p234 = scmp.eq.s32.totalorder %s82, 1
      %p235 = por %p233, %p234
      %p237 = scmp.ne.s32.totalorder %s220, %s236
      %p238 = scmp.eq.s32.totalorder %s82, 0
      %p239 = por %p237, %p238
      %s240 = ssub.s32 %s76, %s83
      %p241 = scmp.eq.s32.totalorder %s240, 0
      %s243 = sadd.s32 %s242, 1
      %s244 = scalar_select %p241, %s242, %s243
      %p247 = pneg %p241
      %p248 = scmp.eq.s32.totalorder %s76, 1
      %p249 = por %p247, %p248
      %p250 = scmp.ne.s32.totalorder %s242, %s245
      %p251 = scmp.eq.s32.totalorder %s76, 0
      %p252 = por %p250, %p251
      %p253 = scmp.ne.s32.totalorder %s242, %s245
      %p254 = scmp.eq.s32.totalorder %s81, 1
      %p255 = por %p253, %p254
      %p256 = scmp.ne.s32.totalorder %s245, %s246
      %p257 = scmp.eq.s32.totalorder %s81, 0
      %p258 = por %p256, %p257
      %p259 = scmp.ne.s32.totalorder %s245, %s246
      %p260 = scmp.eq.s32.totalorder %s82, 1
      %p261 = por %p259, %p260
      %p263 = scmp.ne.s32.totalorder %s246, %s262
      %p264 = scmp.eq.s32.totalorder %s82, 0
      %p265 = por %p263, %p264
      %s267 = sadd.s32 %s266, 1
      %p270 = scmp.eq.s32.totalorder %s76, 1
      %p271 = scmp.ne.s32.totalorder %s266, %s268
      %p272 = scmp.eq.s32.totalorder %s76, 0
      %p273 = por %p271, %p272
      %p274 = scmp.ne.s32.totalorder %s266, %s268
      %p275 = scmp.eq.s32.totalorder %s81, 1
      %p276 = por %p274, %p275
      %p277 = scmp.ne.s32.totalorder %s268, %s269
      %p278 = scmp.eq.s32.totalorder %s81, 0
      %p279 = por %p277, %p278
      %p280 = scmp.ne.s32.totalorder %s268, %s269
      %p281 = scmp.eq.s32.totalorder %s82, 1
      %p282 = por %p280, %p281
      %p284 = scmp.ne.s32.totalorder %s269, %s283
      %p285 = scmp.eq.s32.totalorder %s82, 0
      %p286 = por %p284, %p285
      %s288 = sadd.s32 %s287, 1
      %p291 = scmp.eq.s32.totalorder %s76, 1
      %p292 = scmp.ne.s32.totalorder %s287, %s289
      %p293 = scmp.eq.s32.totalorder %s76, 0
      %p294 = por %p292, %p293
      %p295 = scmp.ne.s32.totalorder %s287, %s289
      %p296 = scmp.eq.s32.totalorder %s81, 1
      %p297 = por %p295, %p296
      %p298 = scmp.ne.s32.totalorder %s289, %s290
      %p299 = scmp.eq.s32.totalorder %s81, 0
      %p300 = por %p298, %p299
      %p301 = scmp.ne.s32.totalorder %s289, %s290
      %p302 = scmp.eq.s32.totalorder %s82, 1
      %p303 = por %p301, %p302
      %p305 = scmp.ne.s32.totalorder %s290, %s304
      %p306 = scmp.eq.s32.totalorder %s82, 0
      %p307 = por %p305, %p306
      %s309 = sadd.s32 %s308, 1
      %p312 = scmp.eq.s32.totalorder %s76, 1
      %p313 = scmp.ne.s32.totalorder %s308, %s310
      %p314 = scmp.eq.s32.totalorder %s76, 0
      %p315 = por %p313, %p314
      %p316 = scmp.ne.s32.totalorder %s308, %s310
      %p317 = scmp.eq.s32.totalorder %s81, 1
      %p318 = por %p316, %p317
      %p319 = scmp.ne.s32.totalorder %s310, %s311
      %p320 = scmp.eq.s32.totalorder %s81, 0
      %p321 = por %p319, %p320
      %p322 = scmp.ne.s32.totalorder %s310, %s311
      %p323 = scmp.eq.s32.totalorder %s82, 1
      %p324 = por %p322, %p323
      %p326 = scmp.ne.s32.totalorder %s311, %s325
      %p327 = scmp.eq.s32.totalorder %s82, 0
      %p328 = por %p326, %p327
      %s330 = sadd.s32 %s329, 1
      %p333 = scmp.eq.s32.totalorder %s76, 1
      %p334 = scmp.ne.s32.totalorder %s329, %s331
      %p335 = scmp.eq.s32.totalorder %s76, 0
      %p336 = por %p334, %p335
      %p337 = scmp.ne.s32.totalorder %s329, %s331
      %p338 = scmp.eq.s32.totalorder %s81, 1
      %p339 = por %p337, %p338
      %p340 = scmp.ne.s32.totalorder %s331, %s332
      %p341 = scmp.eq.s32.totalorder %s81, 0
      %p342 = por %p340, %p341
      %p343 = scmp.ne.s32.totalorder %s331, %s332
      %p344 = scmp.eq.s32.totalorder %s82, 1
      %p345 = por %p343, %p344
      %p347 = scmp.ne.s32.totalorder %s332, %s346
      %p348 = scmp.eq.s32.totalorder %s82, 0
      %p349 = por %p347, %p348
      %s351 = sadd.s32 %s350, 1
      %p354 = scmp.eq.s32.totalorder %s76, 1
      %p355 = scmp.ne.s32.totalorder %s350, %s352
      %p356 = scmp.eq.s32.totalorder %s76, 0
      %p357 = por %p355, %p356
      %p358 = scmp.ne.s32.totalorder %s350, %s352
      %p359 = scmp.eq.s32.totalorder %s81, 1
      %p360 = por %p358, %p359
      %p361 = scmp.ne.s32.totalorder %s352, %s353
      %p362 = scmp.eq.s32.totalorder %s81, 0
      %p363 = por %p361, %p362
      %p364 = scmp.ne.s32.totalorder %s352, %s353
      %p365 = scmp.eq.s32.totalorder %s82, 1
      %p366 = por %p364, %p365
      %p368 = scmp.ne.s32.totalorder %s353, %s367
      %p369 = scmp.eq.s32.totalorder %s82, 0
      %p370 = por %p368, %p369
      %s372 = sadd.s32 %s371, 1
      %p375 = scmp.eq.s32.totalorder %s76, 1
      %p376 = scmp.ne.s32.totalorder %s371, %s373
      %p377 = scmp.eq.s32.totalorder %s76, 0
      %p378 = por %p376, %p377
      %p379 = scmp.ne.s32.totalorder %s371, %s373
      %p380 = scmp.eq.s32.totalorder %s81, 1
      %p381 = por %p379, %p380
      %p382 = scmp.ne.s32.totalorder %s373, %s374
      %p383 = scmp.eq.s32.totalorder %s81, 0
      %p384 = por %p382, %p383
      %p385 = scmp.ne.s32.totalorder %s373, %s374
      %p386 = scmp.eq.s32.totalorder %s82, 1
      %p387 = por %p385, %p386
      %p389 = scmp.ne.s32.totalorder %s374, %s388
      %p390 = scmp.eq.s32.totalorder %s82, 0
      %p391 = por %p389, %p390
      %s393 = sadd.s32 %s392, 1
      %p396 = scmp.eq.s32.totalorder %s76, 1
      %p397 = scmp.ne.s32.totalorder %s392, %s394
      %p398 = scmp.eq.s32.totalorder %s76, 0
      %p399 = por %p397, %p398
      %p400 = scmp.ne.s32.totalorder %s392, %s394
      %p401 = scmp.eq.s32.totalorder %s81, 1
      %p402 = por %p400, %p401
      %p403 = scmp.ne.s32.totalorder %s394, %s395
      %p404 = scmp.eq.s32.totalorder %s81, 0
      %p405 = por %p403, %p404
      %p406 = scmp.ne.s32.totalorder %s394, %s395
      %p407 = scmp.eq.s32.totalorder %s82, 1
      %p408 = por %p406, %p407
      %p410 = scmp.ne.s32.totalorder %s395, %s409
      %p411 = scmp.eq.s32.totalorder %s82, 0
      %p412 = por %p410, %p411
      %s414 = sadd.s32 %s413, 1
      %p417 = scmp.eq.s32.totalorder %s76, 1
      %p418 = scmp.ne.s32.totalorder %s413, %s415
      %p419 = scmp.eq.s32.totalorder %s76, 0
      %p420 = por %p418, %p419
      %p421 = scmp.ne.s32.totalorder %s413, %s415
      %p422 = scmp.eq.s32.totalorder %s81, 1
      %p423 = por %p421, %p422
      %p424 = scmp.ne.s32.totalorder %s415, %s416
      %p425 = scmp.eq.s32.totalorder %s81, 0
      %p426 = por %p424, %p425
      %p427 = scmp.ne.s32.totalorder %s415, %s416
      %p428 = scmp.eq.s32.totalorder %s82, 1
      %p429 = por %p427, %p428
      %p431 = scmp.ne.s32.totalorder %s416, %s430
      %p432 = scmp.eq.s32.totalorder %s82, 0
      %p433 = por %p431, %p432
      %s435 = sadd.s32 %s434, 1
      %p438 = scmp.eq.s32.totalorder %s76, 1
      %p439 = scmp.ne.s32.totalorder %s434, %s436
      %p440 = scmp.eq.s32.totalorder %s76, 0
      %p441 = por %p439, %p440
      %p442 = scmp.ne.s32.totalorder %s434, %s436
      %p443 = scmp.eq.s32.totalorder %s81, 1
      %p444 = por %p442, %p443
      %p445 = scmp.ne.s32.totalorder %s436, %s437
      %p446 = scmp.eq.s32.totalorder %s81, 0
      %p447 = por %p445, %p446
      %p448 = scmp.ne.s32.totalorder %s436, %s437
      %p449 = scmp.eq.s32.totalorder %s82, 1
      %p450 = por %p448, %p449
      %p452 = scmp.ne.s32.totalorder %s437, %s451
      %p453 = scmp.eq.s32.totalorder %s82, 0
      %p454 = por %p452, %p453
      %s456 = sadd.s32 %s455, 1
      %p459 = scmp.eq.s32.totalorder %s76, 1
      %p460 = scmp.ne.s32.totalorder %s455, %s457
      %p461 = scmp.eq.s32.totalorder %s76, 0
      %p462 = por %p460, %p461
      %p463 = scmp.ne.s32.totalorder %s455, %s457
      %p464 = scmp.eq.s32.totalorder %s81, 1
      %p465 = por %p463, %p464
      %p466 = scmp.ne.s32.totalorder %s457, %s458
      %p467 = scmp.eq.s32.totalorder %s81, 0
      %p468 = por %p466, %p467
      %p469 = scmp.ne.s32.totalorder %s457, %s458
      %p470 = scmp.eq.s32.totalorder %s82, 1
      %p471 = por %p469, %p470
      %p473 = scmp.ne.s32.totalorder %s458, %s472
      %p474 = scmp.eq.s32.totalorder %s82, 0
      %p475 = por %p473, %p474
      %s477 = sadd.s32 %s476, 1
      %p480 = scmp.eq.s32.totalorder %s76, 1
      %p481 = scmp.ne.s32.totalorder %s476, %s478
      %p482 = scmp.eq.s32.totalorder %s76, 0
      %p483 = por %p481, %p482
      %p484 = scmp.ne.s32.totalorder %s476, %s478
      %p485 = scmp.eq.s32.totalorder %s81, 1
      %p486 = por %p484, %p485
      %p487 = scmp.ne.s32.totalorder %s478, %s479
      %p488 = scmp.eq.s32.totalorder %s81, 0
      %p489 = por %p487, %p488
      %p490 = scmp.ne.s32.totalorder %s478, %s479
      %p491 = scmp.eq.s32.totalorder %s82, 1
      %p492 = por %p490, %p491
      %p494 = scmp.ne.s32.totalorder %s479, %s493
      %p495 = scmp.eq.s32.totalorder %s82, 0
      %p496 = por %p494, %p495
      %s498 = sadd.s32 %s497, 1
      %p501 = scmp.eq.s32.totalorder %s76, 1
      %p502 = scmp.ne.s32.totalorder %s497, %s499
      %p503 = scmp.eq.s32.totalorder %s76, 0
      %p504 = por %p502, %p503
      %p505 = scmp.ne.s32.totalorder %s497, %s499
      %p506 = scmp.eq.s32.totalorder %s81, 1
      %p507 = por %p505, %p506
      %p508 = scmp.ne.s32.totalorder %s499, %s500
      %p509 = scmp.eq.s32.totalorder %s81, 0
      %p510 = por %p508, %p509
      %p511 = scmp.ne.s32.totalorder %s499, %s500
      %p512 = scmp.eq.s32.totalorder %s82, 1
      %p513 = por %p511, %p512
      %p515 = scmp.ne.s32.totalorder %s500, %s514
      %p516 = scmp.eq.s32.totalorder %s82, 0
      %p517 = por %p515, %p516
      %s519 = sadd.s32 %s518, 1
      %p522 = scmp.eq.s32.totalorder %s76, 1
      %p523 = scmp.ne.s32.totalorder %s518, %s520
      %p524 = scmp.eq.s32.totalorder %s76, 0
      %p525 = por %p523, %p524
      %p526 = scmp.ne.s32.totalorder %s518, %s520
      %p527 = scmp.eq.s32.totalorder %s81, 1
      %p528 = por %p526, %p527
      %p529 = scmp.ne.s32.totalorder %s520, %s521
      %p530 = scmp.eq.s32.totalorder %s81, 0
      %p531 = por %p529, %p530
      %p532 = scmp.ne.s32.totalorder %s520, %s521
      %p533 = scmp.eq.s32.totalorder %s82, 1
      %p534 = por %p532, %p533
      %p536 = scmp.ne.s32.totalorder %s521, %s535
      %p537 = scmp.eq.s32.totalorder %s82, 0
      %p538 = por %p536, %p537
      %s540 = sadd.s32 %s539, 1
      %p543 = scmp.eq.s32.totalorder %s76, 1
      %p544 = scmp.ne.s32.totalorder %s539, %s541
      %p545 = scmp.eq.s32.totalorder %s76, 0
      %p546 = por %p544, %p545
      %p547 = scmp.ne.s32.totalorder %s539, %s541
      %p548 = scmp.eq.s32.totalorder %s81, 1
      %p549 = por %p547, %p548
      %p550 = scmp.ne.s32.totalorder %s541, %s542
      %p551 = scmp.eq.s32.totalorder %s81, 0
      %p552 = por %p550, %p551
      %p553 = scmp.ne.s32.totalorder %s541, %s542
      %p554 = scmp.eq.s32.totalorder %s82, 1
      %p555 = por %p553, %p554
      %p557 = scmp.ne.s32.totalorder %s542, %s556
      %p558 = scmp.eq.s32.totalorder %s82, 0
      %p559 = por %p557, %p558
      %s561 = sadd.s32 %s560, 1
      %p564 = scmp.eq.s32.totalorder %s76, 1
      %p565 = scmp.ne.s32.totalorder %s560, %s562
      %p566 = scmp.eq.s32.totalorder %s76, 0
      %p567 = por %p565, %p566
      %p568 = scmp.ne.s32.totalorder %s560, %s562
      %p569 = scmp.eq.s32.totalorder %s81, 1
      %p570 = por %p568, %p569
      %p571 = scmp.ne.s32.totalorder %s562, %s563
      %p572 = scmp.eq.s32.totalorder %s81, 0
      %p573 = por %p571, %p572
      %p574 = scmp.ne.s32.totalorder %s562, %s563
      %p575 = scmp.eq.s32.totalorder %s82, 1
      %p576 = por %p574, %p575
      %p578 = scmp.ne.s32.totalorder %s563, %s577
      %p579 = scmp.eq.s32.totalorder %s82, 0
      %p580 = por %p578, %p579
      %s582 = sadd.s32 %s581, 1
      %p585 = scmp.eq.s32.totalorder %s76, 1
      %p586 = scmp.ne.s32.totalorder %s581, %s583
      %p587 = scmp.eq.s32.totalorder %s76, 0
      %p588 = por %p586, %p587
      %p589 = scmp.ne.s32.totalorder %s581, %s583
      %p590 = scmp.eq.s32.totalorder %s81, 1
      %p591 = por %p589, %p590
      %p592 = scmp.ne.s32.totalorder %s583, %s584
      %p593 = scmp.eq.s32.totalorder %s81, 0
      %p594 = por %p592, %p593
      %p595 = scmp.ne.s32.totalorder %s583, %s584
      %p596 = scmp.eq.s32.totalorder %s82, 1
      %p597 = por %p595, %p596
      %p599 = scmp.ne.s32.totalorder %s584, %s598
      %p600 = scmp.eq.s32.totalorder %s82, 0
      %p601 = por %p599, %p600
      %s603 = sadd.s32 %s602, 1
      %p606 = scmp.eq.s32.totalorder %s76, 1
      %p607 = scmp.ne.s32.totalorder %s602, %s604
      %p608 = scmp.eq.s32.totalorder %s76, 0
      %p609 = por %p607, %p608
      %p610 = scmp.ne.s32.totalorder %s602, %s604
      %p611 = scmp.eq.s32.totalorder %s81, 1
      %p612 = por %p610, %p611
      %p613 = scmp.ne.s32.totalorder %s604, %s605
      %p614 = scmp.eq.s32.totalorder %s81, 0
      %p615 = por %p613, %p614
      %p616 = scmp.ne.s32.totalorder %s604, %s605
      %p617 = scmp.eq.s32.totalorder %s82, 1
      %p618 = por %p616, %p617
      %p620 = scmp.ne.s32.totalorder %s605, %s619
      %p621 = scmp.eq.s32.totalorder %s82, 0
      %p622 = por %p620, %p621
      %s624 = sadd.s32 %s623, 1
      %p627 = scmp.eq.s32.totalorder %s76, 1
      %p628 = scmp.ne.s32.totalorder %s623, %s625
      %p629 = scmp.eq.s32.totalorder %s76, 0
      %p630 = por %p628, %p629
      %p631 = scmp.ne.s32.totalorder %s623, %s625
      %p632 = scmp.eq.s32.totalorder %s81, 1
      %p633 = por %p631, %p632
      %p634 = scmp.ne.s32.totalorder %s625, %s626
      %p635 = scmp.eq.s32.totalorder %s81, 0
      %p636 = por %p634, %p635
      %p637 = scmp.ne.s32.totalorder %s625, %s626
      %p638 = scmp.eq.s32.totalorder %s82, 1
      %p639 = por %p637, %p638
      %p641 = scmp.ne.s32.totalorder %s626, %s640
      %p642 = scmp.eq.s32.totalorder %s82, 0
      %p643 = por %p641, %p642
      %s645 = sadd.s32 %s644, 1
      %p648 = scmp.eq.s32.totalorder %s76, 1
      %p649 = scmp.ne.s32.totalorder %s644, %s646
      %p650 = scmp.eq.s32.totalorder %s76, 0
      %p651 = por %p649, %p650
      %p652 = scmp.ne.s32.totalorder %s644, %s646
      %p653 = scmp.eq.s32.totalorder %s81, 1
      %p654 = por %p652, %p653
      %p655 = scmp.ne.s32.totalorder %s646, %s647
      %p656 = scmp.eq.s32.totalorder %s81, 0
      %p657 = por %p655, %p656
      %p658 = scmp.ne.s32.totalorder %s646, %s647
      %p659 = scmp.eq.s32.totalorder %s82, 1
      %p660 = por %p658, %p659
      %p662 = scmp.ne.s32.totalorder %s647, %s661
      %p663 = scmp.eq.s32.totalorder %s82, 0
      %p664 = por %p662, %p663
      %s666 = sadd.s32 %s665, 1
      %p669 = scmp.eq.s32.totalorder %s76, 1
      %p670 = scmp.ne.s32.totalorder %s665, %s667
      %p671 = scmp.eq.s32.totalorder %s76, 0
      %p672 = por %p670, %p671
      %p673 = scmp.ne.s32.totalorder %s665, %s667
      %p674 = scmp.eq.s32.totalorder %s81, 1
      %p675 = por %p673, %p674
      %p676 = scmp.ne.s32.totalorder %s667, %s668
      %p677 = scmp.eq.s32.totalorder %s81, 0
      %p678 = por %p676, %p677
      %p679 = scmp.ne.s32.totalorder %s667, %s668
      %p680 = scmp.eq.s32.totalorder %s82, 1
      %p681 = por %p679, %p680
      %p683 = scmp.ne.s32.totalorder %s668, %s682
      %p684 = scmp.eq.s32.totalorder %s82, 0
      %p685 = por %p683, %p684
      %s687 = sadd.s32 %s686, 1
      %p690 = scmp.eq.s32.totalorder %s76, 1
      %p691 = scmp.ne.s32.totalorder %s686, %s688
      %p692 = scmp.eq.s32.totalorder %s76, 0
      %p693 = por %p691, %p692
      %p694 = scmp.ne.s32.totalorder %s686, %s688
      %p695 = scmp.eq.s32.totalorder %s81, 1
      %p696 = por %p694, %p695
      %p697 = scmp.ne.s32.totalorder %s688, %s689
      %p698 = scmp.eq.s32.totalorder %s81, 0
      %p699 = por %p697, %p698
      %p700 = scmp.ne.s32.totalorder %s688, %s689
      %p701 = scmp.eq.s32.totalorder %s82, 1
      %p702 = por %p700, %p701
      %p704 = scmp.ne.s32.totalorder %s689, %s703
      %p705 = scmp.eq.s32.totalorder %s82, 0
      %p706 = por %p704, %p705
      %s708 = sadd.s32 %s707, 1
      %p711 = scmp.eq.s32.totalorder %s76, 1
      %p712 = scmp.ne.s32.totalorder %s707, %s709
      %p713 = scmp.eq.s32.totalorder %s76, 0
      %p714 = por %p712, %p713
      %p715 = scmp.ne.s32.totalorder %s707, %s709
      %p716 = scmp.eq.s32.totalorder %s81, 1
      %p717 = por %p715, %p716
      %p718 = scmp.ne.s32.totalorder %s709, %s710
      %p719 = scmp.eq.s32.totalorder %s81, 0
      %p720 = por %p718, %p719
      %p721 = scmp.ne.s32.totalorder %s709, %s710
      %p722 = scmp.eq.s32.totalorder %s82, 1
      %p723 = por %p721, %p722
      %p725 = scmp.ne.s32.totalorder %s710, %s724
      %p726 = scmp.eq.s32.totalorder %s82, 0
      %p727 = por %p725, %p726
      %s729 = sadd.s32 %s728, 1
      %p732 = scmp.eq.s32.totalorder %s76, 1
      %p733 = scmp.ne.s32.totalorder %s728, %s730
      %p734 = scmp.eq.s32.totalorder %s76, 0
      %p735 = por %p733, %p734
      %p736 = scmp.ne.s32.totalorder %s728, %s730
      %p737 = scmp.eq.s32.totalorder %s81, 1
      %p738 = por %p736, %p737
      %p739 = scmp.ne.s32.totalorder %s730, %s731
      %p740 = scmp.eq.s32.totalorder %s81, 0
      %p741 = por %p739, %p740
      %p742 = scmp.ne.s32.totalorder %s730, %s731
      %p743 = scmp.eq.s32.totalorder %s82, 1
      %p744 = por %p742, %p743
      %p746 = scmp.ne.s32.totalorder %s731, %s745
      %p747 = scmp.eq.s32.totalorder %s82, 0
      %p748 = por %p746, %p747
      %s750 = sadd.s32 %s749, 1
      %p753 = scmp.eq.s32.totalorder %s76, 1
      %p754 = scmp.ne.s32.totalorder %s749, %s751
      %p755 = scmp.eq.s32.totalorder %s76, 0
      %p756 = por %p754, %p755
      %p757 = scmp.ne.s32.totalorder %s749, %s751
      %p758 = scmp.eq.s32.totalorder %s81, 1
      %p759 = por %p757, %p758
      %p760 = scmp.ne.s32.totalorder %s751, %s752
      %p761 = scmp.eq.s32.totalorder %s81, 0
      %p762 = por %p760, %p761
      %p763 = scmp.ne.s32.totalorder %s751, %s752
      %p764 = scmp.eq.s32.totalorder %s82, 1
      %p765 = por %p763, %p764
      %p767 = scmp.ne.s32.totalorder %s752, %s766
      %p768 = scmp.eq.s32.totalorder %s82, 0
      %p769 = por %p767, %p768
      %s771 = sadd.s32 %s770, 1
      %p774 = scmp.eq.s32.totalorder %s76, 1
      %p775 = scmp.ne.s32.totalorder %s770, %s772
      %p776 = scmp.eq.s32.totalorder %s76, 0
      %p777 = por %p775, %p776
      %p778 = scmp.ne.s32.totalorder %s770, %s772
      %p779 = scmp.eq.s32.totalorder %s81, 1
      %p780 = por %p778, %p779
      %p781 = scmp.ne.s32.totalorder %s772, %s773
      %p782 = scmp.eq.s32.totalorder %s81, 0
      %p783 = por %p781, %p782
      %p784 = scmp.ne.s32.totalorder %s772, %s773
      %p785 = scmp.eq.s32.totalorder %s82, 1
      %p786 = por %p784, %p785
      %p788 = scmp.ne.s32.totalorder %s773, %s787
      %p789 = scmp.eq.s32.totalorder %s82, 0
      %p790 = por %p788, %p789
      %s792 = sadd.s32 %s791, 1
      %p795 = scmp.eq.s32.totalorder %s76, 1
      %p796 = scmp.ne.s32.totalorder %s791, %s793
      %p797 = scmp.eq.s32.totalorder %s76, 0
      %p798 = por %p796, %p797
      %p799 = scmp.ne.s32.totalorder %s791, %s793
      %p800 = scmp.eq.s32.totalorder %s81, 1
      %p801 = por %p799, %p800
      %p802 = scmp.ne.s32.totalorder %s793, %s794
      %p803 = scmp.eq.s32.totalorder %s81, 0
      %p804 = por %p802, %p803
      %p805 = scmp.ne.s32.totalorder %s793, %s794
      %p806 = scmp.eq.s32.totalorder %s82, 1
      %p807 = por %p805, %p806
      %p809 = scmp.ne.s32.totalorder %s794, %s808
      %p810 = scmp.eq.s32.totalorder %s82, 0
      %p811 = por %p809, %p810
      %s812 = ssub.s32 %s76, %s83
      %p813 = scmp.eq.s32.totalorder %s812, 0
      %s815 = sadd.s32 %s814, 1
      %s816 = scalar_select %p813, %s814, %s815
      %p819 = pneg %p813
      %p820 = scmp.eq.s32.totalorder %s76, 1
      %p821 = por %p819, %p820
      %p822 = scmp.ne.s32.totalorder %s814, %s817
      %p823 = scmp.eq.s32.totalorder %s76, 0
      %p824 = por %p822, %p823
      %p825 = scmp.ne.s32.totalorder %s814, %s817
      %p826 = scmp.eq.s32.totalorder %s81, 1
      %p827 = por %p825, %p826
      %p828 = scmp.ne.s32.totalorder %s817, %s818
      %p829 = scmp.eq.s32.totalorder %s81, 0
      %p830 = por %p828, %p829
      %p831 = scmp.ne.s32.totalorder %s817, %s818
      %p832 = scmp.eq.s32.totalorder %s82, 1
      %p833 = por %p831, %p832
      %p835 = scmp.ne.s32.totalorder %s818, %s834
      %p836 = scmp.eq.s32.totalorder %s82, 0
      %p837 = por %p835, %p836
      %p838 = scmp.le.s32.totalorder 1, %s76
      %p839 = scmp.lt.s32.totalorder %s76, 3
      %p840 = pnand %p838, %p839
      %p841 = pneg %p840
      // Predicated region
      $region9: #{tpu_custom_call.1} parent=5 // pred_check
        _
      $region10: #{tpu_custom_call.1} parent=5 // pred_check_branch
        %843 = sbr.rel (%p840) target = $region12
      $region11: #{tpu_custom_call.1} parent=5 // pred_region
        %s844 = ssub.s32 %s76, 1
        // Predicated region
        $region13: #{tpu_custom_call.1} parent=11 // pred_check
          %p845 = pneg %p279
        $region14: #{tpu_custom_call.1} parent=11 // pred_check_branch
          %847 = sbr.rel (%p845) target = $region16
        $region15: #{tpu_custom_call.1} parent=11 // pred_region
          _
        $region16: #{tpu_custom_call.1} parent=11 // pred_fallthru
          _
        // Predicated region
        $region17: #{tpu_custom_call.1} parent=11 // pred_check
          %p848 = pneg %p300
        $region18: #{tpu_custom_call.1} parent=11 // pred_check_branch
          %850 = sbr.rel (%p848) target = $region20
        $region19: #{tpu_custom_call.1} parent=11 // pred_region
          _
        $region20: #{tpu_custom_call.1} parent=11 // pred_fallthru
          _
        // Predicated region
        $region21: #{tpu_custom_call.1} parent=11 // pred_check
          %p851 = pneg %p321
        $region22: #{tpu_custom_call.1} parent=11 // pred_check_branch
          %853 = sbr.rel (%p851) target = $region24
        $region23: #{tpu_custom_call.1} parent=11 // pred_region
          _
        $region24: #{tpu_custom_call.1} parent=11 // pred_fallthru
          _
        // Predicated region
        $region25: #{tpu_custom_call.1} parent=11 // pred_check
          %p854 = pneg %p342
        $region26: #{tpu_custom_call.1} parent=11 // pred_check_branch
          %856 = sbr.rel (%p854) target = $region28
        $region27: #{tpu_custom_call.1} parent=11 // pred_region
          _
        $region28: #{tpu_custom_call.1} parent=11 // pred_fallthru
          _
        // Predicated region
        $region29: #{tpu_custom_call.1} parent=11 // pred_check
          %p857 = pneg %p363
        $region30: #{tpu_custom_call.1} parent=11 // pred_check_branch
          %859 = sbr.rel (%p857) target = $region32
        $region31: #{tpu_custom_call.1} parent=11 // pred_region
          _
        $region32: #{tpu_custom_call.1} parent=11 // pred_fallthru
          _
        // Predicated region
        $region33: #{tpu_custom_call.1} parent=11 // pred_check
          %p860 = pneg %p384
        $region34: #{tpu_custom_call.1} parent=11 // pred_check_branch
          %862 = sbr.rel (%p860) target = $region36
        $region35: #{tpu_custom_call.1} parent=11 // pred_region
          _
        $region36: #{tpu_custom_call.1} parent=11 // pred_fallthru
          _
        // Predicated region
        $region37: #{tpu_custom_call.1} parent=11 // pred_check
          %p863 = pneg %p405
        $region38: #{tpu_custom_call.1} parent=11 // pred_check_branch
          %865 = sbr.rel (%p863) target = $region40
        $region39: #{tpu_custom_call.1} parent=11 // pred_region
          _
        $region40: #{tpu_custom_call.1} parent=11 // pred_fallthru
          _
        // Predicated region
        $region41: #{tpu_custom_call.1} parent=11 // pred_check
          %p866 = pneg %p426
        $region42: #{tpu_custom_call.1} parent=11 // pred_check_branch
          %868 = sbr.rel (%p866) target = $region44
        $region43: #{tpu_custom_call.1} parent=11 // pred_region
          _
        $region44: #{tpu_custom_call.1} parent=11 // pred_fallthru
          _
        // Predicated region
        $region45: #{tpu_custom_call.1} parent=11 // pred_check
          %p869 = pneg %p447
        $region46: #{tpu_custom_call.1} parent=11 // pred_check_branch
          %871 = sbr.rel (%p869) target = $region48
        $region47: #{tpu_custom_call.1} parent=11 // pred_region
          _
        $region48: #{tpu_custom_call.1} parent=11 // pred_fallthru
          _
        // Predicated region
        $region49: #{tpu_custom_call.1} parent=11 // pred_check
          %p872 = pneg %p468
        $region50: #{tpu_custom_call.1} parent=11 // pred_check_branch
          %874 = sbr.rel (%p872) target = $region52
        $region51: #{tpu_custom_call.1} parent=11 // pred_region
          _
        $region52: #{tpu_custom_call.1} parent=11 // pred_fallthru
          _
        // Predicated region
        $region53: #{tpu_custom_call.1} parent=11 // pred_check
          %p875 = pneg %p489
        $region54: #{tpu_custom_call.1} parent=11 // pred_check_branch
          %877 = sbr.rel (%p875) target = $region56
        $region55: #{tpu_custom_call.1} parent=11 // pred_region
          _
        $region56: #{tpu_custom_call.1} parent=11 // pred_fallthru
          _
        // Predicated region
        $region57: #{tpu_custom_call.1} parent=11 // pred_check
          %p878 = pneg %p510
        $region58: #{tpu_custom_call.1} parent=11 // pred_check_branch
          %880 = sbr.rel (%p878) target = $region60
        $region59: #{tpu_custom_call.1} parent=11 // pred_region
          _
        $region60: #{tpu_custom_call.1} parent=11 // pred_fallthru
          _
        // Predicated region
        $region61: #{tpu_custom_call.1} parent=11 // pred_check
          %p881 = pneg %p531
        $region62: #{tpu_custom_call.1} parent=11 // pred_check_branch
          %883 = sbr.rel (%p881) target = $region64
        $region63: #{tpu_custom_call.1} parent=11 // pred_region
          _
        $region64: #{tpu_custom_call.1} parent=11 // pred_fallthru
          _
        // Predicated region
        $region65: #{tpu_custom_call.1} parent=11 // pred_check
          %p884 = pneg %p552
        $region66: #{tpu_custom_call.1} parent=11 // pred_check_branch
          %886 = sbr.rel (%p884) target = $region68
        $region67: #{tpu_custom_call.1} parent=11 // pred_region
          _
        $region68: #{tpu_custom_call.1} parent=11 // pred_fallthru
          _
        // Predicated region
        $region69: #{tpu_custom_call.1} parent=11 // pred_check
          %p887 = pneg %p573
        $region70: #{tpu_custom_call.1} parent=11 // pred_check_branch
          %889 = sbr.rel (%p887) target = $region72
        $region71: #{tpu_custom_call.1} parent=11 // pred_region
          _
        $region72: #{tpu_custom_call.1} parent=11 // pred_fallthru
          _
        // Predicated region
        $region73: #{tpu_custom_call.1} parent=11 // pred_check
          %p890 = pneg %p594
        $region74: #{tpu_custom_call.1} parent=11 // pred_check_branch
          %892 = sbr.rel (%p890) target = $region76
        $region75: #{tpu_custom_call.1} parent=11 // pred_region
          _
        $region76: #{tpu_custom_call.1} parent=11 // pred_fallthru
          _
        // Predicated region
        $region77: #{tpu_custom_call.1} parent=11 // pred_check
          %p893 = pneg %p615
        $region78: #{tpu_custom_call.1} parent=11 // pred_check_branch
          %895 = sbr.rel (%p893) target = $region80
        $region79: #{tpu_custom_call.1} parent=11 // pred_region
          _
        $region80: #{tpu_custom_call.1} parent=11 // pred_fallthru
          _
        // Predicated region
        $region81: #{tpu_custom_call.1} parent=11 // pred_check
          %p896 = pneg %p636
        $region82: #{tpu_custom_call.1} parent=11 // pred_check_branch
          %898 = sbr.rel (%p896) target = $region84
        $region83: #{tpu_custom_call.1} parent=11 // pred_region
          _
        $region84: #{tpu_custom_call.1} parent=11 // pred_fallthru
          _
        // Predicated region
        $region85: #{tpu_custom_call.1} parent=11 // pred_check
          %p899 = pneg %p657
        $region86: #{tpu_custom_call.1} parent=11 // pred_check_branch
          %901 = sbr.rel (%p899) target = $region88
        $region87: #{tpu_custom_call.1} parent=11 // pred_region
          _
        $region88: #{tpu_custom_call.1} parent=11 // pred_fallthru
          _
        // Predicated region
        $region89: #{tpu_custom_call.1} parent=11 // pred_check
          %p902 = pneg %p678
        $region90: #{tpu_custom_call.1} parent=11 // pred_check_branch
          %904 = sbr.rel (%p902) target = $region92
        $region91: #{tpu_custom_call.1} parent=11 // pred_region
          _
        $region92: #{tpu_custom_call.1} parent=11 // pred_fallthru
          _
        // Predicated region
        $region93: #{tpu_custom_call.1} parent=11 // pred_check
          %p905 = pneg %p699
        $region94: #{tpu_custom_call.1} parent=11 // pred_check_branch
          %907 = sbr.rel (%p905) target = $region96
        $region95: #{tpu_custom_call.1} parent=11 // pred_region
          _
        $region96: #{tpu_custom_call.1} parent=11 // pred_fallthru
          _
        // Predicated region
        $region97: #{tpu_custom_call.1} parent=11 // pred_check
          %p908 = pneg %p720
        $region98: #{tpu_custom_call.1} parent=11 // pred_check_branch
          %910 = sbr.rel (%p908) target = $region100
        $region99: #{tpu_custom_call.1} parent=11 // pred_region
          _
        $region100: #{tpu_custom_call.1} parent=11 // pred_fallthru
          _
        // Predicated region
        $region101: #{tpu_custom_call.1} parent=11 // pred_check
          %p911 = pneg %p741
        $region102: #{tpu_custom_call.1} parent=11 // pred_check_branch
          %913 = sbr.rel (%p911) target = $region104
        $region103: #{tpu_custom_call.1} parent=11 // pred_region
          _
        $region104: #{tpu_custom_call.1} parent=11 // pred_fallthru
          _
        // Predicated region
        $region105: #{tpu_custom_call.1} parent=11 // pred_check
          %p914 = pneg %p762
        $region106: #{tpu_custom_call.1} parent=11 // pred_check_branch
          %916 = sbr.rel (%p914) target = $region108
        $region107: #{tpu_custom_call.1} parent=11 // pred_region
          _
        $region108: #{tpu_custom_call.1} parent=11 // pred_fallthru
          _
        // Predicated region
        $region109: #{tpu_custom_call.1} parent=11 // pred_check
          %p917 = pneg %p783
        $region110: #{tpu_custom_call.1} parent=11 // pred_check_branch
          %919 = sbr.rel (%p917) target = $region112
        $region111: #{tpu_custom_call.1} parent=11 // pred_region
          _
        $region112: #{tpu_custom_call.1} parent=11 // pred_fallthru
          _
        // Predicated region
        $region113: #{tpu_custom_call.1} parent=11 // pred_check
          %p920 = pneg %p804
        $region114: #{tpu_custom_call.1} parent=11 // pred_check_branch
          %922 = sbr.rel (%p920) target = $region116
        $region115: #{tpu_custom_call.1} parent=11 // pred_region
          _
        $region116: #{tpu_custom_call.1} parent=11 // pred_fallthru
          _
      $region12: #{tpu_custom_call.1} parent=5 // pred_fallthru
        _
      %p923 = scmp.lt.s32.totalorder %s76, 2
      // Predicated region
      $region117: #{tpu_custom_call.1} parent=5 // pred_check
        %p924 = pneg %p923
      $region118: #{tpu_custom_call.1} parent=5 // pred_check_branch
        %926 = sbr.rel (%p924) target = $region120
      $region119: #{tpu_custom_call.1} parent=5 // pred_region
        // Predicated region
        $region121: #{tpu_custom_call.1} parent=119 // pred_check
          %p927 = pneg %p96
        $region122: #{tpu_custom_call.1} parent=119 // pred_check_branch
          %929 = sbr.rel (%p927) target = $region124
        $region123: #{tpu_custom_call.1} parent=119 // pred_region
          %p930 = scmp.lt.s32.totalorder %s76, 1
          %s931 = scalar_select %p930, %s76, 1
          %s932 = smul.addr %s931, 16
          %s933 = smul.addr %s932, 8
          %s934 = scalar_lea.vmem %s1, %s933
        $region124: #{tpu_custom_call.1} parent=119 // pred_fallthru
          _
        // Predicated region
        $region125: #{tpu_custom_call.1} parent=119 // pred_check
          %p935 = pneg %p122
        $region126: #{tpu_custom_call.1} parent=119 // pred_check_branch
          %937 = sbr.rel (%p935) target = $region128
        $region127: #{tpu_custom_call.1} parent=119 // pred_region
          %p938 = scmp.lt.s32.totalorder %s76, 1
          %s939 = scalar_select %p938, %s76, 1
          %s940 = smul.addr %s939, 16
          %s941 = smul.addr %s940, 8
          %s942 = scalar_lea.vmem %s3, %s941
        $region128: #{tpu_custom_call.1} parent=119 // pred_fallthru
          _
        // Predicated region
        $region129: #{tpu_custom_call.1} parent=119 // pred_check
          %p943 = pneg %p148
        $region130: #{tpu_custom_call.1} parent=119 // pred_check_branch
          %945 = sbr.rel (%p943) target = $region132
        $region131: #{tpu_custom_call.1} parent=119 // pred_region
          %p946 = scmp.lt.s32.totalorder %s76, 1
          %s947 = scalar_select %p946, %s76, 1
          %s948 = smul.addr %s947, 16
          %s949 = smul.addr %s948, 8
          %s950 = scalar_lea.vmem %s5, %s949
        $region132: #{tpu_custom_call.1} parent=119 // pred_fallthru
          _
        // Predicated region
        $region133: #{tpu_custom_call.1} parent=119 // pred_check
          %p951 = pneg %p174
        $region134: #{tpu_custom_call.1} parent=119 // pred_check_branch
          %953 = sbr.rel (%p951) target = $region136
        $region135: #{tpu_custom_call.1} parent=119 // pred_region
          %p954 = scmp.lt.s32.totalorder %s76, 1
          %s955 = scalar_select %p954, %s76, 1
          %s956 = smul.addr %s955, 8
          %s957 = smul.addr %s956, 4
          %s958 = scalar_lea.vmem %s7, %s957
        $region136: #{tpu_custom_call.1} parent=119 // pred_fallthru
          _
        // Predicated region
        $region137: #{tpu_custom_call.1} parent=119 // pred_check
          %p959 = pneg %p200
        $region138: #{tpu_custom_call.1} parent=119 // pred_check_branch
          %961 = sbr.rel (%p959) target = $region140
        $region139: #{tpu_custom_call.1} parent=119 // pred_region
          %p962 = scmp.lt.s32.totalorder %s76, 1
          %s963 = scalar_select %p962, %s76, 1
          %s964 = smul.addr %s963, 16
          %s965 = smul.addr %s964, 4
          %s966 = scalar_lea.vmem %s9, %s965
        $region140: #{tpu_custom_call.1} parent=119 // pred_fallthru
          _
        // Predicated region
        $region141: #{tpu_custom_call.1} parent=119 // pred_check
          %p967 = pneg %p226
        $region142: #{tpu_custom_call.1} parent=119 // pred_check_branch
          %969 = sbr.rel (%p967) target = $region144
        $region143: #{tpu_custom_call.1} parent=119 // pred_region
          %p970 = scmp.lt.s32.totalorder %s76, 1
          %s971 = scalar_select %p970, %s76, 1
          %s972 = smul.addr %s971, 32
          %s973 = smul.addr %s972, 4
          %s974 = scalar_lea.vmem %s11, %s973
        $region144: #{tpu_custom_call.1} parent=119 // pred_fallthru
          _
        // Predicated region
        $region145: #{tpu_custom_call.1} parent=119 // pred_check
          %p975 = pneg %p252
        $region146: #{tpu_custom_call.1} parent=119 // pred_check_branch
          %977 = sbr.rel (%p975) target = $region148
        $region147: #{tpu_custom_call.1} parent=119 // pred_region
          %p978 = scmp.lt.s32.totalorder %s76, 1
          %s979 = scalar_select %p978, %s76, 1
          %s980 = smul.addr %s979, 32
          %s981 = smul.addr %s980, 4
          %s982 = scalar_lea.vmem %s13, %s981
        $region148: #{tpu_custom_call.1} parent=119 // pred_fallthru
          _
      $region120: #{tpu_custom_call.1} parent=5 // pred_fallthru
        _
      %p983 = scmp.le.s32.totalorder 1, %s76
      %p984 = scmp.lt.s32.totalorder %s76, 3
      %p985 = pnand %p983, %p984
      %p986 = pneg %p985
      // Predicated region
      $region149: #{tpu_custom_call.1} parent=5 // pred_check
        _
      $region150: #{tpu_custom_call.1} parent=5 // pred_check_branch
        %988 = sbr.rel (%p985) target = $region152
      $region151: #{tpu_custom_call.1} parent=5 // pred_region
        %s989 = ssub.s32 %s76, 1
        %p990 = scmp.lt.s32.totalorder %s81, 1
        %s991 = scalar_select %p990, %s81, 1
        %s992 = smul.addr %s991, 16
        %s993 = smul.addr %s992, 8
        %s994 = scalar_lea.vmem %s1, %s993
        %p995 = pneg %p102
        %p996 = pneg %p99
        %p997 = scmp.lt.s32.totalorder %s81, 1
        %s998 = scalar_select %p997, %s81, 1
        %s999 = smul.addr %s998, 16
        %s1000 = smul.addr %s999, 8
        %s1001 = scalar_lea.vmem %s3, %s1000
        %p1002 = pneg %p128
        %p1003 = pneg %p125
        %p1004 = scmp.lt.s32.totalorder %s81, 1
        %s1005 = scalar_select %p1004, %s81, 1
        %s1006 = smul.addr %s1005, 16
        %s1007 = smul.addr %s1006, 8
        %s1008 = scalar_lea.vmem %s5, %s1007
        %p1009 = pneg %p154
        %p1010 = pneg %p151
        %p1011 = scmp.lt.s32.totalorder %s81, 1
        %s1012 = scalar_select %p1011, %s81, 1
        %s1013 = smul.addr %s1012, 8
        %s1014 = smul.addr %s1013, 4
        %s1015 = scalar_lea.vmem %s7, %s1014
        %p1016 = pneg %p180
        %p1017 = pneg %p177
        %p1018 = scmp.lt.s32.totalorder %s81, 1
        %s1019 = scalar_select %p1018, %s81, 1
        %s1020 = smul.addr %s1019, 16
        %s1021 = smul.addr %s1020, 4
        %s1022 = scalar_lea.vmem %s9, %s1021
        %p1023 = pneg %p206
        %p1024 = pneg %p203
        %p1025 = scmp.lt.s32.totalorder %s81, 1
        %s1026 = scalar_select %p1025, %s81, 1
        %s1027 = smul.addr %s1026, 32
        %s1028 = smul.addr %s1027, 4
        %s1029 = scalar_lea.vmem %s11, %s1028
        %p1030 = pneg %p232
        %p1031 = pneg %p229
        %p1032 = scmp.lt.s32.totalorder %s81, 1
        %s1033 = scalar_select %p1032, %s81, 1
        %s1034 = smul.addr %s1033, 32
        %s1035 = smul.addr %s1034, 4
        %s1036 = scalar_lea.vmem %s13, %s1035
        %p1037 = pneg %p258
        %p1038 = pneg %p255
        %p1039 = pneg %p279
        %p1040 = pneg %p276
        %p1041 = pneg %p300
        %p1042 = pneg %p297
        %p1043 = pneg %p321
        %p1044 = pneg %p318
        %p1045 = pneg %p342
        %p1046 = pneg %p339
        %p1047 = pneg %p363
        %p1048 = pneg %p360
        %p1049 = pneg %p384
        %p1050 = pneg %p381
        %p1051 = pneg %p405
        %p1052 = pneg %p402
        %p1053 = pneg %p426
        %p1054 = pneg %p423
        %p1055 = pneg %p447
        %p1056 = pneg %p444
        %p1057 = pneg %p468
        %p1058 = pneg %p465
        %p1059 = pneg %p489
        %p1060 = pneg %p486
        %p1061 = pneg %p510
        %p1062 = pneg %p507
        %p1063 = pneg %p531
        %p1064 = pneg %p528
        %p1065 = pneg %p552
        %p1066 = pneg %p549
        %p1067 = pneg %p573
        %p1068 = pneg %p570
        %p1069 = pneg %p594
        %p1070 = pneg %p591
        %p1071 = pneg %p615
        %p1072 = pneg %p612
        %p1073 = pneg %p636
        %p1074 = pneg %p633
        %p1075 = pneg %p657
        %p1076 = pneg %p654
        %p1077 = pneg %p678
        %p1078 = pneg %p675
        %p1079 = pneg %p699
        %p1080 = pneg %p696
        %p1081 = pneg %p720
        %p1082 = pneg %p717
        %p1083 = pneg %p741
        %p1084 = pneg %p738
        %p1085 = pneg %p762
        %p1086 = pneg %p759
        %p1087 = pneg %p783
        %p1088 = pneg %p780
        %p1089 = pneg %p804
        %p1090 = pneg %p801
        %p1091 = pneg %p830
        %p1092 = pneg %p827
        %s1093 = sand.u32 %s817, 1
        %s1094 = scalar_lea.sflag [#allocation3], %s1093
        %s1095 = sand.u32 %s817, 1
        %s1096 = smul.addr %s1095, 128
        %s1097 = scalar_lea.vmem [#allocation2], %s1096
        %p1098 = scmp.lt.s32.totalorder %s81, 1
        %s1099 = scalar_select %p1098, %s81, 1
        %s1100 = smul.addr %s1099, 16
        %s1101 = smul.addr %s1100, 8
        %s1102 = scalar_lea.vmem %s1, %s1101
        %p1103 = scmp.lt.s32.totalorder %s81, 1
        %s1104 = scalar_select %p1103, %s81, 1
        %s1105 = smul.addr %s1104, 16
        %s1106 = smul.addr %s1105, 8
        %s1107 = scalar_lea.vmem %s3, %s1106
        %p1108 = scmp.lt.s32.totalorder %s81, 1
        %s1109 = scalar_select %p1108, %s81, 1
        %s1110 = smul.addr %s1109, 16
        %s1111 = smul.addr %s1110, 8
        %s1112 = scalar_lea.vmem %s5, %s1111
        %p1113 = scmp.lt.s32.totalorder %s81, 1
        %s1114 = scalar_select %p1113, %s81, 1
        %s1115 = smul.addr %s1114, 8
        %s1116 = smul.addr %s1115, 4
        %s1117 = scalar_lea.vmem %s7, %s1116
        %p1118 = scmp.lt.s32.totalorder %s81, 1
        %s1119 = scalar_select %p1118, %s81, 1
        %s1120 = smul.addr %s1119, 16
        %s1121 = smul.addr %s1120, 4
        %s1122 = scalar_lea.vmem %s9, %s1121
        %p1123 = scmp.lt.s32.totalorder %s81, 1
        %s1124 = scalar_select %p1123, %s81, 1
        %s1125 = smul.addr %s1124, 32
        %s1126 = smul.addr %s1125, 4
        %s1127 = scalar_lea.vmem %s11, %s1126
        %p1128 = scmp.lt.s32.totalorder %s81, 1
        %s1129 = scalar_select %p1128, %s81, 1
        %s1130 = smul.addr %s1129, 32
        %s1131 = smul.addr %s1130, 4
        %s1132 = scalar_lea.vmem %s13, %s1131
        %v1134 = vld [vmem:[%s1102] sm:$0xff]
        %v1135 = vld [vmem:[%s1102 + $0x8] sm:$0xff]
        %v1136 = vld [vmem:[%s1102 + $0x10] sm:$0xff]
        %v1137 = vld [vmem:[%s1102 + $0x18] sm:$0xff]
        %v1138 = vld [vmem:[%s1102 + $0x20] sm:$0xff]
        %v1139 = vld [vmem:[%s1102 + $0x28] sm:$0xff]
        %v1140 = vld [vmem:[%s1102 + $0x30] sm:$0xff]
        %v1141 = vld [vmem:[%s1102 + $0x38] sm:$0xff]
        %v1142 = vld [vmem:[%s1102 + $0x40] sm:$0xff]
        %v1143 = vld [vmem:[%s1102 + $0x48] sm:$0xff]
        %v1144 = vld [vmem:[%s1102 + $0x50] sm:$0xff]
        %v1145 = vld [vmem:[%s1102 + $0x58] sm:$0xff]
        %v1146 = vld [vmem:[%s1102 + $0x60] sm:$0xff]
        %v1147 = vld [vmem:[%s1102 + $0x68] sm:$0xff]
        %v1148 = vld [vmem:[%s1102 + $0x70] sm:$0xff]
        %v1149 = vld [vmem:[%s1102 + $0x78] sm:$0xff]
        %v1150 = vld [vmem:[%s15] sm:$0xff]
        %v1151 = vld [vmem:[%s15 + $0x8] sm:$0x1]
        %v1152 = vld [vmem:[%s17] sm:$0x1]
        %v1153 = vld [vmem:[%s19] sm:$0xff]
        %v1154 = vld [vmem:[%s19 + $0x8] sm:$0x1]
        %v1155 = vld [vmem:[%s21] sm:$0x1]
        %v1157 = vperm.slane %v1152, 0
        %vm1159 = vcmask 72704
        %v1161 = vsel %vm1159, %v1134, 0
        %v1164 = vsel %vm1159, %v1135, 0
        %v1167 = vsel %vm1159, %v1136, 0
        %v1170 = vsel %vm1159, %v1137, 0
        %v1173 = vsel %vm1159, %v1138, 0
        %v1176 = vsel %vm1159, %v1139, 0
        %v1179 = vsel %vm1159, %v1140, 0
        %v1182 = vsel %vm1159, %v1141, 0
        %v1185 = vsel %vm1159, %v1142, 0
        %v1188 = vsel %vm1159, %v1143, 0
        %v1191 = vsel %vm1159, %v1144, 0
        %v1194 = vsel %vm1159, %v1145, 0
        %v1197 = vsel %vm1159, %v1146, 0
        %v1200 = vsel %vm1159, %v1147, 0
        %v1203 = vsel %vm1159, %v1148, 0
        %v1206 = vsel %vm1159, %v1149, 0
        %vm1208 = vcmask 1040384
        %v1210 = vsel %vm1208, %v1151, 0
        %1212 = vmatpush.msra.mxu0 0.0
        %1213 = vmatpush.msra.mxu0 0.0
        %1214 = vmatpush.msra.mxu0 0.0
        %1215 = vmatpush.msra.mxu0 0.0
        %1216 = vmatpush.msra.mxu0 0.0
        %1217 = vmatpush.msra.mxu0 0.0
        %1218 = vmatpush.msra.mxu0 0.0
        %1219 = vmatpush.msra.mxu0 0.0
        %1220 = vmatpush.msra.mxu0 0.0
        %1221 = vmatpush.msra.mxu0 0.0
        %1222 = vmatpush.msra.mxu0 0.0
        %1223 = vmatpush.msra.mxu0 0.0
        %1224 = vmatpush.msra.mxu0 0.0
        %1225 = vmatpush.msra.mxu0 0.0
        %1226 = vmatpush.msra.mxu0 %v1210
        %1227 = vmatpush.msra.mxu0 %v1150
        %1228 = vmatmul.f32.gmra.mxu0 %v1161
        %v1229 = vpop.f32.mrf.mxu0
        %v1230 = vadd.f32 %v1157, %v1229
        %1231 = vmatmul.f32.gmra.mxu0 %v1164
        %v1232 = vpop.f32.mrf.mxu0
        %v1233 = vadd.f32 %v1157, %v1232
        %1234 = vmatmul.f32.gmra.mxu0 %v1167
        %v1235 = vpop.f32.mrf.mxu0
        %v1236 = vadd.f32 %v1157, %v1235
        %1237 = vmatmul.f32.gmra.mxu0 %v1170
        %v1238 = vpop.f32.mrf.mxu0
        %v1239 = vadd.f32 %v1157, %v1238
        %1240 = vmatmul.f32.gmra.mxu0 %v1173
        %v1241 = vpop.f32.mrf.mxu0
        %v1242 = vadd.f32 %v1157, %v1241
        %1243 = vmatmul.f32.gmra.mxu0 %v1176
        %v1244 = vpop.f32.mrf.mxu0
        %v1245 = vadd.f32 %v1157, %v1244
        %1246 = vmatmul.f32.gmra.mxu0 %v1179
        %v1247 = vpop.f32.mrf.mxu0
        %v1248 = vadd.f32 %v1157, %v1247
        %1249 = vmatmul.f32.gmra.mxu0 %v1182
        %v1250 = vpop.f32.mrf.mxu0
        %v1251 = vadd.f32 %v1157, %v1250
        %1252 = vmatmul.f32.gmra.mxu0 %v1185
        %v1253 = vpop.f32.mrf.mxu0
        %v1254 = vadd.f32 %v1157, %v1253
        %1255 = vmatmul.f32.gmra.mxu0 %v1188
        %v1256 = vpop.f32.mrf.mxu0
        %v1257 = vadd.f32 %v1157, %v1256
        %1258 = vmatmul.f32.gmra.mxu0 %v1191
        %v1259 = vpop.f32.mrf.mxu0
        %v1260 = vadd.f32 %v1157, %v1259
        %1261 = vmatmul.f32.gmra.mxu0 %v1194
        %v1262 = vpop.f32.mrf.mxu0
        %v1263 = vadd.f32 %v1157, %v1262
        %1264 = vmatmul.f32.gmra.mxu0 %v1197
        %v1265 = vpop.f32.mrf.mxu0
        %v1266 = vadd.f32 %v1157, %v1265
        %1267 = vmatmul.f32.gmra.mxu0 %v1200
        %v1268 = vpop.f32.mrf.mxu0
        %v1269 = vadd.f32 %v1157, %v1268
        %1270 = vmatmul.f32.gmra.mxu0 %v1203
        %v1271 = vpop.f32.mrf.mxu0
        %v1272 = vadd.f32 %v1157, %v1271
        %1273 = vmatmul.f32.gmra.mxu0 %v1206
        %v1274 = vpop.f32.mrf.mxu0
        %v1275 = vadd.f32 %v1157, %v1274
        %1276 = vdwg.mxu0
        %vm1277 = vcmask 261120
        %v1278 = vsel %vm1277, %v1230, 0.0
        %v1279 = vsel %vm1277, %v1233, 0.0
        %v1280 = vadd.f32 %v1278, %v1279
        %v1281 = vsel %vm1277, %v1236, 0.0
        %v1282 = vadd.f32 %v1280, %v1281
        %v1283 = vsel %vm1277, %v1239, 0.0
        %v1284 = vadd.f32 %v1282, %v1283
        %v1285 = vsel %vm1277, %v1242, 0.0
        %v1286 = vadd.f32 %v1284, %v1285
        %v1287 = vsel %vm1277, %v1245, 0.0
        %v1288 = vadd.f32 %v1286, %v1287
        %v1289 = vsel %vm1277, %v1248, 0.0
        %v1290 = vadd.f32 %v1288, %v1289
        %v1291 = vsel %vm1277, %v1251, 0.0
        %v1292 = vadd.f32 %v1290, %v1291
        %v1293 = vsel %vm1277, %v1254, 0.0
        %v1294 = vadd.f32 %v1292, %v1293
        %v1295 = vsel %vm1277, %v1257, 0.0
        %v1296 = vadd.f32 %v1294, %v1295
        %v1297 = vsel %vm1277, %v1260, 0.0
        %v1298 = vadd.f32 %v1296, %v1297
        %v1299 = vsel %vm1277, %v1263, 0.0
        %v1300 = vadd.f32 %v1298, %v1299
        %v1301 = vsel %vm1277, %v1266, 0.0
        %v1302 = vadd.f32 %v1300, %v1301
        %v1303 = vsel %vm1277, %v1269, 0.0
        %v1304 = vadd.f32 %v1302, %v1303
        %v1305 = vsel %vm1277, %v1272, 0.0
        %v1306 = vadd.f32 %v1304, %v1305
        %v1307 = vsel %vm1277, %v1275, 0.0
        %v1308 = vadd.f32 %v1306, %v1307
        %v1309 = vrot.slane %v1308, 4
        %v1310 = vadd.f32 %v1308, %v1309
        %v1311 = vrot.slane %v1310, 2
        %v1312 = vadd.f32 %v1310, %v1311
        %v1313 = vrot.slane %v1312, 1
        %v1314 = vadd.f32 %v1312, %v1313
        %v1315 = vrcp.pop 128.0
        %v1316 = vmul.f32 128.0, %v1315
        %v1317 = vsub.f32 1.0, %v1316
        %v1318 = vmul.f32 %v1315, %v1317
        %v1319 = vadd.f32 %v1315, %v1318
        %vm1320 = vweird.f32 %v1315
        %v1321 = vsel %vm1320, %v1315, %v1319
        %v1322 = vmul.f32 %v1314, %v1321
        %v1323 = vsub.f32 %v1230, %v1322
        %v1324 = vsub.f32 %v1233, %v1322
        %v1325 = vsub.f32 %v1236, %v1322
        %v1326 = vsub.f32 %v1239, %v1322
        %v1327 = vsub.f32 %v1242, %v1322
        %v1328 = vsub.f32 %v1245, %v1322
        %v1329 = vsub.f32 %v1248, %v1322
        %v1330 = vsub.f32 %v1251, %v1322
        %v1331 = vsub.f32 %v1254, %v1322
        %v1332 = vsub.f32 %v1257, %v1322
        %v1333 = vsub.f32 %v1260, %v1322
        %v1334 = vsub.f32 %v1263, %v1322
        %v1335 = vsub.f32 %v1266, %v1322
        %v1336 = vsub.f32 %v1269, %v1322
        %v1337 = vsub.f32 %v1272, %v1322
        %v1338 = vsub.f32 %v1275, %v1322
        %v1339 = vmul.f32 %v1323, %v1323
        %v1340 = vmul.f32 %v1324, %v1324
        %v1341 = vmul.f32 %v1325, %v1325
        %v1342 = vmul.f32 %v1326, %v1326
        %v1343 = vmul.f32 %v1327, %v1327
        %v1344 = vmul.f32 %v1328, %v1328
        %v1345 = vmul.f32 %v1329, %v1329
        %v1346 = vmul.f32 %v1330, %v1330
        %v1347 = vmul.f32 %v1331, %v1331
        %v1348 = vmul.f32 %v1332, %v1332
        %v1349 = vmul.f32 %v1333, %v1333
        %v1350 = vmul.f32 %v1334, %v1334
        %v1351 = vmul.f32 %v1335, %v1335
        %v1352 = vmul.f32 %v1336, %v1336
        %v1353 = vmul.f32 %v1337, %v1337
        %v1354 = vmul.f32 %v1338, %v1338
        %v1355 = vsel %vm1277, %v1339, 0.0
        %v1356 = vsel %vm1277, %v1340, 0.0
        %v1357 = vadd.f32 %v1355, %v1356
        %v1358 = vsel %vm1277, %v1341, 0.0
        %v1359 = vadd.f32 %v1357, %v1358
        %v1360 = vsel %vm1277, %v1342, 0.0
        %v1361 = vadd.f32 %v1359, %v1360
        %v1362 = vsel %vm1277, %v1343, 0.0
        %v1363 = vadd.f32 %v1361, %v1362
        %v1364 = vsel %vm1277, %v1344, 0.0
        %v1365 = vadd.f32 %v1363, %v1364
        %v1366 = vsel %vm1277, %v1345, 0.0
        %v1367 = vadd.f32 %v1365, %v1366
        %v1368 = vsel %vm1277, %v1346, 0.0
        %v1369 = vadd.f32 %v1367, %v1368
        %v1370 = vsel %vm1277, %v1347, 0.0
        %v1371 = vadd.f32 %v1369, %v1370
        %v1372 = vsel %vm1277, %v1348, 0.0
        %v1373 = vadd.f32 %v1371, %v1372
        %v1374 = vsel %vm1277, %v1349, 0.0
        %v1375 = vadd.f32 %v1373, %v1374
        %v1376 = vsel %vm1277, %v1350, 0.0
        %v1377 = vadd.f32 %v1375, %v1376
        %v1378 = vsel %vm1277, %v1351, 0.0
        %v1379 = vadd.f32 %v1377, %v1378
        %v1380 = vsel %vm1277, %v1352, 0.0
        %v1381 = vadd.f32 %v1379, %v1380
        %v1382 = vsel %vm1277, %v1353, 0.0
        %v1383 = vadd.f32 %v1381, %v1382
        %v1384 = vsel %vm1277, %v1354, 0.0
        %v1385 = vadd.f32 %v1383, %v1384
        %v1386 = vrot.slane %v1385, 4
        %v1387 = vadd.f32 %v1385, %v1386
        %v1388 = vrot.slane %v1387, 2
        %v1389 = vadd.f32 %v1387, %v1388
        %v1390 = vrot.slane %v1389, 1
        %v1391 = vadd.f32 %v1389, %v1390
        %v1392 = vmul.f32 %v1391, %v1321
        %v1393 = vadd.f32 %v1392, 1e-05
        %v1394 = vrsqrt.pop %v1393
        %v1395 = vmul.f32 %v1394, %v1393
        %v1396 = vmul.f32 %v1395, %v1394
        %v1397 = vmul.f32 0.5, %v1396
        %v1398 = vsub.f32 1.5, %v1397
        %v1399 = vmul.f32 %v1394, %v1398
        %vm1400 = vweird.f32 %v1393
        %vm1401 = vweird.f32 %v1394
        %vm1402 = vmor %vm1400, %vm1401
        %v1403 = vsel %vm1402, %v1394, %v1399
        %v1404 = vmul.f32 %v1323, %v1403
        %v1405 = vmul.f32 %v1324, %v1403
        %v1406 = vmul.f32 %v1325, %v1403
        %v1407 = vmul.f32 %v1326, %v1403
        %v1408 = vmul.f32 %v1327, %v1403
        %v1409 = vmul.f32 %v1328, %v1403
        %v1410 = vmul.f32 %v1329, %v1403
        %v1411 = vmul.f32 %v1330, %v1403
        %v1412 = vmul.f32 %v1331, %v1403
        %v1413 = vmul.f32 %v1332, %v1403
        %v1414 = vmul.f32 %v1333, %v1403
        %v1415 = vmul.f32 %v1334, %v1403
        %v1416 = vmul.f32 %v1335, %v1403
        %v1417 = vmul.f32 %v1336, %v1403
        %v1418 = vmul.f32 %v1337, %v1403
        %v1419 = vmul.f32 %v1338, %v1403
        %v1420 = vmax.f32 %v1404, 0.0
        %v1421 = vmax.f32 %v1405, 0.0
        %v1422 = vmax.f32 %v1406, 0.0
        %v1423 = vmax.f32 %v1407, 0.0
        %v1424 = vmax.f32 %v1408, 0.0
        %v1425 = vmax.f32 %v1409, 0.0
        %v1426 = vmax.f32 %v1410, 0.0
        %v1427 = vmax.f32 %v1411, 0.0
        %v1428 = vmax.f32 %v1412, 0.0
        %v1429 = vmax.f32 %v1413, 0.0
        %v1430 = vmax.f32 %v1414, 0.0
        %v1431 = vmax.f32 %v1415, 0.0
        %v1432 = vmax.f32 %v1416, 0.0
        %v1433 = vmax.f32 %v1417, 0.0
        %v1434 = vmax.f32 %v1418, 0.0
        %v1435 = vmax.f32 %v1419, 0.0
        %v1437 = vperm.slane %v1155, 0
        %v1440 = vsel %vm1208, %v1154, 0
        %1442 = vmatpush.msra.mxu0 0.0
        %1443 = vmatpush.msra.mxu0 0.0
        %1444 = vmatpush.msra.mxu0 0.0
        %1445 = vmatpush.msra.mxu0 0.0
        %1446 = vmatpush.msra.mxu0 0.0
        %1447 = vmatpush.msra.mxu0 0.0
        %1448 = vmatpush.msra.mxu0 0.0
        %1449 = vmatpush.msra.mxu0 0.0
        %1450 = vmatpush.msra.mxu0 0.0
        %1451 = vmatpush.msra.mxu0 0.0
        %1452 = vmatpush.msra.mxu0 0.0
        %1453 = vmatpush.msra.mxu0 0.0
        %1454 = vmatpush.msra.mxu0 0.0
        %1455 = vmatpush.msra.mxu0 0.0
        %1456 = vmatpush.msra.mxu0 %v1440
        %1457 = vmatpush.msra.mxu0 %v1153
        %1458 = vmatmul.f32.gmra.mxu0 %v1161
        %v1459 = vpop.f32.mrf.mxu0
        %v1460 = vadd.f32 %v1437, %v1459
        %1461 = vmatmul.f32.gmra.mxu0 %v1164
        %v1462 = vpop.f32.mrf.mxu0
        %v1463 = vadd.f32 %v1437, %v1462
        %1464 = vmatmul.f32.gmra.mxu0 %v1167
        %v1465 = vpop.f32.mrf.mxu0
        %v1466 = vadd.f32 %v1437, %v1465
        %1467 = vmatmul.f32.gmra.mxu0 %v1170
        %v1468 = vpop.f32.mrf.mxu0
        %v1469 = vadd.f32 %v1437, %v1468
        %1470 = vmatmul.f32.gmra.mxu0 %v1173
        %v1471 = vpop.f32.mrf.mxu0
        %v1472 = vadd.f32 %v1437, %v1471
        %1473 = vmatmul.f32.gmra.mxu0 %v1176
        %v1474 = vpop.f32.mrf.mxu0
        %v1475 = vadd.f32 %v1437, %v1474
        %1476 = vmatmul.f32.gmra.mxu0 %v1179
        %v1477 = vpop.f32.mrf.mxu0
        %v1478 = vadd.f32 %v1437, %v1477
        %1479 = vmatmul.f32.gmra.mxu0 %v1182
        %v1480 = vpop.f32.mrf.mxu0
        %v1481 = vadd.f32 %v1437, %v1480
        %1482 = vmatmul.f32.gmra.mxu0 %v1185
        %v1483 = vpop.f32.mrf.mxu0
        %v1484 = vadd.f32 %v1437, %v1483
        %1485 = vmatmul.f32.gmra.mxu0 %v1188
        %v1486 = vpop.f32.mrf.mxu0
        %v1487 = vadd.f32 %v1437, %v1486
        %1488 = vmatmul.f32.gmra.mxu0 %v1191
        %v1489 = vpop.f32.mrf.mxu0
        %v1490 = vadd.f32 %v1437, %v1489
        %1491 = vmatmul.f32.gmra.mxu0 %v1194
        %v1492 = vpop.f32.mrf.mxu0
        %v1493 = vadd.f32 %v1437, %v1492
        %1494 = vmatmul.f32.gmra.mxu0 %v1197
        %v1495 = vpop.f32.mrf.mxu0
        %v1496 = vadd.f32 %v1437, %v1495
        %1497 = vmatmul.f32.gmra.mxu0 %v1200
        %v1498 = vpop.f32.mrf.mxu0
        %v1499 = vadd.f32 %v1437, %v1498
        %1500 = vmatmul.f32.gmra.mxu0 %v1203
        %v1501 = vpop.f32.mrf.mxu0
        %v1502 = vadd.f32 %v1437, %v1501
        %1503 = vmatmul.f32.gmra.mxu0 %v1206
        %v1504 = vpop.f32.mrf.mxu0
        %v1505 = vadd.f32 %v1437, %v1504
        %1506 = vdwg.mxu0
        %v1507 = vadd.f32 %v1420, %v1460
        %v1508 = vadd.f32 %v1421, %v1463
        %v1509 = vadd.f32 %v1422, %v1466
        %v1510 = vadd.f32 %v1423, %v1469
        %v1511 = vadd.f32 %v1424, %v1472
        %v1512 = vadd.f32 %v1425, %v1475
        %v1513 = vadd.f32 %v1426, %v1478
        %v1514 = vadd.f32 %v1427, %v1481
        %v1515 = vadd.f32 %v1428, %v1484
        %v1516 = vadd.f32 %v1429, %v1487
        %v1517 = vadd.f32 %v1430, %v1490
        %v1518 = vadd.f32 %v1431, %v1493
        %v1519 = vadd.f32 %v1432, %v1496
        %v1520 = vadd.f32 %v1433, %v1499
        %v1521 = vadd.f32 %v1434, %v1502
        %v1522 = vadd.f32 %v1435, %v1505
        %v1523 = vld [vmem:[%s23] sm:$0xff]
        %v1524 = vld [vmem:[%s23 + $0x8] sm:$0xff]
        %v1525 = vld [vmem:[%s23 + $0x10] sm:$0xff]
        %v1526 = vld [vmem:[%s23 + $0x18] sm:$0xff]
        %v1527 = vld [vmem:[%s25] sm:$0x1]
        %v1528 = vld [vmem:[%s27] sm:$0xff]
        %v1529 = vld [vmem:[%s27 + $0x8] sm:$0xff]
        %v1530 = vld [vmem:[%s27 + $0x10] sm:$0xff]
        %v1531 = vld [vmem:[%s27 + $0x18] sm:$0xff]
        %v1532 = vld [vmem:[%s29] sm:$0x1]
        %v1534 = vperm.slane %v1527, 0
        %v1537 = vsel %vm1277, %v1507, 0
        %v1540 = vsel %vm1277, %v1508, 0
        %v1543 = vsel %vm1277, %v1509, 0
        %v1546 = vsel %vm1277, %v1510, 0
        %v1549 = vsel %vm1277, %v1511, 0
        %v1552 = vsel %vm1277, %v1512, 0
        %v1555 = vsel %vm1277, %v1513, 0
        %v1558 = vsel %vm1277, %v1514, 0
        %v1561 = vsel %vm1277, %v1515, 0
        %v1564 = vsel %vm1277, %v1516, 0
        %v1567 = vsel %vm1277, %v1517, 0
        %v1570 = vsel %vm1277, %v1518, 0
        %v1573 = vsel %vm1277, %v1519, 0
        %v1576 = vsel %vm1277, %v1520, 0
        %v1579 = vsel %vm1277, %v1521, 0
        %v1582 = vsel %vm1277, %v1522, 0
        %1584 = vmatpush.msra.mxu0 0.0
        %1585 = vmatpush.msra.mxu0 0.0
        %1586 = vmatpush.msra.mxu0 0.0
        %1587 = vmatpush.msra.mxu0 0.0
        %1588 = vmatpush.msra.mxu0 0.0
        %1589 = vmatpush.msra.mxu0 0.0
        %1590 = vmatpush.msra.mxu0 0.0
        %1591 = vmatpush.msra.mxu0 0.0
        %1592 = vmatpush.msra.mxu0 0.0
        %1593 = vmatpush.msra.mxu0 0.0
        %1594 = vmatpush.msra.mxu0 0.0
        %1595 = vmatpush.msra.mxu0 0.0
        %1596 = vmatpush.msra.mxu0 %v1526
        %1597 = vmatpush.msra.mxu0 %v1525
        %1598 = vmatpush.msra.mxu0 %v1524
        %1599 = vmatpush.msra.mxu0 %v1523
        %1600 = vmatmul.f32.gmra.mxu0 %v1537
        %v1601 = vpop.f32.mrf.mxu0
        %v1602 = vadd.f32 %v1534, %v1601
        %1603 = vmatmul.f32.gmra.mxu0 %v1540
        %v1604 = vpop.f32.mrf.mxu0
        %v1605 = vadd.f32 %v1534, %v1604
        %1606 = vmatmul.f32.gmra.mxu0 %v1543
        %v1607 = vpop.f32.mrf.mxu0
        %v1608 = vadd.f32 %v1534, %v1607
        %1609 = vmatmul.f32.gmra.mxu0 %v1546
        %v1610 = vpop.f32.mrf.mxu0
        %v1611 = vadd.f32 %v1534, %v1610
        %1612 = vmatmul.f32.gmra.mxu0 %v1549
        %v1613 = vpop.f32.mrf.mxu0
        %v1614 = vadd.f32 %v1534, %v1613
        %1615 = vmatmul.f32.gmra.mxu0 %v1552
        %v1616 = vpop.f32.mrf.mxu0
        %v1617 = vadd.f32 %v1534, %v1616
        %1618 = vmatmul.f32.gmra.mxu0 %v1555
        %v1619 = vpop.f32.mrf.mxu0
        %v1620 = vadd.f32 %v1534, %v1619
        %1621 = vmatmul.f32.gmra.mxu0 %v1558
        %v1622 = vpop.f32.mrf.mxu0
        %v1623 = vadd.f32 %v1534, %v1622
        %1624 = vmatmul.f32.gmra.mxu0 %v1561
        %v1625 = vpop.f32.mrf.mxu0
        %v1626 = vadd.f32 %v1534, %v1625
        %1627 = vmatmul.f32.gmra.mxu0 %v1564
        %v1628 = vpop.f32.mrf.mxu0
        %v1629 = vadd.f32 %v1534, %v1628
        %1630 = vmatmul.f32.gmra.mxu0 %v1567
        %v1631 = vpop.f32.mrf.mxu0
        %v1632 = vadd.f32 %v1534, %v1631
        %1633 = vmatmul.f32.gmra.mxu0 %v1570
        %v1634 = vpop.f32.mrf.mxu0
        %v1635 = vadd.f32 %v1534, %v1634
        %1636 = vmatmul.f32.gmra.mxu0 %v1573
        %v1637 = vpop.f32.mrf.mxu0
        %v1638 = vadd.f32 %v1534, %v1637
        %1639 = vmatmul.f32.gmra.mxu0 %v1576
        %v1640 = vpop.f32.mrf.mxu0
        %v1641 = vadd.f32 %v1534, %v1640
        %1642 = vmatmul.f32.gmra.mxu0 %v1579
        %v1643 = vpop.f32.mrf.mxu0
        %v1644 = vadd.f32 %v1534, %v1643
        %1645 = vmatmul.f32.gmra.mxu0 %v1582
        %v1646 = vpop.f32.mrf.mxu0
        %v1647 = vadd.f32 %v1534, %v1646
        %1648 = vdwg.mxu0
        %vm1649 = vcmask 523264
        %v1650 = vsel %vm1649, %v1602, 0.0
        %v1651 = vsel %vm1649, %v1605, 0.0
        %v1652 = vadd.f32 %v1650, %v1651
        %v1653 = vsel %vm1649, %v1608, 0.0
        %v1654 = vadd.f32 %v1652, %v1653
        %v1655 = vsel %vm1649, %v1611, 0.0
        %v1656 = vadd.f32 %v1654, %v1655
        %v1657 = vsel %vm1649, %v1614, 0.0
        %v1658 = vadd.f32 %v1656, %v1657
        %v1659 = vsel %vm1649, %v1617, 0.0
        %v1660 = vadd.f32 %v1658, %v1659
        %v1661 = vsel %vm1649, %v1620, 0.0
        %v1662 = vadd.f32 %v1660, %v1661
        %v1663 = vsel %vm1649, %v1623, 0.0
        %v1664 = vadd.f32 %v1662, %v1663
        %v1665 = vsel %vm1649, %v1626, 0.0
        %v1666 = vadd.f32 %v1664, %v1665
        %v1667 = vsel %vm1649, %v1629, 0.0
        %v1668 = vadd.f32 %v1666, %v1667
        %v1669 = vsel %vm1649, %v1632, 0.0
        %v1670 = vadd.f32 %v1668, %v1669
        %v1671 = vsel %vm1649, %v1635, 0.0
        %v1672 = vadd.f32 %v1670, %v1671
        %v1673 = vsel %vm1649, %v1638, 0.0
        %v1674 = vadd.f32 %v1672, %v1673
        %v1675 = vsel %vm1649, %v1641, 0.0
        %v1676 = vadd.f32 %v1674, %v1675
        %v1677 = vsel %vm1649, %v1644, 0.0
        %v1678 = vadd.f32 %v1676, %v1677
        %v1679 = vsel %vm1649, %v1647, 0.0
        %v1680 = vadd.f32 %v1678, %v1679
        %v1681 = vrot.slane %v1680, 4
        %v1682 = vadd.f32 %v1680, %v1681
        %v1683 = vrot.slane %v1682, 2
        %v1684 = vadd.f32 %v1682, %v1683
        %v1685 = vrot.slane %v1684, 1
        %v1686 = vadd.f32 %v1684, %v1685
        %v1687 = vmul.f32 %v1686, %v1321
        %v1688 = vsub.f32 %v1602, %v1687
        %v1689 = vsub.f32 %v1605, %v1687
        %v1690 = vsub.f32 %v1608, %v1687
        %v1691 = vsub.f32 %v1611, %v1687
        %v1692 = vsub.f32 %v1614, %v1687
        %v1693 = vsub.f32 %v1617, %v1687
        %v1694 = vsub.f32 %v1620, %v1687
        %v1695 = vsub.f32 %v1623, %v1687
        %v1696 = vsub.f32 %v1626, %v1687
        %v1697 = vsub.f32 %v1629, %v1687
        %v1698 = vsub.f32 %v1632, %v1687
        %v1699 = vsub.f32 %v1635, %v1687
        %v1700 = vsub.f32 %v1638, %v1687
        %v1701 = vsub.f32 %v1641, %v1687
        %v1702 = vsub.f32 %v1644, %v1687
        %v1703 = vsub.f32 %v1647, %v1687
        %v1704 = vmul.f32 %v1688, %v1688
        %v1705 = vmul.f32 %v1689, %v1689
        %v1706 = vmul.f32 %v1690, %v1690
        %v1707 = vmul.f32 %v1691, %v1691
        %v1708 = vmul.f32 %v1692, %v1692
        %v1709 = vmul.f32 %v1693, %v1693
        %v1710 = vmul.f32 %v1694, %v1694
        %v1711 = vmul.f32 %v1695, %v1695
        %v1712 = vmul.f32 %v1696, %v1696
        %v1713 = vmul.f32 %v1697, %v1697
        %v1714 = vmul.f32 %v1698, %v1698
        %v1715 = vmul.f32 %v1699, %v1699
        %v1716 = vmul.f32 %v1700, %v1700
        %v1717 = vmul.f32 %v1701, %v1701
        %v1718 = vmul.f32 %v1702, %v1702
        %v1719 = vmul.f32 %v1703, %v1703
        %v1720 = vsel %vm1649, %v1704, 0.0
        %v1721 = vsel %vm1649, %v1705, 0.0
        %v1722 = vadd.f32 %v1720, %v1721
        %v1723 = vsel %vm1649, %v1706, 0.0
        %v1724 = vadd.f32 %v1722, %v1723
        %v1725 = vsel %vm1649, %v1707, 0.0
        %v1726 = vadd.f32 %v1724, %v1725
        %v1727 = vsel %vm1649, %v1708, 0.0
        %v1728 = vadd.f32 %v1726, %v1727
        %v1729 = vsel %vm1649, %v1709, 0.0
        %v1730 = vadd.f32 %v1728, %v1729
        %v1731 = vsel %vm1649, %v1710, 0.0
        %v1732 = vadd.f32 %v1730, %v1731
        %v1733 = vsel %vm1649, %v1711, 0.0
        %v1734 = vadd.f32 %v1732, %v1733
        %v1735 = vsel %vm1649, %v1712, 0.0
        %v1736 = vadd.f32 %v1734, %v1735
        %v1737 = vsel %vm1649, %v1713, 0.0
        %v1738 = vadd.f32 %v1736, %v1737
        %v1739 = vsel %vm1649, %v1714, 0.0
        %v1740 = vadd.f32 %v1738, %v1739
        %v1741 = vsel %vm1649, %v1715, 0.0
        %v1742 = vadd.f32 %v1740, %v1741
        %v1743 = vsel %vm1649, %v1716, 0.0
        %v1744 = vadd.f32 %v1742, %v1743
        %v1745 = vsel %vm1649, %v1717, 0.0
        %v1746 = vadd.f32 %v1744, %v1745
        %v1747 = vsel %vm1649, %v1718, 0.0
        %v1748 = vadd.f32 %v1746, %v1747
        %v1749 = vsel %vm1649, %v1719, 0.0
        %v1750 = vadd.f32 %v1748, %v1749
        %v1751 = vrot.slane %v1750, 4
        %v1752 = vadd.f32 %v1750, %v1751
        %v1753 = vrot.slane %v1752, 2
        %v1754 = vadd.f32 %v1752, %v1753
        %v1755 = vrot.slane %v1754, 1
        %v1756 = vadd.f32 %v1754, %v1755
        %v1757 = vmul.f32 %v1756, %v1321
        %v1758 = vadd.f32 %v1757, 1e-05
        %v1759 = vrsqrt.pop %v1758
        %v1760 = vmul.f32 %v1759, %v1758
        %v1761 = vmul.f32 %v1760, %v1759
        %v1762 = vmul.f32 0.5, %v1761
        %v1763 = vsub.f32 1.5, %v1762
        %v1764 = vmul.f32 %v1759, %v1763
        %vm1765 = vweird.f32 %v1758
        %vm1766 = vweird.f32 %v1759
        %vm1767 = vmor %vm1765, %vm1766
        %v1768 = vsel %vm1767, %v1759, %v1764
        %v1769 = vmul.f32 %v1688, %v1768
        %v1770 = vmul.f32 %v1689, %v1768
        %v1771 = vmul.f32 %v1690, %v1768
        %v1772 = vmul.f32 %v1691, %v1768
        %v1773 = vmul.f32 %v1692, %v1768
        %v1774 = vmul.f32 %v1693, %v1768
        %v1775 = vmul.f32 %v1694, %v1768
        %v1776 = vmul.f32 %v1695, %v1768
        %v1777 = vmul.f32 %v1696, %v1768
        %v1778 = vmul.f32 %v1697, %v1768
        %v1779 = vmul.f32 %v1698, %v1768
        %v1780 = vmul.f32 %v1699, %v1768
        %v1781 = vmul.f32 %v1700, %v1768
        %v1782 = vmul.f32 %v1701, %v1768
        %v1783 = vmul.f32 %v1702, %v1768
        %v1784 = vmul.f32 %v1703, %v1768
        %v1785 = vmax.f32 %v1769, 0.0
        %v1786 = vmax.f32 %v1770, 0.0
        %v1787 = vmax.f32 %v1771, 0.0
        %v1788 = vmax.f32 %v1772, 0.0
        %v1789 = vmax.f32 %v1773, 0.0
        %v1790 = vmax.f32 %v1774, 0.0
        %v1791 = vmax.f32 %v1775, 0.0
        %v1792 = vmax.f32 %v1776, 0.0
        %v1793 = vmax.f32 %v1777, 0.0
        %v1794 = vmax.f32 %v1778, 0.0
        %v1795 = vmax.f32 %v1779, 0.0
        %v1796 = vmax.f32 %v1780, 0.0
        %v1797 = vmax.f32 %v1781, 0.0
        %v1798 = vmax.f32 %v1782, 0.0
        %v1799 = vmax.f32 %v1783, 0.0
        %v1800 = vmax.f32 %v1784, 0.0
        %v1802 = vperm.slane %v1532, 0
        %1804 = vmatpush.msra.mxu0 0.0
        %1805 = vmatpush.msra.mxu0 0.0
        %1806 = vmatpush.msra.mxu0 0.0
        %1807 = vmatpush.msra.mxu0 0.0
        %1808 = vmatpush.msra.mxu0 0.0
        %1809 = vmatpush.msra.mxu0 0.0
        %1810 = vmatpush.msra.mxu0 0.0
        %1811 = vmatpush.msra.mxu0 0.0
        %1812 = vmatpush.msra.mxu0 0.0
        %1813 = vmatpush.msra.mxu0 0.0
        %1814 = vmatpush.msra.mxu0 0.0
        %1815 = vmatpush.msra.mxu0 0.0
        %1816 = vmatpush.msra.mxu0 %v1531
        %1817 = vmatpush.msra.mxu0 %v1530
        %1818 = vmatpush.msra.mxu0 %v1529
        %1819 = vmatpush.msra.mxu0 %v1528
        %1820 = vmatmul.f32.gmra.mxu0 %v1537
        %v1821 = vpop.f32.mrf.mxu0
        %v1822 = vadd.f32 %v1802, %v1821
        %1823 = vmatmul.f32.gmra.mxu0 %v1540
        %v1824 = vpop.f32.mrf.mxu0
        %v1825 = vadd.f32 %v1802, %v1824
        %1826 = vmatmul.f32.gmra.mxu0 %v1543
        %v1827 = vpop.f32.mrf.mxu0
        %v1828 = vadd.f32 %v1802, %v1827
        %1829 = vmatmul.f32.gmra.mxu0 %v1546
        %v1830 = vpop.f32.mrf.mxu0
        %v1831 = vadd.f32 %v1802, %v1830
        %1832 = vmatmul.f32.gmra.mxu0 %v1549
        %v1833 = vpop.f32.mrf.mxu0
        %v1834 = vadd.f32 %v1802, %v1833
        %1835 = vmatmul.f32.gmra.mxu0 %v1552
        %v1836 = vpop.f32.mrf.mxu0
        %v1837 = vadd.f32 %v1802, %v1836
        %1838 = vmatmul.f32.gmra.mxu0 %v1555
        %v1839 = vpop.f32.mrf.mxu0
        %v1840 = vadd.f32 %v1802, %v1839
        %1841 = vmatmul.f32.gmra.mxu0 %v1558
        %v1842 = vpop.f32.mrf.mxu0
        %v1843 = vadd.f32 %v1802, %v1842
        %1844 = vmatmul.f32.gmra.mxu0 %v1561
        %v1845 = vpop.f32.mrf.mxu0
        %v1846 = vadd.f32 %v1802, %v1845
        %1847 = vmatmul.f32.gmra.mxu0 %v1564
        %v1848 = vpop.f32.mrf.mxu0
        %v1849 = vadd.f32 %v1802, %v1848
        %1850 = vmatmul.f32.gmra.mxu0 %v1567
        %v1851 = vpop.f32.mrf.mxu0
        %v1852 = vadd.f32 %v1802, %v1851
        %1853 = vmatmul.f32.gmra.mxu0 %v1570
        %v1854 = vpop.f32.mrf.mxu0
        %v1855 = vadd.f32 %v1802, %v1854
        %1856 = vmatmul.f32.gmra.mxu0 %v1573
        %v1857 = vpop.f32.mrf.mxu0
        %v1858 = vadd.f32 %v1802, %v1857
        %1859 = vmatmul.f32.gmra.mxu0 %v1576
        %v1860 = vpop.f32.mrf.mxu0
        %v1861 = vadd.f32 %v1802, %v1860
        %1862 = vmatmul.f32.gmra.mxu0 %v1579
        %v1863 = vpop.f32.mrf.mxu0
        %v1864 = vadd.f32 %v1802, %v1863
        %1865 = vmatmul.f32.gmra.mxu0 %v1582
        %v1866 = vpop.f32.mrf.mxu0
        %v1867 = vadd.f32 %v1802, %v1866
        %1868 = vdwg.mxu0
        %v1869 = vadd.f32 %v1785, %v1822
        %v1870 = vadd.f32 %v1786, %v1825
        %v1871 = vadd.f32 %v1787, %v1828
        %v1872 = vadd.f32 %v1788, %v1831
        %v1873 = vadd.f32 %v1789, %v1834
        %v1874 = vadd.f32 %v1790, %v1837
        %v1875 = vadd.f32 %v1791, %v1840
        %v1876 = vadd.f32 %v1792, %v1843
        %v1877 = vadd.f32 %v1793, %v1846
        %v1878 = vadd.f32 %v1794, %v1849
        %v1879 = vadd.f32 %v1795, %v1852
        %v1880 = vadd.f32 %v1796, %v1855
        %v1881 = vadd.f32 %v1797, %v1858
        %v1882 = vadd.f32 %v1798, %v1861
        %v1883 = vadd.f32 %v1799, %v1864
        %v1884 = vadd.f32 %v1800, %v1867
        %v1885 = vpack.c.bf16 %v1870, %v1869
        %v1886 = vpack.c.bf16 %v1872, %v1871
        %v1887 = vpack.c.bf16 %v1874, %v1873
        %v1888 = vpack.c.bf16 %v1876, %v1875
        %v1889 = vpack.c.bf16 %v1878, %v1877
        %v1890 = vpack.c.bf16 %v1880, %v1879
        %v1891 = vpack.c.bf16 %v1882, %v1881
        %v1892 = vpack.c.bf16 %v1884, %v1883
        %v1893 = vld [vmem:[%s31 + $0x1e0] sm:$0xf]
        %v1894 = vld [vmem:[%s31 + $0x1e4] sm:$0xf]
        %v1895 = vld [vmem:[%s31 + $0x1e8] sm:$0xf]
        %v1896 = vld [vmem:[%s31 + $0x1ec] sm:$0xf]
        %v1897 = vld [vmem:[%s31 + $0x1f0] sm:$0xf]
        %v1898 = vld [vmem:[%s31 + $0x1f4] sm:$0xf]
        %v1899 = vld [vmem:[%s31 + $0x1f8] sm:$0xf]
        %v1900 = vld [vmem:[%s31 + $0x1fc] sm:$0xf]
        %v1901 = vld [vmem:[%s1107] sm:$0xff]
        %v1902 = vld [vmem:[%s1107 + $0x8] sm:$0xff]
        %v1903 = vld [vmem:[%s1107 + $0x10] sm:$0xff]
        %v1904 = vld [vmem:[%s1107 + $0x18] sm:$0xff]
        %v1905 = vld [vmem:[%s1107 + $0x20] sm:$0xff]
        %v1906 = vld [vmem:[%s1107 + $0x28] sm:$0xff]
        %v1907 = vld [vmem:[%s1107 + $0x30] sm:$0xff]
        %v1908 = vld [vmem:[%s1107 + $0x38] sm:$0xff]
        %v1909 = vld [vmem:[%s1107 + $0x40] sm:$0xff]
        %v1910 = vld [vmem:[%s1107 + $0x48] sm:$0xff]
        %v1911 = vld [vmem:[%s1107 + $0x50] sm:$0xff]
        %v1912 = vld [vmem:[%s1107 + $0x58] sm:$0xff]
        %v1913 = vld [vmem:[%s1107 + $0x60] sm:$0xff]
        %v1914 = vld [vmem:[%s1107 + $0x68] sm:$0xff]
        %v1915 = vld [vmem:[%s1107 + $0x70] sm:$0xff]
        %v1916 = vld [vmem:[%s1107 + $0x78] sm:$0xff]
        %v1917 = vld [vmem:[%s1112] sm:$0xff]
        %v1918 = vld [vmem:[%s1112 + $0x8] sm:$0xff]
        %v1919 = vld [vmem:[%s1112 + $0x10] sm:$0xff]
        %v1920 = vld [vmem:[%s1112 + $0x18] sm:$0xff]
        %v1921 = vld [vmem:[%s1112 + $0x20] sm:$0xff]
        %v1922 = vld [vmem:[%s1112 + $0x28] sm:$0xff]
        %v1923 = vld [vmem:[%s1112 + $0x30] sm:$0xff]
        %v1924 = vld [vmem:[%s1112 + $0x38] sm:$0xff]
        %v1925 = vld [vmem:[%s1112 + $0x40] sm:$0xff]
        %v1926 = vld [vmem:[%s1112 + $0x48] sm:$0xff]
        %v1927 = vld [vmem:[%s1112 + $0x50] sm:$0xff]
        %v1928 = vld [vmem:[%s1112 + $0x58] sm:$0xff]
        %v1929 = vld [vmem:[%s1112 + $0x60] sm:$0xff]
        %v1930 = vld [vmem:[%s1112 + $0x68] sm:$0xff]
        %v1931 = vld [vmem:[%s1112 + $0x70] sm:$0xff]
        %v1932 = vld [vmem:[%s1112 + $0x78] sm:$0xff]
        %v1933 = vld [vmem:[%s31] sm:$0xf]
        %v1934 = vld [vmem:[%s31 + $0x4] sm:$0xf]
        %v1935 = vld [vmem:[%s31 + $0x8] sm:$0xf]
        %v1936 = vld [vmem:[%s31 + $0xc] sm:$0xf]
        %v1937 = vld [vmem:[%s31 + $0x10] sm:$0xf]
        %v1938 = vld [vmem:[%s31 + $0x14] sm:$0xf]
        %v1939 = vld [vmem:[%s31 + $0x18] sm:$0xf]
        %v1940 = vld [vmem:[%s31 + $0x1c] sm:$0xf]
        %v1941 = vld [vmem:[%s31 + $0x20] sm:$0xf]
        %v1942 = vld [vmem:[%s31 + $0x24] sm:$0xf]
        %v1943 = vld [vmem:[%s31 + $0x28] sm:$0xf]
        %v1944 = vld [vmem:[%s31 + $0x2c] sm:$0xf]
        %v1945 = vld [vmem:[%s31 + $0x30] sm:$0xf]
        %v1946 = vld [vmem:[%s31 + $0x34] sm:$0xf]
        %v1947 = vld [vmem:[%s31 + $0x38] sm:$0xf]
        %v1948 = vld [vmem:[%s31 + $0x3c] sm:$0xf]
        %v1949 = vld [vmem:[%s31 + $0x40] sm:$0xf]
        %v1950 = vld [vmem:[%s31 + $0x44] sm:$0xf]
        %v1951 = vld [vmem:[%s31 + $0x48] sm:$0xf]
        %v1952 = vld [vmem:[%s31 + $0x4c] sm:$0xf]
        %v1953 = vld [vmem:[%s31 + $0x50] sm:$0xf]
        %v1954 = vld [vmem:[%s31 + $0x54] sm:$0xf]
        %v1955 = vld [vmem:[%s31 + $0x58] sm:$0xf]
        %v1956 = vld [vmem:[%s31 + $0x5c] sm:$0xf]
        %v1957 = vld [vmem:[%s31 + $0x60] sm:$0xf]
        %v1958 = vld [vmem:[%s31 + $0x64] sm:$0xf]
        %v1959 = vld [vmem:[%s31 + $0x68] sm:$0xf]
        %v1960 = vld [vmem:[%s31 + $0x6c] sm:$0xf]
        %v1961 = vld [vmem:[%s31 + $0x70] sm:$0xf]
        %v1962 = vld [vmem:[%s31 + $0x74] sm:$0xf]
        %v1963 = vld [vmem:[%s31 + $0x78] sm:$0xf]
        %v1964 = vld [vmem:[%s31 + $0x7c] sm:$0xf]
        %v1965 = vld [vmem:[%s31 + $0x80] sm:$0xf]
        %v1966 = vld [vmem:[%s31 + $0x84] sm:$0xf]
        %v1967 = vld [vmem:[%s31 + $0x88] sm:$0xf]
        %v1968 = vld [vmem:[%s31 + $0x8c] sm:$0xf]
        %v1969 = vld [vmem:[%s31 + $0x90] sm:$0xf]
        %v1970 = vld [vmem:[%s31 + $0x94] sm:$0xf]
        %v1971 = vld [vmem:[%s31 + $0x98] sm:$0xf]
        %v1972 = vld [vmem:[%s31 + $0x9c] sm:$0xf]
        %v1973 = vld [vmem:[%s31 + $0xa0] sm:$0xf]
        %v1974 = vld [vmem:[%s31 + $0xa4] sm:$0xf]
        %v1975 = vld [vmem:[%s31 + $0xa8] sm:$0xf]
        %v1976 = vld [vmem:[%s31 + $0xac] sm:$0xf]
        %v1977 = vld [vmem:[%s31 + $0xb0] sm:$0xf]
        %v1978 = vld [vmem:[%s31 + $0xb4] sm:$0xf]
        %v1979 = vld [vmem:[%s31 + $0xb8] sm:$0xf]
        %v1980 = vld [vmem:[%s31 + $0xbc] sm:$0xf]
        %v1981 = vld [vmem:[%s31 + $0xc0] sm:$0xf]
        %v1982 = vld [vmem:[%s31 + $0xc4] sm:$0xf]
        %v1983 = vld [vmem:[%s31 + $0xc8] sm:$0xf]
        %v1984 = vld [vmem:[%s31 + $0xcc] sm:$0xf]
        %v1985 = vld [vmem:[%s31 + $0xd0] sm:$0xf]
        %v1986 = vld [vmem:[%s31 + $0xd4] sm:$0xf]
        %v1987 = vld [vmem:[%s31 + $0xd8] sm:$0xf]
        %v1988 = vld [vmem:[%s31 + $0xdc] sm:$0xf]
        %v1989 = vld [vmem:[%s31 + $0xe0] sm:$0xf]
        %v1990 = vld [vmem:[%s31 + $0xe4] sm:$0xf]
        %v1991 = vld [vmem:[%s31 + $0xe8] sm:$0xf]
        %v1992 = vld [vmem:[%s31 + $0xec] sm:$0xf]
        %v1993 = vld [vmem:[%s31 + $0xf0] sm:$0xf]
        %v1994 = vld [vmem:[%s31 + $0xf4] sm:$0xf]
        %v1995 = vld [vmem:[%s31 + $0xf8] sm:$0xf]
        %v1996 = vld [vmem:[%s31 + $0xfc] sm:$0xf]
        %v1997 = vlaneseq
        %v1998 = vand.u32 %v1997, 127
        %1999 = vset.pattern.permute.xlu0 0
        %2000 = vperm.xlu0 %1999, %v1901
        %v2001 = vpop.permute.xlu0 %2000
        %2002 = vset.pattern.permute.xlu0 0
        %2003 = vperm.xlu0 %2002, %v1902
        %v2004 = vpop.permute.xlu0 %2003
        %2005 = vset.pattern.permute.xlu0 0
        %2006 = vperm.xlu0 %2005, %v1903
        %v2007 = vpop.permute.xlu0 %2006
        %2008 = vset.pattern.permute.xlu0 0
        %2009 = vperm.xlu0 %2008, %v1904
        %v2010 = vpop.permute.xlu0 %2009
        %2011 = vset.pattern.permute.xlu0 0
        %2012 = vperm.xlu0 %2011, %v1905
        %v2013 = vpop.permute.xlu0 %2012
        %2014 = vset.pattern.permute.xlu0 0
        %2015 = vperm.xlu0 %2014, %v1906
        %v2016 = vpop.permute.xlu0 %2015
        %2017 = vset.pattern.permute.xlu0 0
        %2018 = vperm.xlu0 %2017, %v1907
        %v2019 = vpop.permute.xlu0 %2018
        %2020 = vset.pattern.permute.xlu0 0
        %2021 = vperm.xlu0 %2020, %v1908
        %v2022 = vpop.permute.xlu0 %2021
        %2023 = vset.pattern.permute.xlu0 0
        %2024 = vperm.xlu0 %2023, %v1909
        %v2025 = vpop.permute.xlu0 %2024
        %2026 = vset.pattern.permute.xlu0 0
        %2027 = vperm.xlu0 %2026, %v1910
        %v2028 = vpop.permute.xlu0 %2027
        %2029 = vset.pattern.permute.xlu0 0
        %2030 = vperm.xlu0 %2029, %v1911
        %v2031 = vpop.permute.xlu0 %2030
        %2032 = vset.pattern.permute.xlu0 0
        %2033 = vperm.xlu0 %2032, %v1912
        %v2034 = vpop.permute.xlu0 %2033
        %2035 = vset.pattern.permute.xlu0 0
        %2036 = vperm.xlu0 %2035, %v1913
        %v2037 = vpop.permute.xlu0 %2036
        %2038 = vset.pattern.permute.xlu0 0
        %2039 = vperm.xlu0 %2038, %v1914
        %v2040 = vpop.permute.xlu0 %2039
        %2041 = vset.pattern.permute.xlu0 0
        %2042 = vperm.xlu0 %2041, %v1915
        %v2043 = vpop.permute.xlu0 %2042
        %2044 = vset.pattern.permute.xlu0 0
        %2045 = vperm.xlu0 %2044, %v1916
        %v2046 = vpop.permute.xlu0 %2045
        %vm2047 = vcmp.eq.s32.totalorder %v1998, %v2001
        %vm2048 = vcmp.eq.s32.totalorder %v1998, %v2004
        %vm2049 = vcmp.eq.s32.totalorder %v1998, %v2007
        %vm2050 = vcmp.eq.s32.totalorder %v1998, %v2010
        %vm2051 = vcmp.eq.s32.totalorder %v1998, %v2013
        %vm2052 = vcmp.eq.s32.totalorder %v1998, %v2016
        %vm2053 = vcmp.eq.s32.totalorder %v1998, %v2019
        %vm2054 = vcmp.eq.s32.totalorder %v1998, %v2022
        %vm2055 = vcmp.eq.s32.totalorder %v1998, %v2025
        %vm2056 = vcmp.eq.s32.totalorder %v1998, %v2028
        %vm2057 = vcmp.eq.s32.totalorder %v1998, %v2031
        %vm2058 = vcmp.eq.s32.totalorder %v1998, %v2034
        %vm2059 = vcmp.eq.s32.totalorder %v1998, %v2037
        %vm2060 = vcmp.eq.s32.totalorder %v1998, %v2040
        %vm2061 = vcmp.eq.s32.totalorder %v1998, %v2043
        %vm2062 = vcmp.eq.s32.totalorder %v1998, %v2046
        %2064 = vset.pattern.permute.xlu0 0
        %2065 = vperm.xlu0 %2064, %v1917
        %v2066 = vpop.permute.xlu0 %2065
        %2069 = vset.pattern.permute.xlu0 0
        %2070 = vperm.xlu0 %2069, %v1918
        %v2071 = vpop.permute.xlu0 %2070
        %2074 = vset.pattern.permute.xlu0 0
        %2075 = vperm.xlu0 %2074, %v1919
        %v2076 = vpop.permute.xlu0 %2075
        %2079 = vset.pattern.permute.xlu0 0
        %2080 = vperm.xlu0 %2079, %v1920
        %v2081 = vpop.permute.xlu0 %2080
        %2084 = vset.pattern.permute.xlu0 0
        %2085 = vperm.xlu0 %2084, %v1921
        %v2086 = vpop.permute.xlu0 %2085
        %2089 = vset.pattern.permute.xlu0 0
        %2090 = vperm.xlu0 %2089, %v1922
        %v2091 = vpop.permute.xlu0 %2090
        %2094 = vset.pattern.permute.xlu0 0
        %2095 = vperm.xlu0 %2094, %v1923
        %v2096 = vpop.permute.xlu0 %2095
        %2099 = vset.pattern.permute.xlu0 0
        %2100 = vperm.xlu0 %2099, %v1924
        %v2101 = vpop.permute.xlu0 %2100
        %2104 = vset.pattern.permute.xlu0 0
        %2105 = vperm.xlu0 %2104, %v1925
        %v2106 = vpop.permute.xlu0 %2105
        %2109 = vset.pattern.permute.xlu0 0
        %2110 = vperm.xlu0 %2109, %v1926
        %v2111 = vpop.permute.xlu0 %2110
        %2114 = vset.pattern.permute.xlu0 0
        %2115 = vperm.xlu0 %2114, %v1927
        %v2116 = vpop.permute.xlu0 %2115
        %2119 = vset.pattern.permute.xlu0 0
        %2120 = vperm.xlu0 %2119, %v1928
        %v2121 = vpop.permute.xlu0 %2120
        %2124 = vset.pattern.permute.xlu0 0
        %2125 = vperm.xlu0 %2124, %v1929
        %v2126 = vpop.permute.xlu0 %2125
        %2129 = vset.pattern.permute.xlu0 0
        %2130 = vperm.xlu0 %2129, %v1930
        %v2131 = vpop.permute.xlu0 %2130
        %2134 = vset.pattern.permute.xlu0 0
        %2135 = vperm.xlu0 %2134, %v1931
        %v2136 = vpop.permute.xlu0 %2135
        %2139 = vset.pattern.permute.xlu0 0
        %2140 = vperm.xlu0 %2139, %v1932
        %v2141 = vpop.permute.xlu0 %2140
        %v2143 = vsel %vm2047, %v2066, 0.0
        %v2144 = vsel %vm2048, %v2071, 0.0
        %v2145 = vsel %vm2049, %v2076, 0.0
        %v2146 = vsel %vm2050, %v2081, 0.0
        %v2147 = vsel %vm2051, %v2086, 0.0
        %v2148 = vsel %vm2052, %v2091, 0.0
        %v2149 = vsel %vm2053, %v2096, 0.0
        %v2150 = vsel %vm2054, %v2101, 0.0
        %v2151 = vsel %vm2055, %v2106, 0.0
        %v2152 = vsel %vm2056, %v2111, 0.0
        %v2153 = vsel %vm2057, %v2116, 0.0
        %v2154 = vsel %vm2058, %v2121, 0.0
        %v2155 = vsel %vm2059, %v2126, 0.0
        %v2156 = vsel %vm2060, %v2131, 0.0
        %v2157 = vsel %vm2061, %v2136, 0.0
        %v2158 = vsel %vm2062, %v2141, 0.0
        %v2159 = vadd.f32 %v2143, 0.0
        %v2160 = vadd.f32 %v2144, 0.0
        %v2161 = vadd.f32 %v2145, 0.0
        %v2162 = vadd.f32 %v2146, 0.0
        %v2163 = vadd.f32 %v2147, 0.0
        %v2164 = vadd.f32 %v2148, 0.0
        %v2165 = vadd.f32 %v2149, 0.0
        %v2166 = vadd.f32 %v2150, 0.0
        %v2167 = vadd.f32 %v2151, 0.0
        %v2168 = vadd.f32 %v2152, 0.0
        %v2169 = vadd.f32 %v2153, 0.0
        %v2170 = vadd.f32 %v2154, 0.0
        %v2171 = vadd.f32 %v2155, 0.0
        %v2172 = vadd.f32 %v2156, 0.0
        %v2173 = vadd.f32 %v2157, 0.0
        %v2174 = vadd.f32 %v2158, 0.0
        %2175 = vset.pattern.permute.xlu0 1
        %2176 = vperm.xlu0 %2175, %v1901
        %v2177 = vpop.permute.xlu0 %2176
        %2178 = vset.pattern.permute.xlu0 1
        %2179 = vperm.xlu0 %2178, %v1902
        %v2180 = vpop.permute.xlu0 %2179
        %2181 = vset.pattern.permute.xlu0 1
        %2182 = vperm.xlu0 %2181, %v1903
        %v2183 = vpop.permute.xlu0 %2182
        %2184 = vset.pattern.permute.xlu0 1
        %2185 = vperm.xlu0 %2184, %v1904
        %v2186 = vpop.permute.xlu0 %2185
        %2187 = vset.pattern.permute.xlu0 1
        %2188 = vperm.xlu0 %2187, %v1905
        %v2189 = vpop.permute.xlu0 %2188
        %2190 = vset.pattern.permute.xlu0 1
        %2191 = vperm.xlu0 %2190, %v1906
        %v2192 = vpop.permute.xlu0 %2191
        %2193 = vset.pattern.permute.xlu0 1
        %2194 = vperm.xlu0 %2193, %v1907
        %v2195 = vpop.permute.xlu0 %2194
        %2196 = vset.pattern.permute.xlu0 1
        %2197 = vperm.xlu0 %2196, %v1908
        %v2198 = vpop.permute.xlu0 %2197
        %2199 = vset.pattern.permute.xlu0 1
        %2200 = vperm.xlu0 %2199, %v1909
        %v2201 = vpop.permute.xlu0 %2200
        %2202 = vset.pattern.permute.xlu0 1
        %2203 = vperm.xlu0 %2202, %v1910
        %v2204 = vpop.permute.xlu0 %2203
        %2205 = vset.pattern.permute.xlu0 1
        %2206 = vperm.xlu0 %2205, %v1911
        %v2207 = vpop.permute.xlu0 %2206
        %2208 = vset.pattern.permute.xlu0 1
        %2209 = vperm.xlu0 %2208, %v1912
        %v2210 = vpop.permute.xlu0 %2209
        %2211 = vset.pattern.permute.xlu0 1
        %2212 = vperm.xlu0 %2211, %v1913
        %v2213 = vpop.permute.xlu0 %2212
        %2214 = vset.pattern.permute.xlu0 1
        %2215 = vperm.xlu0 %2214, %v1914
        %v2216 = vpop.permute.xlu0 %2215
        %2217 = vset.pattern.permute.xlu0 1
        %2218 = vperm.xlu0 %2217, %v1915
        %v2219 = vpop.permute.xlu0 %2218
        %2220 = vset.pattern.permute.xlu0 1
        %2221 = vperm.xlu0 %2220, %v1916
        %v2222 = vpop.permute.xlu0 %2221
        %vm2223 = vcmp.eq.s32.totalorder %v1998, %v2177
        %vm2224 = vcmp.eq.s32.totalorder %v1998, %v2180
        %vm2225 = vcmp.eq.s32.totalorder %v1998, %v2183
        %vm2226 = vcmp.eq.s32.totalorder %v1998, %v2186
        %vm2227 = vcmp.eq.s32.totalorder %v1998, %v2189
        %vm2228 = vcmp.eq.s32.totalorder %v1998, %v2192
        %vm2229 = vcmp.eq.s32.totalorder %v1998, %v2195
        %vm2230 = vcmp.eq.s32.totalorder %v1998, %v2198
        %vm2231 = vcmp.eq.s32.totalorder %v1998, %v2201
        %vm2232 = vcmp.eq.s32.totalorder %v1998, %v2204
        %vm2233 = vcmp.eq.s32.totalorder %v1998, %v2207
        %vm2234 = vcmp.eq.s32.totalorder %v1998, %v2210
        %vm2235 = vcmp.eq.s32.totalorder %v1998, %v2213
        %vm2236 = vcmp.eq.s32.totalorder %v1998, %v2216
        %vm2237 = vcmp.eq.s32.totalorder %v1998, %v2219
        %vm2238 = vcmp.eq.s32.totalorder %v1998, %v2222
        %2239 = vset.pattern.permute.xlu0 1
        %2240 = vperm.xlu0 %2239, %v1917
        %v2241 = vpop.permute.xlu0 %2240
        %2243 = vset.pattern.permute.xlu0 1
        %2244 = vperm.xlu0 %2243, %v1918
        %v2245 = vpop.permute.xlu0 %2244
        %2247 = vset.pattern.permute.xlu0 1
        %2248 = vperm.xlu0 %2247, %v1919
        %v2249 = vpop.permute.xlu0 %2248
        %2251 = vset.pattern.permute.xlu0 1
        %2252 = vperm.xlu0 %2251, %v1920
        %v2253 = vpop.permute.xlu0 %2252
        %2255 = vset.pattern.permute.xlu0 1
        %2256 = vperm.xlu0 %2255, %v1921
        %v2257 = vpop.permute.xlu0 %2256
        %2259 = vset.pattern.permute.xlu0 1
        %2260 = vperm.xlu0 %2259, %v1922
        %v2261 = vpop.permute.xlu0 %2260
        %2263 = vset.pattern.permute.xlu0 1
        %2264 = vperm.xlu0 %2263, %v1923
        %v2265 = vpop.permute.xlu0 %2264
        %2267 = vset.pattern.permute.xlu0 1
        %2268 = vperm.xlu0 %2267, %v1924
        %v2269 = vpop.permute.xlu0 %2268
        %2271 = vset.pattern.permute.xlu0 1
        %2272 = vperm.xlu0 %2271, %v1925
        %v2273 = vpop.permute.xlu0 %2272
        %2275 = vset.pattern.permute.xlu0 1
        %2276 = vperm.xlu0 %2275, %v1926
        %v2277 = vpop.permute.xlu0 %2276
        %2279 = vset.pattern.permute.xlu0 1
        %2280 = vperm.xlu0 %2279, %v1927
        %v2281 = vpop.permute.xlu0 %2280
        %2283 = vset.pattern.permute.xlu0 1
        %2284 = vperm.xlu0 %2283, %v1928
        %v2285 = vpop.permute.xlu0 %2284
        %2287 = vset.pattern.permute.xlu0 1
        %2288 = vperm.xlu0 %2287, %v1929
        %v2289 = vpop.permute.xlu0 %2288
        %2291 = vset.pattern.permute.xlu0 1
        %2292 = vperm.xlu0 %2291, %v1930
        %v2293 = vpop.permute.xlu0 %2292
        %2295 = vset.pattern.permute.xlu0 1
        %2296 = vperm.xlu0 %2295, %v1931
        %v2297 = vpop.permute.xlu0 %2296
        %2299 = vset.pattern.permute.xlu0 1
        %2300 = vperm.xlu0 %2299, %v1932
        %v2301 = vpop.permute.xlu0 %2300
        %v2303 = vsel %vm2223, %v2241, 0.0
        %v2304 = vsel %vm2224, %v2245, 0.0
        %v2305 = vsel %vm2225, %v2249, 0.0
        %v2306 = vsel %vm2226, %v2253, 0.0
        %v2307 = vsel %vm2227, %v2257, 0.0
        %v2308 = vsel %vm2228, %v2261, 0.0
        %v2309 = vsel %vm2229, %v2265, 0.0
        %v2310 = vsel %vm2230, %v2269, 0.0
        %v2311 = vsel %vm2231, %v2273, 0.0
        %v2312 = vsel %vm2232, %v2277, 0.0
        %v2313 = vsel %vm2233, %v2281, 0.0
        %v2314 = vsel %vm2234, %v2285, 0.0
        %v2315 = vsel %vm2235, %v2289, 0.0
        %v2316 = vsel %vm2236, %v2293, 0.0
        %v2317 = vsel %vm2237, %v2297, 0.0
        %v2318 = vsel %vm2238, %v2301, 0.0
        %v2319 = vadd.f32 %v2159, %v2303
        %v2320 = vadd.f32 %v2160, %v2304
        %v2321 = vadd.f32 %v2161, %v2305
        %v2322 = vadd.f32 %v2162, %v2306
        %v2323 = vadd.f32 %v2163, %v2307
        %v2324 = vadd.f32 %v2164, %v2308
        %v2325 = vadd.f32 %v2165, %v2309
        %v2326 = vadd.f32 %v2166, %v2310
        %v2327 = vadd.f32 %v2167, %v2311
        %v2328 = vadd.f32 %v2168, %v2312
        %v2329 = vadd.f32 %v2169, %v2313
        %v2330 = vadd.f32 %v2170, %v2314
        %v2331 = vadd.f32 %v2171, %v2315
        %v2332 = vadd.f32 %v2172, %v2316
        %v2333 = vadd.f32 %v2173, %v2317
        %v2334 = vadd.f32 %v2174, %v2318
        %2335 = vset.pattern.permute.xlu0 2
        %2336 = vperm.xlu0 %2335, %v1901
        %v2337 = vpop.permute.xlu0 %2336
        %2338 = vset.pattern.permute.xlu0 2
        %2339 = vperm.xlu0 %2338, %v1902
        %v2340 = vpop.permute.xlu0 %2339
        %2341 = vset.pattern.permute.xlu0 2
        %2342 = vperm.xlu0 %2341, %v1903
        %v2343 = vpop.permute.xlu0 %2342
        %2344 = vset.pattern.permute.xlu0 2
        %2345 = vperm.xlu0 %2344, %v1904
        %v2346 = vpop.permute.xlu0 %2345
        %2347 = vset.pattern.permute.xlu0 2
        %2348 = vperm.xlu0 %2347, %v1905
        %v2349 = vpop.permute.xlu0 %2348
        %2350 = vset.pattern.permute.xlu0 2
        %2351 = vperm.xlu0 %2350, %v1906
        %v2352 = vpop.permute.xlu0 %2351
        %2353 = vset.pattern.permute.xlu0 2
        %2354 = vperm.xlu0 %2353, %v1907
        %v2355 = vpop.permute.xlu0 %2354
        %2356 = vset.pattern.permute.xlu0 2
        %2357 = vperm.xlu0 %2356, %v1908
        %v2358 = vpop.permute.xlu0 %2357
        %2359 = vset.pattern.permute.xlu0 2
        %2360 = vperm.xlu0 %2359, %v1909
        %v2361 = vpop.permute.xlu0 %2360
        %2362 = vset.pattern.permute.xlu0 2
        %2363 = vperm.xlu0 %2362, %v1910
        %v2364 = vpop.permute.xlu0 %2363
        %2365 = vset.pattern.permute.xlu0 2
        %2366 = vperm.xlu0 %2365, %v1911
        %v2367 = vpop.permute.xlu0 %2366
        %2368 = vset.pattern.permute.xlu0 2
        %2369 = vperm.xlu0 %2368, %v1912
        %v2370 = vpop.permute.xlu0 %2369
        %2371 = vset.pattern.permute.xlu0 2
        %2372 = vperm.xlu0 %2371, %v1913
        %v2373 = vpop.permute.xlu0 %2372
        %2374 = vset.pattern.permute.xlu0 2
        %2375 = vperm.xlu0 %2374, %v1914
        %v2376 = vpop.permute.xlu0 %2375
        %2377 = vset.pattern.permute.xlu0 2
        %2378 = vperm.xlu0 %2377, %v1915
        %v2379 = vpop.permute.xlu0 %2378
        %2380 = vset.pattern.permute.xlu0 2
        %2381 = vperm.xlu0 %2380, %v1916
        %v2382 = vpop.permute.xlu0 %2381
        %vm2383 = vcmp.eq.s32.totalorder %v1998, %v2337
        %vm2384 = vcmp.eq.s32.totalorder %v1998, %v2340
        %vm2385 = vcmp.eq.s32.totalorder %v1998, %v2343
        %vm2386 = vcmp.eq.s32.totalorder %v1998, %v2346
        %vm2387 = vcmp.eq.s32.totalorder %v1998, %v2349
        %vm2388 = vcmp.eq.s32.totalorder %v1998, %v2352
        %vm2389 = vcmp.eq.s32.totalorder %v1998, %v2355
        %vm2390 = vcmp.eq.s32.totalorder %v1998, %v2358
        %vm2391 = vcmp.eq.s32.totalorder %v1998, %v2361
        %vm2392 = vcmp.eq.s32.totalorder %v1998, %v2364
        %vm2393 = vcmp.eq.s32.totalorder %v1998, %v2367
        %vm2394 = vcmp.eq.s32.totalorder %v1998, %v2370
        %vm2395 = vcmp.eq.s32.totalorder %v1998, %v2373
        %vm2396 = vcmp.eq.s32.totalorder %v1998, %v2376
        %vm2397 = vcmp.eq.s32.totalorder %v1998, %v2379
        %vm2398 = vcmp.eq.s32.totalorder %v1998, %v2382
        %2399 = vset.pattern.permute.xlu0 2
        %2400 = vperm.xlu0 %2399, %v1917
        %v2401 = vpop.permute.xlu0 %2400
        %2403 = vset.pattern.permute.xlu0 2
        %2404 = vperm.xlu0 %2403, %v1918
        %v2405 = vpop.permute.xlu0 %2404
        %2407 = vset.pattern.permute.xlu0 2
        %2408 = vperm.xlu0 %2407, %v1919
        %v2409 = vpop.permute.xlu0 %2408
        %2411 = vset.pattern.permute.xlu0 2
        %2412 = vperm.xlu0 %2411, %v1920
        %v2413 = vpop.permute.xlu0 %2412
        %2415 = vset.pattern.permute.xlu0 2
        %2416 = vperm.xlu0 %2415, %v1921
        %v2417 = vpop.permute.xlu0 %2416
        %2419 = vset.pattern.permute.xlu0 2
        %2420 = vperm.xlu0 %2419, %v1922
        %v2421 = vpop.permute.xlu0 %2420
        %2423 = vset.pattern.permute.xlu0 2
        %2424 = vperm.xlu0 %2423, %v1923
        %v2425 = vpop.permute.xlu0 %2424
        %2427 = vset.pattern.permute.xlu0 2
        %2428 = vperm.xlu0 %2427, %v1924
        %v2429 = vpop.permute.xlu0 %2428
        %2431 = vset.pattern.permute.xlu0 2
        %2432 = vperm.xlu0 %2431, %v1925
        %v2433 = vpop.permute.xlu0 %2432
        %2435 = vset.pattern.permute.xlu0 2
        %2436 = vperm.xlu0 %2435, %v1926
        %v2437 = vpop.permute.xlu0 %2436
        %2439 = vset.pattern.permute.xlu0 2
        %2440 = vperm.xlu0 %2439, %v1927
        %v2441 = vpop.permute.xlu0 %2440
        %2443 = vset.pattern.permute.xlu0 2
        %2444 = vperm.xlu0 %2443, %v1928
        %v2445 = vpop.permute.xlu0 %2444
        %2447 = vset.pattern.permute.xlu0 2
        %2448 = vperm.xlu0 %2447, %v1929
        %v2449 = vpop.permute.xlu0 %2448
        %2451 = vset.pattern.permute.xlu0 2
        %2452 = vperm.xlu0 %2451, %v1930
        %v2453 = vpop.permute.xlu0 %2452
        %2455 = vset.pattern.permute.xlu0 2
        %2456 = vperm.xlu0 %2455, %v1931
        %v2457 = vpop.permute.xlu0 %2456
        %2459 = vset.pattern.permute.xlu0 2
        %2460 = vperm.xlu0 %2459, %v1932
        %v2461 = vpop.permute.xlu0 %2460
        %v2463 = vsel %vm2383, %v2401, 0.0
        %v2464 = vsel %vm2384, %v2405, 0.0
        %v2465 = vsel %vm2385, %v2409, 0.0
        %v2466 = vsel %vm2386, %v2413, 0.0
        %v2467 = vsel %vm2387, %v2417, 0.0
        %v2468 = vsel %vm2388, %v2421, 0.0
        %v2469 = vsel %vm2389, %v2425, 0.0
        %v2470 = vsel %vm2390, %v2429, 0.0
        %v2471 = vsel %vm2391, %v2433, 0.0
        %v2472 = vsel %vm2392, %v2437, 0.0
        %v2473 = vsel %vm2393, %v2441, 0.0
        %v2474 = vsel %vm2394, %v2445, 0.0
        %v2475 = vsel %vm2395, %v2449, 0.0
        %v2476 = vsel %vm2396, %v2453, 0.0
        %v2477 = vsel %vm2397, %v2457, 0.0
        %v2478 = vsel %vm2398, %v2461, 0.0
        %v2479 = vadd.f32 %v2319, %v2463
        %v2480 = vadd.f32 %v2320, %v2464
        %v2481 = vadd.f32 %v2321, %v2465
        %v2482 = vadd.f32 %v2322, %v2466
        %v2483 = vadd.f32 %v2323, %v2467
        %v2484 = vadd.f32 %v2324, %v2468
        %v2485 = vadd.f32 %v2325, %v2469
        %v2486 = vadd.f32 %v2326, %v2470
        %v2487 = vadd.f32 %v2327, %v2471
        %v2488 = vadd.f32 %v2328, %v2472
        %v2489 = vadd.f32 %v2329, %v2473
        %v2490 = vadd.f32 %v2330, %v2474
        %v2491 = vadd.f32 %v2331, %v2475
        %v2492 = vadd.f32 %v2332, %v2476
        %v2493 = vadd.f32 %v2333, %v2477
        %v2494 = vadd.f32 %v2334, %v2478
        %2495 = vset.pattern.permute.xlu0 3
        %2496 = vperm.xlu0 %2495, %v1901
        %v2497 = vpop.permute.xlu0 %2496
        %2498 = vset.pattern.permute.xlu0 3
        %2499 = vperm.xlu0 %2498, %v1902
        %v2500 = vpop.permute.xlu0 %2499
        %2501 = vset.pattern.permute.xlu0 3
        %2502 = vperm.xlu0 %2501, %v1903
        %v2503 = vpop.permute.xlu0 %2502
        %2504 = vset.pattern.permute.xlu0 3
        %2505 = vperm.xlu0 %2504, %v1904
        %v2506 = vpop.permute.xlu0 %2505
        %2507 = vset.pattern.permute.xlu0 3
        %2508 = vperm.xlu0 %2507, %v1905
        %v2509 = vpop.permute.xlu0 %2508
        %2510 = vset.pattern.permute.xlu0 3
        %2511 = vperm.xlu0 %2510, %v1906
        %v2512 = vpop.permute.xlu0 %2511
        %2513 = vset.pattern.permute.xlu0 3
        %2514 = vperm.xlu0 %2513, %v1907
        %v2515 = vpop.permute.xlu0 %2514
        %2516 = vset.pattern.permute.xlu0 3
        %2517 = vperm.xlu0 %2516, %v1908
        %v2518 = vpop.permute.xlu0 %2517
        %2519 = vset.pattern.permute.xlu0 3
        %2520 = vperm.xlu0 %2519, %v1909
        %v2521 = vpop.permute.xlu0 %2520
        %2522 = vset.pattern.permute.xlu0 3
        %2523 = vperm.xlu0 %2522, %v1910
        %v2524 = vpop.permute.xlu0 %2523
        %2525 = vset.pattern.permute.xlu0 3
        %2526 = vperm.xlu0 %2525, %v1911
        %v2527 = vpop.permute.xlu0 %2526
        %2528 = vset.pattern.permute.xlu0 3
        %2529 = vperm.xlu0 %2528, %v1912
        %v2530 = vpop.permute.xlu0 %2529
        %2531 = vset.pattern.permute.xlu0 3
        %2532 = vperm.xlu0 %2531, %v1913
        %v2533 = vpop.permute.xlu0 %2532
        %2534 = vset.pattern.permute.xlu0 3
        %2535 = vperm.xlu0 %2534, %v1914
        %v2536 = vpop.permute.xlu0 %2535
        %2537 = vset.pattern.permute.xlu0 3
        %2538 = vperm.xlu0 %2537, %v1915
        %v2539 = vpop.permute.xlu0 %2538
        %2540 = vset.pattern.permute.xlu0 3
        %2541 = vperm.xlu0 %2540, %v1916
        %v2542 = vpop.permute.xlu0 %2541
        %vm2543 = vcmp.eq.s32.totalorder %v1998, %v2497
        %vm2544 = vcmp.eq.s32.totalorder %v1998, %v2500
        %vm2545 = vcmp.eq.s32.totalorder %v1998, %v2503
        %vm2546 = vcmp.eq.s32.totalorder %v1998, %v2506
        %vm2547 = vcmp.eq.s32.totalorder %v1998, %v2509
        %vm2548 = vcmp.eq.s32.totalorder %v1998, %v2512
        %vm2549 = vcmp.eq.s32.totalorder %v1998, %v2515
        %vm2550 = vcmp.eq.s32.totalorder %v1998, %v2518
        %vm2551 = vcmp.eq.s32.totalorder %v1998, %v2521
        %vm2552 = vcmp.eq.s32.totalorder %v1998, %v2524
        %vm2553 = vcmp.eq.s32.totalorder %v1998, %v2527
        %vm2554 = vcmp.eq.s32.totalorder %v1998, %v2530
        %vm2555 = vcmp.eq.s32.totalorder %v1998, %v2533
        %vm2556 = vcmp.eq.s32.totalorder %v1998, %v2536
        %vm2557 = vcmp.eq.s32.totalorder %v1998, %v2539
        %vm2558 = vcmp.eq.s32.totalorder %v1998, %v2542
        %2559 = vset.pattern.permute.xlu0 3
        %2560 = vperm.xlu0 %2559, %v1917
        %v2561 = vpop.permute.xlu0 %2560
        %2563 = vset.pattern.permute.xlu0 3
        %2564 = vperm.xlu0 %2563, %v1918
        %v2565 = vpop.permute.xlu0 %2564
        %2567 = vset.pattern.permute.xlu0 3
        %2568 = vperm.xlu0 %2567, %v1919
        %v2569 = vpop.permute.xlu0 %2568
        %2571 = vset.pattern.permute.xlu0 3
        %2572 = vperm.xlu0 %2571, %v1920
        %v2573 = vpop.permute.xlu0 %2572
        %2575 = vset.pattern.permute.xlu0 3
        %2576 = vperm.xlu0 %2575, %v1921
        %v2577 = vpop.permute.xlu0 %2576
        %2579 = vset.pattern.permute.xlu0 3
        %2580 = vperm.xlu0 %2579, %v1922
        %v2581 = vpop.permute.xlu0 %2580
        %2583 = vset.pattern.permute.xlu0 3
        %2584 = vperm.xlu0 %2583, %v1923
        %v2585 = vpop.permute.xlu0 %2584
        %2587 = vset.pattern.permute.xlu0 3
        %2588 = vperm.xlu0 %2587, %v1924
        %v2589 = vpop.permute.xlu0 %2588
        %2591 = vset.pattern.permute.xlu0 3
        %2592 = vperm.xlu0 %2591, %v1925
        %v2593 = vpop.permute.xlu0 %2592
        %2595 = vset.pattern.permute.xlu0 3
        %2596 = vperm.xlu0 %2595, %v1926
        %v2597 = vpop.permute.xlu0 %2596
        %2599 = vset.pattern.permute.xlu0 3
        %2600 = vperm.xlu0 %2599, %v1927
        %v2601 = vpop.permute.xlu0 %2600
        %2603 = vset.pattern.permute.xlu0 3
        %2604 = vperm.xlu0 %2603, %v1928
        %v2605 = vpop.permute.xlu0 %2604
        %2607 = vset.pattern.permute.xlu0 3
        %2608 = vperm.xlu0 %2607, %v1929
        %v2609 = vpop.permute.xlu0 %2608
        %2611 = vset.pattern.permute.xlu0 3
        %2612 = vperm.xlu0 %2611, %v1930
        %v2613 = vpop.permute.xlu0 %2612
        %2615 = vset.pattern.permute.xlu0 3
        %2616 = vperm.xlu0 %2615, %v1931
        %v2617 = vpop.permute.xlu0 %2616
        %2619 = vset.pattern.permute.xlu0 3
        %2620 = vperm.xlu0 %2619, %v1932
        %v2621 = vpop.permute.xlu0 %2620
        %v2623 = vsel %vm2543, %v2561, 0.0
        %v2624 = vsel %vm2544, %v2565, 0.0
        %v2625 = vsel %vm2545, %v2569, 0.0
        %v2626 = vsel %vm2546, %v2573, 0.0
        %v2627 = vsel %vm2547, %v2577, 0.0
        %v2628 = vsel %vm2548, %v2581, 0.0
        %v2629 = vsel %vm2549, %v2585, 0.0
        %v2630 = vsel %vm2550, %v2589, 0.0
        %v2631 = vsel %vm2551, %v2593, 0.0
        %v2632 = vsel %vm2552, %v2597, 0.0
        %v2633 = vsel %vm2553, %v2601, 0.0
        %v2634 = vsel %vm2554, %v2605, 0.0
        %v2635 = vsel %vm2555, %v2609, 0.0
        %v2636 = vsel %vm2556, %v2613, 0.0
        %v2637 = vsel %vm2557, %v2617, 0.0
        %v2638 = vsel %vm2558, %v2621, 0.0
        %v2639 = vadd.f32 %v2479, %v2623
        %v2640 = vadd.f32 %v2480, %v2624
        %v2641 = vadd.f32 %v2481, %v2625
        %v2642 = vadd.f32 %v2482, %v2626
        %v2643 = vadd.f32 %v2483, %v2627
        %v2644 = vadd.f32 %v2484, %v2628
        %v2645 = vadd.f32 %v2485, %v2629
        %v2646 = vadd.f32 %v2486, %v2630
        %v2647 = vadd.f32 %v2487, %v2631
        %v2648 = vadd.f32 %v2488, %v2632
        %v2649 = vadd.f32 %v2489, %v2633
        %v2650 = vadd.f32 %v2490, %v2634
        %v2651 = vadd.f32 %v2491, %v2635
        %v2652 = vadd.f32 %v2492, %v2636
        %v2653 = vadd.f32 %v2493, %v2637
        %v2654 = vadd.f32 %v2494, %v2638
        %v2655 = vpack.c.bf16 %v2640, %v2639
        %v2656 = vpack.c.bf16 %v2642, %v2641
        %v2657 = vpack.c.bf16 %v2644, %v2643
        %v2658 = vpack.c.bf16 %v2646, %v2645
        %v2659 = vpack.c.bf16 %v2648, %v2647
        %v2660 = vpack.c.bf16 %v2650, %v2649
        %v2661 = vpack.c.bf16 %v2652, %v2651
        %v2662 = vpack.c.bf16 %v2654, %v2653
        %v2663 = vld [vmem:[%s1117] sm:$0xff]
        %v2664 = vld [vmem:[%s1117 + $0x8] sm:$0xff]
        %v2665 = vld [vmem:[%s1117 + $0x10] sm:$0xff]
        %v2666 = vld [vmem:[%s1117 + $0x18] sm:$0xff]
        %v2671 = vunpack.c.l.b16 %v2663
        %v2672 = vunpack.c.h.b16 %v2663
        %v2673 = vunpack.c.l.b16 %v2664
        %v2674 = vunpack.c.h.b16 %v2664
        %v2675 = vunpack.c.l.b16 %v2665
        %v2676 = vunpack.c.h.b16 %v2665
        %v2677 = vunpack.c.l.b16 %v2666
        %v2678 = vunpack.c.h.b16 %v2666
        %v2679 = vpack.c.b16 %v2675, %v2671
        %v2680 = vpack.c.b16 %v2676, %v2672
        %v2681 = vpack.c.b16 %v2677, %v2673
        %v2682 = vpack.c.b16 %v2678, %v2674
        %v2751 = vunpack.c.l.b16 %v1933
        %v2752 = vunpack.c.l.b16 %v1934
        %v2753 = vunpack.c.l.b16 %v1935
        %v2754 = vunpack.c.l.b16 %v1936
        %v2755 = vunpack.c.l.b16 %v1937
        %v2756 = vunpack.c.l.b16 %v1938
        %v2757 = vunpack.c.l.b16 %v1939
        %v2758 = vunpack.c.l.b16 %v1940
        %v2759 = vunpack.c.l.b16 %v1941
        %v2760 = vunpack.c.l.b16 %v1942
        %v2761 = vunpack.c.l.b16 %v1943
        %v2762 = vunpack.c.l.b16 %v1944
        %v2763 = vunpack.c.l.b16 %v1945
        %v2764 = vunpack.c.l.b16 %v1946
        %v2765 = vunpack.c.l.b16 %v1947
        %v2766 = vunpack.c.l.b16 %v1948
        %v2767 = vunpack.c.l.b16 %v1949
        %v2768 = vunpack.c.l.b16 %v1950
        %v2769 = vunpack.c.l.b16 %v1951
        %v2770 = vunpack.c.l.b16 %v1952
        %v2771 = vunpack.c.l.b16 %v1953
        %v2772 = vunpack.c.l.b16 %v1954
        %v2773 = vunpack.c.l.b16 %v1955
        %v2774 = vunpack.c.l.b16 %v1956
        %v2775 = vunpack.c.l.b16 %v1957
        %v2776 = vunpack.c.l.b16 %v1958
        %v2777 = vunpack.c.l.b16 %v1959
        %v2778 = vunpack.c.l.b16 %v1960
        %v2779 = vunpack.c.l.b16 %v1961
        %v2780 = vunpack.c.l.b16 %v1962
        %v2781 = vunpack.c.l.b16 %v1963
        %v2782 = vunpack.c.l.b16 %v1964
        %v2783 = vunpack.c.l.b16 %v1965
        %v2784 = vunpack.c.l.b16 %v1966
        %v2785 = vunpack.c.l.b16 %v1967
        %v2786 = vunpack.c.l.b16 %v1968
        %v2787 = vunpack.c.l.b16 %v1969
        %v2788 = vunpack.c.l.b16 %v1970
        %v2789 = vunpack.c.l.b16 %v1971
        %v2790 = vunpack.c.l.b16 %v1972
        %v2791 = vunpack.c.l.b16 %v1973
        %v2792 = vunpack.c.l.b16 %v1974
        %v2793 = vunpack.c.l.b16 %v1975
        %v2794 = vunpack.c.l.b16 %v1976
        %v2795 = vunpack.c.l.b16 %v1977
        %v2796 = vunpack.c.l.b16 %v1978
        %v2797 = vunpack.c.l.b16 %v1979
        %v2798 = vunpack.c.l.b16 %v1980
        %v2799 = vunpack.c.l.b16 %v1981
        %v2800 = vunpack.c.l.b16 %v1982
        %v2801 = vunpack.c.l.b16 %v1983
        %v2802 = vunpack.c.l.b16 %v1984
        %v2803 = vunpack.c.l.b16 %v1985
        %v2804 = vunpack.c.l.b16 %v1986
        %v2805 = vunpack.c.l.b16 %v1987
        %v2806 = vunpack.c.l.b16 %v1988
        %v2807 = vunpack.c.l.b16 %v1989
        %v2808 = vunpack.c.l.b16 %v1990
        %v2809 = vunpack.c.l.b16 %v1991
        %v2810 = vunpack.c.l.b16 %v1992
        %v2811 = vunpack.c.l.b16 %v1993
        %v2812 = vunpack.c.l.b16 %v1994
        %v2813 = vunpack.c.l.b16 %v1995
        %v2814 = vunpack.c.l.b16 %v1996
        %v2815 = vpack.c.b16 %v2752, %v2751
        %v2816 = vpack.c.b16 %v2754, %v2753
        %v2817 = vpack.c.b16 %v2756, %v2755
        %v2818 = vpack.c.b16 %v2758, %v2757
        %v2819 = vpack.c.b16 %v2760, %v2759
        %v2820 = vpack.c.b16 %v2762, %v2761
        %v2821 = vpack.c.b16 %v2764, %v2763
        %v2822 = vpack.c.b16 %v2766, %v2765
        %v2823 = vpack.c.b16 %v2768, %v2767
        %v2824 = vpack.c.b16 %v2770, %v2769
        %v2825 = vpack.c.b16 %v2772, %v2771
        %v2826 = vpack.c.b16 %v2774, %v2773
        %v2827 = vpack.c.b16 %v2776, %v2775
        %v2828 = vpack.c.b16 %v2778, %v2777
        %v2829 = vpack.c.b16 %v2780, %v2779
        %v2830 = vpack.c.b16 %v2782, %v2781
        %v2831 = vpack.c.b16 %v2784, %v2783
        %v2832 = vpack.c.b16 %v2786, %v2785
        %v2833 = vpack.c.b16 %v2788, %v2787
        %v2834 = vpack.c.b16 %v2790, %v2789
        %v2835 = vpack.c.b16 %v2792, %v2791
        %v2836 = vpack.c.b16 %v2794, %v2793
        %v2837 = vpack.c.b16 %v2796, %v2795
        %v2838 = vpack.c.b16 %v2798, %v2797
        %v2839 = vpack.c.b16 %v2800, %v2799
        %v2840 = vpack.c.b16 %v2802, %v2801
        %v2841 = vpack.c.b16 %v2804, %v2803
        %v2842 = vpack.c.b16 %v2806, %v2805
        %v2843 = vpack.c.b16 %v2808, %v2807
        %v2844 = vpack.c.b16 %v2810, %v2809
        %v2845 = vpack.c.b16 %v2812, %v2811
        %v2846 = vpack.c.b16 %v2814, %v2813
        %2879 = vmatpush.bf16.msra.mxu0 %v2822
        %2880 = vmatpush.bf16.msra.mxu0 %v2821
        %2881 = vmatpush.bf16.msra.mxu0 %v2820
        %2882 = vmatpush.bf16.msra.mxu0 %v2819
        %2883 = vmatpush.bf16.msra.mxu0 %v2818
        %2884 = vmatpush.bf16.msra.mxu0 %v2817
        %2885 = vmatpush.bf16.msra.mxu0 %v2816
        %2886 = vmatpush.bf16.msra.mxu0 %v2815
        %2887 = vmatmul.bf16.gmra.mxu0 %v2679
        %v2888 = vpop.f32.mrf.mxu0
        %v2889 = vadd.f32 0.0, %v2888
        %v2890 = vpop.f32.mrf.mxu0
        %v2891 = vadd.f32 0.0, %v2890
        %2892 = vdwg.mxu0
        %2893 = vmatpush.bf16.msra.mxu0 %v2830
        %2894 = vmatpush.bf16.msra.mxu0 %v2829
        %2895 = vmatpush.bf16.msra.mxu0 %v2828
        %2896 = vmatpush.bf16.msra.mxu0 %v2827
        %2897 = vmatpush.bf16.msra.mxu0 %v2826
        %2898 = vmatpush.bf16.msra.mxu0 %v2825
        %2899 = vmatpush.bf16.msra.mxu0 %v2824
        %2900 = vmatpush.bf16.msra.mxu0 %v2823
        %2901 = vmatmul.bf16.gmra.mxu0 %v2680
        %v2902 = vpop.f32.mrf.mxu0
        %v2903 = vadd.f32 %v2889, %v2902
        %v2904 = vpop.f32.mrf.mxu0
        %v2905 = vadd.f32 %v2891, %v2904
        %2906 = vdwg.mxu0
        %2907 = vmatpush.bf16.msra.mxu0 %v2838
        %2908 = vmatpush.bf16.msra.mxu0 %v2837
        %2909 = vmatpush.bf16.msra.mxu0 %v2836
        %2910 = vmatpush.bf16.msra.mxu0 %v2835
        %2911 = vmatpush.bf16.msra.mxu0 %v2834
        %2912 = vmatpush.bf16.msra.mxu0 %v2833
        %2913 = vmatpush.bf16.msra.mxu0 %v2832
        %2914 = vmatpush.bf16.msra.mxu0 %v2831
        %2915 = vmatmul.bf16.gmra.mxu0 %v2681
        %v2916 = vpop.f32.mrf.mxu0
        %v2917 = vadd.f32 %v2903, %v2916
        %v2918 = vpop.f32.mrf.mxu0
        %v2919 = vadd.f32 %v2905, %v2918
        %2920 = vdwg.mxu0
        %2921 = vmatpush.bf16.msra.mxu0 %v2846
        %2922 = vmatpush.bf16.msra.mxu0 %v2845
        %2923 = vmatpush.bf16.msra.mxu0 %v2844
        %2924 = vmatpush.bf16.msra.mxu0 %v2843
        %2925 = vmatpush.bf16.msra.mxu0 %v2842
        %2926 = vmatpush.bf16.msra.mxu0 %v2841
        %2927 = vmatpush.bf16.msra.mxu0 %v2840
        %2928 = vmatpush.bf16.msra.mxu0 %v2839
        %2929 = vmatmul.bf16.gmra.mxu0 %v2682
        %v2930 = vpop.f32.mrf.mxu0
        %v2931 = vadd.f32 %v2917, %v2930
        %v2932 = vpop.f32.mrf.mxu0
        %v2933 = vadd.f32 %v2919, %v2932
        %2934 = vdwg.mxu0
        %v2935 = vpack.c.bf16 %v2933, %v2931
        %vm2936 = vcmask 130048
        %v2938 = vsel %vm2936, %v2655, 0
        %v2941 = vsel %vm2936, %v2656, 0
        %v2944 = vsel %vm2936, %v2657, 0
        %v2947 = vsel %vm2936, %v2658, 0
        %v2950 = vsel %vm2936, %v2659, 0
        %v2953 = vsel %vm2936, %v2660, 0
        %v2956 = vsel %vm2936, %v2661, 0
        %v2959 = vsel %vm2936, %v2662, 0
        %2961 = vmatpush.bf16.msra.mxu0 0
        %2962 = vmatpush.bf16.msra.mxu0 0
        %2963 = vmatpush.bf16.msra.mxu0 0
        %2964 = vmatpush.bf16.msra.mxu0 0
        %2965 = vmatpush.bf16.msra.mxu0 0
        %2966 = vmatpush.bf16.msra.mxu0 0
        %2967 = vmatpush.bf16.msra.mxu0 0
        %2968 = vmatpush.bf16.msra.mxu0 %v2935
        %2969 = vmatmul.bf16.gmra.mxu0 %v2938
        %v2970 = vpop.f32.mrf.mxu0
        %v2971 = vadd.f32 0.0, %v2970
        %v2972 = vpop.f32.mrf.mxu0
        %v2973 = vadd.f32 0.0, %v2972
        %2974 = vmatmul.bf16.gmra.mxu0 %v2941
        %v2975 = vpop.f32.mrf.mxu0
        %v2976 = vadd.f32 0.0, %v2975
        %v2977 = vpop.f32.mrf.mxu0
        %v2978 = vadd.f32 0.0, %v2977
        %2979 = vmatmul.bf16.gmra.mxu0 %v2944
        %v2980 = vpop.f32.mrf.mxu0
        %v2981 = vadd.f32 0.0, %v2980
        %v2982 = vpop.f32.mrf.mxu0
        %v2983 = vadd.f32 0.0, %v2982
        %2984 = vmatmul.bf16.gmra.mxu0 %v2947
        %v2985 = vpop.f32.mrf.mxu0
        %v2986 = vadd.f32 0.0, %v2985
        %v2987 = vpop.f32.mrf.mxu0
        %v2988 = vadd.f32 0.0, %v2987
        %2989 = vmatmul.bf16.gmra.mxu0 %v2950
        %v2990 = vpop.f32.mrf.mxu0
        %v2991 = vadd.f32 0.0, %v2990
        %v2992 = vpop.f32.mrf.mxu0
        %v2993 = vadd.f32 0.0, %v2992
        %2994 = vmatmul.bf16.gmra.mxu0 %v2953
        %v2995 = vpop.f32.mrf.mxu0
        %v2996 = vadd.f32 0.0, %v2995
        %v2997 = vpop.f32.mrf.mxu0
        %v2998 = vadd.f32 0.0, %v2997
        %2999 = vmatmul.bf16.gmra.mxu0 %v2956
        %v3000 = vpop.f32.mrf.mxu0
        %v3001 = vadd.f32 0.0, %v3000
        %v3002 = vpop.f32.mrf.mxu0
        %v3003 = vadd.f32 0.0, %v3002
        %3004 = vmatmul.bf16.gmra.mxu0 %v2959
        %v3005 = vpop.f32.mrf.mxu0
        %v3006 = vadd.f32 0.0, %v3005
        %v3007 = vpop.f32.mrf.mxu0
        %v3008 = vadd.f32 0.0, %v3007
        %3009 = vdwg.mxu0
        %v3018 = vunpack.c.l.b16 %v1893
        %v3019 = vunpack.c.l.b16 %v1894
        %v3020 = vunpack.c.l.b16 %v1895
        %v3021 = vunpack.c.l.b16 %v1896
        %v3022 = vunpack.c.l.b16 %v1897
        %v3023 = vunpack.c.l.b16 %v1898
        %v3024 = vunpack.c.l.b16 %v1899
        %v3025 = vunpack.c.l.b16 %v1900
        %v3026 = vpack.c.b16 %v3019, %v3018
        %v3027 = vpack.c.b16 %v3021, %v3020
        %v3028 = vpack.c.b16 %v3023, %v3022
        %v3029 = vpack.c.b16 %v3025, %v3024
        %v3035 = vsel %vm1649, %v1885, 0
        %v3038 = vsel %vm1649, %v1886, 0
        %v3041 = vsel %vm1649, %v1887, 0
        %v3044 = vsel %vm1649, %v1888, 0
        %v3047 = vsel %vm1649, %v1889, 0
        %v3050 = vsel %vm1649, %v1890, 0
        %v3053 = vsel %vm1649, %v1891, 0
        %v3056 = vsel %vm1649, %v1892, 0
        %3058 = vmatpush.bf16.msra.mxu0 0
        %3059 = vmatpush.bf16.msra.mxu0 0
        %3060 = vmatpush.bf16.msra.mxu0 0
        %3061 = vmatpush.bf16.msra.mxu0 0
        %3062 = vmatpush.bf16.msra.mxu0 %v3029
        %3063 = vmatpush.bf16.msra.mxu0 %v3028
        %3064 = vmatpush.bf16.msra.mxu0 %v3027
        %3065 = vmatpush.bf16.msra.mxu0 %v3026
        %3066 = vmatmul.bf16.gmra.mxu0 %v3035
        %v3067 = vpop.f32.mrf.mxu0
        %v3068 = vadd.f32 %v2971, %v3067
        %v3069 = vpop.f32.mrf.mxu0
        %v3070 = vadd.f32 %v2973, %v3069
        %3071 = vmatmul.bf16.gmra.mxu0 %v3038
        %v3072 = vpop.f32.mrf.mxu0
        %v3073 = vadd.f32 %v2976, %v3072
        %v3074 = vpop.f32.mrf.mxu0
        %v3075 = vadd.f32 %v2978, %v3074
        %3076 = vmatmul.bf16.gmra.mxu0 %v3041
        %v3077 = vpop.f32.mrf.mxu0
        %v3078 = vadd.f32 %v2981, %v3077
        %v3079 = vpop.f32.mrf.mxu0
        %v3080 = vadd.f32 %v2983, %v3079
        %3081 = vmatmul.bf16.gmra.mxu0 %v3044
        %v3082 = vpop.f32.mrf.mxu0
        %v3083 = vadd.f32 %v2986, %v3082
        %v3084 = vpop.f32.mrf.mxu0
        %v3085 = vadd.f32 %v2988, %v3084
        %3086 = vmatmul.bf16.gmra.mxu0 %v3047
        %v3087 = vpop.f32.mrf.mxu0
        %v3088 = vadd.f32 %v2991, %v3087
        %v3089 = vpop.f32.mrf.mxu0
        %v3090 = vadd.f32 %v2993, %v3089
        %3091 = vmatmul.bf16.gmra.mxu0 %v3050
        %v3092 = vpop.f32.mrf.mxu0
        %v3093 = vadd.f32 %v2996, %v3092
        %v3094 = vpop.f32.mrf.mxu0
        %v3095 = vadd.f32 %v2998, %v3094
        %3096 = vmatmul.bf16.gmra.mxu0 %v3053
        %v3097 = vpop.f32.mrf.mxu0
        %v3098 = vadd.f32 %v3001, %v3097
        %v3099 = vpop.f32.mrf.mxu0
        %v3100 = vadd.f32 %v3003, %v3099
        %3101 = vmatmul.bf16.gmra.mxu0 %v3056
        %v3102 = vpop.f32.mrf.mxu0
        %v3103 = vadd.f32 %v3006, %v3102
        %v3104 = vpop.f32.mrf.mxu0
        %v3105 = vadd.f32 %v3008, %v3104
        %3106 = vdwg.mxu0
        %v3107 = vld [vmem:[%s31 + $0x100] sm:$0xf]
        %v3108 = vld [vmem:[%s31 + $0x104] sm:$0xf]
        %v3109 = vld [vmem:[%s31 + $0x108] sm:$0xf]
        %v3110 = vld [vmem:[%s31 + $0x10c] sm:$0xf]
        %v3111 = vld [vmem:[%s31 + $0x110] sm:$0xf]
        %v3112 = vld [vmem:[%s31 + $0x114] sm:$0xf]
        %v3113 = vld [vmem:[%s31 + $0x118] sm:$0xf]
        %v3114 = vld [vmem:[%s31 + $0x11c] sm:$0xf]
        %v3115 = vld [vmem:[%s31 + $0x120] sm:$0xf]
        %v3116 = vld [vmem:[%s31 + $0x124] sm:$0xf]
        %v3117 = vld [vmem:[%s31 + $0x128] sm:$0xf]
        %v3118 = vld [vmem:[%s31 + $0x12c] sm:$0xf]
        %v3119 = vld [vmem:[%s31 + $0x130] sm:$0xf]
        %v3120 = vld [vmem:[%s31 + $0x134] sm:$0xf]
        %v3121 = vld [vmem:[%s31 + $0x138] sm:$0xf]
        %v3122 = vld [vmem:[%s31 + $0x13c] sm:$0xf]
        %v3123 = vld [vmem:[%s31 + $0x140] sm:$0xf]
        %v3124 = vld [vmem:[%s31 + $0x144] sm:$0xf]
        %v3125 = vld [vmem:[%s31 + $0x148] sm:$0xf]
        %v3126 = vld [vmem:[%s31 + $0x14c] sm:$0xf]
        %v3127 = vld [vmem:[%s31 + $0x150] sm:$0xf]
        %v3128 = vld [vmem:[%s31 + $0x154] sm:$0xf]
        %v3129 = vld [vmem:[%s31 + $0x158] sm:$0xf]
        %v3130 = vld [vmem:[%s31 + $0x15c] sm:$0xf]
        %v3131 = vld [vmem:[%s31 + $0x160] sm:$0xf]
        %v3132 = vld [vmem:[%s31 + $0x164] sm:$0xf]
        %v3133 = vld [vmem:[%s31 + $0x168] sm:$0xf]
        %v3134 = vld [vmem:[%s31 + $0x16c] sm:$0xf]
        %v3135 = vld [vmem:[%s31 + $0x170] sm:$0xf]
        %v3136 = vld [vmem:[%s31 + $0x174] sm:$0xf]
        %v3137 = vld [vmem:[%s31 + $0x178] sm:$0xf]
        %v3138 = vld [vmem:[%s31 + $0x17c] sm:$0xf]
        %3139 = vset.pattern.permute.xlu0 4
        %3140 = vperm.xlu0 %3139, %v1901
        %v3141 = vpop.permute.xlu0 %3140
        %3142 = vset.pattern.permute.xlu0 4
        %3143 = vperm.xlu0 %3142, %v1902
        %v3144 = vpop.permute.xlu0 %3143
        %3145 = vset.pattern.permute.xlu0 4
        %3146 = vperm.xlu0 %3145, %v1903
        %v3147 = vpop.permute.xlu0 %3146
        %3148 = vset.pattern.permute.xlu0 4
        %3149 = vperm.xlu0 %3148, %v1904
        %v3150 = vpop.permute.xlu0 %3149
        %3151 = vset.pattern.permute.xlu0 4
        %3152 = vperm.xlu0 %3151, %v1905
        %v3153 = vpop.permute.xlu0 %3152
        %3154 = vset.pattern.permute.xlu0 4
        %3155 = vperm.xlu0 %3154, %v1906
        %v3156 = vpop.permute.xlu0 %3155
        %3157 = vset.pattern.permute.xlu0 4
        %3158 = vperm.xlu0 %3157, %v1907
        %v3159 = vpop.permute.xlu0 %3158
        %3160 = vset.pattern.permute.xlu0 4
        %3161 = vperm.xlu0 %3160, %v1908
        %v3162 = vpop.permute.xlu0 %3161
        %3163 = vset.pattern.permute.xlu0 4
        %3164 = vperm.xlu0 %3163, %v1909
        %v3165 = vpop.permute.xlu0 %3164
        %3166 = vset.pattern.permute.xlu0 4
        %3167 = vperm.xlu0 %3166, %v1910
        %v3168 = vpop.permute.xlu0 %3167
        %3169 = vset.pattern.permute.xlu0 4
        %3170 = vperm.xlu0 %3169, %v1911
        %v3171 = vpop.permute.xlu0 %3170
        %3172 = vset.pattern.permute.xlu0 4
        %3173 = vperm.xlu0 %3172, %v1912
        %v3174 = vpop.permute.xlu0 %3173
        %3175 = vset.pattern.permute.xlu0 4
        %3176 = vperm.xlu0 %3175, %v1913
        %v3177 = vpop.permute.xlu0 %3176
        %3178 = vset.pattern.permute.xlu0 4
        %3179 = vperm.xlu0 %3178, %v1914
        %v3180 = vpop.permute.xlu0 %3179
        %3181 = vset.pattern.permute.xlu0 4
        %3182 = vperm.xlu0 %3181, %v1915
        %v3183 = vpop.permute.xlu0 %3182
        %3184 = vset.pattern.permute.xlu0 4
        %3185 = vperm.xlu0 %3184, %v1916
        %v3186 = vpop.permute.xlu0 %3185
        %vm3187 = vcmp.eq.s32.totalorder %v1998, %v3141
        %vm3188 = vcmp.eq.s32.totalorder %v1998, %v3144
        %vm3189 = vcmp.eq.s32.totalorder %v1998, %v3147
        %vm3190 = vcmp.eq.s32.totalorder %v1998, %v3150
        %vm3191 = vcmp.eq.s32.totalorder %v1998, %v3153
        %vm3192 = vcmp.eq.s32.totalorder %v1998, %v3156
        %vm3193 = vcmp.eq.s32.totalorder %v1998, %v3159
        %vm3194 = vcmp.eq.s32.totalorder %v1998, %v3162
        %vm3195 = vcmp.eq.s32.totalorder %v1998, %v3165
        %vm3196 = vcmp.eq.s32.totalorder %v1998, %v3168
        %vm3197 = vcmp.eq.s32.totalorder %v1998, %v3171
        %vm3198 = vcmp.eq.s32.totalorder %v1998, %v3174
        %vm3199 = vcmp.eq.s32.totalorder %v1998, %v3177
        %vm3200 = vcmp.eq.s32.totalorder %v1998, %v3180
        %vm3201 = vcmp.eq.s32.totalorder %v1998, %v3183
        %vm3202 = vcmp.eq.s32.totalorder %v1998, %v3186
        %3203 = vset.pattern.permute.xlu0 4
        %3204 = vperm.xlu0 %3203, %v1917
        %v3205 = vpop.permute.xlu0 %3204
        %3207 = vset.pattern.permute.xlu0 4
        %3208 = vperm.xlu0 %3207, %v1918
        %v3209 = vpop.permute.xlu0 %3208
        %3211 = vset.pattern.permute.xlu0 4
        %3212 = vperm.xlu0 %3211, %v1919
        %v3213 = vpop.permute.xlu0 %3212
        %3215 = vset.pattern.permute.xlu0 4
        %3216 = vperm.xlu0 %3215, %v1920
        %v3217 = vpop.permute.xlu0 %3216
        %3219 = vset.pattern.permute.xlu0 4
        %3220 = vperm.xlu0 %3219, %v1921
        %v3221 = vpop.permute.xlu0 %3220
        %3223 = vset.pattern.permute.xlu0 4
        %3224 = vperm.xlu0 %3223, %v1922
        %v3225 = vpop.permute.xlu0 %3224
        %3227 = vset.pattern.permute.xlu0 4
        %3228 = vperm.xlu0 %3227, %v1923
        %v3229 = vpop.permute.xlu0 %3228
        %3231 = vset.pattern.permute.xlu0 4
        %3232 = vperm.xlu0 %3231, %v1924
        %v3233 = vpop.permute.xlu0 %3232
        %3235 = vset.pattern.permute.xlu0 4
        %3236 = vperm.xlu0 %3235, %v1925
        %v3237 = vpop.permute.xlu0 %3236
        %3239 = vset.pattern.permute.xlu0 4
        %3240 = vperm.xlu0 %3239, %v1926
        %v3241 = vpop.permute.xlu0 %3240
        %3243 = vset.pattern.permute.xlu0 4
        %3244 = vperm.xlu0 %3243, %v1927
        %v3245 = vpop.permute.xlu0 %3244
        %3247 = vset.pattern.permute.xlu0 4
        %3248 = vperm.xlu0 %3247, %v1928
        %v3249 = vpop.permute.xlu0 %3248
        %3251 = vset.pattern.permute.xlu0 4
        %3252 = vperm.xlu0 %3251, %v1929
        %v3253 = vpop.permute.xlu0 %3252
        %3255 = vset.pattern.permute.xlu0 4
        %3256 = vperm.xlu0 %3255, %v1930
        %v3257 = vpop.permute.xlu0 %3256
        %3259 = vset.pattern.permute.xlu0 4
        %3260 = vperm.xlu0 %3259, %v1931
        %v3261 = vpop.permute.xlu0 %3260
        %3263 = vset.pattern.permute.xlu0 4
        %3264 = vperm.xlu0 %3263, %v1932
        %v3265 = vpop.permute.xlu0 %3264
        %v3267 = vsel %vm3187, %v3205, 0.0
        %v3268 = vsel %vm3188, %v3209, 0.0
        %v3269 = vsel %vm3189, %v3213, 0.0
        %v3270 = vsel %vm3190, %v3217, 0.0
        %v3271 = vsel %vm3191, %v3221, 0.0
        %v3272 = vsel %vm3192, %v3225, 0.0
        %v3273 = vsel %vm3193, %v3229, 0.0
        %v3274 = vsel %vm3194, %v3233, 0.0
        %v3275 = vsel %vm3195, %v3237, 0.0
        %v3276 = vsel %vm3196, %v3241, 0.0
        %v3277 = vsel %vm3197, %v3245, 0.0
        %v3278 = vsel %vm3198, %v3249, 0.0
        %v3279 = vsel %vm3199, %v3253, 0.0
        %v3280 = vsel %vm3200, %v3257, 0.0
        %v3281 = vsel %vm3201, %v3261, 0.0
        %v3282 = vsel %vm3202, %v3265, 0.0
        %v3283 = vadd.f32 %v3267, 0.0
        %v3284 = vadd.f32 %v3268, 0.0
        %v3285 = vadd.f32 %v3269, 0.0
        %v3286 = vadd.f32 %v3270, 0.0
        %v3287 = vadd.f32 %v3271, 0.0
        %v3288 = vadd.f32 %v3272, 0.0
        %v3289 = vadd.f32 %v3273, 0.0
        %v3290 = vadd.f32 %v3274, 0.0
        %v3291 = vadd.f32 %v3275, 0.0
        %v3292 = vadd.f32 %v3276, 0.0
        %v3293 = vadd.f32 %v3277, 0.0
        %v3294 = vadd.f32 %v3278, 0.0
        %v3295 = vadd.f32 %v3279, 0.0
        %v3296 = vadd.f32 %v3280, 0.0
        %v3297 = vadd.f32 %v3281, 0.0
        %v3298 = vadd.f32 %v3282, 0.0
        %3299 = vset.pattern.permute.xlu0 5
        %3300 = vperm.xlu0 %3299, %v1901
        %v3301 = vpop.permute.xlu0 %3300
        %3302 = vset.pattern.permute.xlu0 5
        %3303 = vperm.xlu0 %3302, %v1902
        %v3304 = vpop.permute.xlu0 %3303
        %3305 = vset.pattern.permute.xlu0 5
        %3306 = vperm.xlu0 %3305, %v1903
        %v3307 = vpop.permute.xlu0 %3306
        %3308 = vset.pattern.permute.xlu0 5
        %3309 = vperm.xlu0 %3308, %v1904
        %v3310 = vpop.permute.xlu0 %3309
        %3311 = vset.pattern.permute.xlu0 5
        %3312 = vperm.xlu0 %3311, %v1905
        %v3313 = vpop.permute.xlu0 %3312
        %3314 = vset.pattern.permute.xlu0 5
        %3315 = vperm.xlu0 %3314, %v1906
        %v3316 = vpop.permute.xlu0 %3315
        %3317 = vset.pattern.permute.xlu0 5
        %3318 = vperm.xlu0 %3317, %v1907
        %v3319 = vpop.permute.xlu0 %3318
        %3320 = vset.pattern.permute.xlu0 5
        %3321 = vperm.xlu0 %3320, %v1908
        %v3322 = vpop.permute.xlu0 %3321
        %3323 = vset.pattern.permute.xlu0 5
        %3324 = vperm.xlu0 %3323, %v1909
        %v3325 = vpop.permute.xlu0 %3324
        %3326 = vset.pattern.permute.xlu0 5
        %3327 = vperm.xlu0 %3326, %v1910
        %v3328 = vpop.permute.xlu0 %3327
        %3329 = vset.pattern.permute.xlu0 5
        %3330 = vperm.xlu0 %3329, %v1911
        %v3331 = vpop.permute.xlu0 %3330
        %3332 = vset.pattern.permute.xlu0 5
        %3333 = vperm.xlu0 %3332, %v1912
        %v3334 = vpop.permute.xlu0 %3333
        %3335 = vset.pattern.permute.xlu0 5
        %3336 = vperm.xlu0 %3335, %v1913
        %v3337 = vpop.permute.xlu0 %3336
        %3338 = vset.pattern.permute.xlu0 5
        %3339 = vperm.xlu0 %3338, %v1914
        %v3340 = vpop.permute.xlu0 %3339
        %3341 = vset.pattern.permute.xlu0 5
        %3342 = vperm.xlu0 %3341, %v1915
        %v3343 = vpop.permute.xlu0 %3342
        %3344 = vset.pattern.permute.xlu0 5
        %3345 = vperm.xlu0 %3344, %v1916
        %v3346 = vpop.permute.xlu0 %3345
        %vm3347 = vcmp.eq.s32.totalorder %v1998, %v3301
        %vm3348 = vcmp.eq.s32.totalorder %v1998, %v3304
        %vm3349 = vcmp.eq.s32.totalorder %v1998, %v3307
        %vm3350 = vcmp.eq.s32.totalorder %v1998, %v3310
        %vm3351 = vcmp.eq.s32.totalorder %v1998, %v3313
        %vm3352 = vcmp.eq.s32.totalorder %v1998, %v3316
        %vm3353 = vcmp.eq.s32.totalorder %v1998, %v3319
        %vm3354 = vcmp.eq.s32.totalorder %v1998, %v3322
        %vm3355 = vcmp.eq.s32.totalorder %v1998, %v3325
        %vm3356 = vcmp.eq.s32.totalorder %v1998, %v3328
        %vm3357 = vcmp.eq.s32.totalorder %v1998, %v3331
        %vm3358 = vcmp.eq.s32.totalorder %v1998, %v3334
        %vm3359 = vcmp.eq.s32.totalorder %v1998, %v3337
        %vm3360 = vcmp.eq.s32.totalorder %v1998, %v3340
        %vm3361 = vcmp.eq.s32.totalorder %v1998, %v3343
        %vm3362 = vcmp.eq.s32.totalorder %v1998, %v3346
        %3363 = vset.pattern.permute.xlu0 5
        %3364 = vperm.xlu0 %3363, %v1917
        %v3365 = vpop.permute.xlu0 %3364
        %3367 = vset.pattern.permute.xlu0 5
        %3368 = vperm.xlu0 %3367, %v1918
        %v3369 = vpop.permute.xlu0 %3368
        %3371 = vset.pattern.permute.xlu0 5
        %3372 = vperm.xlu0 %3371, %v1919
        %v3373 = vpop.permute.xlu0 %3372
        %3375 = vset.pattern.permute.xlu0 5
        %3376 = vperm.xlu0 %3375, %v1920
        %v3377 = vpop.permute.xlu0 %3376
        %3379 = vset.pattern.permute.xlu0 5
        %3380 = vperm.xlu0 %3379, %v1921
        %v3381 = vpop.permute.xlu0 %3380
        %3383 = vset.pattern.permute.xlu0 5
        %3384 = vperm.xlu0 %3383, %v1922
        %v3385 = vpop.permute.xlu0 %3384
        %3387 = vset.pattern.permute.xlu0 5
        %3388 = vperm.xlu0 %3387, %v1923
        %v3389 = vpop.permute.xlu0 %3388
        %3391 = vset.pattern.permute.xlu0 5
        %3392 = vperm.xlu0 %3391, %v1924
        %v3393 = vpop.permute.xlu0 %3392
        %3395 = vset.pattern.permute.xlu0 5
        %3396 = vperm.xlu0 %3395, %v1925
        %v3397 = vpop.permute.xlu0 %3396
        %3399 = vset.pattern.permute.xlu0 5
        %3400 = vperm.xlu0 %3399, %v1926
        %v3401 = vpop.permute.xlu0 %3400
        %3403 = vset.pattern.permute.xlu0 5
        %3404 = vperm.xlu0 %3403, %v1927
        %v3405 = vpop.permute.xlu0 %3404
        %3407 = vset.pattern.permute.xlu0 5
        %3408 = vperm.xlu0 %3407, %v1928
        %v3409 = vpop.permute.xlu0 %3408
        %3411 = vset.pattern.permute.xlu0 5
        %3412 = vperm.xlu0 %3411, %v1929
        %v3413 = vpop.permute.xlu0 %3412
        %3415 = vset.pattern.permute.xlu0 5
        %3416 = vperm.xlu0 %3415, %v1930
        %v3417 = vpop.permute.xlu0 %3416
        %3419 = vset.pattern.permute.xlu0 5
        %3420 = vperm.xlu0 %3419, %v1931
        %v3421 = vpop.permute.xlu0 %3420
        %3423 = vset.pattern.permute.xlu0 5
        %3424 = vperm.xlu0 %3423, %v1932
        %v3425 = vpop.permute.xlu0 %3424
        %v3427 = vsel %vm3347, %v3365, 0.0
        %v3428 = vsel %vm3348, %v3369, 0.0
        %v3429 = vsel %vm3349, %v3373, 0.0
        %v3430 = vsel %vm3350, %v3377, 0.0
        %v3431 = vsel %vm3351, %v3381, 0.0
        %v3432 = vsel %vm3352, %v3385, 0.0
        %v3433 = vsel %vm3353, %v3389, 0.0
        %v3434 = vsel %vm3354, %v3393, 0.0
        %v3435 = vsel %vm3355, %v3397, 0.0
        %v3436 = vsel %vm3356, %v3401, 0.0
        %v3437 = vsel %vm3357, %v3405, 0.0
        %v3438 = vsel %vm3358, %v3409, 0.0
        %v3439 = vsel %vm3359, %v3413, 0.0
        %v3440 = vsel %vm3360, %v3417, 0.0
        %v3441 = vsel %vm3361, %v3421, 0.0
        %v3442 = vsel %vm3362, %v3425, 0.0
        %v3443 = vadd.f32 %v3283, %v3427
        %v3444 = vadd.f32 %v3284, %v3428
        %v3445 = vadd.f32 %v3285, %v3429
        %v3446 = vadd.f32 %v3286, %v3430
        %v3447 = vadd.f32 %v3287, %v3431
        %v3448 = vadd.f32 %v3288, %v3432
        %v3449 = vadd.f32 %v3289, %v3433
        %v3450 = vadd.f32 %v3290, %v3434
        %v3451 = vadd.f32 %v3291, %v3435
        %v3452 = vadd.f32 %v3292, %v3436
        %v3453 = vadd.f32 %v3293, %v3437
        %v3454 = vadd.f32 %v3294, %v3438
        %v3455 = vadd.f32 %v3295, %v3439
        %v3456 = vadd.f32 %v3296, %v3440
        %v3457 = vadd.f32 %v3297, %v3441
        %v3458 = vadd.f32 %v3298, %v3442
        %3459 = vset.pattern.permute.xlu0 6
        %3460 = vperm.xlu0 %3459, %v1901
        %v3461 = vpop.permute.xlu0 %3460
        %3462 = vset.pattern.permute.xlu0 6
        %3463 = vperm.xlu0 %3462, %v1902
        %v3464 = vpop.permute.xlu0 %3463
        %3465 = vset.pattern.permute.xlu0 6
        %3466 = vperm.xlu0 %3465, %v1903
        %v3467 = vpop.permute.xlu0 %3466
        %3468 = vset.pattern.permute.xlu0 6
        %3469 = vperm.xlu0 %3468, %v1904
        %v3470 = vpop.permute.xlu0 %3469
        %3471 = vset.pattern.permute.xlu0 6
        %3472 = vperm.xlu0 %3471, %v1905
        %v3473 = vpop.permute.xlu0 %3472
        %3474 = vset.pattern.permute.xlu0 6
        %3475 = vperm.xlu0 %3474, %v1906
        %v3476 = vpop.permute.xlu0 %3475
        %3477 = vset.pattern.permute.xlu0 6
        %3478 = vperm.xlu0 %3477, %v1907
        %v3479 = vpop.permute.xlu0 %3478
        %3480 = vset.pattern.permute.xlu0 6
        %3481 = vperm.xlu0 %3480, %v1908
        %v3482 = vpop.permute.xlu0 %3481
        %3483 = vset.pattern.permute.xlu0 6
        %3484 = vperm.xlu0 %3483, %v1909
        %v3485 = vpop.permute.xlu0 %3484
        %3486 = vset.pattern.permute.xlu0 6
        %3487 = vperm.xlu0 %3486, %v1910
        %v3488 = vpop.permute.xlu0 %3487
        %3489 = vset.pattern.permute.xlu0 6
        %3490 = vperm.xlu0 %3489, %v1911
        %v3491 = vpop.permute.xlu0 %3490
        %3492 = vset.pattern.permute.xlu0 6
        %3493 = vperm.xlu0 %3492, %v1912
        %v3494 = vpop.permute.xlu0 %3493
        %3495 = vset.pattern.permute.xlu0 6
        %3496 = vperm.xlu0 %3495, %v1913
        %v3497 = vpop.permute.xlu0 %3496
        %3498 = vset.pattern.permute.xlu0 6
        %3499 = vperm.xlu0 %3498, %v1914
        %v3500 = vpop.permute.xlu0 %3499
        %3501 = vset.pattern.permute.xlu0 6
        %3502 = vperm.xlu0 %3501, %v1915
        %v3503 = vpop.permute.xlu0 %3502
        %3504 = vset.pattern.permute.xlu0 6
        %3505 = vperm.xlu0 %3504, %v1916
        %v3506 = vpop.permute.xlu0 %3505
        %vm3507 = vcmp.eq.s32.totalorder %v1998, %v3461
        %vm3508 = vcmp.eq.s32.totalorder %v1998, %v3464
        %vm3509 = vcmp.eq.s32.totalorder %v1998, %v3467
        %vm3510 = vcmp.eq.s32.totalorder %v1998, %v3470
        %vm3511 = vcmp.eq.s32.totalorder %v1998, %v3473
        %vm3512 = vcmp.eq.s32.totalorder %v1998, %v3476
        %vm3513 = vcmp.eq.s32.totalorder %v1998, %v3479
        %vm3514 = vcmp.eq.s32.totalorder %v1998, %v3482
        %vm3515 = vcmp.eq.s32.totalorder %v1998, %v3485
        %vm3516 = vcmp.eq.s32.totalorder %v1998, %v3488
        %vm3517 = vcmp.eq.s32.totalorder %v1998, %v3491
        %vm3518 = vcmp.eq.s32.totalorder %v1998, %v3494
        %vm3519 = vcmp.eq.s32.totalorder %v1998, %v3497
        %vm3520 = vcmp.eq.s32.totalorder %v1998, %v3500
        %vm3521 = vcmp.eq.s32.totalorder %v1998, %v3503
        %vm3522 = vcmp.eq.s32.totalorder %v1998, %v3506
        %3523 = vset.pattern.permute.xlu0 6
        %3524 = vperm.xlu0 %3523, %v1917
        %v3525 = vpop.permute.xlu0 %3524
        %3527 = vset.pattern.permute.xlu0 6
        %3528 = vperm.xlu0 %3527, %v1918
        %v3529 = vpop.permute.xlu0 %3528
        %3531 = vset.pattern.permute.xlu0 6
        %3532 = vperm.xlu0 %3531, %v1919
        %v3533 = vpop.permute.xlu0 %3532
        %3535 = vset.pattern.permute.xlu0 6
        %3536 = vperm.xlu0 %3535, %v1920
        %v3537 = vpop.permute.xlu0 %3536
        %3539 = vset.pattern.permute.xlu0 6
        %3540 = vperm.xlu0 %3539, %v1921
        %v3541 = vpop.permute.xlu0 %3540
        %3543 = vset.pattern.permute.xlu0 6
        %3544 = vperm.xlu0 %3543, %v1922
        %v3545 = vpop.permute.xlu0 %3544
        %3547 = vset.pattern.permute.xlu0 6
        %3548 = vperm.xlu0 %3547, %v1923
        %v3549 = vpop.permute.xlu0 %3548
        %3551 = vset.pattern.permute.xlu0 6
        %3552 = vperm.xlu0 %3551, %v1924
        %v3553 = vpop.permute.xlu0 %3552
        %3555 = vset.pattern.permute.xlu0 6
        %3556 = vperm.xlu0 %3555, %v1925
        %v3557 = vpop.permute.xlu0 %3556
        %3559 = vset.pattern.permute.xlu0 6
        %3560 = vperm.xlu0 %3559, %v1926
        %v3561 = vpop.permute.xlu0 %3560
        %3563 = vset.pattern.permute.xlu0 6
        %3564 = vperm.xlu0 %3563, %v1927
        %v3565 = vpop.permute.xlu0 %3564
        %3567 = vset.pattern.permute.xlu0 6
        %3568 = vperm.xlu0 %3567, %v1928
        %v3569 = vpop.permute.xlu0 %3568
        %3571 = vset.pattern.permute.xlu0 6
        %3572 = vperm.xlu0 %3571, %v1929
        %v3573 = vpop.permute.xlu0 %3572
        %3575 = vset.pattern.permute.xlu0 6
        %3576 = vperm.xlu0 %3575, %v1930
        %v3577 = vpop.permute.xlu0 %3576
        %3579 = vset.pattern.permute.xlu0 6
        %3580 = vperm.xlu0 %3579, %v1931
        %v3581 = vpop.permute.xlu0 %3580
        %3583 = vset.pattern.permute.xlu0 6
        %3584 = vperm.xlu0 %3583, %v1932
        %v3585 = vpop.permute.xlu0 %3584
        %v3587 = vsel %vm3507, %v3525, 0.0
        %v3588 = vsel %vm3508, %v3529, 0.0
        %v3589 = vsel %vm3509, %v3533, 0.0
        %v3590 = vsel %vm3510, %v3537, 0.0
        %v3591 = vsel %vm3511, %v3541, 0.0
        %v3592 = vsel %vm3512, %v3545, 0.0
        %v3593 = vsel %vm3513, %v3549, 0.0
        %v3594 = vsel %vm3514, %v3553, 0.0
        %v3595 = vsel %vm3515, %v3557, 0.0
        %v3596 = vsel %vm3516, %v3561, 0.0
        %v3597 = vsel %vm3517, %v3565, 0.0
        %v3598 = vsel %vm3518, %v3569, 0.0
        %v3599 = vsel %vm3519, %v3573, 0.0
        %v3600 = vsel %vm3520, %v3577, 0.0
        %v3601 = vsel %vm3521, %v3581, 0.0
        %v3602 = vsel %vm3522, %v3585, 0.0
        %v3603 = vadd.f32 %v3443, %v3587
        %v3604 = vadd.f32 %v3444, %v3588
        %v3605 = vadd.f32 %v3445, %v3589
        %v3606 = vadd.f32 %v3446, %v3590
        %v3607 = vadd.f32 %v3447, %v3591
        %v3608 = vadd.f32 %v3448, %v3592
        %v3609 = vadd.f32 %v3449, %v3593
        %v3610 = vadd.f32 %v3450, %v3594
        %v3611 = vadd.f32 %v3451, %v3595
        %v3612 = vadd.f32 %v3452, %v3596
        %v3613 = vadd.f32 %v3453, %v3597
        %v3614 = vadd.f32 %v3454, %v3598
        %v3615 = vadd.f32 %v3455, %v3599
        %v3616 = vadd.f32 %v3456, %v3600
        %v3617 = vadd.f32 %v3457, %v3601
        %v3618 = vadd.f32 %v3458, %v3602
        %3619 = vset.pattern.permute.xlu0 7
        %3620 = vperm.xlu0 %3619, %v1901
        %v3621 = vpop.permute.xlu0 %3620
        %3622 = vset.pattern.permute.xlu0 7
        %3623 = vperm.xlu0 %3622, %v1902
        %v3624 = vpop.permute.xlu0 %3623
        %3625 = vset.pattern.permute.xlu0 7
        %3626 = vperm.xlu0 %3625, %v1903
        %v3627 = vpop.permute.xlu0 %3626
        %3628 = vset.pattern.permute.xlu0 7
        %3629 = vperm.xlu0 %3628, %v1904
        %v3630 = vpop.permute.xlu0 %3629
        %3631 = vset.pattern.permute.xlu0 7
        %3632 = vperm.xlu0 %3631, %v1905
        %v3633 = vpop.permute.xlu0 %3632
        %3634 = vset.pattern.permute.xlu0 7
        %3635 = vperm.xlu0 %3634, %v1906
        %v3636 = vpop.permute.xlu0 %3635
        %3637 = vset.pattern.permute.xlu0 7
        %3638 = vperm.xlu0 %3637, %v1907
        %v3639 = vpop.permute.xlu0 %3638
        %3640 = vset.pattern.permute.xlu0 7
        %3641 = vperm.xlu0 %3640, %v1908
        %v3642 = vpop.permute.xlu0 %3641
        %3643 = vset.pattern.permute.xlu0 7
        %3644 = vperm.xlu0 %3643, %v1909
        %v3645 = vpop.permute.xlu0 %3644
        %3646 = vset.pattern.permute.xlu0 7
        %3647 = vperm.xlu0 %3646, %v1910
        %v3648 = vpop.permute.xlu0 %3647
        %3649 = vset.pattern.permute.xlu0 7
        %3650 = vperm.xlu0 %3649, %v1911
        %v3651 = vpop.permute.xlu0 %3650
        %3652 = vset.pattern.permute.xlu0 7
        %3653 = vperm.xlu0 %3652, %v1912
        %v3654 = vpop.permute.xlu0 %3653
        %3655 = vset.pattern.permute.xlu0 7
        %3656 = vperm.xlu0 %3655, %v1913
        %v3657 = vpop.permute.xlu0 %3656
        %3658 = vset.pattern.permute.xlu0 7
        %3659 = vperm.xlu0 %3658, %v1914
        %v3660 = vpop.permute.xlu0 %3659
        %3661 = vset.pattern.permute.xlu0 7
        %3662 = vperm.xlu0 %3661, %v1915
        %v3663 = vpop.permute.xlu0 %3662
        %3664 = vset.pattern.permute.xlu0 7
        %3665 = vperm.xlu0 %3664, %v1916
        %v3666 = vpop.permute.xlu0 %3665
        %vm3667 = vcmp.eq.s32.totalorder %v1998, %v3621
        %vm3668 = vcmp.eq.s32.totalorder %v1998, %v3624
        %vm3669 = vcmp.eq.s32.totalorder %v1998, %v3627
        %vm3670 = vcmp.eq.s32.totalorder %v1998, %v3630
        %vm3671 = vcmp.eq.s32.totalorder %v1998, %v3633
        %vm3672 = vcmp.eq.s32.totalorder %v1998, %v3636
        %vm3673 = vcmp.eq.s32.totalorder %v1998, %v3639
        %vm3674 = vcmp.eq.s32.totalorder %v1998, %v3642
        %vm3675 = vcmp.eq.s32.totalorder %v1998, %v3645
        %vm3676 = vcmp.eq.s32.totalorder %v1998, %v3648
        %vm3677 = vcmp.eq.s32.totalorder %v1998, %v3651
        %vm3678 = vcmp.eq.s32.totalorder %v1998, %v3654
        %vm3679 = vcmp.eq.s32.totalorder %v1998, %v3657
        %vm3680 = vcmp.eq.s32.totalorder %v1998, %v3660
        %vm3681 = vcmp.eq.s32.totalorder %v1998, %v3663
        %vm3682 = vcmp.eq.s32.totalorder %v1998, %v3666
        %3683 = vset.pattern.permute.xlu0 7
        %3684 = vperm.xlu0 %3683, %v1917
        %v3685 = vpop.permute.xlu0 %3684
        %3687 = vset.pattern.permute.xlu0 7
        %3688 = vperm.xlu0 %3687, %v1918
        %v3689 = vpop.permute.xlu0 %3688
        %3691 = vset.pattern.permute.xlu0 7
        %3692 = vperm.xlu0 %3691, %v1919
        %v3693 = vpop.permute.xlu0 %3692
        %3695 = vset.pattern.permute.xlu0 7
        %3696 = vperm.xlu0 %3695, %v1920
        %v3697 = vpop.permute.xlu0 %3696
        %3699 = vset.pattern.permute.xlu0 7
        %3700 = vperm.xlu0 %3699, %v1921
        %v3701 = vpop.permute.xlu0 %3700
        %3703 = vset.pattern.permute.xlu0 7
        %3704 = vperm.xlu0 %3703, %v1922
        %v3705 = vpop.permute.xlu0 %3704
        %3707 = vset.pattern.permute.xlu0 7
        %3708 = vperm.xlu0 %3707, %v1923
        %v3709 = vpop.permute.xlu0 %3708
        %3711 = vset.pattern.permute.xlu0 7
        %3712 = vperm.xlu0 %3711, %v1924
        %v3713 = vpop.permute.xlu0 %3712
        %3715 = vset.pattern.permute.xlu0 7
        %3716 = vperm.xlu0 %3715, %v1925
        %v3717 = vpop.permute.xlu0 %3716
        %3719 = vset.pattern.permute.xlu0 7
        %3720 = vperm.xlu0 %3719, %v1926
        %v3721 = vpop.permute.xlu0 %3720
        %3723 = vset.pattern.permute.xlu0 7
        %3724 = vperm.xlu0 %3723, %v1927
        %v3725 = vpop.permute.xlu0 %3724
        %3727 = vset.pattern.permute.xlu0 7
        %3728 = vperm.xlu0 %3727, %v1928
        %v3729 = vpop.permute.xlu0 %3728
        %3731 = vset.pattern.permute.xlu0 7
        %3732 = vperm.xlu0 %3731, %v1929
        %v3733 = vpop.permute.xlu0 %3732
        %3735 = vset.pattern.permute.xlu0 7
        %3736 = vperm.xlu0 %3735, %v1930
        %v3737 = vpop.permute.xlu0 %3736
        %3739 = vset.pattern.permute.xlu0 7
        %3740 = vperm.xlu0 %3739, %v1931
        %v3741 = vpop.permute.xlu0 %3740
        %3743 = vset.pattern.permute.xlu0 7
        %3744 = vperm.xlu0 %3743, %v1932
        %v3745 = vpop.permute.xlu0 %3744
        %v3747 = vsel %vm3667, %v3685, 0.0
        %v3748 = vsel %vm3668, %v3689, 0.0
        %v3749 = vsel %vm3669, %v3693, 0.0
        %v3750 = vsel %vm3670, %v3697, 0.0
        %v3751 = vsel %vm3671, %v3701, 0.0
        %v3752 = vsel %vm3672, %v3705, 0.0
        %v3753 = vsel %vm3673, %v3709, 0.0
        %v3754 = vsel %vm3674, %v3713, 0.0
        %v3755 = vsel %vm3675, %v3717, 0.0
        %v3756 = vsel %vm3676, %v3721, 0.0
        %v3757 = vsel %vm3677, %v3725, 0.0
        %v3758 = vsel %vm3678, %v3729, 0.0
        %v3759 = vsel %vm3679, %v3733, 0.0
        %v3760 = vsel %vm3680, %v3737, 0.0
        %v3761 = vsel %vm3681, %v3741, 0.0
        %v3762 = vsel %vm3682, %v3745, 0.0
        %v3763 = vadd.f32 %v3603, %v3747
        %v3764 = vadd.f32 %v3604, %v3748
        %v3765 = vadd.f32 %v3605, %v3749
        %v3766 = vadd.f32 %v3606, %v3750
        %v3767 = vadd.f32 %v3607, %v3751
        %v3768 = vadd.f32 %v3608, %v3752
        %v3769 = vadd.f32 %v3609, %v3753
        %v3770 = vadd.f32 %v3610, %v3754
        %v3771 = vadd.f32 %v3611, %v3755
        %v3772 = vadd.f32 %v3612, %v3756
        %v3773 = vadd.f32 %v3613, %v3757
        %v3774 = vadd.f32 %v3614, %v3758
        %v3775 = vadd.f32 %v3615, %v3759
        %v3776 = vadd.f32 %v3616, %v3760
        %v3777 = vadd.f32 %v3617, %v3761
        %v3778 = vadd.f32 %v3618, %v3762
        %v3779 = vpack.c.bf16 %v3764, %v3763
        %v3780 = vpack.c.bf16 %v3766, %v3765
        %v3781 = vpack.c.bf16 %v3768, %v3767
        %v3782 = vpack.c.bf16 %v3770, %v3769
        %v3783 = vpack.c.bf16 %v3772, %v3771
        %v3784 = vpack.c.bf16 %v3774, %v3773
        %v3785 = vpack.c.bf16 %v3776, %v3775
        %v3786 = vpack.c.bf16 %v3778, %v3777
        %v3787 = vld [vmem:[%s1122] sm:$0xff]
        %v3788 = vld [vmem:[%s1122 + $0x8] sm:$0xff]
        %v3789 = vld [vmem:[%s1122 + $0x10] sm:$0xff]
        %v3790 = vld [vmem:[%s1122 + $0x18] sm:$0xff]
        %v3791 = vld [vmem:[%s1122 + $0x20] sm:$0xff]
        %v3792 = vld [vmem:[%s1122 + $0x28] sm:$0xff]
        %v3793 = vld [vmem:[%s1122 + $0x30] sm:$0xff]
        %v3794 = vld [vmem:[%s1122 + $0x38] sm:$0xff]
        %v3803 = vunpack.c.l.b16 %v3787
        %v3804 = vunpack.c.h.b16 %v3787
        %v3805 = vunpack.c.l.b16 %v3788
        %v3806 = vunpack.c.h.b16 %v3788
        %v3807 = vunpack.c.l.b16 %v3789
        %v3808 = vunpack.c.h.b16 %v3789
        %v3809 = vunpack.c.l.b16 %v3790
        %v3810 = vunpack.c.h.b16 %v3790
        %v3811 = vunpack.c.l.b16 %v3791
        %v3812 = vunpack.c.h.b16 %v3791
        %v3813 = vunpack.c.l.b16 %v3792
        %v3814 = vunpack.c.h.b16 %v3792
        %v3815 = vunpack.c.l.b16 %v3793
        %v3816 = vunpack.c.h.b16 %v3793
        %v3817 = vunpack.c.l.b16 %v3794
        %v3818 = vunpack.c.h.b16 %v3794
        %v3819 = vpack.c.b16 %v3805, %v3803
        %v3820 = vpack.c.b16 %v3806, %v3804
        %v3821 = vpack.c.b16 %v3809, %v3807
        %v3822 = vpack.c.b16 %v3810, %v3808
        %v3823 = vpack.c.b16 %v3813, %v3811
        %v3824 = vpack.c.b16 %v3814, %v3812
        %v3825 = vpack.c.b16 %v3817, %v3815
        %v3826 = vpack.c.b16 %v3818, %v3816
        %v3867 = vunpack.c.l.b16 %v3107
        %v3868 = vunpack.c.l.b16 %v3108
        %v3869 = vunpack.c.l.b16 %v3109
        %v3870 = vunpack.c.l.b16 %v3110
        %v3871 = vunpack.c.l.b16 %v3111
        %v3872 = vunpack.c.l.b16 %v3112
        %v3873 = vunpack.c.l.b16 %v3113
        %v3874 = vunpack.c.l.b16 %v3114
        %v3875 = vunpack.c.l.b16 %v3115
        %v3876 = vunpack.c.l.b16 %v3116
        %v3877 = vunpack.c.l.b16 %v3117
        %v3878 = vunpack.c.l.b16 %v3118
        %v3879 = vunpack.c.l.b16 %v3119
        %v3880 = vunpack.c.l.b16 %v3120
        %v3881 = vunpack.c.l.b16 %v3121
        %v3882 = vunpack.c.l.b16 %v3122
        %v3883 = vunpack.c.l.b16 %v3123
        %v3884 = vunpack.c.l.b16 %v3124
        %v3885 = vunpack.c.l.b16 %v3125
        %v3886 = vunpack.c.l.b16 %v3126
        %v3887 = vunpack.c.l.b16 %v3127
        %v3888 = vunpack.c.l.b16 %v3128
        %v3889 = vunpack.c.l.b16 %v3129
        %v3890 = vunpack.c.l.b16 %v3130
        %v3891 = vunpack.c.l.b16 %v3131
        %v3892 = vunpack.c.l.b16 %v3132
        %v3893 = vunpack.c.l.b16 %v3133
        %v3894 = vunpack.c.l.b16 %v3134
        %v3895 = vunpack.c.l.b16 %v3135
        %v3896 = vunpack.c.l.b16 %v3136
        %v3897 = vunpack.c.l.b16 %v3137
        %v3898 = vunpack.c.l.b16 %v3138
        %v3899 = vpack.c.b16 %v3868, %v3867
        %v3900 = vpack.c.b16 %v3870, %v3869
        %v3901 = vpack.c.b16 %v3872, %v3871
        %v3902 = vpack.c.b16 %v3874, %v3873
        %v3903 = vpack.c.b16 %v3876, %v3875
        %v3904 = vpack.c.b16 %v3878, %v3877
        %v3905 = vpack.c.b16 %v3880, %v3879
        %v3906 = vpack.c.b16 %v3882, %v3881
        %v3907 = vpack.c.b16 %v3884, %v3883
        %v3908 = vpack.c.b16 %v3886, %v3885
        %v3909 = vpack.c.b16 %v3888, %v3887
        %v3910 = vpack.c.b16 %v3890, %v3889
        %v3911 = vpack.c.b16 %v3892, %v3891
        %v3912 = vpack.c.b16 %v3894, %v3893
        %v3913 = vpack.c.b16 %v3896, %v3895
        %v3914 = vpack.c.b16 %v3898, %v3897
        %3931 = vmatpush.bf16.msra.mxu0 %v3906
        %3932 = vmatpush.bf16.msra.mxu0 %v3905
        %3933 = vmatpush.bf16.msra.mxu0 %v3904
        %3934 = vmatpush.bf16.msra.mxu0 %v3903
        %3935 = vmatpush.bf16.msra.mxu0 %v3902
        %3936 = vmatpush.bf16.msra.mxu0 %v3901
        %3937 = vmatpush.bf16.msra.mxu0 %v3900
        %3938 = vmatpush.bf16.msra.mxu0 %v3899
        %3939 = vmatmul.bf16.gmra.mxu0 %v3819
        %v3940 = vpop.f32.mrf.mxu0
        %v3941 = vadd.f32 0.0, %v3940
        %v3942 = vpop.f32.mrf.mxu0
        %v3943 = vadd.f32 0.0, %v3942
        %3944 = vmatmul.bf16.gmra.mxu0 %v3821
        %v3945 = vpop.f32.mrf.mxu0
        %v3946 = vadd.f32 0.0, %v3945
        %v3947 = vpop.f32.mrf.mxu0
        %v3948 = vadd.f32 0.0, %v3947
        %3949 = vmatmul.bf16.gmra.mxu0 %v3823
        %v3950 = vpop.f32.mrf.mxu0
        %v3951 = vadd.f32 0.0, %v3950
        %v3952 = vpop.f32.mrf.mxu0
        %v3953 = vadd.f32 0.0, %v3952
        %3954 = vmatmul.bf16.gmra.mxu0 %v3825
        %v3955 = vpop.f32.mrf.mxu0
        %v3956 = vadd.f32 0.0, %v3955
        %v3957 = vpop.f32.mrf.mxu0
        %v3958 = vadd.f32 0.0, %v3957
        %3959 = vdwg.mxu0
        %3960 = vmatpush.bf16.msra.mxu0 %v3914
        %3961 = vmatpush.bf16.msra.mxu0 %v3913
        %3962 = vmatpush.bf16.msra.mxu0 %v3912
        %3963 = vmatpush.bf16.msra.mxu0 %v3911
        %3964 = vmatpush.bf16.msra.mxu0 %v3910
        %3965 = vmatpush.bf16.msra.mxu0 %v3909
        %3966 = vmatpush.bf16.msra.mxu0 %v3908
        %3967 = vmatpush.bf16.msra.mxu0 %v3907
        %3968 = vmatmul.bf16.gmra.mxu0 %v3820
        %v3969 = vpop.f32.mrf.mxu0
        %v3970 = vadd.f32 %v3941, %v3969
        %v3971 = vpop.f32.mrf.mxu0
        %v3972 = vadd.f32 %v3943, %v3971
        %3973 = vmatmul.bf16.gmra.mxu0 %v3822
        %v3974 = vpop.f32.mrf.mxu0
        %v3975 = vadd.f32 %v3946, %v3974
        %v3976 = vpop.f32.mrf.mxu0
        %v3977 = vadd.f32 %v3948, %v3976
        %3978 = vmatmul.bf16.gmra.mxu0 %v3824
        %v3979 = vpop.f32.mrf.mxu0
        %v3980 = vadd.f32 %v3951, %v3979
        %v3981 = vpop.f32.mrf.mxu0
        %v3982 = vadd.f32 %v3953, %v3981
        %3983 = vmatmul.bf16.gmra.mxu0 %v3826
        %v3984 = vpop.f32.mrf.mxu0
        %v3985 = vadd.f32 %v3956, %v3984
        %v3986 = vpop.f32.mrf.mxu0
        %v3987 = vadd.f32 %v3958, %v3986
        %3988 = vdwg.mxu0
        %v3989 = vpack.c.bf16 %v3972, %v3970
        %v3990 = vpack.c.bf16 %v3977, %v3975
        %v3991 = vpack.c.bf16 %v3982, %v3980
        %v3992 = vpack.c.bf16 %v3987, %v3985
        %v3994 = vsel %vm1649, %v3779, 0
        %v3997 = vsel %vm1649, %v3780, 0
        %v4000 = vsel %vm1649, %v3781, 0
        %v4003 = vsel %vm1649, %v3782, 0
        %v4006 = vsel %vm1649, %v3783, 0
        %v4009 = vsel %vm1649, %v3784, 0
        %v4012 = vsel %vm1649, %v3785, 0
        %v4015 = vsel %vm1649, %v3786, 0
        %4017 = vmatpush.bf16.msra.mxu0 0
        %4018 = vmatpush.bf16.msra.mxu0 0
        %4019 = vmatpush.bf16.msra.mxu0 0
        %4020 = vmatpush.bf16.msra.mxu0 0
        %4021 = vmatpush.bf16.msra.mxu0 %v3992
        %4022 = vmatpush.bf16.msra.mxu0 %v3991
        %4023 = vmatpush.bf16.msra.mxu0 %v3990
        %4024 = vmatpush.bf16.msra.mxu0 %v3989
        %4025 = vmatmul.bf16.gmra.mxu0 %v3994
        %v4026 = vpop.f32.mrf.mxu0
        %v4027 = vadd.f32 0.0, %v4026
        %v4028 = vpop.f32.mrf.mxu0
        %v4029 = vadd.f32 0.0, %v4028
        %4030 = vmatmul.bf16.gmra.mxu0 %v3997
        %v4031 = vpop.f32.mrf.mxu0
        %v4032 = vadd.f32 0.0, %v4031
        %v4033 = vpop.f32.mrf.mxu0
        %v4034 = vadd.f32 0.0, %v4033
        %4035 = vmatmul.bf16.gmra.mxu0 %v4000
        %v4036 = vpop.f32.mrf.mxu0
        %v4037 = vadd.f32 0.0, %v4036
        %v4038 = vpop.f32.mrf.mxu0
        %v4039 = vadd.f32 0.0, %v4038
        %4040 = vmatmul.bf16.gmra.mxu0 %v4003
        %v4041 = vpop.f32.mrf.mxu0
        %v4042 = vadd.f32 0.0, %v4041
        %v4043 = vpop.f32.mrf.mxu0
        %v4044 = vadd.f32 0.0, %v4043
        %4045 = vmatmul.bf16.gmra.mxu0 %v4006
        %v4046 = vpop.f32.mrf.mxu0
        %v4047 = vadd.f32 0.0, %v4046
        %v4048 = vpop.f32.mrf.mxu0
        %v4049 = vadd.f32 0.0, %v4048
        %4050 = vmatmul.bf16.gmra.mxu0 %v4009
        %v4051 = vpop.f32.mrf.mxu0
        %v4052 = vadd.f32 0.0, %v4051
        %v4053 = vpop.f32.mrf.mxu0
        %v4054 = vadd.f32 0.0, %v4053
        %4055 = vmatmul.bf16.gmra.mxu0 %v4012
        %v4056 = vpop.f32.mrf.mxu0
        %v4057 = vadd.f32 0.0, %v4056
        %v4058 = vpop.f32.mrf.mxu0
        %v4059 = vadd.f32 0.0, %v4058
        %4060 = vmatmul.bf16.gmra.mxu0 %v4015
        %v4061 = vpop.f32.mrf.mxu0
        %v4062 = vadd.f32 0.0, %v4061
        %v4063 = vpop.f32.mrf.mxu0
        %v4064 = vadd.f32 0.0, %v4063
        %4065 = vdwg.mxu0
        %v4066 = vadd.f32 %v3068, %v4027
        %v4067 = vadd.f32 %v3070, %v4029
        %v4068 = vadd.f32 %v3073, %v4032
        %v4069 = vadd.f32 %v3075, %v4034
        %v4070 = vadd.f32 %v3078, %v4037
        %v4071 = vadd.f32 %v3080, %v4039
        %v4072 = vadd.f32 %v3083, %v4042
        %v4073 = vadd.f32 %v3085, %v4044
        %v4074 = vadd.f32 %v3088, %v4047
        %v4075 = vadd.f32 %v3090, %v4049
        %v4076 = vadd.f32 %v3093, %v4052
        %v4077 = vadd.f32 %v3095, %v4054
        %v4078 = vadd.f32 %v3098, %v4057
        %v4079 = vadd.f32 %v3100, %v4059
        %v4080 = vadd.f32 %v3103, %v4062
        %v4081 = vadd.f32 %v3105, %v4064
        %v4082 = vld [vmem:[%s31 + $0x180] sm:$0xf]
        %v4083 = vld [vmem:[%s31 + $0x184] sm:$0xf]
        %v4084 = vld [vmem:[%s31 + $0x188] sm:$0xf]
        %v4085 = vld [vmem:[%s31 + $0x18c] sm:$0xf]
        %v4086 = vld [vmem:[%s31 + $0x190] sm:$0xf]
        %v4087 = vld [vmem:[%s31 + $0x194] sm:$0xf]
        %v4088 = vld [vmem:[%s31 + $0x198] sm:$0xf]
        %v4089 = vld [vmem:[%s31 + $0x19c] sm:$0xf]
        %v4090 = vld [vmem:[%s31 + $0x1a0] sm:$0xf]
        %v4091 = vld [vmem:[%s31 + $0x1a4] sm:$0xf]
        %v4092 = vld [vmem:[%s31 + $0x1a8] sm:$0xf]
        %v4093 = vld [vmem:[%s31 + $0x1ac] sm:$0xf]
        %v4094 = vld [vmem:[%s31 + $0x1b0] sm:$0xf]
        %v4095 = vld [vmem:[%s31 + $0x1b4] sm:$0xf]
        %v4096 = vld [vmem:[%s31 + $0x1b8] sm:$0xf]
        %v4097 = vld [vmem:[%s31 + $0x1bc] sm:$0xf]
        %v4098 = vadd.s32 %v1998, 128
        %4099 = vset.pattern.permute.xlu0 8
        %4100 = vperm.xlu0 %4099, %v1901
        %v4101 = vpop.permute.xlu0 %4100
        %4102 = vset.pattern.permute.xlu0 8
        %4103 = vperm.xlu0 %4102, %v1902
        %v4104 = vpop.permute.xlu0 %4103
        %4105 = vset.pattern.permute.xlu0 8
        %4106 = vperm.xlu0 %4105, %v1903
        %v4107 = vpop.permute.xlu0 %4106
        %4108 = vset.pattern.permute.xlu0 8
        %4109 = vperm.xlu0 %4108, %v1904
        %v4110 = vpop.permute.xlu0 %4109
        %4111 = vset.pattern.permute.xlu0 8
        %4112 = vperm.xlu0 %4111, %v1905
        %v4113 = vpop.permute.xlu0 %4112
        %4114 = vset.pattern.permute.xlu0 8
        %4115 = vperm.xlu0 %4114, %v1906
        %v4116 = vpop.permute.xlu0 %4115
        %4117 = vset.pattern.permute.xlu0 8
        %4118 = vperm.xlu0 %4117, %v1907
        %v4119 = vpop.permute.xlu0 %4118
        %4120 = vset.pattern.permute.xlu0 8
        %4121 = vperm.xlu0 %4120, %v1908
        %v4122 = vpop.permute.xlu0 %4121
        %4123 = vset.pattern.permute.xlu0 8
        %4124 = vperm.xlu0 %4123, %v1909
        %v4125 = vpop.permute.xlu0 %4124
        %4126 = vset.pattern.permute.xlu0 8
        %4127 = vperm.xlu0 %4126, %v1910
        %v4128 = vpop.permute.xlu0 %4127
        %4129 = vset.pattern.permute.xlu0 8
        %4130 = vperm.xlu0 %4129, %v1911
        %v4131 = vpop.permute.xlu0 %4130
        %4132 = vset.pattern.permute.xlu0 8
        %4133 = vperm.xlu0 %4132, %v1912
        %v4134 = vpop.permute.xlu0 %4133
        %4135 = vset.pattern.permute.xlu0 8
        %4136 = vperm.xlu0 %4135, %v1913
        %v4137 = vpop.permute.xlu0 %4136
        %4138 = vset.pattern.permute.xlu0 8
        %4139 = vperm.xlu0 %4138, %v1914
        %v4140 = vpop.permute.xlu0 %4139
        %4141 = vset.pattern.permute.xlu0 8
        %4142 = vperm.xlu0 %4141, %v1915
        %v4143 = vpop.permute.xlu0 %4142
        %4144 = vset.pattern.permute.xlu0 8
        %4145 = vperm.xlu0 %4144, %v1916
        %v4146 = vpop.permute.xlu0 %4145
        %vm4147 = vcmp.eq.s32.totalorder %v1998, %v4101
        %vm4148 = vcmp.eq.s32.totalorder %v4098, %v4101
        %vm4149 = vcmp.eq.s32.totalorder %v1998, %v4104
        %vm4150 = vcmp.eq.s32.totalorder %v4098, %v4104
        %vm4151 = vcmp.eq.s32.totalorder %v1998, %v4107
        %vm4152 = vcmp.eq.s32.totalorder %v4098, %v4107
        %vm4153 = vcmp.eq.s32.totalorder %v1998, %v4110
        %vm4154 = vcmp.eq.s32.totalorder %v4098, %v4110
        %vm4155 = vcmp.eq.s32.totalorder %v1998, %v4113
        %vm4156 = vcmp.eq.s32.totalorder %v4098, %v4113
        %vm4157 = vcmp.eq.s32.totalorder %v1998, %v4116
        %vm4158 = vcmp.eq.s32.totalorder %v4098, %v4116
        %vm4159 = vcmp.eq.s32.totalorder %v1998, %v4119
        %vm4160 = vcmp.eq.s32.totalorder %v4098, %v4119
        %vm4161 = vcmp.eq.s32.totalorder %v1998, %v4122
        %vm4162 = vcmp.eq.s32.totalorder %v4098, %v4122
        %vm4163 = vcmp.eq.s32.totalorder %v1998, %v4125
        %vm4164 = vcmp.eq.s32.totalorder %v4098, %v4125
        %vm4165 = vcmp.eq.s32.totalorder %v1998, %v4128
        %vm4166 = vcmp.eq.s32.totalorder %v4098, %v4128
        %vm4167 = vcmp.eq.s32.totalorder %v1998, %v4131
        %vm4168 = vcmp.eq.s32.totalorder %v4098, %v4131
        %vm4169 = vcmp.eq.s32.totalorder %v1998, %v4134
        %vm4170 = vcmp.eq.s32.totalorder %v4098, %v4134
        %vm4171 = vcmp.eq.s32.totalorder %v1998, %v4137
        %vm4172 = vcmp.eq.s32.totalorder %v4098, %v4137
        %vm4173 = vcmp.eq.s32.totalorder %v1998, %v4140
        %vm4174 = vcmp.eq.s32.totalorder %v4098, %v4140
        %vm4175 = vcmp.eq.s32.totalorder %v1998, %v4143
        %vm4176 = vcmp.eq.s32.totalorder %v4098, %v4143
        %vm4177 = vcmp.eq.s32.totalorder %v1998, %v4146
        %vm4178 = vcmp.eq.s32.totalorder %v4098, %v4146
        %4179 = vset.pattern.permute.xlu0 8
        %4180 = vperm.xlu0 %4179, %v1917
        %v4181 = vpop.permute.xlu0 %4180
        %4183 = vset.pattern.permute.xlu0 8
        %4184 = vperm.xlu0 %4183, %v1918
        %v4185 = vpop.permute.xlu0 %4184
        %4187 = vset.pattern.permute.xlu0 8
        %4188 = vperm.xlu0 %4187, %v1919
        %v4189 = vpop.permute.xlu0 %4188
        %4191 = vset.pattern.permute.xlu0 8
        %4192 = vperm.xlu0 %4191, %v1920
        %v4193 = vpop.permute.xlu0 %4192
        %4195 = vset.pattern.permute.xlu0 8
        %4196 = vperm.xlu0 %4195, %v1921
        %v4197 = vpop.permute.xlu0 %4196
        %4199 = vset.pattern.permute.xlu0 8
        %4200 = vperm.xlu0 %4199, %v1922
        %v4201 = vpop.permute.xlu0 %4200
        %4203 = vset.pattern.permute.xlu0 8
        %4204 = vperm.xlu0 %4203, %v1923
        %v4205 = vpop.permute.xlu0 %4204
        %4207 = vset.pattern.permute.xlu0 8
        %4208 = vperm.xlu0 %4207, %v1924
        %v4209 = vpop.permute.xlu0 %4208
        %4211 = vset.pattern.permute.xlu0 8
        %4212 = vperm.xlu0 %4211, %v1925
        %v4213 = vpop.permute.xlu0 %4212
        %4215 = vset.pattern.permute.xlu0 8
        %4216 = vperm.xlu0 %4215, %v1926
        %v4217 = vpop.permute.xlu0 %4216
        %4219 = vset.pattern.permute.xlu0 8
        %4220 = vperm.xlu0 %4219, %v1927
        %v4221 = vpop.permute.xlu0 %4220
        %4223 = vset.pattern.permute.xlu0 8
        %4224 = vperm.xlu0 %4223, %v1928
        %v4225 = vpop.permute.xlu0 %4224
        %4227 = vset.pattern.permute.xlu0 8
        %4228 = vperm.xlu0 %4227, %v1929
        %v4229 = vpop.permute.xlu0 %4228
        %4231 = vset.pattern.permute.xlu0 8
        %4232 = vperm.xlu0 %4231, %v1930
        %v4233 = vpop.permute.xlu0 %4232
        %4235 = vset.pattern.permute.xlu0 8
        %4236 = vperm.xlu0 %4235, %v1931
        %v4237 = vpop.permute.xlu0 %4236
        %4239 = vset.pattern.permute.xlu0 8
        %4240 = vperm.xlu0 %4239, %v1932
        %v4241 = vpop.permute.xlu0 %4240
        %v4243 = vsel %vm4147, %v4181, 0.0
        %v4244 = vsel %vm4148, %v4181, 0.0
        %v4245 = vsel %vm4149, %v4185, 0.0
        %v4246 = vsel %vm4150, %v4185, 0.0
        %v4247 = vsel %vm4151, %v4189, 0.0
        %v4248 = vsel %vm4152, %v4189, 0.0
        %v4249 = vsel %vm4153, %v4193, 0.0
        %v4250 = vsel %vm4154, %v4193, 0.0
        %v4251 = vsel %vm4155, %v4197, 0.0
        %v4252 = vsel %vm4156, %v4197, 0.0
        %v4253 = vsel %vm4157, %v4201, 0.0
        %v4254 = vsel %vm4158, %v4201, 0.0
        %v4255 = vsel %vm4159, %v4205, 0.0
        %v4256 = vsel %vm4160, %v4205, 0.0
        %v4257 = vsel %vm4161, %v4209, 0.0
        %v4258 = vsel %vm4162, %v4209, 0.0
        %v4259 = vsel %vm4163, %v4213, 0.0
        %v4260 = vsel %vm4164, %v4213, 0.0
        %v4261 = vsel %vm4165, %v4217, 0.0
        %v4262 = vsel %vm4166, %v4217, 0.0
        %v4263 = vsel %vm4167, %v4221, 0.0
        %v4264 = vsel %vm4168, %v4221, 0.0
        %v4265 = vsel %vm4169, %v4225, 0.0
        %v4266 = vsel %vm4170, %v4225, 0.0
        %v4267 = vsel %vm4171, %v4229, 0.0
        %v4268 = vsel %vm4172, %v4229, 0.0
        %v4269 = vsel %vm4173, %v4233, 0.0
        %v4270 = vsel %vm4174, %v4233, 0.0
        %v4271 = vsel %vm4175, %v4237, 0.0
        %v4272 = vsel %vm4176, %v4237, 0.0
        %v4273 = vsel %vm4177, %v4241, 0.0
        %v4274 = vsel %vm4178, %v4241, 0.0
        %v4275 = vadd.f32 %v4243, 0.0
        %v4276 = vadd.f32 %v4244, 0.0
        %v4277 = vadd.f32 %v4245, 0.0
        %v4278 = vadd.f32 %v4246, 0.0
        %v4279 = vadd.f32 %v4247, 0.0
        %v4280 = vadd.f32 %v4248, 0.0
        %v4281 = vadd.f32 %v4249, 0.0
        %v4282 = vadd.f32 %v4250, 0.0
        %v4283 = vadd.f32 %v4251, 0.0
        %v4284 = vadd.f32 %v4252, 0.0
        %v4285 = vadd.f32 %v4253, 0.0
        %v4286 = vadd.f32 %v4254, 0.0
        %v4287 = vadd.f32 %v4255, 0.0
        %v4288 = vadd.f32 %v4256, 0.0
        %v4289 = vadd.f32 %v4257, 0.0
        %v4290 = vadd.f32 %v4258, 0.0
        %v4291 = vadd.f32 %v4259, 0.0
        %v4292 = vadd.f32 %v4260, 0.0
        %v4293 = vadd.f32 %v4261, 0.0
        %v4294 = vadd.f32 %v4262, 0.0
        %v4295 = vadd.f32 %v4263, 0.0
        %v4296 = vadd.f32 %v4264, 0.0
        %v4297 = vadd.f32 %v4265, 0.0
        %v4298 = vadd.f32 %v4266, 0.0
        %v4299 = vadd.f32 %v4267, 0.0
        %v4300 = vadd.f32 %v4268, 0.0
        %v4301 = vadd.f32 %v4269, 0.0
        %v4302 = vadd.f32 %v4270, 0.0
        %v4303 = vadd.f32 %v4271, 0.0
        %v4304 = vadd.f32 %v4272, 0.0
        %v4305 = vadd.f32 %v4273, 0.0
        %v4306 = vadd.f32 %v4274, 0.0
        %4307 = vset.pattern.permute.xlu0 9
        %4308 = vperm.xlu0 %4307, %v1901
        %v4309 = vpop.permute.xlu0 %4308
        %4310 = vset.pattern.permute.xlu0 9
        %4311 = vperm.xlu0 %4310, %v1902
        %v4312 = vpop.permute.xlu0 %4311
        %4313 = vset.pattern.permute.xlu0 9
        %4314 = vperm.xlu0 %4313, %v1903
        %v4315 = vpop.permute.xlu0 %4314
        %4316 = vset.pattern.permute.xlu0 9
        %4317 = vperm.xlu0 %4316, %v1904
        %v4318 = vpop.permute.xlu0 %4317
        %4319 = vset.pattern.permute.xlu0 9
        %4320 = vperm.xlu0 %4319, %v1905
        %v4321 = vpop.permute.xlu0 %4320
        %4322 = vset.pattern.permute.xlu0 9
        %4323 = vperm.xlu0 %4322, %v1906
        %v4324 = vpop.permute.xlu0 %4323
        %4325 = vset.pattern.permute.xlu0 9
        %4326 = vperm.xlu0 %4325, %v1907
        %v4327 = vpop.permute.xlu0 %4326
        %4328 = vset.pattern.permute.xlu0 9
        %4329 = vperm.xlu0 %4328, %v1908
        %v4330 = vpop.permute.xlu0 %4329
        %4331 = vset.pattern.permute.xlu0 9
        %4332 = vperm.xlu0 %4331, %v1909
        %v4333 = vpop.permute.xlu0 %4332
        %4334 = vset.pattern.permute.xlu0 9
        %4335 = vperm.xlu0 %4334, %v1910
        %v4336 = vpop.permute.xlu0 %4335
        %4337 = vset.pattern.permute.xlu0 9
        %4338 = vperm.xlu0 %4337, %v1911
        %v4339 = vpop.permute.xlu0 %4338
        %4340 = vset.pattern.permute.xlu0 9
        %4341 = vperm.xlu0 %4340, %v1912
        %v4342 = vpop.permute.xlu0 %4341
        %4343 = vset.pattern.permute.xlu0 9
        %4344 = vperm.xlu0 %4343, %v1913
        %v4345 = vpop.permute.xlu0 %4344
        %4346 = vset.pattern.permute.xlu0 9
        %4347 = vperm.xlu0 %4346, %v1914
        %v4348 = vpop.permute.xlu0 %4347
        %4349 = vset.pattern.permute.xlu0 9
        %4350 = vperm.xlu0 %4349, %v1915
        %v4351 = vpop.permute.xlu0 %4350
        %4352 = vset.pattern.permute.xlu0 9
        %4353 = vperm.xlu0 %4352, %v1916
        %v4354 = vpop.permute.xlu0 %4353
        %vm4355 = vcmp.eq.s32.totalorder %v1998, %v4309
        %vm4356 = vcmp.eq.s32.totalorder %v4098, %v4309
        %vm4357 = vcmp.eq.s32.totalorder %v1998, %v4312
        %vm4358 = vcmp.eq.s32.totalorder %v4098, %v4312
        %vm4359 = vcmp.eq.s32.totalorder %v1998, %v4315
        %vm4360 = vcmp.eq.s32.totalorder %v4098, %v4315
        %vm4361 = vcmp.eq.s32.totalorder %v1998, %v4318
        %vm4362 = vcmp.eq.s32.totalorder %v4098, %v4318
        %vm4363 = vcmp.eq.s32.totalorder %v1998, %v4321
        %vm4364 = vcmp.eq.s32.totalorder %v4098, %v4321
        %vm4365 = vcmp.eq.s32.totalorder %v1998, %v4324
        %vm4366 = vcmp.eq.s32.totalorder %v4098, %v4324
        %vm4367 = vcmp.eq.s32.totalorder %v1998, %v4327
        %vm4368 = vcmp.eq.s32.totalorder %v4098, %v4327
        %vm4369 = vcmp.eq.s32.totalorder %v1998, %v4330
        %vm4370 = vcmp.eq.s32.totalorder %v4098, %v4330
        %vm4371 = vcmp.eq.s32.totalorder %v1998, %v4333
        %vm4372 = vcmp.eq.s32.totalorder %v4098, %v4333
        %vm4373 = vcmp.eq.s32.totalorder %v1998, %v4336
        %vm4374 = vcmp.eq.s32.totalorder %v4098, %v4336
        %vm4375 = vcmp.eq.s32.totalorder %v1998, %v4339
        %vm4376 = vcmp.eq.s32.totalorder %v4098, %v4339
        %vm4377 = vcmp.eq.s32.totalorder %v1998, %v4342
        %vm4378 = vcmp.eq.s32.totalorder %v4098, %v4342
        %vm4379 = vcmp.eq.s32.totalorder %v1998, %v4345
        %vm4380 = vcmp.eq.s32.totalorder %v4098, %v4345
        %vm4381 = vcmp.eq.s32.totalorder %v1998, %v4348
        %vm4382 = vcmp.eq.s32.totalorder %v4098, %v4348
        %vm4383 = vcmp.eq.s32.totalorder %v1998, %v4351
        %vm4384 = vcmp.eq.s32.totalorder %v4098, %v4351
        %vm4385 = vcmp.eq.s32.totalorder %v1998, %v4354
        %vm4386 = vcmp.eq.s32.totalorder %v4098, %v4354
        %4387 = vset.pattern.permute.xlu0 9
        %4388 = vperm.xlu0 %4387, %v1917
        %v4389 = vpop.permute.xlu0 %4388
        %4391 = vset.pattern.permute.xlu0 9
        %4392 = vperm.xlu0 %4391, %v1918
        %v4393 = vpop.permute.xlu0 %4392
        %4395 = vset.pattern.permute.xlu0 9
        %4396 = vperm.xlu0 %4395, %v1919
        %v4397 = vpop.permute.xlu0 %4396
        %4399 = vset.pattern.permute.xlu0 9
        %4400 = vperm.xlu0 %4399, %v1920
        %v4401 = vpop.permute.xlu0 %4400
        %4403 = vset.pattern.permute.xlu0 9
        %4404 = vperm.xlu0 %4403, %v1921
        %v4405 = vpop.permute.xlu0 %4404
        %4407 = vset.pattern.permute.xlu0 9
        %4408 = vperm.xlu0 %4407, %v1922
        %v4409 = vpop.permute.xlu0 %4408
        %4411 = vset.pattern.permute.xlu0 9
        %4412 = vperm.xlu0 %4411, %v1923
        %v4413 = vpop.permute.xlu0 %4412
        %4415 = vset.pattern.permute.xlu0 9
        %4416 = vperm.xlu0 %4415, %v1924
        %v4417 = vpop.permute.xlu0 %4416
        %4419 = vset.pattern.permute.xlu0 9
        %4420 = vperm.xlu0 %4419, %v1925
        %v4421 = vpop.permute.xlu0 %4420
        %4423 = vset.pattern.permute.xlu0 9
        %4424 = vperm.xlu0 %4423, %v1926
        %v4425 = vpop.permute.xlu0 %4424
        %4427 = vset.pattern.permute.xlu0 9
        %4428 = vperm.xlu0 %4427, %v1927
        %v4429 = vpop.permute.xlu0 %4428
        %4431 = vset.pattern.permute.xlu0 9
        %4432 = vperm.xlu0 %4431, %v1928
        %v4433 = vpop.permute.xlu0 %4432
        %4435 = vset.pattern.permute.xlu0 9
        %4436 = vperm.xlu0 %4435, %v1929
        %v4437 = vpop.permute.xlu0 %4436
        %4439 = vset.pattern.permute.xlu0 9
        %4440 = vperm.xlu0 %4439, %v1930
        %v4441 = vpop.permute.xlu0 %4440
        %4443 = vset.pattern.permute.xlu0 9
        %4444 = vperm.xlu0 %4443, %v1931
        %v4445 = vpop.permute.xlu0 %4444
        %4447 = vset.pattern.permute.xlu0 9
        %4448 = vperm.xlu0 %4447, %v1932
        %v4449 = vpop.permute.xlu0 %4448
        %v4451 = vsel %vm4355, %v4389, 0.0
        %v4452 = vsel %vm4356, %v4389, 0.0
        %v4453 = vsel %vm4357, %v4393, 0.0
        %v4454 = vsel %vm4358, %v4393, 0.0
        %v4455 = vsel %vm4359, %v4397, 0.0
        %v4456 = vsel %vm4360, %v4397, 0.0
        %v4457 = vsel %vm4361, %v4401, 0.0
        %v4458 = vsel %vm4362, %v4401, 0.0
        %v4459 = vsel %vm4363, %v4405, 0.0
        %v4460 = vsel %vm4364, %v4405, 0.0
        %v4461 = vsel %vm4365, %v4409, 0.0
        %v4462 = vsel %vm4366, %v4409, 0.0
        %v4463 = vsel %vm4367, %v4413, 0.0
        %v4464 = vsel %vm4368, %v4413, 0.0
        %v4465 = vsel %vm4369, %v4417, 0.0
        %v4466 = vsel %vm4370, %v4417, 0.0
        %v4467 = vsel %vm4371, %v4421, 0.0
        %v4468 = vsel %vm4372, %v4421, 0.0
        %v4469 = vsel %vm4373, %v4425, 0.0
        %v4470 = vsel %vm4374, %v4425, 0.0
        %v4471 = vsel %vm4375, %v4429, 0.0
        %v4472 = vsel %vm4376, %v4429, 0.0
        %v4473 = vsel %vm4377, %v4433, 0.0
        %v4474 = vsel %vm4378, %v4433, 0.0
        %v4475 = vsel %vm4379, %v4437, 0.0
        %v4476 = vsel %vm4380, %v4437, 0.0
        %v4477 = vsel %vm4381, %v4441, 0.0
        %v4478 = vsel %vm4382, %v4441, 0.0
        %v4479 = vsel %vm4383, %v4445, 0.0
        %v4480 = vsel %vm4384, %v4445, 0.0
        %v4481 = vsel %vm4385, %v4449, 0.0
        %v4482 = vsel %vm4386, %v4449, 0.0
        %v4483 = vadd.f32 %v4275, %v4451
        %v4484 = vadd.f32 %v4276, %v4452
        %v4485 = vadd.f32 %v4277, %v4453
        %v4486 = vadd.f32 %v4278, %v4454
        %v4487 = vadd.f32 %v4279, %v4455
        %v4488 = vadd.f32 %v4280, %v4456
        %v4489 = vadd.f32 %v4281, %v4457
        %v4490 = vadd.f32 %v4282, %v4458
        %v4491 = vadd.f32 %v4283, %v4459
        %v4492 = vadd.f32 %v4284, %v4460
        %v4493 = vadd.f32 %v4285, %v4461
        %v4494 = vadd.f32 %v4286, %v4462
        %v4495 = vadd.f32 %v4287, %v4463
        %v4496 = vadd.f32 %v4288, %v4464
        %v4497 = vadd.f32 %v4289, %v4465
        %v4498 = vadd.f32 %v4290, %v4466
        %v4499 = vadd.f32 %v4291, %v4467
        %v4500 = vadd.f32 %v4292, %v4468
        %v4501 = vadd.f32 %v4293, %v4469
        %v4502 = vadd.f32 %v4294, %v4470
        %v4503 = vadd.f32 %v4295, %v4471
        %v4504 = vadd.f32 %v4296, %v4472
        %v4505 = vadd.f32 %v4297, %v4473
        %v4506 = vadd.f32 %v4298, %v4474
        %v4507 = vadd.f32 %v4299, %v4475
        %v4508 = vadd.f32 %v4300, %v4476
        %v4509 = vadd.f32 %v4301, %v4477
        %v4510 = vadd.f32 %v4302, %v4478
        %v4511 = vadd.f32 %v4303, %v4479
        %v4512 = vadd.f32 %v4304, %v4480
        %v4513 = vadd.f32 %v4305, %v4481
        %v4514 = vadd.f32 %v4306, %v4482
        %4515 = vset.pattern.permute.xlu0 10
        %4516 = vperm.xlu0 %4515, %v1901
        %v4517 = vpop.permute.xlu0 %4516
        %4518 = vset.pattern.permute.xlu0 10
        %4519 = vperm.xlu0 %4518, %v1902
        %v4520 = vpop.permute.xlu0 %4519
        %4521 = vset.pattern.permute.xlu0 10
        %4522 = vperm.xlu0 %4521, %v1903
        %v4523 = vpop.permute.xlu0 %4522
        %4524 = vset.pattern.permute.xlu0 10
        %4525 = vperm.xlu0 %4524, %v1904
        %v4526 = vpop.permute.xlu0 %4525
        %4527 = vset.pattern.permute.xlu0 10
        %4528 = vperm.xlu0 %4527, %v1905
        %v4529 = vpop.permute.xlu0 %4528
        %4530 = vset.pattern.permute.xlu0 10
        %4531 = vperm.xlu0 %4530, %v1906
        %v4532 = vpop.permute.xlu0 %4531
        %4533 = vset.pattern.permute.xlu0 10
        %4534 = vperm.xlu0 %4533, %v1907
        %v4535 = vpop.permute.xlu0 %4534
        %4536 = vset.pattern.permute.xlu0 10
        %4537 = vperm.xlu0 %4536, %v1908
        %v4538 = vpop.permute.xlu0 %4537
        %4539 = vset.pattern.permute.xlu0 10
        %4540 = vperm.xlu0 %4539, %v1909
        %v4541 = vpop.permute.xlu0 %4540
        %4542 = vset.pattern.permute.xlu0 10
        %4543 = vperm.xlu0 %4542, %v1910
        %v4544 = vpop.permute.xlu0 %4543
        %4545 = vset.pattern.permute.xlu0 10
        %4546 = vperm.xlu0 %4545, %v1911
        %v4547 = vpop.permute.xlu0 %4546
        %4548 = vset.pattern.permute.xlu0 10
        %4549 = vperm.xlu0 %4548, %v1912
        %v4550 = vpop.permute.xlu0 %4549
        %4551 = vset.pattern.permute.xlu0 10
        %4552 = vperm.xlu0 %4551, %v1913
        %v4553 = vpop.permute.xlu0 %4552
        %4554 = vset.pattern.permute.xlu0 10
        %4555 = vperm.xlu0 %4554, %v1914
        %v4556 = vpop.permute.xlu0 %4555
        %4557 = vset.pattern.permute.xlu0 10
        %4558 = vperm.xlu0 %4557, %v1915
        %v4559 = vpop.permute.xlu0 %4558
        %4560 = vset.pattern.permute.xlu0 10
        %4561 = vperm.xlu0 %4560, %v1916
        %v4562 = vpop.permute.xlu0 %4561
        %vm4563 = vcmp.eq.s32.totalorder %v1998, %v4517
        %vm4564 = vcmp.eq.s32.totalorder %v4098, %v4517
        %vm4565 = vcmp.eq.s32.totalorder %v1998, %v4520
        %vm4566 = vcmp.eq.s32.totalorder %v4098, %v4520
        %vm4567 = vcmp.eq.s32.totalorder %v1998, %v4523
        %vm4568 = vcmp.eq.s32.totalorder %v4098, %v4523
        %vm4569 = vcmp.eq.s32.totalorder %v1998, %v4526
        %vm4570 = vcmp.eq.s32.totalorder %v4098, %v4526
        %vm4571 = vcmp.eq.s32.totalorder %v1998, %v4529
        %vm4572 = vcmp.eq.s32.totalorder %v4098, %v4529
        %vm4573 = vcmp.eq.s32.totalorder %v1998, %v4532
        %vm4574 = vcmp.eq.s32.totalorder %v4098, %v4532
        %vm4575 = vcmp.eq.s32.totalorder %v1998, %v4535
        %vm4576 = vcmp.eq.s32.totalorder %v4098, %v4535
        %vm4577 = vcmp.eq.s32.totalorder %v1998, %v4538
        %vm4578 = vcmp.eq.s32.totalorder %v4098, %v4538
        %vm4579 = vcmp.eq.s32.totalorder %v1998, %v4541
        %vm4580 = vcmp.eq.s32.totalorder %v4098, %v4541
        %vm4581 = vcmp.eq.s32.totalorder %v1998, %v4544
        %vm4582 = vcmp.eq.s32.totalorder %v4098, %v4544
        %vm4583 = vcmp.eq.s32.totalorder %v1998, %v4547
        %vm4584 = vcmp.eq.s32.totalorder %v4098, %v4547
        %vm4585 = vcmp.eq.s32.totalorder %v1998, %v4550
        %vm4586 = vcmp.eq.s32.totalorder %v4098, %v4550
        %vm4587 = vcmp.eq.s32.totalorder %v1998, %v4553
        %vm4588 = vcmp.eq.s32.totalorder %v4098, %v4553
        %vm4589 = vcmp.eq.s32.totalorder %v1998, %v4556
        %vm4590 = vcmp.eq.s32.totalorder %v4098, %v4556
        %vm4591 = vcmp.eq.s32.totalorder %v1998, %v4559
        %vm4592 = vcmp.eq.s32.totalorder %v4098, %v4559
        %vm4593 = vcmp.eq.s32.totalorder %v1998, %v4562
        %vm4594 = vcmp.eq.s32.totalorder %v4098, %v4562
        %4595 = vset.pattern.permute.xlu0 10
        %4596 = vperm.xlu0 %4595, %v1917
        %v4597 = vpop.permute.xlu0 %4596
        %4599 = vset.pattern.permute.xlu0 10
        %4600 = vperm.xlu0 %4599, %v1918
        %v4601 = vpop.permute.xlu0 %4600
        %4603 = vset.pattern.permute.xlu0 10
        %4604 = vperm.xlu0 %4603, %v1919
        %v4605 = vpop.permute.xlu0 %4604
        %4607 = vset.pattern.permute.xlu0 10
        %4608 = vperm.xlu0 %4607, %v1920
        %v4609 = vpop.permute.xlu0 %4608
        %4611 = vset.pattern.permute.xlu0 10
        %4612 = vperm.xlu0 %4611, %v1921
        %v4613 = vpop.permute.xlu0 %4612
        %4615 = vset.pattern.permute.xlu0 10
        %4616 = vperm.xlu0 %4615, %v1922
        %v4617 = vpop.permute.xlu0 %4616
        %4619 = vset.pattern.permute.xlu0 10
        %4620 = vperm.xlu0 %4619, %v1923
        %v4621 = vpop.permute.xlu0 %4620
        %4623 = vset.pattern.permute.xlu0 10
        %4624 = vperm.xlu0 %4623, %v1924
        %v4625 = vpop.permute.xlu0 %4624
        %4627 = vset.pattern.permute.xlu0 10
        %4628 = vperm.xlu0 %4627, %v1925
        %v4629 = vpop.permute.xlu0 %4628
        %4631 = vset.pattern.permute.xlu0 10
        %4632 = vperm.xlu0 %4631, %v1926
        %v4633 = vpop.permute.xlu0 %4632
        %4635 = vset.pattern.permute.xlu0 10
        %4636 = vperm.xlu0 %4635, %v1927
        %v4637 = vpop.permute.xlu0 %4636
        %4639 = vset.pattern.permute.xlu0 10
        %4640 = vperm.xlu0 %4639, %v1928
        %v4641 = vpop.permute.xlu0 %4640
        %4643 = vset.pattern.permute.xlu0 10
        %4644 = vperm.xlu0 %4643, %v1929
        %v4645 = vpop.permute.xlu0 %4644
        %4647 = vset.pattern.permute.xlu0 10
        %4648 = vperm.xlu0 %4647, %v1930
        %v4649 = vpop.permute.xlu0 %4648
        %4651 = vset.pattern.permute.xlu0 10
        %4652 = vperm.xlu0 %4651, %v1931
        %v4653 = vpop.permute.xlu0 %4652
        %4655 = vset.pattern.permute.xlu0 10
        %4656 = vperm.xlu0 %4655, %v1932
        %v4657 = vpop.permute.xlu0 %4656
        %v4659 = vsel %vm4563, %v4597, 0.0
        %v4660 = vsel %vm4564, %v4597, 0.0
        %v4661 = vsel %vm4565, %v4601, 0.0
        %v4662 = vsel %vm4566, %v4601, 0.0
        %v4663 = vsel %vm4567, %v4605, 0.0
        %v4664 = vsel %vm4568, %v4605, 0.0
        %v4665 = vsel %vm4569, %v4609, 0.0
        %v4666 = vsel %vm4570, %v4609, 0.0
        %v4667 = vsel %vm4571, %v4613, 0.0
        %v4668 = vsel %vm4572, %v4613, 0.0
        %v4669 = vsel %vm4573, %v4617, 0.0
        %v4670 = vsel %vm4574, %v4617, 0.0
        %v4671 = vsel %vm4575, %v4621, 0.0
        %v4672 = vsel %vm4576, %v4621, 0.0
        %v4673 = vsel %vm4577, %v4625, 0.0
        %v4674 = vsel %vm4578, %v4625, 0.0
        %v4675 = vsel %vm4579, %v4629, 0.0
        %v4676 = vsel %vm4580, %v4629, 0.0
        %v4677 = vsel %vm4581, %v4633, 0.0
        %v4678 = vsel %vm4582, %v4633, 0.0
        %v4679 = vsel %vm4583, %v4637, 0.0
        %v4680 = vsel %vm4584, %v4637, 0.0
        %v4681 = vsel %vm4585, %v4641, 0.0
        %v4682 = vsel %vm4586, %v4641, 0.0
        %v4683 = vsel %vm4587, %v4645, 0.0
        %v4684 = vsel %vm4588, %v4645, 0.0
        %v4685 = vsel %vm4589, %v4649, 0.0
        %v4686 = vsel %vm4590, %v4649, 0.0
        %v4687 = vsel %vm4591, %v4653, 0.0
        %v4688 = vsel %vm4592, %v4653, 0.0
        %v4689 = vsel %vm4593, %v4657, 0.0
        %v4690 = vsel %vm4594, %v4657, 0.0
        %v4691 = vadd.f32 %v4483, %v4659
        %v4692 = vadd.f32 %v4484, %v4660
        %v4693 = vadd.f32 %v4485, %v4661
        %v4694 = vadd.f32 %v4486, %v4662
        %v4695 = vadd.f32 %v4487, %v4663
        %v4696 = vadd.f32 %v4488, %v4664
        %v4697 = vadd.f32 %v4489, %v4665
        %v4698 = vadd.f32 %v4490, %v4666
        %v4699 = vadd.f32 %v4491, %v4667
        %v4700 = vadd.f32 %v4492, %v4668
        %v4701 = vadd.f32 %v4493, %v4669
        %v4702 = vadd.f32 %v4494, %v4670
        %v4703 = vadd.f32 %v4495, %v4671
        %v4704 = vadd.f32 %v4496, %v4672
        %v4705 = vadd.f32 %v4497, %v4673
        %v4706 = vadd.f32 %v4498, %v4674
        %v4707 = vadd.f32 %v4499, %v4675
        %v4708 = vadd.f32 %v4500, %v4676
        %v4709 = vadd.f32 %v4501, %v4677
        %v4710 = vadd.f32 %v4502, %v4678
        %v4711 = vadd.f32 %v4503, %v4679
        %v4712 = vadd.f32 %v4504, %v4680
        %v4713 = vadd.f32 %v4505, %v4681
        %v4714 = vadd.f32 %v4506, %v4682
        %v4715 = vadd.f32 %v4507, %v4683
        %v4716 = vadd.f32 %v4508, %v4684
        %v4717 = vadd.f32 %v4509, %v4685
        %v4718 = vadd.f32 %v4510, %v4686
        %v4719 = vadd.f32 %v4511, %v4687
        %v4720 = vadd.f32 %v4512, %v4688
        %v4721 = vadd.f32 %v4513, %v4689
        %v4722 = vadd.f32 %v4514, %v4690
        %4723 = vset.pattern.permute.xlu0 11
        %4724 = vperm.xlu0 %4723, %v1901
        %v4725 = vpop.permute.xlu0 %4724
        %4726 = vset.pattern.permute.xlu0 11
        %4727 = vperm.xlu0 %4726, %v1902
        %v4728 = vpop.permute.xlu0 %4727
        %4729 = vset.pattern.permute.xlu0 11
        %4730 = vperm.xlu0 %4729, %v1903
        %v4731 = vpop.permute.xlu0 %4730
        %4732 = vset.pattern.permute.xlu0 11
        %4733 = vperm.xlu0 %4732, %v1904
        %v4734 = vpop.permute.xlu0 %4733
        %4735 = vset.pattern.permute.xlu0 11
        %4736 = vperm.xlu0 %4735, %v1905
        %v4737 = vpop.permute.xlu0 %4736
        %4738 = vset.pattern.permute.xlu0 11
        %4739 = vperm.xlu0 %4738, %v1906
        %v4740 = vpop.permute.xlu0 %4739
        %4741 = vset.pattern.permute.xlu0 11
        %4742 = vperm.xlu0 %4741, %v1907
        %v4743 = vpop.permute.xlu0 %4742
        %4744 = vset.pattern.permute.xlu0 11
        %4745 = vperm.xlu0 %4744, %v1908
        %v4746 = vpop.permute.xlu0 %4745
        %4747 = vset.pattern.permute.xlu0 11
        %4748 = vperm.xlu0 %4747, %v1909
        %v4749 = vpop.permute.xlu0 %4748
        %4750 = vset.pattern.permute.xlu0 11
        %4751 = vperm.xlu0 %4750, %v1910
        %v4752 = vpop.permute.xlu0 %4751
        %4753 = vset.pattern.permute.xlu0 11
        %4754 = vperm.xlu0 %4753, %v1911
        %v4755 = vpop.permute.xlu0 %4754
        %4756 = vset.pattern.permute.xlu0 11
        %4757 = vperm.xlu0 %4756, %v1912
        %v4758 = vpop.permute.xlu0 %4757
        %4759 = vset.pattern.permute.xlu0 11
        %4760 = vperm.xlu0 %4759, %v1913
        %v4761 = vpop.permute.xlu0 %4760
        %4762 = vset.pattern.permute.xlu0 11
        %4763 = vperm.xlu0 %4762, %v1914
        %v4764 = vpop.permute.xlu0 %4763
        %4765 = vset.pattern.permute.xlu0 11
        %4766 = vperm.xlu0 %4765, %v1915
        %v4767 = vpop.permute.xlu0 %4766
        %4768 = vset.pattern.permute.xlu0 11
        %4769 = vperm.xlu0 %4768, %v1916
        %v4770 = vpop.permute.xlu0 %4769
        %vm4771 = vcmp.eq.s32.totalorder %v1998, %v4725
        %vm4772 = vcmp.eq.s32.totalorder %v4098, %v4725
        %vm4773 = vcmp.eq.s32.totalorder %v1998, %v4728
        %vm4774 = vcmp.eq.s32.totalorder %v4098, %v4728
        %vm4775 = vcmp.eq.s32.totalorder %v1998, %v4731
        %vm4776 = vcmp.eq.s32.totalorder %v4098, %v4731
        %vm4777 = vcmp.eq.s32.totalorder %v1998, %v4734
        %vm4778 = vcmp.eq.s32.totalorder %v4098, %v4734
        %vm4779 = vcmp.eq.s32.totalorder %v1998, %v4737
        %vm4780 = vcmp.eq.s32.totalorder %v4098, %v4737
        %vm4781 = vcmp.eq.s32.totalorder %v1998, %v4740
        %vm4782 = vcmp.eq.s32.totalorder %v4098, %v4740
        %vm4783 = vcmp.eq.s32.totalorder %v1998, %v4743
        %vm4784 = vcmp.eq.s32.totalorder %v4098, %v4743
        %vm4785 = vcmp.eq.s32.totalorder %v1998, %v4746
        %vm4786 = vcmp.eq.s32.totalorder %v4098, %v4746
        %vm4787 = vcmp.eq.s32.totalorder %v1998, %v4749
        %vm4788 = vcmp.eq.s32.totalorder %v4098, %v4749
        %vm4789 = vcmp.eq.s32.totalorder %v1998, %v4752
        %vm4790 = vcmp.eq.s32.totalorder %v4098, %v4752
        %vm4791 = vcmp.eq.s32.totalorder %v1998, %v4755
        %vm4792 = vcmp.eq.s32.totalorder %v4098, %v4755
        %vm4793 = vcmp.eq.s32.totalorder %v1998, %v4758
        %vm4794 = vcmp.eq.s32.totalorder %v4098, %v4758
        %vm4795 = vcmp.eq.s32.totalorder %v1998, %v4761
        %vm4796 = vcmp.eq.s32.totalorder %v4098, %v4761
        %vm4797 = vcmp.eq.s32.totalorder %v1998, %v4764
        %vm4798 = vcmp.eq.s32.totalorder %v4098, %v4764
        %vm4799 = vcmp.eq.s32.totalorder %v1998, %v4767
        %vm4800 = vcmp.eq.s32.totalorder %v4098, %v4767
        %vm4801 = vcmp.eq.s32.totalorder %v1998, %v4770
        %vm4802 = vcmp.eq.s32.totalorder %v4098, %v4770
        %4803 = vset.pattern.permute.xlu0 11
        %4804 = vperm.xlu0 %4803, %v1917
        %v4805 = vpop.permute.xlu0 %4804
        %4807 = vset.pattern.permute.xlu0 11
        %4808 = vperm.xlu0 %4807, %v1918
        %v4809 = vpop.permute.xlu0 %4808
        %4811 = vset.pattern.permute.xlu0 11
        %4812 = vperm.xlu0 %4811, %v1919
        %v4813 = vpop.permute.xlu0 %4812
        %4815 = vset.pattern.permute.xlu0 11
        %4816 = vperm.xlu0 %4815, %v1920
        %v4817 = vpop.permute.xlu0 %4816
        %4819 = vset.pattern.permute.xlu0 11
        %4820 = vperm.xlu0 %4819, %v1921
        %v4821 = vpop.permute.xlu0 %4820
        %4823 = vset.pattern.permute.xlu0 11
        %4824 = vperm.xlu0 %4823, %v1922
        %v4825 = vpop.permute.xlu0 %4824
        %4827 = vset.pattern.permute.xlu0 11
        %4828 = vperm.xlu0 %4827, %v1923
        %v4829 = vpop.permute.xlu0 %4828
        %4831 = vset.pattern.permute.xlu0 11
        %4832 = vperm.xlu0 %4831, %v1924
        %v4833 = vpop.permute.xlu0 %4832
        %4835 = vset.pattern.permute.xlu0 11
        %4836 = vperm.xlu0 %4835, %v1925
        %v4837 = vpop.permute.xlu0 %4836
        %4839 = vset.pattern.permute.xlu0 11
        %4840 = vperm.xlu0 %4839, %v1926
        %v4841 = vpop.permute.xlu0 %4840
        %4843 = vset.pattern.permute.xlu0 11
        %4844 = vperm.xlu0 %4843, %v1927
        %v4845 = vpop.permute.xlu0 %4844
        %4847 = vset.pattern.permute.xlu0 11
        %4848 = vperm.xlu0 %4847, %v1928
        %v4849 = vpop.permute.xlu0 %4848
        %4851 = vset.pattern.permute.xlu0 11
        %4852 = vperm.xlu0 %4851, %v1929
        %v4853 = vpop.permute.xlu0 %4852
        %4855 = vset.pattern.permute.xlu0 11
        %4856 = vperm.xlu0 %4855, %v1930
        %v4857 = vpop.permute.xlu0 %4856
        %4859 = vset.pattern.permute.xlu0 11
        %4860 = vperm.xlu0 %4859, %v1931
        %v4861 = vpop.permute.xlu0 %4860
        %4863 = vset.pattern.permute.xlu0 11
        %4864 = vperm.xlu0 %4863, %v1932
        %v4865 = vpop.permute.xlu0 %4864
        %v4867 = vsel %vm4771, %v4805, 0.0
        %v4868 = vsel %vm4772, %v4805, 0.0
        %v4869 = vsel %vm4773, %v4809, 0.0
        %v4870 = vsel %vm4774, %v4809, 0.0
        %v4871 = vsel %vm4775, %v4813, 0.0
        %v4872 = vsel %vm4776, %v4813, 0.0
        %v4873 = vsel %vm4777, %v4817, 0.0
        %v4874 = vsel %vm4778, %v4817, 0.0
        %v4875 = vsel %vm4779, %v4821, 0.0
        %v4876 = vsel %vm4780, %v4821, 0.0
        %v4877 = vsel %vm4781, %v4825, 0.0
        %v4878 = vsel %vm4782, %v4825, 0.0
        %v4879 = vsel %vm4783, %v4829, 0.0
        %v4880 = vsel %vm4784, %v4829, 0.0
        %v4881 = vsel %vm4785, %v4833, 0.0
        %v4882 = vsel %vm4786, %v4833, 0.0
        %v4883 = vsel %vm4787, %v4837, 0.0
        %v4884 = vsel %vm4788, %v4837, 0.0
        %v4885 = vsel %vm4789, %v4841, 0.0
        %v4886 = vsel %vm4790, %v4841, 0.0
        %v4887 = vsel %vm4791, %v4845, 0.0
        %v4888 = vsel %vm4792, %v4845, 0.0
        %v4889 = vsel %vm4793, %v4849, 0.0
        %v4890 = vsel %vm4794, %v4849, 0.0
        %v4891 = vsel %vm4795, %v4853, 0.0
        %v4892 = vsel %vm4796, %v4853, 0.0
        %v4893 = vsel %vm4797, %v4857, 0.0
        %v4894 = vsel %vm4798, %v4857, 0.0
        %v4895 = vsel %vm4799, %v4861, 0.0
        %v4896 = vsel %vm4800, %v4861, 0.0
        %v4897 = vsel %vm4801, %v4865, 0.0
        %v4898 = vsel %vm4802, %v4865, 0.0
        %v4899 = vadd.f32 %v4691, %v4867
        %v4900 = vadd.f32 %v4692, %v4868
        %v4901 = vadd.f32 %v4693, %v4869
        %v4902 = vadd.f32 %v4694, %v4870
        %v4903 = vadd.f32 %v4695, %v4871
        %v4904 = vadd.f32 %v4696, %v4872
        %v4905 = vadd.f32 %v4697, %v4873
        %v4906 = vadd.f32 %v4698, %v4874
        %v4907 = vadd.f32 %v4699, %v4875
        %v4908 = vadd.f32 %v4700, %v4876
        %v4909 = vadd.f32 %v4701, %v4877
        %v4910 = vadd.f32 %v4702, %v4878
        %v4911 = vadd.f32 %v4703, %v4879
        %v4912 = vadd.f32 %v4704, %v4880
        %v4913 = vadd.f32 %v4705, %v4881
        %v4914 = vadd.f32 %v4706, %v4882
        %v4915 = vadd.f32 %v4707, %v4883
        %v4916 = vadd.f32 %v4708, %v4884
        %v4917 = vadd.f32 %v4709, %v4885
        %v4918 = vadd.f32 %v4710, %v4886
        %v4919 = vadd.f32 %v4711, %v4887
        %v4920 = vadd.f32 %v4712, %v4888
        %v4921 = vadd.f32 %v4713, %v4889
        %v4922 = vadd.f32 %v4714, %v4890
        %v4923 = vadd.f32 %v4715, %v4891
        %v4924 = vadd.f32 %v4716, %v4892
        %v4925 = vadd.f32 %v4717, %v4893
        %v4926 = vadd.f32 %v4718, %v4894
        %v4927 = vadd.f32 %v4719, %v4895
        %v4928 = vadd.f32 %v4720, %v4896
        %v4929 = vadd.f32 %v4721, %v4897
        %v4930 = vadd.f32 %v4722, %v4898
        %v4931 = vpack.c.bf16 %v4901, %v4899
        %v4932 = vpack.c.bf16 %v4902, %v4900
        %v4933 = vpack.c.bf16 %v4905, %v4903
        %v4934 = vpack.c.bf16 %v4906, %v4904
        %v4935 = vpack.c.bf16 %v4909, %v4907
        %v4936 = vpack.c.bf16 %v4910, %v4908
        %v4937 = vpack.c.bf16 %v4913, %v4911
        %v4938 = vpack.c.bf16 %v4914, %v4912
        %v4939 = vpack.c.bf16 %v4917, %v4915
        %v4940 = vpack.c.bf16 %v4918, %v4916
        %v4941 = vpack.c.bf16 %v4921, %v4919
        %v4942 = vpack.c.bf16 %v4922, %v4920
        %v4943 = vpack.c.bf16 %v4925, %v4923
        %v4944 = vpack.c.bf16 %v4926, %v4924
        %v4945 = vpack.c.bf16 %v4929, %v4927
        %v4946 = vpack.c.bf16 %v4930, %v4928
        %v4947 = vld [vmem:[%s1127] sm:$0xf]
        %v4948 = vld [vmem:[%s1127 + $0x4] sm:$0xf]
        %v4949 = vld [vmem:[%s1127 + $0x8] sm:$0xf]
        %v4950 = vld [vmem:[%s1127 + $0xc] sm:$0xf]
        %v4951 = vld [vmem:[%s1127 + $0x10] sm:$0xf]
        %v4952 = vld [vmem:[%s1127 + $0x14] sm:$0xf]
        %v4953 = vld [vmem:[%s1127 + $0x18] sm:$0xf]
        %v4954 = vld [vmem:[%s1127 + $0x1c] sm:$0xf]
        %v4955 = vld [vmem:[%s1127 + $0x20] sm:$0xf]
        %v4956 = vld [vmem:[%s1127 + $0x24] sm:$0xf]
        %v4957 = vld [vmem:[%s1127 + $0x28] sm:$0xf]
        %v4958 = vld [vmem:[%s1127 + $0x2c] sm:$0xf]
        %v4959 = vld [vmem:[%s1127 + $0x30] sm:$0xf]
        %v4960 = vld [vmem:[%s1127 + $0x34] sm:$0xf]
        %v4961 = vld [vmem:[%s1127 + $0x38] sm:$0xf]
        %v4962 = vld [vmem:[%s1127 + $0x3c] sm:$0xf]
        %v4963 = vld [vmem:[%s1127 + $0x40] sm:$0xf]
        %v4964 = vld [vmem:[%s1127 + $0x44] sm:$0xf]
        %v4965 = vld [vmem:[%s1127 + $0x48] sm:$0xf]
        %v4966 = vld [vmem:[%s1127 + $0x4c] sm:$0xf]
        %v4967 = vld [vmem:[%s1127 + $0x50] sm:$0xf]
        %v4968 = vld [vmem:[%s1127 + $0x54] sm:$0xf]
        %v4969 = vld [vmem:[%s1127 + $0x58] sm:$0xf]
        %v4970 = vld [vmem:[%s1127 + $0x5c] sm:$0xf]
        %v4971 = vld [vmem:[%s1127 + $0x60] sm:$0xf]
        %v4972 = vld [vmem:[%s1127 + $0x64] sm:$0xf]
        %v4973 = vld [vmem:[%s1127 + $0x68] sm:$0xf]
        %v4974 = vld [vmem:[%s1127 + $0x6c] sm:$0xf]
        %v4975 = vld [vmem:[%s1127 + $0x70] sm:$0xf]
        %v4976 = vld [vmem:[%s1127 + $0x74] sm:$0xf]
        %v4977 = vld [vmem:[%s1127 + $0x78] sm:$0xf]
        %v4978 = vld [vmem:[%s1127 + $0x7c] sm:$0xf]
        %v5011 = vunpack.c.l.b16 %v4947
        %v5012 = vunpack.c.l.b16 %v4948
        %v5013 = vunpack.c.l.b16 %v4949
        %v5014 = vunpack.c.l.b16 %v4950
        %v5015 = vunpack.c.l.b16 %v4951
        %v5016 = vunpack.c.l.b16 %v4952
        %v5017 = vunpack.c.l.b16 %v4953
        %v5018 = vunpack.c.l.b16 %v4954
        %v5019 = vunpack.c.l.b16 %v4955
        %v5020 = vunpack.c.l.b16 %v4956
        %v5021 = vunpack.c.l.b16 %v4957
        %v5022 = vunpack.c.l.b16 %v4958
        %v5023 = vunpack.c.l.b16 %v4959
        %v5024 = vunpack.c.l.b16 %v4960
        %v5025 = vunpack.c.l.b16 %v4961
        %v5026 = vunpack.c.l.b16 %v4962
        %v5027 = vunpack.c.l.b16 %v4963
        %v5028 = vunpack.c.l.b16 %v4964
        %v5029 = vunpack.c.l.b16 %v4965
        %v5030 = vunpack.c.l.b16 %v4966
        %v5031 = vunpack.c.l.b16 %v4967
        %v5032 = vunpack.c.l.b16 %v4968
        %v5033 = vunpack.c.l.b16 %v4969
        %v5034 = vunpack.c.l.b16 %v4970
        %v5035 = vunpack.c.l.b16 %v4971
        %v5036 = vunpack.c.l.b16 %v4972
        %v5037 = vunpack.c.l.b16 %v4973
        %v5038 = vunpack.c.l.b16 %v4974
        %v5039 = vunpack.c.l.b16 %v4975
        %v5040 = vunpack.c.l.b16 %v4976
        %v5041 = vunpack.c.l.b16 %v4977
        %v5042 = vunpack.c.l.b16 %v4978
        %v5043 = vpack.c.b16 %v5012, %v5011
        %v5044 = vpack.c.b16 %v5014, %v5013
        %v5045 = vpack.c.b16 %v5016, %v5015
        %v5046 = vpack.c.b16 %v5018, %v5017
        %v5047 = vpack.c.b16 %v5020, %v5019
        %v5048 = vpack.c.b16 %v5022, %v5021
        %v5049 = vpack.c.b16 %v5024, %v5023
        %v5050 = vpack.c.b16 %v5026, %v5025
        %v5051 = vpack.c.b16 %v5028, %v5027
        %v5052 = vpack.c.b16 %v5030, %v5029
        %v5053 = vpack.c.b16 %v5032, %v5031
        %v5054 = vpack.c.b16 %v5034, %v5033
        %v5055 = vpack.c.b16 %v5036, %v5035
        %v5056 = vpack.c.b16 %v5038, %v5037
        %v5057 = vpack.c.b16 %v5040, %v5039
        %v5058 = vpack.c.b16 %v5042, %v5041
        %5075 = vmatpush.bf16.msra.mxu0 %v5050
        %5076 = vmatpush.bf16.msra.mxu0 %v5049
        %5077 = vmatpush.bf16.msra.mxu0 %v5048
        %5078 = vmatpush.bf16.msra.mxu0 %v5047
        %5079 = vmatpush.bf16.msra.mxu0 %v5046
        %5080 = vmatpush.bf16.msra.mxu0 %v5045
        %5081 = vmatpush.bf16.msra.mxu0 %v5044
        %5082 = vmatpush.bf16.msra.mxu0 %v5043
        %5083 = vmatmul.bf16.gmra.mxu0 %v4931
        %v5084 = vpop.f32.mrf.mxu0
        %v5085 = vadd.f32 0.0, %v5084
        %v5086 = vpop.f32.mrf.mxu0
        %v5087 = vadd.f32 0.0, %v5086
        %5088 = vmatmul.bf16.gmra.mxu0 %v4933
        %v5089 = vpop.f32.mrf.mxu0
        %v5090 = vadd.f32 0.0, %v5089
        %v5091 = vpop.f32.mrf.mxu0
        %v5092 = vadd.f32 0.0, %v5091
        %5093 = vmatmul.bf16.gmra.mxu0 %v4935
        %v5094 = vpop.f32.mrf.mxu0
        %v5095 = vadd.f32 0.0, %v5094
        %v5096 = vpop.f32.mrf.mxu0
        %v5097 = vadd.f32 0.0, %v5096
        %5098 = vmatmul.bf16.gmra.mxu0 %v4937
        %v5099 = vpop.f32.mrf.mxu0
        %v5100 = vadd.f32 0.0, %v5099
        %v5101 = vpop.f32.mrf.mxu0
        %v5102 = vadd.f32 0.0, %v5101
        %5103 = vmatmul.bf16.gmra.mxu0 %v4939
        %v5104 = vpop.f32.mrf.mxu0
        %v5105 = vadd.f32 0.0, %v5104
        %v5106 = vpop.f32.mrf.mxu0
        %v5107 = vadd.f32 0.0, %v5106
        %5108 = vmatmul.bf16.gmra.mxu0 %v4941
        %v5109 = vpop.f32.mrf.mxu0
        %v5110 = vadd.f32 0.0, %v5109
        %v5111 = vpop.f32.mrf.mxu0
        %v5112 = vadd.f32 0.0, %v5111
        %5113 = vmatmul.bf16.gmra.mxu0 %v4943
        %v5114 = vpop.f32.mrf.mxu0
        %v5115 = vadd.f32 0.0, %v5114
        %v5116 = vpop.f32.mrf.mxu0
        %v5117 = vadd.f32 0.0, %v5116
        %5118 = vmatmul.bf16.gmra.mxu0 %v4945
        %v5119 = vpop.f32.mrf.mxu0
        %v5120 = vadd.f32 0.0, %v5119
        %v5121 = vpop.f32.mrf.mxu0
        %v5122 = vadd.f32 0.0, %v5121
        %5123 = vdwg.mxu0
        %5124 = vmatpush.bf16.msra.mxu0 %v5058
        %5125 = vmatpush.bf16.msra.mxu0 %v5057
        %5126 = vmatpush.bf16.msra.mxu0 %v5056
        %5127 = vmatpush.bf16.msra.mxu0 %v5055
        %5128 = vmatpush.bf16.msra.mxu0 %v5054
        %5129 = vmatpush.bf16.msra.mxu0 %v5053
        %5130 = vmatpush.bf16.msra.mxu0 %v5052
        %5131 = vmatpush.bf16.msra.mxu0 %v5051
        %5132 = vmatmul.bf16.gmra.mxu0 %v4932
        %v5133 = vpop.f32.mrf.mxu0
        %v5134 = vadd.f32 %v5085, %v5133
        %v5135 = vpop.f32.mrf.mxu0
        %v5136 = vadd.f32 %v5087, %v5135
        %5137 = vmatmul.bf16.gmra.mxu0 %v4934
        %v5138 = vpop.f32.mrf.mxu0
        %v5139 = vadd.f32 %v5090, %v5138
        %v5140 = vpop.f32.mrf.mxu0
        %v5141 = vadd.f32 %v5092, %v5140
        %5142 = vmatmul.bf16.gmra.mxu0 %v4936
        %v5143 = vpop.f32.mrf.mxu0
        %v5144 = vadd.f32 %v5095, %v5143
        %v5145 = vpop.f32.mrf.mxu0
        %v5146 = vadd.f32 %v5097, %v5145
        %5147 = vmatmul.bf16.gmra.mxu0 %v4938
        %v5148 = vpop.f32.mrf.mxu0
        %v5149 = vadd.f32 %v5100, %v5148
        %v5150 = vpop.f32.mrf.mxu0
        %v5151 = vadd.f32 %v5102, %v5150
        %5152 = vmatmul.bf16.gmra.mxu0 %v4940
        %v5153 = vpop.f32.mrf.mxu0
        %v5154 = vadd.f32 %v5105, %v5153
        %v5155 = vpop.f32.mrf.mxu0
        %v5156 = vadd.f32 %v5107, %v5155
        %5157 = vmatmul.bf16.gmra.mxu0 %v4942
        %v5158 = vpop.f32.mrf.mxu0
        %v5159 = vadd.f32 %v5110, %v5158
        %v5160 = vpop.f32.mrf.mxu0
        %v5161 = vadd.f32 %v5112, %v5160
        %5162 = vmatmul.bf16.gmra.mxu0 %v4944
        %v5163 = vpop.f32.mrf.mxu0
        %v5164 = vadd.f32 %v5115, %v5163
        %v5165 = vpop.f32.mrf.mxu0
        %v5166 = vadd.f32 %v5117, %v5165
        %5167 = vmatmul.bf16.gmra.mxu0 %v4946
        %v5168 = vpop.f32.mrf.mxu0
        %v5169 = vadd.f32 %v5120, %v5168
        %v5170 = vpop.f32.mrf.mxu0
        %v5171 = vadd.f32 %v5122, %v5170
        %5172 = vdwg.mxu0
        %v5173 = vpack.c.bf16 %v5136, %v5134
        %v5174 = vpack.c.bf16 %v5141, %v5139
        %v5175 = vpack.c.bf16 %v5146, %v5144
        %v5176 = vpack.c.bf16 %v5151, %v5149
        %v5177 = vpack.c.bf16 %v5156, %v5154
        %v5178 = vpack.c.bf16 %v5161, %v5159
        %v5179 = vpack.c.bf16 %v5166, %v5164
        %v5180 = vpack.c.bf16 %v5171, %v5169
        %v5197 = vunpack.c.l.b16 %v4082
        %v5198 = vunpack.c.l.b16 %v4083
        %v5199 = vunpack.c.l.b16 %v4084
        %v5200 = vunpack.c.l.b16 %v4085
        %v5201 = vunpack.c.l.b16 %v4086
        %v5202 = vunpack.c.l.b16 %v4087
        %v5203 = vunpack.c.l.b16 %v4088
        %v5204 = vunpack.c.l.b16 %v4089
        %v5205 = vunpack.c.l.b16 %v4090
        %v5206 = vunpack.c.l.b16 %v4091
        %v5207 = vunpack.c.l.b16 %v4092
        %v5208 = vunpack.c.l.b16 %v4093
        %v5209 = vunpack.c.l.b16 %v4094
        %v5210 = vunpack.c.l.b16 %v4095
        %v5211 = vunpack.c.l.b16 %v4096
        %v5212 = vunpack.c.l.b16 %v4097
        %v5213 = vpack.c.b16 %v5198, %v5197
        %v5214 = vpack.c.b16 %v5200, %v5199
        %v5215 = vpack.c.b16 %v5202, %v5201
        %v5216 = vpack.c.b16 %v5204, %v5203
        %v5217 = vpack.c.b16 %v5206, %v5205
        %v5218 = vpack.c.b16 %v5208, %v5207
        %v5219 = vpack.c.b16 %v5210, %v5209
        %v5220 = vpack.c.b16 %v5212, %v5211
        %5229 = vmatpush.bf16.msra.mxu0 %v5220
        %5230 = vmatpush.bf16.msra.mxu0 %v5219
        %5231 = vmatpush.bf16.msra.mxu0 %v5218
        %5232 = vmatpush.bf16.msra.mxu0 %v5217
        %5233 = vmatpush.bf16.msra.mxu0 %v5216
        %5234 = vmatpush.bf16.msra.mxu0 %v5215
        %5235 = vmatpush.bf16.msra.mxu0 %v5214
        %5236 = vmatpush.bf16.msra.mxu0 %v5213
        %5237 = vmatmul.bf16.gmra.mxu0 %v5173
        %v5238 = vpop.f32.mrf.mxu0
        %v5239 = vadd.f32 0.0, %v5238
        %v5240 = vpop.f32.mrf.mxu0
        %v5241 = vadd.f32 0.0, %v5240
        %5242 = vmatmul.bf16.gmra.mxu0 %v5174
        %v5243 = vpop.f32.mrf.mxu0
        %v5244 = vadd.f32 0.0, %v5243
        %v5245 = vpop.f32.mrf.mxu0
        %v5246 = vadd.f32 0.0, %v5245
        %5247 = vmatmul.bf16.gmra.mxu0 %v5175
        %v5248 = vpop.f32.mrf.mxu0
        %v5249 = vadd.f32 0.0, %v5248
        %v5250 = vpop.f32.mrf.mxu0
        %v5251 = vadd.f32 0.0, %v5250
        %5252 = vmatmul.bf16.gmra.mxu0 %v5176
        %v5253 = vpop.f32.mrf.mxu0
        %v5254 = vadd.f32 0.0, %v5253
        %v5255 = vpop.f32.mrf.mxu0
        %v5256 = vadd.f32 0.0, %v5255
        %5257 = vmatmul.bf16.gmra.mxu0 %v5177
        %v5258 = vpop.f32.mrf.mxu0
        %v5259 = vadd.f32 0.0, %v5258
        %v5260 = vpop.f32.mrf.mxu0
        %v5261 = vadd.f32 0.0, %v5260
        %5262 = vmatmul.bf16.gmra.mxu0 %v5178
        %v5263 = vpop.f32.mrf.mxu0
        %v5264 = vadd.f32 0.0, %v5263
        %v5265 = vpop.f32.mrf.mxu0
        %v5266 = vadd.f32 0.0, %v5265
        %5267 = vmatmul.bf16.gmra.mxu0 %v5179
        %v5268 = vpop.f32.mrf.mxu0
        %v5269 = vadd.f32 0.0, %v5268
        %v5270 = vpop.f32.mrf.mxu0
        %v5271 = vadd.f32 0.0, %v5270
        %5272 = vmatmul.bf16.gmra.mxu0 %v5180
        %v5273 = vpop.f32.mrf.mxu0
        %v5274 = vadd.f32 0.0, %v5273
        %v5275 = vpop.f32.mrf.mxu0
        %v5276 = vadd.f32 0.0, %v5275
        %5277 = vdwg.mxu0
        %v5278 = vadd.f32 %v4066, %v5239
        %v5279 = vadd.f32 %v4067, %v5241
        %v5280 = vadd.f32 %v4068, %v5244
        %v5281 = vadd.f32 %v4069, %v5246
        %v5282 = vadd.f32 %v4070, %v5249
        %v5283 = vadd.f32 %v4071, %v5251
        %v5284 = vadd.f32 %v4072, %v5254
        %v5285 = vadd.f32 %v4073, %v5256
        %v5286 = vadd.f32 %v4074, %v5259
        %v5287 = vadd.f32 %v4075, %v5261
        %v5288 = vadd.f32 %v4076, %v5264
        %v5289 = vadd.f32 %v4077, %v5266
        %v5290 = vadd.f32 %v4078, %v5269
        %v5291 = vadd.f32 %v4079, %v5271
        %v5292 = vadd.f32 %v4080, %v5274
        %v5293 = vadd.f32 %v4081, %v5276
        %v5294 = vld [vmem:[%s31 + $0x1c0] sm:$0xf]
        %v5295 = vld [vmem:[%s31 + $0x1c4] sm:$0xf]
        %v5296 = vld [vmem:[%s31 + $0x1c8] sm:$0xf]
        %v5297 = vld [vmem:[%s31 + $0x1cc] sm:$0xf]
        %v5298 = vld [vmem:[%s31 + $0x1d0] sm:$0xf]
        %v5299 = vld [vmem:[%s31 + $0x1d4] sm:$0xf]
        %v5300 = vld [vmem:[%s31 + $0x1d8] sm:$0xf]
        %v5301 = vld [vmem:[%s31 + $0x1dc] sm:$0xf]
        %5302 = vset.pattern.permute.xlu0 12
        %5303 = vperm.xlu0 %5302, %v1901
        %v5304 = vpop.permute.xlu0 %5303
        %5305 = vset.pattern.permute.xlu0 12
        %5306 = vperm.xlu0 %5305, %v1902
        %v5307 = vpop.permute.xlu0 %5306
        %5308 = vset.pattern.permute.xlu0 12
        %5309 = vperm.xlu0 %5308, %v1903
        %v5310 = vpop.permute.xlu0 %5309
        %5311 = vset.pattern.permute.xlu0 12
        %5312 = vperm.xlu0 %5311, %v1904
        %v5313 = vpop.permute.xlu0 %5312
        %5314 = vset.pattern.permute.xlu0 12
        %5315 = vperm.xlu0 %5314, %v1905
        %v5316 = vpop.permute.xlu0 %5315
        %5317 = vset.pattern.permute.xlu0 12
        %5318 = vperm.xlu0 %5317, %v1906
        %v5319 = vpop.permute.xlu0 %5318
        %5320 = vset.pattern.permute.xlu0 12
        %5321 = vperm.xlu0 %5320, %v1907
        %v5322 = vpop.permute.xlu0 %5321
        %5323 = vset.pattern.permute.xlu0 12
        %5324 = vperm.xlu0 %5323, %v1908
        %v5325 = vpop.permute.xlu0 %5324
        %5326 = vset.pattern.permute.xlu0 12
        %5327 = vperm.xlu0 %5326, %v1909
        %v5328 = vpop.permute.xlu0 %5327
        %5329 = vset.pattern.permute.xlu0 12
        %5330 = vperm.xlu0 %5329, %v1910
        %v5331 = vpop.permute.xlu0 %5330
        %5332 = vset.pattern.permute.xlu0 12
        %5333 = vperm.xlu0 %5332, %v1911
        %v5334 = vpop.permute.xlu0 %5333
        %5335 = vset.pattern.permute.xlu0 12
        %5336 = vperm.xlu0 %5335, %v1912
        %v5337 = vpop.permute.xlu0 %5336
        %5338 = vset.pattern.permute.xlu0 12
        %5339 = vperm.xlu0 %5338, %v1913
        %v5340 = vpop.permute.xlu0 %5339
        %5341 = vset.pattern.permute.xlu0 12
        %5342 = vperm.xlu0 %5341, %v1914
        %v5343 = vpop.permute.xlu0 %5342
        %5344 = vset.pattern.permute.xlu0 12
        %5345 = vperm.xlu0 %5344, %v1915
        %v5346 = vpop.permute.xlu0 %5345
        %5347 = vset.pattern.permute.xlu0 12
        %5348 = vperm.xlu0 %5347, %v1916
        %v5349 = vpop.permute.xlu0 %5348
        %vm5350 = vcmp.eq.s32.totalorder %v1998, %v5304
        %vm5351 = vcmp.eq.s32.totalorder %v4098, %v5304
        %vm5352 = vcmp.eq.s32.totalorder %v1998, %v5307
        %vm5353 = vcmp.eq.s32.totalorder %v4098, %v5307
        %vm5354 = vcmp.eq.s32.totalorder %v1998, %v5310
        %vm5355 = vcmp.eq.s32.totalorder %v4098, %v5310
        %vm5356 = vcmp.eq.s32.totalorder %v1998, %v5313
        %vm5357 = vcmp.eq.s32.totalorder %v4098, %v5313
        %vm5358 = vcmp.eq.s32.totalorder %v1998, %v5316
        %vm5359 = vcmp.eq.s32.totalorder %v4098, %v5316
        %vm5360 = vcmp.eq.s32.totalorder %v1998, %v5319
        %vm5361 = vcmp.eq.s32.totalorder %v4098, %v5319
        %vm5362 = vcmp.eq.s32.totalorder %v1998, %v5322
        %vm5363 = vcmp.eq.s32.totalorder %v4098, %v5322
        %vm5364 = vcmp.eq.s32.totalorder %v1998, %v5325
        %vm5365 = vcmp.eq.s32.totalorder %v4098, %v5325
        %vm5366 = vcmp.eq.s32.totalorder %v1998, %v5328
        %vm5367 = vcmp.eq.s32.totalorder %v4098, %v5328
        %vm5368 = vcmp.eq.s32.totalorder %v1998, %v5331
        %vm5369 = vcmp.eq.s32.totalorder %v4098, %v5331
        %vm5370 = vcmp.eq.s32.totalorder %v1998, %v5334
        %vm5371 = vcmp.eq.s32.totalorder %v4098, %v5334
        %vm5372 = vcmp.eq.s32.totalorder %v1998, %v5337
        %vm5373 = vcmp.eq.s32.totalorder %v4098, %v5337
        %vm5374 = vcmp.eq.s32.totalorder %v1998, %v5340
        %vm5375 = vcmp.eq.s32.totalorder %v4098, %v5340
        %vm5376 = vcmp.eq.s32.totalorder %v1998, %v5343
        %vm5377 = vcmp.eq.s32.totalorder %v4098, %v5343
        %vm5378 = vcmp.eq.s32.totalorder %v1998, %v5346
        %vm5379 = vcmp.eq.s32.totalorder %v4098, %v5346
        %vm5380 = vcmp.eq.s32.totalorder %v1998, %v5349
        %vm5381 = vcmp.eq.s32.totalorder %v4098, %v5349
        %5382 = vset.pattern.permute.xlu0 12
        %5383 = vperm.xlu0 %5382, %v1917
        %v5384 = vpop.permute.xlu0 %5383
        %5386 = vset.pattern.permute.xlu0 12
        %5387 = vperm.xlu0 %5386, %v1918
        %v5388 = vpop.permute.xlu0 %5387
        %5390 = vset.pattern.permute.xlu0 12
        %5391 = vperm.xlu0 %5390, %v1919
        %v5392 = vpop.permute.xlu0 %5391
        %5394 = vset.pattern.permute.xlu0 12
        %5395 = vperm.xlu0 %5394, %v1920
        %v5396 = vpop.permute.xlu0 %5395
        %5398 = vset.pattern.permute.xlu0 12
        %5399 = vperm.xlu0 %5398, %v1921
        %v5400 = vpop.permute.xlu0 %5399
        %5402 = vset.pattern.permute.xlu0 12
        %5403 = vperm.xlu0 %5402, %v1922
        %v5404 = vpop.permute.xlu0 %5403
        %5406 = vset.pattern.permute.xlu0 12
        %5407 = vperm.xlu0 %5406, %v1923
        %v5408 = vpop.permute.xlu0 %5407
        %5410 = vset.pattern.permute.xlu0 12
        %5411 = vperm.xlu0 %5410, %v1924
        %v5412 = vpop.permute.xlu0 %5411
        %5414 = vset.pattern.permute.xlu0 12
        %5415 = vperm.xlu0 %5414, %v1925
        %v5416 = vpop.permute.xlu0 %5415
        %5418 = vset.pattern.permute.xlu0 12
        %5419 = vperm.xlu0 %5418, %v1926
        %v5420 = vpop.permute.xlu0 %5419
        %5422 = vset.pattern.permute.xlu0 12
        %5423 = vperm.xlu0 %5422, %v1927
        %v5424 = vpop.permute.xlu0 %5423
        %5426 = vset.pattern.permute.xlu0 12
        %5427 = vperm.xlu0 %5426, %v1928
        %v5428 = vpop.permute.xlu0 %5427
        %5430 = vset.pattern.permute.xlu0 12
        %5431 = vperm.xlu0 %5430, %v1929
        %v5432 = vpop.permute.xlu0 %5431
        %5434 = vset.pattern.permute.xlu0 12
        %5435 = vperm.xlu0 %5434, %v1930
        %v5436 = vpop.permute.xlu0 %5435
        %5438 = vset.pattern.permute.xlu0 12
        %5439 = vperm.xlu0 %5438, %v1931
        %v5440 = vpop.permute.xlu0 %5439
        %5442 = vset.pattern.permute.xlu0 12
        %5443 = vperm.xlu0 %5442, %v1932
        %v5444 = vpop.permute.xlu0 %5443
        %v5446 = vsel %vm5350, %v5384, 0.0
        %v5447 = vsel %vm5351, %v5384, 0.0
        %v5448 = vsel %vm5352, %v5388, 0.0
        %v5449 = vsel %vm5353, %v5388, 0.0
        %v5450 = vsel %vm5354, %v5392, 0.0
        %v5451 = vsel %vm5355, %v5392, 0.0
        %v5452 = vsel %vm5356, %v5396, 0.0
        %v5453 = vsel %vm5357, %v5396, 0.0
        %v5454 = vsel %vm5358, %v5400, 0.0
        %v5455 = vsel %vm5359, %v5400, 0.0
        %v5456 = vsel %vm5360, %v5404, 0.0
        %v5457 = vsel %vm5361, %v5404, 0.0
        %v5458 = vsel %vm5362, %v5408, 0.0
        %v5459 = vsel %vm5363, %v5408, 0.0
        %v5460 = vsel %vm5364, %v5412, 0.0
        %v5461 = vsel %vm5365, %v5412, 0.0
        %v5462 = vsel %vm5366, %v5416, 0.0
        %v5463 = vsel %vm5367, %v5416, 0.0
        %v5464 = vsel %vm5368, %v5420, 0.0
        %v5465 = vsel %vm5369, %v5420, 0.0
        %v5466 = vsel %vm5370, %v5424, 0.0
        %v5467 = vsel %vm5371, %v5424, 0.0
        %v5468 = vsel %vm5372, %v5428, 0.0
        %v5469 = vsel %vm5373, %v5428, 0.0
        %v5470 = vsel %vm5374, %v5432, 0.0
        %v5471 = vsel %vm5375, %v5432, 0.0
        %v5472 = vsel %vm5376, %v5436, 0.0
        %v5473 = vsel %vm5377, %v5436, 0.0
        %v5474 = vsel %vm5378, %v5440, 0.0
        %v5475 = vsel %vm5379, %v5440, 0.0
        %v5476 = vsel %vm5380, %v5444, 0.0
        %v5477 = vsel %vm5381, %v5444, 0.0
        %v5478 = vadd.f32 %v5446, 0.0
        %v5479 = vadd.f32 %v5447, 0.0
        %v5480 = vadd.f32 %v5448, 0.0
        %v5481 = vadd.f32 %v5449, 0.0
        %v5482 = vadd.f32 %v5450, 0.0
        %v5483 = vadd.f32 %v5451, 0.0
        %v5484 = vadd.f32 %v5452, 0.0
        %v5485 = vadd.f32 %v5453, 0.0
        %v5486 = vadd.f32 %v5454, 0.0
        %v5487 = vadd.f32 %v5455, 0.0
        %v5488 = vadd.f32 %v5456, 0.0
        %v5489 = vadd.f32 %v5457, 0.0
        %v5490 = vadd.f32 %v5458, 0.0
        %v5491 = vadd.f32 %v5459, 0.0
        %v5492 = vadd.f32 %v5460, 0.0
        %v5493 = vadd.f32 %v5461, 0.0
        %v5494 = vadd.f32 %v5462, 0.0
        %v5495 = vadd.f32 %v5463, 0.0
        %v5496 = vadd.f32 %v5464, 0.0
        %v5497 = vadd.f32 %v5465, 0.0
        %v5498 = vadd.f32 %v5466, 0.0
        %v5499 = vadd.f32 %v5467, 0.0
        %v5500 = vadd.f32 %v5468, 0.0
        %v5501 = vadd.f32 %v5469, 0.0
        %v5502 = vadd.f32 %v5470, 0.0
        %v5503 = vadd.f32 %v5471, 0.0
        %v5504 = vadd.f32 %v5472, 0.0
        %v5505 = vadd.f32 %v5473, 0.0
        %v5506 = vadd.f32 %v5474, 0.0
        %v5507 = vadd.f32 %v5475, 0.0
        %v5508 = vadd.f32 %v5476, 0.0
        %v5509 = vadd.f32 %v5477, 0.0
        %5510 = vset.pattern.permute.xlu0 13
        %5511 = vperm.xlu0 %5510, %v1901
        %v5512 = vpop.permute.xlu0 %5511
        %5513 = vset.pattern.permute.xlu0 13
        %5514 = vperm.xlu0 %5513, %v1902
        %v5515 = vpop.permute.xlu0 %5514
        %5516 = vset.pattern.permute.xlu0 13
        %5517 = vperm.xlu0 %5516, %v1903
        %v5518 = vpop.permute.xlu0 %5517
        %5519 = vset.pattern.permute.xlu0 13
        %5520 = vperm.xlu0 %5519, %v1904
        %v5521 = vpop.permute.xlu0 %5520
        %5522 = vset.pattern.permute.xlu0 13
        %5523 = vperm.xlu0 %5522, %v1905
        %v5524 = vpop.permute.xlu0 %5523
        %5525 = vset.pattern.permute.xlu0 13
        %5526 = vperm.xlu0 %5525, %v1906
        %v5527 = vpop.permute.xlu0 %5526
        %5528 = vset.pattern.permute.xlu0 13
        %5529 = vperm.xlu0 %5528, %v1907
        %v5530 = vpop.permute.xlu0 %5529
        %5531 = vset.pattern.permute.xlu0 13
        %5532 = vperm.xlu0 %5531, %v1908
        %v5533 = vpop.permute.xlu0 %5532
        %5534 = vset.pattern.permute.xlu0 13
        %5535 = vperm.xlu0 %5534, %v1909
        %v5536 = vpop.permute.xlu0 %5535
        %5537 = vset.pattern.permute.xlu0 13
        %5538 = vperm.xlu0 %5537, %v1910
        %v5539 = vpop.permute.xlu0 %5538
        %5540 = vset.pattern.permute.xlu0 13
        %5541 = vperm.xlu0 %5540, %v1911
        %v5542 = vpop.permute.xlu0 %5541
        %5543 = vset.pattern.permute.xlu0 13
        %5544 = vperm.xlu0 %5543, %v1912
        %v5545 = vpop.permute.xlu0 %5544
        %5546 = vset.pattern.permute.xlu0 13
        %5547 = vperm.xlu0 %5546, %v1913
        %v5548 = vpop.permute.xlu0 %5547
        %5549 = vset.pattern.permute.xlu0 13
        %5550 = vperm.xlu0 %5549, %v1914
        %v5551 = vpop.permute.xlu0 %5550
        %5552 = vset.pattern.permute.xlu0 13
        %5553 = vperm.xlu0 %5552, %v1915
        %v5554 = vpop.permute.xlu0 %5553
        %5555 = vset.pattern.permute.xlu0 13
        %5556 = vperm.xlu0 %5555, %v1916
        %v5557 = vpop.permute.xlu0 %5556
        %vm5558 = vcmp.eq.s32.totalorder %v1998, %v5512
        %vm5559 = vcmp.eq.s32.totalorder %v4098, %v5512
        %vm5560 = vcmp.eq.s32.totalorder %v1998, %v5515
        %vm5561 = vcmp.eq.s32.totalorder %v4098, %v5515
        %vm5562 = vcmp.eq.s32.totalorder %v1998, %v5518
        %vm5563 = vcmp.eq.s32.totalorder %v4098, %v5518
        %vm5564 = vcmp.eq.s32.totalorder %v1998, %v5521
        %vm5565 = vcmp.eq.s32.totalorder %v4098, %v5521
        %vm5566 = vcmp.eq.s32.totalorder %v1998, %v5524
        %vm5567 = vcmp.eq.s32.totalorder %v4098, %v5524
        %vm5568 = vcmp.eq.s32.totalorder %v1998, %v5527
        %vm5569 = vcmp.eq.s32.totalorder %v4098, %v5527
        %vm5570 = vcmp.eq.s32.totalorder %v1998, %v5530
        %vm5571 = vcmp.eq.s32.totalorder %v4098, %v5530
        %vm5572 = vcmp.eq.s32.totalorder %v1998, %v5533
        %vm5573 = vcmp.eq.s32.totalorder %v4098, %v5533
        %vm5574 = vcmp.eq.s32.totalorder %v1998, %v5536
        %vm5575 = vcmp.eq.s32.totalorder %v4098, %v5536
        %vm5576 = vcmp.eq.s32.totalorder %v1998, %v5539
        %vm5577 = vcmp.eq.s32.totalorder %v4098, %v5539
        %vm5578 = vcmp.eq.s32.totalorder %v1998, %v5542
        %vm5579 = vcmp.eq.s32.totalorder %v4098, %v5542
        %vm5580 = vcmp.eq.s32.totalorder %v1998, %v5545
        %vm5581 = vcmp.eq.s32.totalorder %v4098, %v5545
        %vm5582 = vcmp.eq.s32.totalorder %v1998, %v5548
        %vm5583 = vcmp.eq.s32.totalorder %v4098, %v5548
        %vm5584 = vcmp.eq.s32.totalorder %v1998, %v5551
        %vm5585 = vcmp.eq.s32.totalorder %v4098, %v5551
        %vm5586 = vcmp.eq.s32.totalorder %v1998, %v5554
        %vm5587 = vcmp.eq.s32.totalorder %v4098, %v5554
        %vm5588 = vcmp.eq.s32.totalorder %v1998, %v5557
        %vm5589 = vcmp.eq.s32.totalorder %v4098, %v5557
        %5590 = vset.pattern.permute.xlu0 13
        %5591 = vperm.xlu0 %5590, %v1917
        %v5592 = vpop.permute.xlu0 %5591
        %5594 = vset.pattern.permute.xlu0 13
        %5595 = vperm.xlu0 %5594, %v1918
        %v5596 = vpop.permute.xlu0 %5595
        %5598 = vset.pattern.permute.xlu0 13
        %5599 = vperm.xlu0 %5598, %v1919
        %v5600 = vpop.permute.xlu0 %5599
        %5602 = vset.pattern.permute.xlu0 13
        %5603 = vperm.xlu0 %5602, %v1920
        %v5604 = vpop.permute.xlu0 %5603
        %5606 = vset.pattern.permute.xlu0 13
        %5607 = vperm.xlu0 %5606, %v1921
        %v5608 = vpop.permute.xlu0 %5607
        %5610 = vset.pattern.permute.xlu0 13
        %5611 = vperm.xlu0 %5610, %v1922
        %v5612 = vpop.permute.xlu0 %5611
        %5614 = vset.pattern.permute.xlu0 13
        %5615 = vperm.xlu0 %5614, %v1923
        %v5616 = vpop.permute.xlu0 %5615
        %5618 = vset.pattern.permute.xlu0 13
        %5619 = vperm.xlu0 %5618, %v1924
        %v5620 = vpop.permute.xlu0 %5619
        %5622 = vset.pattern.permute.xlu0 13
        %5623 = vperm.xlu0 %5622, %v1925
        %v5624 = vpop.permute.xlu0 %5623
        %5626 = vset.pattern.permute.xlu0 13
        %5627 = vperm.xlu0 %5626, %v1926
        %v5628 = vpop.permute.xlu0 %5627
        %5630 = vset.pattern.permute.xlu0 13
        %5631 = vperm.xlu0 %5630, %v1927
        %v5632 = vpop.permute.xlu0 %5631
        %5634 = vset.pattern.permute.xlu0 13
        %5635 = vperm.xlu0 %5634, %v1928
        %v5636 = vpop.permute.xlu0 %5635
        %5638 = vset.pattern.permute.xlu0 13
        %5639 = vperm.xlu0 %5638, %v1929
        %v5640 = vpop.permute.xlu0 %5639
        %5642 = vset.pattern.permute.xlu0 13
        %5643 = vperm.xlu0 %5642, %v1930
        %v5644 = vpop.permute.xlu0 %5643
        %5646 = vset.pattern.permute.xlu0 13
        %5647 = vperm.xlu0 %5646, %v1931
        %v5648 = vpop.permute.xlu0 %5647
        %5650 = vset.pattern.permute.xlu0 13
        %5651 = vperm.xlu0 %5650, %v1932
        %v5652 = vpop.permute.xlu0 %5651
        %v5654 = vsel %vm5558, %v5592, 0.0
        %v5655 = vsel %vm5559, %v5592, 0.0
        %v5656 = vsel %vm5560, %v5596, 0.0
        %v5657 = vsel %vm5561, %v5596, 0.0
        %v5658 = vsel %vm5562, %v5600, 0.0
        %v5659 = vsel %vm5563, %v5600, 0.0
        %v5660 = vsel %vm5564, %v5604, 0.0
        %v5661 = vsel %vm5565, %v5604, 0.0
        %v5662 = vsel %vm5566, %v5608, 0.0
        %v5663 = vsel %vm5567, %v5608, 0.0
        %v5664 = vsel %vm5568, %v5612, 0.0
        %v5665 = vsel %vm5569, %v5612, 0.0
        %v5666 = vsel %vm5570, %v5616, 0.0
        %v5667 = vsel %vm5571, %v5616, 0.0
        %v5668 = vsel %vm5572, %v5620, 0.0
        %v5669 = vsel %vm5573, %v5620, 0.0
        %v5670 = vsel %vm5574, %v5624, 0.0
        %v5671 = vsel %vm5575, %v5624, 0.0
        %v5672 = vsel %vm5576, %v5628, 0.0
        %v5673 = vsel %vm5577, %v5628, 0.0
        %v5674 = vsel %vm5578, %v5632, 0.0
        %v5675 = vsel %vm5579, %v5632, 0.0
        %v5676 = vsel %vm5580, %v5636, 0.0
        %v5677 = vsel %vm5581, %v5636, 0.0
        %v5678 = vsel %vm5582, %v5640, 0.0
        %v5679 = vsel %vm5583, %v5640, 0.0
        %v5680 = vsel %vm5584, %v5644, 0.0
        %v5681 = vsel %vm5585, %v5644, 0.0
        %v5682 = vsel %vm5586, %v5648, 0.0
        %v5683 = vsel %vm5587, %v5648, 0.0
        %v5684 = vsel %vm5588, %v5652, 0.0
        %v5685 = vsel %vm5589, %v5652, 0.0
        %v5686 = vadd.f32 %v5478, %v5654
        %v5687 = vadd.f32 %v5479, %v5655
        %v5688 = vadd.f32 %v5480, %v5656
        %v5689 = vadd.f32 %v5481, %v5657
        %v5690 = vadd.f32 %v5482, %v5658
        %v5691 = vadd.f32 %v5483, %v5659
        %v5692 = vadd.f32 %v5484, %v5660
        %v5693 = vadd.f32 %v5485, %v5661
        %v5694 = vadd.f32 %v5486, %v5662
        %v5695 = vadd.f32 %v5487, %v5663
        %v5696 = vadd.f32 %v5488, %v5664
        %v5697 = vadd.f32 %v5489, %v5665
        %v5698 = vadd.f32 %v5490, %v5666
        %v5699 = vadd.f32 %v5491, %v5667
        %v5700 = vadd.f32 %v5492, %v5668
        %v5701 = vadd.f32 %v5493, %v5669
        %v5702 = vadd.f32 %v5494, %v5670
        %v5703 = vadd.f32 %v5495, %v5671
        %v5704 = vadd.f32 %v5496, %v5672
        %v5705 = vadd.f32 %v5497, %v5673
        %v5706 = vadd.f32 %v5498, %v5674
        %v5707 = vadd.f32 %v5499, %v5675
        %v5708 = vadd.f32 %v5500, %v5676
        %v5709 = vadd.f32 %v5501, %v5677
        %v5710 = vadd.f32 %v5502, %v5678
        %v5711 = vadd.f32 %v5503, %v5679
        %v5712 = vadd.f32 %v5504, %v5680
        %v5713 = vadd.f32 %v5505, %v5681
        %v5714 = vadd.f32 %v5506, %v5682
        %v5715 = vadd.f32 %v5507, %v5683
        %v5716 = vadd.f32 %v5508, %v5684
        %v5717 = vadd.f32 %v5509, %v5685
        %5718 = vset.pattern.permute.xlu0 14
        %5719 = vperm.xlu0 %5718, %v1901
        %v5720 = vpop.permute.xlu0 %5719
        %5721 = vset.pattern.permute.xlu0 14
        %5722 = vperm.xlu0 %5721, %v1902
        %v5723 = vpop.permute.xlu0 %5722
        %5724 = vset.pattern.permute.xlu0 14
        %5725 = vperm.xlu0 %5724, %v1903
        %v5726 = vpop.permute.xlu0 %5725
        %5727 = vset.pattern.permute.xlu0 14
        %5728 = vperm.xlu0 %5727, %v1904
        %v5729 = vpop.permute.xlu0 %5728
        %5730 = vset.pattern.permute.xlu0 14
        %5731 = vperm.xlu0 %5730, %v1905
        %v5732 = vpop.permute.xlu0 %5731
        %5733 = vset.pattern.permute.xlu0 14
        %5734 = vperm.xlu0 %5733, %v1906
        %v5735 = vpop.permute.xlu0 %5734
        %5736 = vset.pattern.permute.xlu0 14
        %5737 = vperm.xlu0 %5736, %v1907
        %v5738 = vpop.permute.xlu0 %5737
        %5739 = vset.pattern.permute.xlu0 14
        %5740 = vperm.xlu0 %5739, %v1908
        %v5741 = vpop.permute.xlu0 %5740
        %5742 = vset.pattern.permute.xlu0 14
        %5743 = vperm.xlu0 %5742, %v1909
        %v5744 = vpop.permute.xlu0 %5743
        %5745 = vset.pattern.permute.xlu0 14
        %5746 = vperm.xlu0 %5745, %v1910
        %v5747 = vpop.permute.xlu0 %5746
        %5748 = vset.pattern.permute.xlu0 14
        %5749 = vperm.xlu0 %5748, %v1911
        %v5750 = vpop.permute.xlu0 %5749
        %5751 = vset.pattern.permute.xlu0 14
        %5752 = vperm.xlu0 %5751, %v1912
        %v5753 = vpop.permute.xlu0 %5752
        %5754 = vset.pattern.permute.xlu0 14
        %5755 = vperm.xlu0 %5754, %v1913
        %v5756 = vpop.permute.xlu0 %5755
        %5757 = vset.pattern.permute.xlu0 14
        %5758 = vperm.xlu0 %5757, %v1914
        %v5759 = vpop.permute.xlu0 %5758
        %5760 = vset.pattern.permute.xlu0 14
        %5761 = vperm.xlu0 %5760, %v1915
        %v5762 = vpop.permute.xlu0 %5761
        %5763 = vset.pattern.permute.xlu0 14
        %5764 = vperm.xlu0 %5763, %v1916
        %v5765 = vpop.permute.xlu0 %5764
        %vm5766 = vcmp.eq.s32.totalorder %v1998, %v5720
        %vm5767 = vcmp.eq.s32.totalorder %v4098, %v5720
        %vm5768 = vcmp.eq.s32.totalorder %v1998, %v5723
        %vm5769 = vcmp.eq.s32.totalorder %v4098, %v5723
        %vm5770 = vcmp.eq.s32.totalorder %v1998, %v5726
        %vm5771 = vcmp.eq.s32.totalorder %v4098, %v5726
        %vm5772 = vcmp.eq.s32.totalorder %v1998, %v5729
        %vm5773 = vcmp.eq.s32.totalorder %v4098, %v5729
        %vm5774 = vcmp.eq.s32.totalorder %v1998, %v5732
        %vm5775 = vcmp.eq.s32.totalorder %v4098, %v5732
        %vm5776 = vcmp.eq.s32.totalorder %v1998, %v5735
        %vm5777 = vcmp.eq.s32.totalorder %v4098, %v5735
        %vm5778 = vcmp.eq.s32.totalorder %v1998, %v5738
        %vm5779 = vcmp.eq.s32.totalorder %v4098, %v5738
        %vm5780 = vcmp.eq.s32.totalorder %v1998, %v5741
        %vm5781 = vcmp.eq.s32.totalorder %v4098, %v5741
        %vm5782 = vcmp.eq.s32.totalorder %v1998, %v5744
        %vm5783 = vcmp.eq.s32.totalorder %v4098, %v5744
        %vm5784 = vcmp.eq.s32.totalorder %v1998, %v5747
        %vm5785 = vcmp.eq.s32.totalorder %v4098, %v5747
        %vm5786 = vcmp.eq.s32.totalorder %v1998, %v5750
        %vm5787 = vcmp.eq.s32.totalorder %v4098, %v5750
        %vm5788 = vcmp.eq.s32.totalorder %v1998, %v5753
        %vm5789 = vcmp.eq.s32.totalorder %v4098, %v5753
        %vm5790 = vcmp.eq.s32.totalorder %v1998, %v5756
        %vm5791 = vcmp.eq.s32.totalorder %v4098, %v5756
        %vm5792 = vcmp.eq.s32.totalorder %v1998, %v5759
        %vm5793 = vcmp.eq.s32.totalorder %v4098, %v5759
        %vm5794 = vcmp.eq.s32.totalorder %v1998, %v5762
        %vm5795 = vcmp.eq.s32.totalorder %v4098, %v5762
        %vm5796 = vcmp.eq.s32.totalorder %v1998, %v5765
        %vm5797 = vcmp.eq.s32.totalorder %v4098, %v5765
        %5798 = vset.pattern.permute.xlu0 14
        %5799 = vperm.xlu0 %5798, %v1917
        %v5800 = vpop.permute.xlu0 %5799
        %5802 = vset.pattern.permute.xlu0 14
        %5803 = vperm.xlu0 %5802, %v1918
        %v5804 = vpop.permute.xlu0 %5803
        %5806 = vset.pattern.permute.xlu0 14
        %5807 = vperm.xlu0 %5806, %v1919
        %v5808 = vpop.permute.xlu0 %5807
        %5810 = vset.pattern.permute.xlu0 14
        %5811 = vperm.xlu0 %5810, %v1920
        %v5812 = vpop.permute.xlu0 %5811
        %5814 = vset.pattern.permute.xlu0 14
        %5815 = vperm.xlu0 %5814, %v1921
        %v5816 = vpop.permute.xlu0 %5815
        %5818 = vset.pattern.permute.xlu0 14
        %5819 = vperm.xlu0 %5818, %v1922
        %v5820 = vpop.permute.xlu0 %5819
        %5822 = vset.pattern.permute.xlu0 14
        %5823 = vperm.xlu0 %5822, %v1923
        %v5824 = vpop.permute.xlu0 %5823
        %5826 = vset.pattern.permute.xlu0 14
        %5827 = vperm.xlu0 %5826, %v1924
        %v5828 = vpop.permute.xlu0 %5827
        %5830 = vset.pattern.permute.xlu0 14
        %5831 = vperm.xlu0 %5830, %v1925
        %v5832 = vpop.permute.xlu0 %5831
        %5834 = vset.pattern.permute.xlu0 14
        %5835 = vperm.xlu0 %5834, %v1926
        %v5836 = vpop.permute.xlu0 %5835
        %5838 = vset.pattern.permute.xlu0 14
        %5839 = vperm.xlu0 %5838, %v1927
        %v5840 = vpop.permute.xlu0 %5839
        %5842 = vset.pattern.permute.xlu0 14
        %5843 = vperm.xlu0 %5842, %v1928
        %v5844 = vpop.permute.xlu0 %5843
        %5846 = vset.pattern.permute.xlu0 14
        %5847 = vperm.xlu0 %5846, %v1929
        %v5848 = vpop.permute.xlu0 %5847
        %5850 = vset.pattern.permute.xlu0 14
        %5851 = vperm.xlu0 %5850, %v1930
        %v5852 = vpop.permute.xlu0 %5851
        %5854 = vset.pattern.permute.xlu0 14
        %5855 = vperm.xlu0 %5854, %v1931
        %v5856 = vpop.permute.xlu0 %5855
        %5858 = vset.pattern.permute.xlu0 14
        %5859 = vperm.xlu0 %5858, %v1932
        %v5860 = vpop.permute.xlu0 %5859
        %v5862 = vsel %vm5766, %v5800, 0.0
        %v5863 = vsel %vm5767, %v5800, 0.0
        %v5864 = vsel %vm5768, %v5804, 0.0
        %v5865 = vsel %vm5769, %v5804, 0.0
        %v5866 = vsel %vm5770, %v5808, 0.0
        %v5867 = vsel %vm5771, %v5808, 0.0
        %v5868 = vsel %vm5772, %v5812, 0.0
        %v5869 = vsel %vm5773, %v5812, 0.0
        %v5870 = vsel %vm5774, %v5816, 0.0
        %v5871 = vsel %vm5775, %v5816, 0.0
        %v5872 = vsel %vm5776, %v5820, 0.0
        %v5873 = vsel %vm5777, %v5820, 0.0
        %v5874 = vsel %vm5778, %v5824, 0.0
        %v5875 = vsel %vm5779, %v5824, 0.0
        %v5876 = vsel %vm5780, %v5828, 0.0
        %v5877 = vsel %vm5781, %v5828, 0.0
        %v5878 = vsel %vm5782, %v5832, 0.0
        %v5879 = vsel %vm5783, %v5832, 0.0
        %v5880 = vsel %vm5784, %v5836, 0.0
        %v5881 = vsel %vm5785, %v5836, 0.0
        %v5882 = vsel %vm5786, %v5840, 0.0
        %v5883 = vsel %vm5787, %v5840, 0.0
        %v5884 = vsel %vm5788, %v5844, 0.0
        %v5885 = vsel %vm5789, %v5844, 0.0
        %v5886 = vsel %vm5790, %v5848, 0.0
        %v5887 = vsel %vm5791, %v5848, 0.0
        %v5888 = vsel %vm5792, %v5852, 0.0
        %v5889 = vsel %vm5793, %v5852, 0.0
        %v5890 = vsel %vm5794, %v5856, 0.0
        %v5891 = vsel %vm5795, %v5856, 0.0
        %v5892 = vsel %vm5796, %v5860, 0.0
        %v5893 = vsel %vm5797, %v5860, 0.0
        %v5894 = vadd.f32 %v5686, %v5862
        %v5895 = vadd.f32 %v5687, %v5863
        %v5896 = vadd.f32 %v5688, %v5864
        %v5897 = vadd.f32 %v5689, %v5865
        %v5898 = vadd.f32 %v5690, %v5866
        %v5899 = vadd.f32 %v5691, %v5867
        %v5900 = vadd.f32 %v5692, %v5868
        %v5901 = vadd.f32 %v5693, %v5869
        %v5902 = vadd.f32 %v5694, %v5870
        %v5903 = vadd.f32 %v5695, %v5871
        %v5904 = vadd.f32 %v5696, %v5872
        %v5905 = vadd.f32 %v5697, %v5873
        %v5906 = vadd.f32 %v5698, %v5874
        %v5907 = vadd.f32 %v5699, %v5875
        %v5908 = vadd.f32 %v5700, %v5876
        %v5909 = vadd.f32 %v5701, %v5877
        %v5910 = vadd.f32 %v5702, %v5878
        %v5911 = vadd.f32 %v5703, %v5879
        %v5912 = vadd.f32 %v5704, %v5880
        %v5913 = vadd.f32 %v5705, %v5881
        %v5914 = vadd.f32 %v5706, %v5882
        %v5915 = vadd.f32 %v5707, %v5883
        %v5916 = vadd.f32 %v5708, %v5884
        %v5917 = vadd.f32 %v5709, %v5885
        %v5918 = vadd.f32 %v5710, %v5886
        %v5919 = vadd.f32 %v5711, %v5887
        %v5920 = vadd.f32 %v5712, %v5888
        %v5921 = vadd.f32 %v5713, %v5889
        %v5922 = vadd.f32 %v5714, %v5890
        %v5923 = vadd.f32 %v5715, %v5891
        %v5924 = vadd.f32 %v5716, %v5892
        %v5925 = vadd.f32 %v5717, %v5893
        %5926 = vset.pattern.permute.xlu0 15
        %5927 = vperm.xlu0 %5926, %v1901
        %v5928 = vpop.permute.xlu0 %5927
        %5929 = vset.pattern.permute.xlu0 15
        %5930 = vperm.xlu0 %5929, %v1902
        %v5931 = vpop.permute.xlu0 %5930
        %5932 = vset.pattern.permute.xlu0 15
        %5933 = vperm.xlu0 %5932, %v1903
        %v5934 = vpop.permute.xlu0 %5933
        %5935 = vset.pattern.permute.xlu0 15
        %5936 = vperm.xlu0 %5935, %v1904
        %v5937 = vpop.permute.xlu0 %5936
        %5938 = vset.pattern.permute.xlu0 15
        %5939 = vperm.xlu0 %5938, %v1905
        %v5940 = vpop.permute.xlu0 %5939
        %5941 = vset.pattern.permute.xlu0 15
        %5942 = vperm.xlu0 %5941, %v1906
        %v5943 = vpop.permute.xlu0 %5942
        %5944 = vset.pattern.permute.xlu0 15
        %5945 = vperm.xlu0 %5944, %v1907
        %v5946 = vpop.permute.xlu0 %5945
        %5947 = vset.pattern.permute.xlu0 15
        %5948 = vperm.xlu0 %5947, %v1908
        %v5949 = vpop.permute.xlu0 %5948
        %5950 = vset.pattern.permute.xlu0 15
        %5951 = vperm.xlu0 %5950, %v1909
        %v5952 = vpop.permute.xlu0 %5951
        %5953 = vset.pattern.permute.xlu0 15
        %5954 = vperm.xlu0 %5953, %v1910
        %v5955 = vpop.permute.xlu0 %5954
        %5956 = vset.pattern.permute.xlu0 15
        %5957 = vperm.xlu0 %5956, %v1911
        %v5958 = vpop.permute.xlu0 %5957
        %5959 = vset.pattern.permute.xlu0 15
        %5960 = vperm.xlu0 %5959, %v1912
        %v5961 = vpop.permute.xlu0 %5960
        %5962 = vset.pattern.permute.xlu0 15
        %5963 = vperm.xlu0 %5962, %v1913
        %v5964 = vpop.permute.xlu0 %5963
        %5965 = vset.pattern.permute.xlu0 15
        %5966 = vperm.xlu0 %5965, %v1914
        %v5967 = vpop.permute.xlu0 %5966
        %5968 = vset.pattern.permute.xlu0 15
        %5969 = vperm.xlu0 %5968, %v1915
        %v5970 = vpop.permute.xlu0 %5969
        %5971 = vset.pattern.permute.xlu0 15
        %5972 = vperm.xlu0 %5971, %v1916
        %v5973 = vpop.permute.xlu0 %5972
        %vm5974 = vcmp.eq.s32.totalorder %v1998, %v5928
        %vm5975 = vcmp.eq.s32.totalorder %v4098, %v5928
        %vm5976 = vcmp.eq.s32.totalorder %v1998, %v5931
        %vm5977 = vcmp.eq.s32.totalorder %v4098, %v5931
        %vm5978 = vcmp.eq.s32.totalorder %v1998, %v5934
        %vm5979 = vcmp.eq.s32.totalorder %v4098, %v5934
        %vm5980 = vcmp.eq.s32.totalorder %v1998, %v5937
        %vm5981 = vcmp.eq.s32.totalorder %v4098, %v5937
        %vm5982 = vcmp.eq.s32.totalorder %v1998, %v5940
        %vm5983 = vcmp.eq.s32.totalorder %v4098, %v5940
        %vm5984 = vcmp.eq.s32.totalorder %v1998, %v5943
        %vm5985 = vcmp.eq.s32.totalorder %v4098, %v5943
        %vm5986 = vcmp.eq.s32.totalorder %v1998, %v5946
        %vm5987 = vcmp.eq.s32.totalorder %v4098, %v5946
        %vm5988 = vcmp.eq.s32.totalorder %v1998, %v5949
        %vm5989 = vcmp.eq.s32.totalorder %v4098, %v5949
        %vm5990 = vcmp.eq.s32.totalorder %v1998, %v5952
        %vm5991 = vcmp.eq.s32.totalorder %v4098, %v5952
        %vm5992 = vcmp.eq.s32.totalorder %v1998, %v5955
        %vm5993 = vcmp.eq.s32.totalorder %v4098, %v5955
        %vm5994 = vcmp.eq.s32.totalorder %v1998, %v5958
        %vm5995 = vcmp.eq.s32.totalorder %v4098, %v5958
        %vm5996 = vcmp.eq.s32.totalorder %v1998, %v5961
        %vm5997 = vcmp.eq.s32.totalorder %v4098, %v5961
        %vm5998 = vcmp.eq.s32.totalorder %v1998, %v5964
        %vm5999 = vcmp.eq.s32.totalorder %v4098, %v5964
        %vm6000 = vcmp.eq.s32.totalorder %v1998, %v5967
        %vm6001 = vcmp.eq.s32.totalorder %v4098, %v5967
        %vm6002 = vcmp.eq.s32.totalorder %v1998, %v5970
        %vm6003 = vcmp.eq.s32.totalorder %v4098, %v5970
        %vm6004 = vcmp.eq.s32.totalorder %v1998, %v5973
        %vm6005 = vcmp.eq.s32.totalorder %v4098, %v5973
        %6006 = vset.pattern.permute.xlu0 15
        %6007 = vperm.xlu0 %6006, %v1917
        %v6008 = vpop.permute.xlu0 %6007
        %6010 = vset.pattern.permute.xlu0 15
        %6011 = vperm.xlu0 %6010, %v1918
        %v6012 = vpop.permute.xlu0 %6011
        %6014 = vset.pattern.permute.xlu0 15
        %6015 = vperm.xlu0 %6014, %v1919
        %v6016 = vpop.permute.xlu0 %6015
        %6018 = vset.pattern.permute.xlu0 15
        %6019 = vperm.xlu0 %6018, %v1920
        %v6020 = vpop.permute.xlu0 %6019
        %6022 = vset.pattern.permute.xlu0 15
        %6023 = vperm.xlu0 %6022, %v1921
        %v6024 = vpop.permute.xlu0 %6023
        %6026 = vset.pattern.permute.xlu0 15
        %6027 = vperm.xlu0 %6026, %v1922
        %v6028 = vpop.permute.xlu0 %6027
        %6030 = vset.pattern.permute.xlu0 15
        %6031 = vperm.xlu0 %6030, %v1923
        %v6032 = vpop.permute.xlu0 %6031
        %6034 = vset.pattern.permute.xlu0 15
        %6035 = vperm.xlu0 %6034, %v1924
        %v6036 = vpop.permute.xlu0 %6035
        %6038 = vset.pattern.permute.xlu0 15
        %6039 = vperm.xlu0 %6038, %v1925
        %v6040 = vpop.permute.xlu0 %6039
        %6042 = vset.pattern.permute.xlu0 15
        %6043 = vperm.xlu0 %6042, %v1926
        %v6044 = vpop.permute.xlu0 %6043
        %6046 = vset.pattern.permute.xlu0 15
        %6047 = vperm.xlu0 %6046, %v1927
        %v6048 = vpop.permute.xlu0 %6047
        %6050 = vset.pattern.permute.xlu0 15
        %6051 = vperm.xlu0 %6050, %v1928
        %v6052 = vpop.permute.xlu0 %6051
        %6054 = vset.pattern.permute.xlu0 15
        %6055 = vperm.xlu0 %6054, %v1929
        %v6056 = vpop.permute.xlu0 %6055
        %6058 = vset.pattern.permute.xlu0 15
        %6059 = vperm.xlu0 %6058, %v1930
        %v6060 = vpop.permute.xlu0 %6059
        %6062 = vset.pattern.permute.xlu0 15
        %6063 = vperm.xlu0 %6062, %v1931
        %v6064 = vpop.permute.xlu0 %6063
        %6066 = vset.pattern.permute.xlu0 15
        %6067 = vperm.xlu0 %6066, %v1932
        %v6068 = vpop.permute.xlu0 %6067
        %v6070 = vsel %vm5974, %v6008, 0.0
        %v6071 = vsel %vm5975, %v6008, 0.0
        %v6072 = vsel %vm5976, %v6012, 0.0
        %v6073 = vsel %vm5977, %v6012, 0.0
        %v6074 = vsel %vm5978, %v6016, 0.0
        %v6075 = vsel %vm5979, %v6016, 0.0
        %v6076 = vsel %vm5980, %v6020, 0.0
        %v6077 = vsel %vm5981, %v6020, 0.0
        %v6078 = vsel %vm5982, %v6024, 0.0
        %v6079 = vsel %vm5983, %v6024, 0.0
        %v6080 = vsel %vm5984, %v6028, 0.0
        %v6081 = vsel %vm5985, %v6028, 0.0
        %v6082 = vsel %vm5986, %v6032, 0.0
        %v6083 = vsel %vm5987, %v6032, 0.0
        %v6084 = vsel %vm5988, %v6036, 0.0
        %v6085 = vsel %vm5989, %v6036, 0.0
        %v6086 = vsel %vm5990, %v6040, 0.0
        %v6087 = vsel %vm5991, %v6040, 0.0
        %v6088 = vsel %vm5992, %v6044, 0.0
        %v6089 = vsel %vm5993, %v6044, 0.0
        %v6090 = vsel %vm5994, %v6048, 0.0
        %v6091 = vsel %vm5995, %v6048, 0.0
        %v6092 = vsel %vm5996, %v6052, 0.0
        %v6093 = vsel %vm5997, %v6052, 0.0
        %v6094 = vsel %vm5998, %v6056, 0.0
        %v6095 = vsel %vm5999, %v6056, 0.0
        %v6096 = vsel %vm6000, %v6060, 0.0
        %v6097 = vsel %vm6001, %v6060, 0.0
        %v6098 = vsel %vm6002, %v6064, 0.0
        %v6099 = vsel %vm6003, %v6064, 0.0
        %v6100 = vsel %vm6004, %v6068, 0.0
        %v6101 = vsel %vm6005, %v6068, 0.0
        %v6102 = vadd.f32 %v5894, %v6070
        %v6103 = vadd.f32 %v5895, %v6071
        %v6104 = vadd.f32 %v5896, %v6072
        %v6105 = vadd.f32 %v5897, %v6073
        %v6106 = vadd.f32 %v5898, %v6074
        %v6107 = vadd.f32 %v5899, %v6075
        %v6108 = vadd.f32 %v5900, %v6076
        %v6109 = vadd.f32 %v5901, %v6077
        %v6110 = vadd.f32 %v5902, %v6078
        %v6111 = vadd.f32 %v5903, %v6079
        %v6112 = vadd.f32 %v5904, %v6080
        %v6113 = vadd.f32 %v5905, %v6081
        %v6114 = vadd.f32 %v5906, %v6082
        %v6115 = vadd.f32 %v5907, %v6083
        %v6116 = vadd.f32 %v5908, %v6084
        %v6117 = vadd.f32 %v5909, %v6085
        %v6118 = vadd.f32 %v5910, %v6086
        %v6119 = vadd.f32 %v5911, %v6087
        %v6120 = vadd.f32 %v5912, %v6088
        %v6121 = vadd.f32 %v5913, %v6089
        %v6122 = vadd.f32 %v5914, %v6090
        %v6123 = vadd.f32 %v5915, %v6091
        %v6124 = vadd.f32 %v5916, %v6092
        %v6125 = vadd.f32 %v5917, %v6093
        %v6126 = vadd.f32 %v5918, %v6094
        %v6127 = vadd.f32 %v5919, %v6095
        %v6128 = vadd.f32 %v5920, %v6096
        %v6129 = vadd.f32 %v5921, %v6097
        %v6130 = vadd.f32 %v5922, %v6098
        %v6131 = vadd.f32 %v5923, %v6099
        %v6132 = vadd.f32 %v5924, %v6100
        %v6133 = vadd.f32 %v5925, %v6101
        %v6134 = vpack.c.bf16 %v6104, %v6102
        %v6135 = vpack.c.bf16 %v6105, %v6103
        %v6136 = vpack.c.bf16 %v6108, %v6106
        %v6137 = vpack.c.bf16 %v6109, %v6107
        %v6138 = vpack.c.bf16 %v6112, %v6110
        %v6139 = vpack.c.bf16 %v6113, %v6111
        %v6140 = vpack.c.bf16 %v6116, %v6114
        %v6141 = vpack.c.bf16 %v6117, %v6115
        %v6142 = vpack.c.bf16 %v6120, %v6118
        %v6143 = vpack.c.bf16 %v6121, %v6119
        %v6144 = vpack.c.bf16 %v6124, %v6122
        %v6145 = vpack.c.bf16 %v6125, %v6123
        %v6146 = vpack.c.bf16 %v6128, %v6126
        %v6147 = vpack.c.bf16 %v6129, %v6127
        %v6148 = vpack.c.bf16 %v6132, %v6130
        %v6149 = vpack.c.bf16 %v6133, %v6131
        %v6150 = vld [vmem:[%s1132] sm:$0xf]
        %v6151 = vld [vmem:[%s1132 + $0x4] sm:$0xf]
        %v6152 = vld [vmem:[%s1132 + $0x8] sm:$0xf]
        %v6153 = vld [vmem:[%s1132 + $0xc] sm:$0xf]
        %v6154 = vld [vmem:[%s1132 + $0x10] sm:$0xf]
        %v6155 = vld [vmem:[%s1132 + $0x14] sm:$0xf]
        %v6156 = vld [vmem:[%s1132 + $0x18] sm:$0xf]
        %v6157 = vld [vmem:[%s1132 + $0x1c] sm:$0xf]
        %v6158 = vld [vmem:[%s1132 + $0x20] sm:$0xf]
        %v6159 = vld [vmem:[%s1132 + $0x24] sm:$0xf]
        %v6160 = vld [vmem:[%s1132 + $0x28] sm:$0xf]
        %v6161 = vld [vmem:[%s1132 + $0x2c] sm:$0xf]
        %v6162 = vld [vmem:[%s1132 + $0x30] sm:$0xf]
        %v6163 = vld [vmem:[%s1132 + $0x34] sm:$0xf]
        %v6164 = vld [vmem:[%s1132 + $0x38] sm:$0xf]
        %v6165 = vld [vmem:[%s1132 + $0x3c] sm:$0xf]
        %v6166 = vld [vmem:[%s1132 + $0x40] sm:$0xf]
        %v6167 = vld [vmem:[%s1132 + $0x44] sm:$0xf]
        %v6168 = vld [vmem:[%s1132 + $0x48] sm:$0xf]
        %v6169 = vld [vmem:[%s1132 + $0x4c] sm:$0xf]
        %v6170 = vld [vmem:[%s1132 + $0x50] sm:$0xf]
        %v6171 = vld [vmem:[%s1132 + $0x54] sm:$0xf]
        %v6172 = vld [vmem:[%s1132 + $0x58] sm:$0xf]
        %v6173 = vld [vmem:[%s1132 + $0x5c] sm:$0xf]
        %v6174 = vld [vmem:[%s1132 + $0x60] sm:$0xf]
        %v6175 = vld [vmem:[%s1132 + $0x64] sm:$0xf]
        %v6176 = vld [vmem:[%s1132 + $0x68] sm:$0xf]
        %v6177 = vld [vmem:[%s1132 + $0x6c] sm:$0xf]
        %v6178 = vld [vmem:[%s1132 + $0x70] sm:$0xf]
        %v6179 = vld [vmem:[%s1132 + $0x74] sm:$0xf]
        %v6180 = vld [vmem:[%s1132 + $0x78] sm:$0xf]
        %v6181 = vld [vmem:[%s1132 + $0x7c] sm:$0xf]
        %v6214 = vunpack.c.l.b16 %v6150
        %v6215 = vunpack.c.l.b16 %v6151
        %v6216 = vunpack.c.l.b16 %v6152
        %v6217 = vunpack.c.l.b16 %v6153
        %v6218 = vunpack.c.l.b16 %v6154
        %v6219 = vunpack.c.l.b16 %v6155
        %v6220 = vunpack.c.l.b16 %v6156
        %v6221 = vunpack.c.l.b16 %v6157
        %v6222 = vunpack.c.l.b16 %v6158
        %v6223 = vunpack.c.l.b16 %v6159
        %v6224 = vunpack.c.l.b16 %v6160
        %v6225 = vunpack.c.l.b16 %v6161
        %v6226 = vunpack.c.l.b16 %v6162
        %v6227 = vunpack.c.l.b16 %v6163
        %v6228 = vunpack.c.l.b16 %v6164
        %v6229 = vunpack.c.l.b16 %v6165
        %v6230 = vunpack.c.l.b16 %v6166
        %v6231 = vunpack.c.l.b16 %v6167
        %v6232 = vunpack.c.l.b16 %v6168
        %v6233 = vunpack.c.l.b16 %v6169
        %v6234 = vunpack.c.l.b16 %v6170
        %v6235 = vunpack.c.l.b16 %v6171
        %v6236 = vunpack.c.l.b16 %v6172
        %v6237 = vunpack.c.l.b16 %v6173
        %v6238 = vunpack.c.l.b16 %v6174
        %v6239 = vunpack.c.l.b16 %v6175
        %v6240 = vunpack.c.l.b16 %v6176
        %v6241 = vunpack.c.l.b16 %v6177
        %v6242 = vunpack.c.l.b16 %v6178
        %v6243 = vunpack.c.l.b16 %v6179
        %v6244 = vunpack.c.l.b16 %v6180
        %v6245 = vunpack.c.l.b16 %v6181
        %v6246 = vpack.c.b16 %v6215, %v6214
        %v6247 = vpack.c.b16 %v6217, %v6216
        %v6248 = vpack.c.b16 %v6219, %v6218
        %v6249 = vpack.c.b16 %v6221, %v6220
        %v6250 = vpack.c.b16 %v6223, %v6222
        %v6251 = vpack.c.b16 %v6225, %v6224
        %v6252 = vpack.c.b16 %v6227, %v6226
        %v6253 = vpack.c.b16 %v6229, %v6228
        %v6254 = vpack.c.b16 %v6231, %v6230
        %v6255 = vpack.c.b16 %v6233, %v6232
        %v6256 = vpack.c.b16 %v6235, %v6234
        %v6257 = vpack.c.b16 %v6237, %v6236
        %v6258 = vpack.c.b16 %v6239, %v6238
        %v6259 = vpack.c.b16 %v6241, %v6240
        %v6260 = vpack.c.b16 %v6243, %v6242
        %v6261 = vpack.c.b16 %v6245, %v6244
        %6278 = vmatpush.bf16.msra.mxu0 %v6253
        %6279 = vmatpush.bf16.msra.mxu0 %v6252
        %6280 = vmatpush.bf16.msra.mxu0 %v6251
        %6281 = vmatpush.bf16.msra.mxu0 %v6250
        %6282 = vmatpush.bf16.msra.mxu0 %v6249
        %6283 = vmatpush.bf16.msra.mxu0 %v6248
        %6284 = vmatpush.bf16.msra.mxu0 %v6247
        %6285 = vmatpush.bf16.msra.mxu0 %v6246
        %6286 = vmatmul.bf16.gmra.mxu0 %v6134
        %v6287 = vpop.f32.mrf.mxu0
        %v6288 = vadd.f32 0.0, %v6287
        %v6289 = vpop.f32.mrf.mxu0
        %v6290 = vadd.f32 0.0, %v6289
        %6291 = vmatmul.bf16.gmra.mxu0 %v6136
        %v6292 = vpop.f32.mrf.mxu0
        %v6293 = vadd.f32 0.0, %v6292
        %v6294 = vpop.f32.mrf.mxu0
        %v6295 = vadd.f32 0.0, %v6294
        %6296 = vmatmul.bf16.gmra.mxu0 %v6138
        %v6297 = vpop.f32.mrf.mxu0
        %v6298 = vadd.f32 0.0, %v6297
        %v6299 = vpop.f32.mrf.mxu0
        %v6300 = vadd.f32 0.0, %v6299
        %6301 = vmatmul.bf16.gmra.mxu0 %v6140
        %v6302 = vpop.f32.mrf.mxu0
        %v6303 = vadd.f32 0.0, %v6302
        %v6304 = vpop.f32.mrf.mxu0
        %v6305 = vadd.f32 0.0, %v6304
        %6306 = vmatmul.bf16.gmra.mxu0 %v6142
        %v6307 = vpop.f32.mrf.mxu0
        %v6308 = vadd.f32 0.0, %v6307
        %v6309 = vpop.f32.mrf.mxu0
        %v6310 = vadd.f32 0.0, %v6309
        %6311 = vmatmul.bf16.gmra.mxu0 %v6144
        %v6312 = vpop.f32.mrf.mxu0
        %v6313 = vadd.f32 0.0, %v6312
        %v6314 = vpop.f32.mrf.mxu0
        %v6315 = vadd.f32 0.0, %v6314
        %6316 = vmatmul.bf16.gmra.mxu0 %v6146
        %v6317 = vpop.f32.mrf.mxu0
        %v6318 = vadd.f32 0.0, %v6317
        %v6319 = vpop.f32.mrf.mxu0
        %v6320 = vadd.f32 0.0, %v6319
        %6321 = vmatmul.bf16.gmra.mxu0 %v6148
        %v6322 = vpop.f32.mrf.mxu0
        %v6323 = vadd.f32 0.0, %v6322
        %v6324 = vpop.f32.mrf.mxu0
        %v6325 = vadd.f32 0.0, %v6324
        %6326 = vdwg.mxu0
        %6327 = vmatpush.bf16.msra.mxu0 %v6261
        %6328 = vmatpush.bf16.msra.mxu0 %v6260
        %6329 = vmatpush.bf16.msra.mxu0 %v6259
        %6330 = vmatpush.bf16.msra.mxu0 %v6258
        %6331 = vmatpush.bf16.msra.mxu0 %v6257
        %6332 = vmatpush.bf16.msra.mxu0 %v6256
        %6333 = vmatpush.bf16.msra.mxu0 %v6255
        %6334 = vmatpush.bf16.msra.mxu0 %v6254
        %6335 = vmatmul.bf16.gmra.mxu0 %v6135
        %v6336 = vpop.f32.mrf.mxu0
        %v6337 = vadd.f32 %v6288, %v6336
        %v6338 = vpop.f32.mrf.mxu0
        %v6339 = vadd.f32 %v6290, %v6338
        %6340 = vmatmul.bf16.gmra.mxu0 %v6137
        %v6341 = vpop.f32.mrf.mxu0
        %v6342 = vadd.f32 %v6293, %v6341
        %v6343 = vpop.f32.mrf.mxu0
        %v6344 = vadd.f32 %v6295, %v6343
        %6345 = vmatmul.bf16.gmra.mxu0 %v6139
        %v6346 = vpop.f32.mrf.mxu0
        %v6347 = vadd.f32 %v6298, %v6346
        %v6348 = vpop.f32.mrf.mxu0
        %v6349 = vadd.f32 %v6300, %v6348
        %6350 = vmatmul.bf16.gmra.mxu0 %v6141
        %v6351 = vpop.f32.mrf.mxu0
        %v6352 = vadd.f32 %v6303, %v6351
        %v6353 = vpop.f32.mrf.mxu0
        %v6354 = vadd.f32 %v6305, %v6353
        %6355 = vmatmul.bf16.gmra.mxu0 %v6143
        %v6356 = vpop.f32.mrf.mxu0
        %v6357 = vadd.f32 %v6308, %v6356
        %v6358 = vpop.f32.mrf.mxu0
        %v6359 = vadd.f32 %v6310, %v6358
        %6360 = vmatmul.bf16.gmra.mxu0 %v6145
        %v6361 = vpop.f32.mrf.mxu0
        %v6362 = vadd.f32 %v6313, %v6361
        %v6363 = vpop.f32.mrf.mxu0
        %v6364 = vadd.f32 %v6315, %v6363
        %6365 = vmatmul.bf16.gmra.mxu0 %v6147
        %v6366 = vpop.f32.mrf.mxu0
        %v6367 = vadd.f32 %v6318, %v6366
        %v6368 = vpop.f32.mrf.mxu0
        %v6369 = vadd.f32 %v6320, %v6368
        %6370 = vmatmul.bf16.gmra.mxu0 %v6149
        %v6371 = vpop.f32.mrf.mxu0
        %v6372 = vadd.f32 %v6323, %v6371
        %v6373 = vpop.f32.mrf.mxu0
        %v6374 = vadd.f32 %v6325, %v6373
        %6375 = vdwg.mxu0
        %v6376 = vpack.c.bf16 %v6339, %v6337
        %v6377 = vpack.c.bf16 %v6344, %v6342
        %v6378 = vpack.c.bf16 %v6349, %v6347
        %v6379 = vpack.c.bf16 %v6354, %v6352
        %v6380 = vpack.c.bf16 %v6359, %v6357
        %v6381 = vpack.c.bf16 %v6364, %v6362
        %v6382 = vpack.c.bf16 %v6369, %v6367
        %v6383 = vpack.c.bf16 %v6374, %v6372
        %v6392 = vunpack.c.l.b16 %v5294
        %v6393 = vunpack.c.l.b16 %v5295
        %v6394 = vunpack.c.l.b16 %v5296
        %v6395 = vunpack.c.l.b16 %v5297
        %v6396 = vunpack.c.l.b16 %v5298
        %v6397 = vunpack.c.l.b16 %v5299
        %v6398 = vunpack.c.l.b16 %v5300
        %v6399 = vunpack.c.l.b16 %v5301
        %v6400 = vpack.c.b16 %v6393, %v6392
        %v6401 = vpack.c.b16 %v6395, %v6394
        %v6402 = vpack.c.b16 %v6397, %v6396
        %v6403 = vpack.c.b16 %v6399, %v6398
        %v6409 = vsel %vm1649, %v6376, 0
        %v6412 = vsel %vm1649, %v6377, 0
        %v6415 = vsel %vm1649, %v6378, 0
        %v6418 = vsel %vm1649, %v6379, 0
        %v6421 = vsel %vm1649, %v6380, 0
        %v6424 = vsel %vm1649, %v6381, 0
        %v6427 = vsel %vm1649, %v6382, 0
        %v6430 = vsel %vm1649, %v6383, 0
        %6432 = vmatpush.bf16.msra.mxu0 0
        %6433 = vmatpush.bf16.msra.mxu0 0
        %6434 = vmatpush.bf16.msra.mxu0 0
        %6435 = vmatpush.bf16.msra.mxu0 0
        %6436 = vmatpush.bf16.msra.mxu0 %v6403
        %6437 = vmatpush.bf16.msra.mxu0 %v6402
        %6438 = vmatpush.bf16.msra.mxu0 %v6401
        %6439 = vmatpush.bf16.msra.mxu0 %v6400
        %6440 = vmatmul.bf16.gmra.mxu0 %v6409
        %v6441 = vpop.f32.mrf.mxu0
        %v6442 = vadd.f32 0.0, %v6441
        %v6443 = vpop.f32.mrf.mxu0
        %v6444 = vadd.f32 0.0, %v6443
        %6445 = vmatmul.bf16.gmra.mxu0 %v6412
        %v6446 = vpop.f32.mrf.mxu0
        %v6447 = vadd.f32 0.0, %v6446
        %v6448 = vpop.f32.mrf.mxu0
        %v6449 = vadd.f32 0.0, %v6448
        %6450 = vmatmul.bf16.gmra.mxu0 %v6415
        %v6451 = vpop.f32.mrf.mxu0
        %v6452 = vadd.f32 0.0, %v6451
        %v6453 = vpop.f32.mrf.mxu0
        %v6454 = vadd.f32 0.0, %v6453
        %6455 = vmatmul.bf16.gmra.mxu0 %v6418
        %v6456 = vpop.f32.mrf.mxu0
        %v6457 = vadd.f32 0.0, %v6456
        %v6458 = vpop.f32.mrf.mxu0
        %v6459 = vadd.f32 0.0, %v6458
        %6460 = vmatmul.bf16.gmra.mxu0 %v6421
        %v6461 = vpop.f32.mrf.mxu0
        %v6462 = vadd.f32 0.0, %v6461
        %v6463 = vpop.f32.mrf.mxu0
        %v6464 = vadd.f32 0.0, %v6463
        %6465 = vmatmul.bf16.gmra.mxu0 %v6424
        %v6466 = vpop.f32.mrf.mxu0
        %v6467 = vadd.f32 0.0, %v6466
        %v6468 = vpop.f32.mrf.mxu0
        %v6469 = vadd.f32 0.0, %v6468
        %6470 = vmatmul.bf16.gmra.mxu0 %v6427
        %v6471 = vpop.f32.mrf.mxu0
        %v6472 = vadd.f32 0.0, %v6471
        %v6473 = vpop.f32.mrf.mxu0
        %v6474 = vadd.f32 0.0, %v6473
        %6475 = vmatmul.bf16.gmra.mxu0 %v6430
        %v6476 = vpop.f32.mrf.mxu0
        %v6477 = vadd.f32 0.0, %v6476
        %v6478 = vpop.f32.mrf.mxu0
        %v6479 = vadd.f32 0.0, %v6478
        %6480 = vdwg.mxu0
        %v6481 = vadd.f32 %v5278, %v6442
        %v6482 = vadd.f32 %v5279, %v6444
        %v6483 = vadd.f32 %v5280, %v6447
        %v6484 = vadd.f32 %v5281, %v6449
        %v6485 = vadd.f32 %v5282, %v6452
        %v6486 = vadd.f32 %v5283, %v6454
        %v6487 = vadd.f32 %v5284, %v6457
        %v6488 = vadd.f32 %v5285, %v6459
        %v6489 = vadd.f32 %v5286, %v6462
        %v6490 = vadd.f32 %v5287, %v6464
        %v6491 = vadd.f32 %v5288, %v6467
        %v6492 = vadd.f32 %v5289, %v6469
        %v6493 = vadd.f32 %v5290, %v6472
        %v6494 = vadd.f32 %v5291, %v6474
        %v6495 = vadd.f32 %v5292, %v6477
        %v6496 = vadd.f32 %v5293, %v6479
        %v6497 = vld [vmem:[%s33] sm:$0x1]
        %v6499 = vperm.slane %v6497, 0
        %v6501 = vadd.f32 %v6481, %v6499
        %v6502 = vadd.f32 %v6482, %v6499
        %v6503 = vadd.f32 %v6483, %v6499
        %v6504 = vadd.f32 %v6484, %v6499
        %v6505 = vadd.f32 %v6485, %v6499
        %v6506 = vadd.f32 %v6486, %v6499
        %v6507 = vadd.f32 %v6487, %v6499
        %v6508 = vadd.f32 %v6488, %v6499
        %v6509 = vadd.f32 %v6489, %v6499
        %v6510 = vadd.f32 %v6490, %v6499
        %v6511 = vadd.f32 %v6491, %v6499
        %v6512 = vadd.f32 %v6492, %v6499
        %v6513 = vadd.f32 %v6493, %v6499
        %v6514 = vadd.f32 %v6494, %v6499
        %v6515 = vadd.f32 %v6495, %v6499
        %v6516 = vadd.f32 %v6496, %v6499
        %v6517 = vsel %vm1649, %v6501, 0.0
        %v6518 = vsel %vm1649, %v6502, 0.0
        %v6519 = vadd.f32 %v6517, %v6518
        %v6520 = vsel %vm1649, %v6503, 0.0
        %v6521 = vadd.f32 %v6519, %v6520
        %v6522 = vsel %vm1649, %v6504, 0.0
        %v6523 = vadd.f32 %v6521, %v6522
        %v6524 = vsel %vm1649, %v6505, 0.0
        %v6525 = vadd.f32 %v6523, %v6524
        %v6526 = vsel %vm1649, %v6506, 0.0
        %v6527 = vadd.f32 %v6525, %v6526
        %v6528 = vsel %vm1649, %v6507, 0.0
        %v6529 = vadd.f32 %v6527, %v6528
        %v6530 = vsel %vm1649, %v6508, 0.0
        %v6531 = vadd.f32 %v6529, %v6530
        %v6532 = vsel %vm1649, %v6509, 0.0
        %v6533 = vadd.f32 %v6531, %v6532
        %v6534 = vsel %vm1649, %v6510, 0.0
        %v6535 = vadd.f32 %v6533, %v6534
        %v6536 = vsel %vm1649, %v6511, 0.0
        %v6537 = vadd.f32 %v6535, %v6536
        %v6538 = vsel %vm1649, %v6512, 0.0
        %v6539 = vadd.f32 %v6537, %v6538
        %v6540 = vsel %vm1649, %v6513, 0.0
        %v6541 = vadd.f32 %v6539, %v6540
        %v6542 = vsel %vm1649, %v6514, 0.0
        %v6543 = vadd.f32 %v6541, %v6542
        %v6544 = vsel %vm1649, %v6515, 0.0
        %v6545 = vadd.f32 %v6543, %v6544
        %v6546 = vsel %vm1649, %v6516, 0.0
        %v6547 = vadd.f32 %v6545, %v6546
        %v6548 = vrot.slane %v6547, 4
        %v6549 = vadd.f32 %v6547, %v6548
        %v6550 = vrot.slane %v6549, 2
        %v6551 = vadd.f32 %v6549, %v6550
        %v6552 = vrot.slane %v6551, 1
        %v6553 = vadd.f32 %v6551, %v6552
        %v6554 = vmul.f32 %v6553, %v1321
        %v6555 = vsub.f32 %v6501, %v6554
        %v6556 = vsub.f32 %v6502, %v6554
        %v6557 = vsub.f32 %v6503, %v6554
        %v6558 = vsub.f32 %v6504, %v6554
        %v6559 = vsub.f32 %v6505, %v6554
        %v6560 = vsub.f32 %v6506, %v6554
        %v6561 = vsub.f32 %v6507, %v6554
        %v6562 = vsub.f32 %v6508, %v6554
        %v6563 = vsub.f32 %v6509, %v6554
        %v6564 = vsub.f32 %v6510, %v6554
        %v6565 = vsub.f32 %v6511, %v6554
        %v6566 = vsub.f32 %v6512, %v6554
        %v6567 = vsub.f32 %v6513, %v6554
        %v6568 = vsub.f32 %v6514, %v6554
        %v6569 = vsub.f32 %v6515, %v6554
        %v6570 = vsub.f32 %v6516, %v6554
        %v6571 = vmul.f32 %v6555, %v6555
        %v6572 = vmul.f32 %v6556, %v6556
        %v6573 = vmul.f32 %v6557, %v6557
        %v6574 = vmul.f32 %v6558, %v6558
        %v6575 = vmul.f32 %v6559, %v6559
        %v6576 = vmul.f32 %v6560, %v6560
        %v6577 = vmul.f32 %v6561, %v6561
        %v6578 = vmul.f32 %v6562, %v6562
        %v6579 = vmul.f32 %v6563, %v6563
        %v6580 = vmul.f32 %v6564, %v6564
        %v6581 = vmul.f32 %v6565, %v6565
        %v6582 = vmul.f32 %v6566, %v6566
        %v6583 = vmul.f32 %v6567, %v6567
        %v6584 = vmul.f32 %v6568, %v6568
        %v6585 = vmul.f32 %v6569, %v6569
        %v6586 = vmul.f32 %v6570, %v6570
        %v6587 = vsel %vm1649, %v6571, 0.0
        %v6588 = vsel %vm1649, %v6572, 0.0
        %v6589 = vadd.f32 %v6587, %v6588
        %v6590 = vsel %vm1649, %v6573, 0.0
        %v6591 = vadd.f32 %v6589, %v6590
        %v6592 = vsel %vm1649, %v6574, 0.0
        %v6593 = vadd.f32 %v6591, %v6592
        %v6594 = vsel %vm1649, %v6575, 0.0
        %v6595 = vadd.f32 %v6593, %v6594
        %v6596 = vsel %vm1649, %v6576, 0.0
        %v6597 = vadd.f32 %v6595, %v6596
        %v6598 = vsel %vm1649, %v6577, 0.0
        %v6599 = vadd.f32 %v6597, %v6598
        %v6600 = vsel %vm1649, %v6578, 0.0
        %v6601 = vadd.f32 %v6599, %v6600
        %v6602 = vsel %vm1649, %v6579, 0.0
        %v6603 = vadd.f32 %v6601, %v6602
        %v6604 = vsel %vm1649, %v6580, 0.0
        %v6605 = vadd.f32 %v6603, %v6604
        %v6606 = vsel %vm1649, %v6581, 0.0
        %v6607 = vadd.f32 %v6605, %v6606
        %v6608 = vsel %vm1649, %v6582, 0.0
        %v6609 = vadd.f32 %v6607, %v6608
        %v6610 = vsel %vm1649, %v6583, 0.0
        %v6611 = vadd.f32 %v6609, %v6610
        %v6612 = vsel %vm1649, %v6584, 0.0
        %v6613 = vadd.f32 %v6611, %v6612
        %v6614 = vsel %vm1649, %v6585, 0.0
        %v6615 = vadd.f32 %v6613, %v6614
        %v6616 = vsel %vm1649, %v6586, 0.0
        %v6617 = vadd.f32 %v6615, %v6616
        %v6618 = vrot.slane %v6617, 4
        %v6619 = vadd.f32 %v6617, %v6618
        %v6620 = vrot.slane %v6619, 2
        %v6621 = vadd.f32 %v6619, %v6620
        %v6622 = vrot.slane %v6621, 1
        %v6623 = vadd.f32 %v6621, %v6622
        %v6624 = vmul.f32 %v6623, %v1321
        %v6625 = vadd.f32 %v6624, 1e-05
        %v6626 = vrsqrt.pop %v6625
        %v6627 = vmul.f32 %v6626, %v6625
        %v6628 = vmul.f32 %v6627, %v6626
        %v6629 = vmul.f32 0.5, %v6628
        %v6630 = vsub.f32 1.5, %v6629
        %v6631 = vmul.f32 %v6626, %v6630
        %vm6632 = vweird.f32 %v6625
        %vm6633 = vweird.f32 %v6626
        %vm6634 = vmor %vm6632, %vm6633
        %v6635 = vsel %vm6634, %v6626, %v6631
        %v6636 = vmul.f32 %v6555, %v6635
        %v6637 = vmul.f32 %v6556, %v6635
        %v6638 = vmul.f32 %v6557, %v6635
        %v6639 = vmul.f32 %v6558, %v6635
        %v6640 = vmul.f32 %v6559, %v6635
        %v6641 = vmul.f32 %v6560, %v6635
        %v6642 = vmul.f32 %v6561, %v6635
        %v6643 = vmul.f32 %v6562, %v6635
        %v6644 = vmul.f32 %v6563, %v6635
        %v6645 = vmul.f32 %v6564, %v6635
        %v6646 = vmul.f32 %v6565, %v6635
        %v6647 = vmul.f32 %v6566, %v6635
        %v6648 = vmul.f32 %v6567, %v6635
        %v6649 = vmul.f32 %v6568, %v6635
        %v6650 = vmul.f32 %v6569, %v6635
        %v6651 = vmul.f32 %v6570, %v6635
        %v6652 = vmax.f32 %v6636, 0.0
        %v6653 = vmax.f32 %v6637, 0.0
        %v6654 = vmax.f32 %v6638, 0.0
        %v6655 = vmax.f32 %v6639, 0.0
        %v6656 = vmax.f32 %v6640, 0.0
        %v6657 = vmax.f32 %v6641, 0.0
        %v6658 = vmax.f32 %v6642, 0.0
        %v6659 = vmax.f32 %v6643, 0.0
        %v6660 = vmax.f32 %v6644, 0.0
        %v6661 = vmax.f32 %v6645, 0.0
        %v6662 = vmax.f32 %v6646, 0.0
        %v6663 = vmax.f32 %v6647, 0.0
        %v6664 = vmax.f32 %v6648, 0.0
        %v6665 = vmax.f32 %v6649, 0.0
        %v6666 = vmax.f32 %v6650, 0.0
        %v6667 = vmax.f32 %v6651, 0.0
        %6684 = vrot.lane.b32.xlu0 %v6501, 64
        %v6685 = vpop.permute.xlu0 %6684
        %6686 = vrot.lane.b32.xlu0 %v6502, 64
        %v6687 = vpop.permute.xlu0 %6686
        %6688 = vrot.lane.b32.xlu0 %v6503, 64
        %v6689 = vpop.permute.xlu0 %6688
        %6690 = vrot.lane.b32.xlu0 %v6504, 64
        %v6691 = vpop.permute.xlu0 %6690
        %6692 = vrot.lane.b32.xlu0 %v6505, 64
        %v6693 = vpop.permute.xlu0 %6692
        %6694 = vrot.lane.b32.xlu0 %v6506, 64
        %v6695 = vpop.permute.xlu0 %6694
        %6696 = vrot.lane.b32.xlu0 %v6507, 64
        %v6697 = vpop.permute.xlu0 %6696
        %6698 = vrot.lane.b32.xlu0 %v6508, 64
        %v6699 = vpop.permute.xlu0 %6698
        %6700 = vrot.lane.b32.xlu0 %v6509, 64
        %v6701 = vpop.permute.xlu0 %6700
        %6702 = vrot.lane.b32.xlu0 %v6510, 64
        %v6703 = vpop.permute.xlu0 %6702
        %6704 = vrot.lane.b32.xlu0 %v6511, 64
        %v6705 = vpop.permute.xlu0 %6704
        %6706 = vrot.lane.b32.xlu0 %v6512, 64
        %v6707 = vpop.permute.xlu0 %6706
        %6708 = vrot.lane.b32.xlu0 %v6513, 64
        %v6709 = vpop.permute.xlu0 %6708
        %6710 = vrot.lane.b32.xlu0 %v6514, 64
        %v6711 = vpop.permute.xlu0 %6710
        %6712 = vrot.lane.b32.xlu0 %v6515, 64
        %v6713 = vpop.permute.xlu0 %6712
        %6714 = vrot.lane.b32.xlu0 %v6516, 64
        %v6715 = vpop.permute.xlu0 %6714
        %v6732 = vadd.f32 %v6652, %v6685
        %v6733 = vadd.f32 %v6653, %v6687
        %v6734 = vadd.f32 %v6654, %v6689
        %v6735 = vadd.f32 %v6655, %v6691
        %v6736 = vadd.f32 %v6656, %v6693
        %v6737 = vadd.f32 %v6657, %v6695
        %v6738 = vadd.f32 %v6658, %v6697
        %v6739 = vadd.f32 %v6659, %v6699
        %v6740 = vadd.f32 %v6660, %v6701
        %v6741 = vadd.f32 %v6661, %v6703
        %v6742 = vadd.f32 %v6662, %v6705
        %v6743 = vadd.f32 %v6663, %v6707
        %v6744 = vadd.f32 %v6664, %v6709
        %v6745 = vadd.f32 %v6665, %v6711
        %v6746 = vadd.f32 %v6666, %v6713
        %v6747 = vadd.f32 %v6667, %v6715
        %v6748 = vld [vmem:[%s35] sm:$0xff]
        %v6749 = vld [vmem:[%s35 + $0x8] sm:$0xff]
        %v6750 = vld [vmem:[%s35 + $0x10] sm:$0xff]
        %v6751 = vld [vmem:[%s35 + $0x18] sm:$0xff]
        %v6752 = vld [vmem:[%s35 + $0x20] sm:$0xff]
        %v6753 = vld [vmem:[%s35 + $0x28] sm:$0xff]
        %v6754 = vld [vmem:[%s35 + $0x30] sm:$0xff]
        %v6755 = vld [vmem:[%s35 + $0x38] sm:$0xff]
        %v6756 = vld [vmem:[%s37] sm:$0x1]
        %v6757 = vld [vmem:[%s39] sm:$0xff]
        %v6758 = vld [vmem:[%s39 + $0x8] sm:$0xff]
        %v6759 = vld [vmem:[%s39 + $0x10] sm:$0xff]
        %v6760 = vld [vmem:[%s39 + $0x18] sm:$0xff]
        %v6761 = vld [vmem:[%s39 + $0x20] sm:$0xff]
        %v6762 = vld [vmem:[%s39 + $0x28] sm:$0xff]
        %v6763 = vld [vmem:[%s39 + $0x30] sm:$0xff]
        %v6764 = vld [vmem:[%s39 + $0x38] sm:$0xff]
        %v6765 = vld [vmem:[%s41] sm:$0x1]
        %v6767 = vperm.slane %v6756, 0
        %v6770 = vsel %vm1649, %v6732, 0
        %v6773 = vsel %vm1649, %v6733, 0
        %v6776 = vsel %vm1649, %v6734, 0
        %v6779 = vsel %vm1649, %v6735, 0
        %v6782 = vsel %vm1649, %v6736, 0
        %v6785 = vsel %vm1649, %v6737, 0
        %v6788 = vsel %vm1649, %v6738, 0
        %v6791 = vsel %vm1649, %v6739, 0
        %v6794 = vsel %vm1649, %v6740, 0
        %v6797 = vsel %vm1649, %v6741, 0
        %v6800 = vsel %vm1649, %v6742, 0
        %v6803 = vsel %vm1649, %v6743, 0
        %v6806 = vsel %vm1649, %v6744, 0
        %v6809 = vsel %vm1649, %v6745, 0
        %v6812 = vsel %vm1649, %v6746, 0
        %v6815 = vsel %vm1649, %v6747, 0
        %6817 = vmatpush.msra.mxu0 0.0
        %6818 = vmatpush.msra.mxu0 0.0
        %6819 = vmatpush.msra.mxu0 0.0
        %6820 = vmatpush.msra.mxu0 0.0
        %6821 = vmatpush.msra.mxu0 0.0
        %6822 = vmatpush.msra.mxu0 0.0
        %6823 = vmatpush.msra.mxu0 0.0
        %6824 = vmatpush.msra.mxu0 0.0
        %6825 = vmatpush.msra.mxu0 %v6755
        %6826 = vmatpush.msra.mxu0 %v6754
        %6827 = vmatpush.msra.mxu0 %v6753
        %6828 = vmatpush.msra.mxu0 %v6752
        %6829 = vmatpush.msra.mxu0 %v6751
        %6830 = vmatpush.msra.mxu0 %v6750
        %6831 = vmatpush.msra.mxu0 %v6749
        %6832 = vmatpush.msra.mxu0 %v6748
        %6833 = vmatmul.f32.gmra.mxu0 %v6770
        %v6834 = vpop.f32.mrf.mxu0
        %v6835 = vadd.f32 %v6767, %v6834
        %6836 = vmatmul.f32.gmra.mxu0 %v6773
        %v6837 = vpop.f32.mrf.mxu0
        %v6838 = vadd.f32 %v6767, %v6837
        %6839 = vmatmul.f32.gmra.mxu0 %v6776
        %v6840 = vpop.f32.mrf.mxu0
        %v6841 = vadd.f32 %v6767, %v6840
        %6842 = vmatmul.f32.gmra.mxu0 %v6779
        %v6843 = vpop.f32.mrf.mxu0
        %v6844 = vadd.f32 %v6767, %v6843
        %6845 = vmatmul.f32.gmra.mxu0 %v6782
        %v6846 = vpop.f32.mrf.mxu0
        %v6847 = vadd.f32 %v6767, %v6846
        %6848 = vmatmul.f32.gmra.mxu0 %v6785
        %v6849 = vpop.f32.mrf.mxu0
        %v6850 = vadd.f32 %v6767, %v6849
        %6851 = vmatmul.f32.gmra.mxu0 %v6788
        %v6852 = vpop.f32.mrf.mxu0
        %v6853 = vadd.f32 %v6767, %v6852
        %6854 = vmatmul.f32.gmra.mxu0 %v6791
        %v6855 = vpop.f32.mrf.mxu0
        %v6856 = vadd.f32 %v6767, %v6855
        %6857 = vmatmul.f32.gmra.mxu0 %v6794
        %v6858 = vpop.f32.mrf.mxu0
        %v6859 = vadd.f32 %v6767, %v6858
        %6860 = vmatmul.f32.gmra.mxu0 %v6797
        %v6861 = vpop.f32.mrf.mxu0
        %v6862 = vadd.f32 %v6767, %v6861
        %6863 = vmatmul.f32.gmra.mxu0 %v6800
        %v6864 = vpop.f32.mrf.mxu0
        %v6865 = vadd.f32 %v6767, %v6864
        %6866 = vmatmul.f32.gmra.mxu0 %v6803
        %v6867 = vpop.f32.mrf.mxu0
        %v6868 = vadd.f32 %v6767, %v6867
        %6869 = vmatmul.f32.gmra.mxu0 %v6806
        %v6870 = vpop.f32.mrf.mxu0
        %v6871 = vadd.f32 %v6767, %v6870
        %6872 = vmatmul.f32.gmra.mxu0 %v6809
        %v6873 = vpop.f32.mrf.mxu0
        %v6874 = vadd.f32 %v6767, %v6873
        %6875 = vmatmul.f32.gmra.mxu0 %v6812
        %v6876 = vpop.f32.mrf.mxu0
        %v6877 = vadd.f32 %v6767, %v6876
        %6878 = vmatmul.f32.gmra.mxu0 %v6815
        %v6879 = vpop.f32.mrf.mxu0
        %v6880 = vadd.f32 %v6767, %v6879
        %6881 = vdwg.mxu0
        %v6882 = vsel %vm1277, %v6835, 0.0
        %v6883 = vsel %vm1277, %v6838, 0.0
        %v6884 = vadd.f32 %v6882, %v6883
        %v6885 = vsel %vm1277, %v6841, 0.0
        %v6886 = vadd.f32 %v6884, %v6885
        %v6887 = vsel %vm1277, %v6844, 0.0
        %v6888 = vadd.f32 %v6886, %v6887
        %v6889 = vsel %vm1277, %v6847, 0.0
        %v6890 = vadd.f32 %v6888, %v6889
        %v6891 = vsel %vm1277, %v6850, 0.0
        %v6892 = vadd.f32 %v6890, %v6891
        %v6893 = vsel %vm1277, %v6853, 0.0
        %v6894 = vadd.f32 %v6892, %v6893
        %v6895 = vsel %vm1277, %v6856, 0.0
        %v6896 = vadd.f32 %v6894, %v6895
        %v6897 = vsel %vm1277, %v6859, 0.0
        %v6898 = vadd.f32 %v6896, %v6897
        %v6899 = vsel %vm1277, %v6862, 0.0
        %v6900 = vadd.f32 %v6898, %v6899
        %v6901 = vsel %vm1277, %v6865, 0.0
        %v6902 = vadd.f32 %v6900, %v6901
        %v6903 = vsel %vm1277, %v6868, 0.0
        %v6904 = vadd.f32 %v6902, %v6903
        %v6905 = vsel %vm1277, %v6871, 0.0
        %v6906 = vadd.f32 %v6904, %v6905
        %v6907 = vsel %vm1277, %v6874, 0.0
        %v6908 = vadd.f32 %v6906, %v6907
        %v6909 = vsel %vm1277, %v6877, 0.0
        %v6910 = vadd.f32 %v6908, %v6909
        %v6911 = vsel %vm1277, %v6880, 0.0
        %v6912 = vadd.f32 %v6910, %v6911
        %v6913 = vrot.slane %v6912, 4
        %v6914 = vadd.f32 %v6912, %v6913
        %v6915 = vrot.slane %v6914, 2
        %v6916 = vadd.f32 %v6914, %v6915
        %v6917 = vrot.slane %v6916, 1
        %v6918 = vadd.f32 %v6916, %v6917
        %v6919 = vmul.f32 %v6918, %v1321
        %v6920 = vsub.f32 %v6835, %v6919
        %v6921 = vsub.f32 %v6838, %v6919
        %v6922 = vsub.f32 %v6841, %v6919
        %v6923 = vsub.f32 %v6844, %v6919
        %v6924 = vsub.f32 %v6847, %v6919
        %v6925 = vsub.f32 %v6850, %v6919
        %v6926 = vsub.f32 %v6853, %v6919
        %v6927 = vsub.f32 %v6856, %v6919
        %v6928 = vsub.f32 %v6859, %v6919
        %v6929 = vsub.f32 %v6862, %v6919
        %v6930 = vsub.f32 %v6865, %v6919
        %v6931 = vsub.f32 %v6868, %v6919
        %v6932 = vsub.f32 %v6871, %v6919
        %v6933 = vsub.f32 %v6874, %v6919
        %v6934 = vsub.f32 %v6877, %v6919
        %v6935 = vsub.f32 %v6880, %v6919
        %v6936 = vmul.f32 %v6920, %v6920
        %v6937 = vmul.f32 %v6921, %v6921
        %v6938 = vmul.f32 %v6922, %v6922
        %v6939 = vmul.f32 %v6923, %v6923
        %v6940 = vmul.f32 %v6924, %v6924
        %v6941 = vmul.f32 %v6925, %v6925
        %v6942 = vmul.f32 %v6926, %v6926
        %v6943 = vmul.f32 %v6927, %v6927
        %v6944 = vmul.f32 %v6928, %v6928
        %v6945 = vmul.f32 %v6929, %v6929
        %v6946 = vmul.f32 %v6930, %v6930
        %v6947 = vmul.f32 %v6931, %v6931
        %v6948 = vmul.f32 %v6932, %v6932
        %v6949 = vmul.f32 %v6933, %v6933
        %v6950 = vmul.f32 %v6934, %v6934
        %v6951 = vmul.f32 %v6935, %v6935
        %v6952 = vsel %vm1277, %v6936, 0.0
        %v6953 = vsel %vm1277, %v6937, 0.0
        %v6954 = vadd.f32 %v6952, %v6953
        %v6955 = vsel %vm1277, %v6938, 0.0
        %v6956 = vadd.f32 %v6954, %v6955
        %v6957 = vsel %vm1277, %v6939, 0.0
        %v6958 = vadd.f32 %v6956, %v6957
        %v6959 = vsel %vm1277, %v6940, 0.0
        %v6960 = vadd.f32 %v6958, %v6959
        %v6961 = vsel %vm1277, %v6941, 0.0
        %v6962 = vadd.f32 %v6960, %v6961
        %v6963 = vsel %vm1277, %v6942, 0.0
        %v6964 = vadd.f32 %v6962, %v6963
        %v6965 = vsel %vm1277, %v6943, 0.0
        %v6966 = vadd.f32 %v6964, %v6965
        %v6967 = vsel %vm1277, %v6944, 0.0
        %v6968 = vadd.f32 %v6966, %v6967
        %v6969 = vsel %vm1277, %v6945, 0.0
        %v6970 = vadd.f32 %v6968, %v6969
        %v6971 = vsel %vm1277, %v6946, 0.0
        %v6972 = vadd.f32 %v6970, %v6971
        %v6973 = vsel %vm1277, %v6947, 0.0
        %v6974 = vadd.f32 %v6972, %v6973
        %v6975 = vsel %vm1277, %v6948, 0.0
        %v6976 = vadd.f32 %v6974, %v6975
        %v6977 = vsel %vm1277, %v6949, 0.0
        %v6978 = vadd.f32 %v6976, %v6977
        %v6979 = vsel %vm1277, %v6950, 0.0
        %v6980 = vadd.f32 %v6978, %v6979
        %v6981 = vsel %vm1277, %v6951, 0.0
        %v6982 = vadd.f32 %v6980, %v6981
        %v6983 = vrot.slane %v6982, 4
        %v6984 = vadd.f32 %v6982, %v6983
        %v6985 = vrot.slane %v6984, 2
        %v6986 = vadd.f32 %v6984, %v6985
        %v6987 = vrot.slane %v6986, 1
        %v6988 = vadd.f32 %v6986, %v6987
        %v6989 = vmul.f32 %v6988, %v1321
        %v6990 = vadd.f32 %v6989, 1e-05
        %v6991 = vrsqrt.pop %v6990
        %v6992 = vmul.f32 %v6991, %v6990
        %v6993 = vmul.f32 %v6992, %v6991
        %v6994 = vmul.f32 0.5, %v6993
        %v6995 = vsub.f32 1.5, %v6994
        %v6996 = vmul.f32 %v6991, %v6995
        %vm6997 = vweird.f32 %v6990
        %vm6998 = vweird.f32 %v6991
        %vm6999 = vmor %vm6997, %vm6998
        %v7000 = vsel %vm6999, %v6991, %v6996
        %v7001 = vmul.f32 %v6920, %v7000
        %v7002 = vmul.f32 %v6921, %v7000
        %v7003 = vmul.f32 %v6922, %v7000
        %v7004 = vmul.f32 %v6923, %v7000
        %v7005 = vmul.f32 %v6924, %v7000
        %v7006 = vmul.f32 %v6925, %v7000
        %v7007 = vmul.f32 %v6926, %v7000
        %v7008 = vmul.f32 %v6927, %v7000
        %v7009 = vmul.f32 %v6928, %v7000
        %v7010 = vmul.f32 %v6929, %v7000
        %v7011 = vmul.f32 %v6930, %v7000
        %v7012 = vmul.f32 %v6931, %v7000
        %v7013 = vmul.f32 %v6932, %v7000
        %v7014 = vmul.f32 %v6933, %v7000
        %v7015 = vmul.f32 %v6934, %v7000
        %v7016 = vmul.f32 %v6935, %v7000
        %v7017 = vmax.f32 %v7001, 0.0
        %v7018 = vmax.f32 %v7002, 0.0
        %v7019 = vmax.f32 %v7003, 0.0
        %v7020 = vmax.f32 %v7004, 0.0
        %v7021 = vmax.f32 %v7005, 0.0
        %v7022 = vmax.f32 %v7006, 0.0
        %v7023 = vmax.f32 %v7007, 0.0
        %v7024 = vmax.f32 %v7008, 0.0
        %v7025 = vmax.f32 %v7009, 0.0
        %v7026 = vmax.f32 %v7010, 0.0
        %v7027 = vmax.f32 %v7011, 0.0
        %v7028 = vmax.f32 %v7012, 0.0
        %v7029 = vmax.f32 %v7013, 0.0
        %v7030 = vmax.f32 %v7014, 0.0
        %v7031 = vmax.f32 %v7015, 0.0
        %v7032 = vmax.f32 %v7016, 0.0
        %v7034 = vperm.slane %v6765, 0
        %7036 = vmatpush.msra.mxu0 0.0
        %7037 = vmatpush.msra.mxu0 0.0
        %7038 = vmatpush.msra.mxu0 0.0
        %7039 = vmatpush.msra.mxu0 0.0
        %7040 = vmatpush.msra.mxu0 0.0
        %7041 = vmatpush.msra.mxu0 0.0
        %7042 = vmatpush.msra.mxu0 0.0
        %7043 = vmatpush.msra.mxu0 0.0
        %7044 = vmatpush.msra.mxu0 %v6764
        %7045 = vmatpush.msra.mxu0 %v6763
        %7046 = vmatpush.msra.mxu0 %v6762
        %7047 = vmatpush.msra.mxu0 %v6761
        %7048 = vmatpush.msra.mxu0 %v6760
        %7049 = vmatpush.msra.mxu0 %v6759
        %7050 = vmatpush.msra.mxu0 %v6758
        %7051 = vmatpush.msra.mxu0 %v6757
        %7052 = vmatmul.f32.gmra.mxu0 %v6770
        %v7053 = vpop.f32.mrf.mxu0
        %v7054 = vadd.f32 %v7034, %v7053
        %7055 = vmatmul.f32.gmra.mxu0 %v6773
        %v7056 = vpop.f32.mrf.mxu0
        %v7057 = vadd.f32 %v7034, %v7056
        %7058 = vmatmul.f32.gmra.mxu0 %v6776
        %v7059 = vpop.f32.mrf.mxu0
        %v7060 = vadd.f32 %v7034, %v7059
        %7061 = vmatmul.f32.gmra.mxu0 %v6779
        %v7062 = vpop.f32.mrf.mxu0
        %v7063 = vadd.f32 %v7034, %v7062
        %7064 = vmatmul.f32.gmra.mxu0 %v6782
        %v7065 = vpop.f32.mrf.mxu0
        %v7066 = vadd.f32 %v7034, %v7065
        %7067 = vmatmul.f32.gmra.mxu0 %v6785
        %v7068 = vpop.f32.mrf.mxu0
        %v7069 = vadd.f32 %v7034, %v7068
        %7070 = vmatmul.f32.gmra.mxu0 %v6788
        %v7071 = vpop.f32.mrf.mxu0
        %v7072 = vadd.f32 %v7034, %v7071
        %7073 = vmatmul.f32.gmra.mxu0 %v6791
        %v7074 = vpop.f32.mrf.mxu0
        %v7075 = vadd.f32 %v7034, %v7074
        %7076 = vmatmul.f32.gmra.mxu0 %v6794
        %v7077 = vpop.f32.mrf.mxu0
        %v7078 = vadd.f32 %v7034, %v7077
        %7079 = vmatmul.f32.gmra.mxu0 %v6797
        %v7080 = vpop.f32.mrf.mxu0
        %v7081 = vadd.f32 %v7034, %v7080
        %7082 = vmatmul.f32.gmra.mxu0 %v6800
        %v7083 = vpop.f32.mrf.mxu0
        %v7084 = vadd.f32 %v7034, %v7083
        %7085 = vmatmul.f32.gmra.mxu0 %v6803
        %v7086 = vpop.f32.mrf.mxu0
        %v7087 = vadd.f32 %v7034, %v7086
        %7088 = vmatmul.f32.gmra.mxu0 %v6806
        %v7089 = vpop.f32.mrf.mxu0
        %v7090 = vadd.f32 %v7034, %v7089
        %7091 = vmatmul.f32.gmra.mxu0 %v6809
        %v7092 = vpop.f32.mrf.mxu0
        %v7093 = vadd.f32 %v7034, %v7092
        %7094 = vmatmul.f32.gmra.mxu0 %v6812
        %v7095 = vpop.f32.mrf.mxu0
        %v7096 = vadd.f32 %v7034, %v7095
        %7097 = vmatmul.f32.gmra.mxu0 %v6815
        %v7098 = vpop.f32.mrf.mxu0
        %v7099 = vadd.f32 %v7034, %v7098
        %7100 = vdwg.mxu0
        %v7101 = vadd.f32 %v7017, %v7054
        %v7102 = vadd.f32 %v7018, %v7057
        %v7103 = vadd.f32 %v7019, %v7060
        %v7104 = vadd.f32 %v7020, %v7063
        %v7105 = vadd.f32 %v7021, %v7066
        %v7106 = vadd.f32 %v7022, %v7069
        %v7107 = vadd.f32 %v7023, %v7072
        %v7108 = vadd.f32 %v7024, %v7075
        %v7109 = vadd.f32 %v7025, %v7078
        %v7110 = vadd.f32 %v7026, %v7081
        %v7111 = vadd.f32 %v7027, %v7084
        %v7112 = vadd.f32 %v7028, %v7087
        %v7113 = vadd.f32 %v7029, %v7090
        %v7114 = vadd.f32 %v7030, %v7093
        %v7115 = vadd.f32 %v7031, %v7096
        %v7116 = vadd.f32 %v7032, %v7099
        %v7117 = vld [vmem:[%s43] sm:$0xff]
        %v7118 = vld [vmem:[%s43 + $0x8] sm:$0xff]
        %v7119 = vld [vmem:[%s43 + $0x10] sm:$0xff]
        %v7120 = vld [vmem:[%s43 + $0x18] sm:$0xff]
        %v7121 = vld [vmem:[%s45] sm:$0x1]
        %v7122 = vld [vmem:[%s47] sm:$0xff]
        %v7123 = vld [vmem:[%s47 + $0x8] sm:$0xff]
        %v7124 = vld [vmem:[%s47 + $0x10] sm:$0xff]
        %v7125 = vld [vmem:[%s47 + $0x18] sm:$0xff]
        %v7126 = vld [vmem:[%s49] sm:$0x1]
        %v7128 = vperm.slane %v7121, 0
        %v7131 = vsel %vm1277, %v7101, 0
        %v7134 = vsel %vm1277, %v7102, 0
        %v7137 = vsel %vm1277, %v7103, 0
        %v7140 = vsel %vm1277, %v7104, 0
        %v7143 = vsel %vm1277, %v7105, 0
        %v7146 = vsel %vm1277, %v7106, 0
        %v7149 = vsel %vm1277, %v7107, 0
        %v7152 = vsel %vm1277, %v7108, 0
        %v7155 = vsel %vm1277, %v7109, 0
        %v7158 = vsel %vm1277, %v7110, 0
        %v7161 = vsel %vm1277, %v7111, 0
        %v7164 = vsel %vm1277, %v7112, 0
        %v7167 = vsel %vm1277, %v7113, 0
        %v7170 = vsel %vm1277, %v7114, 0
        %v7173 = vsel %vm1277, %v7115, 0
        %v7176 = vsel %vm1277, %v7116, 0
        %7178 = vmatpush.msra.mxu0 0.0
        %7179 = vmatpush.msra.mxu0 0.0
        %7180 = vmatpush.msra.mxu0 0.0
        %7181 = vmatpush.msra.mxu0 0.0
        %7182 = vmatpush.msra.mxu0 0.0
        %7183 = vmatpush.msra.mxu0 0.0
        %7184 = vmatpush.msra.mxu0 0.0
        %7185 = vmatpush.msra.mxu0 0.0
        %7186 = vmatpush.msra.mxu0 0.0
        %7187 = vmatpush.msra.mxu0 0.0
        %7188 = vmatpush.msra.mxu0 0.0
        %7189 = vmatpush.msra.mxu0 0.0
        %7190 = vmatpush.msra.mxu0 %v7120
        %7191 = vmatpush.msra.mxu0 %v7119
        %7192 = vmatpush.msra.mxu0 %v7118
        %7193 = vmatpush.msra.mxu0 %v7117
        %7194 = vmatmul.f32.gmra.mxu0 %v7131
        %v7195 = vpop.f32.mrf.mxu0
        %v7196 = vadd.f32 %v7128, %v7195
        %7197 = vmatmul.f32.gmra.mxu0 %v7134
        %v7198 = vpop.f32.mrf.mxu0
        %v7199 = vadd.f32 %v7128, %v7198
        %7200 = vmatmul.f32.gmra.mxu0 %v7137
        %v7201 = vpop.f32.mrf.mxu0
        %v7202 = vadd.f32 %v7128, %v7201
        %7203 = vmatmul.f32.gmra.mxu0 %v7140
        %v7204 = vpop.f32.mrf.mxu0
        %v7205 = vadd.f32 %v7128, %v7204
        %7206 = vmatmul.f32.gmra.mxu0 %v7143
        %v7207 = vpop.f32.mrf.mxu0
        %v7208 = vadd.f32 %v7128, %v7207
        %7209 = vmatmul.f32.gmra.mxu0 %v7146
        %v7210 = vpop.f32.mrf.mxu0
        %v7211 = vadd.f32 %v7128, %v7210
        %7212 = vmatmul.f32.gmra.mxu0 %v7149
        %v7213 = vpop.f32.mrf.mxu0
        %v7214 = vadd.f32 %v7128, %v7213
        %7215 = vmatmul.f32.gmra.mxu0 %v7152
        %v7216 = vpop.f32.mrf.mxu0
        %v7217 = vadd.f32 %v7128, %v7216
        %7218 = vmatmul.f32.gmra.mxu0 %v7155
        %v7219 = vpop.f32.mrf.mxu0
        %v7220 = vadd.f32 %v7128, %v7219
        %7221 = vmatmul.f32.gmra.mxu0 %v7158
        %v7222 = vpop.f32.mrf.mxu0
        %v7223 = vadd.f32 %v7128, %v7222
        %7224 = vmatmul.f32.gmra.mxu0 %v7161
        %v7225 = vpop.f32.mrf.mxu0
        %v7226 = vadd.f32 %v7128, %v7225
        %7227 = vmatmul.f32.gmra.mxu0 %v7164
        %v7228 = vpop.f32.mrf.mxu0
        %v7229 = vadd.f32 %v7128, %v7228
        %7230 = vmatmul.f32.gmra.mxu0 %v7167
        %v7231 = vpop.f32.mrf.mxu0
        %v7232 = vadd.f32 %v7128, %v7231
        %7233 = vmatmul.f32.gmra.mxu0 %v7170
        %v7234 = vpop.f32.mrf.mxu0
        %v7235 = vadd.f32 %v7128, %v7234
        %7236 = vmatmul.f32.gmra.mxu0 %v7173
        %v7237 = vpop.f32.mrf.mxu0
        %v7238 = vadd.f32 %v7128, %v7237
        %7239 = vmatmul.f32.gmra.mxu0 %v7176
        %v7240 = vpop.f32.mrf.mxu0
        %v7241 = vadd.f32 %v7128, %v7240
        %7242 = vdwg.mxu0
        %v7243 = vsel %vm2936, %v7196, 0.0
        %v7244 = vsel %vm2936, %v7199, 0.0
        %v7245 = vadd.f32 %v7243, %v7244
        %v7246 = vsel %vm2936, %v7202, 0.0
        %v7247 = vadd.f32 %v7245, %v7246
        %v7248 = vsel %vm2936, %v7205, 0.0
        %v7249 = vadd.f32 %v7247, %v7248
        %v7250 = vsel %vm2936, %v7208, 0.0
        %v7251 = vadd.f32 %v7249, %v7250
        %v7252 = vsel %vm2936, %v7211, 0.0
        %v7253 = vadd.f32 %v7251, %v7252
        %v7254 = vsel %vm2936, %v7214, 0.0
        %v7255 = vadd.f32 %v7253, %v7254
        %v7256 = vsel %vm2936, %v7217, 0.0
        %v7257 = vadd.f32 %v7255, %v7256
        %v7258 = vsel %vm2936, %v7220, 0.0
        %v7259 = vadd.f32 %v7257, %v7258
        %v7260 = vsel %vm2936, %v7223, 0.0
        %v7261 = vadd.f32 %v7259, %v7260
        %v7262 = vsel %vm2936, %v7226, 0.0
        %v7263 = vadd.f32 %v7261, %v7262
        %v7264 = vsel %vm2936, %v7229, 0.0
        %v7265 = vadd.f32 %v7263, %v7264
        %v7266 = vsel %vm2936, %v7232, 0.0
        %v7267 = vadd.f32 %v7265, %v7266
        %v7268 = vsel %vm2936, %v7235, 0.0
        %v7269 = vadd.f32 %v7267, %v7268
        %v7270 = vsel %vm2936, %v7238, 0.0
        %v7271 = vadd.f32 %v7269, %v7270
        %v7272 = vsel %vm2936, %v7241, 0.0
        %v7273 = vadd.f32 %v7271, %v7272
        %v7274 = vrot.slane %v7273, 4
        %v7275 = vadd.f32 %v7273, %v7274
        %v7276 = vrot.slane %v7275, 2
        %v7277 = vadd.f32 %v7275, %v7276
        %v7278 = vrot.slane %v7277, 1
        %v7279 = vadd.f32 %v7277, %v7278
        %v7280 = vmul.f32 %v7279, %v1321
        %v7281 = vsub.f32 %v7196, %v7280
        %v7282 = vsub.f32 %v7199, %v7280
        %v7283 = vsub.f32 %v7202, %v7280
        %v7284 = vsub.f32 %v7205, %v7280
        %v7285 = vsub.f32 %v7208, %v7280
        %v7286 = vsub.f32 %v7211, %v7280
        %v7287 = vsub.f32 %v7214, %v7280
        %v7288 = vsub.f32 %v7217, %v7280
        %v7289 = vsub.f32 %v7220, %v7280
        %v7290 = vsub.f32 %v7223, %v7280
        %v7291 = vsub.f32 %v7226, %v7280
        %v7292 = vsub.f32 %v7229, %v7280
        %v7293 = vsub.f32 %v7232, %v7280
        %v7294 = vsub.f32 %v7235, %v7280
        %v7295 = vsub.f32 %v7238, %v7280
        %v7296 = vsub.f32 %v7241, %v7280
        %v7297 = vmul.f32 %v7281, %v7281
        %v7298 = vmul.f32 %v7282, %v7282
        %v7299 = vmul.f32 %v7283, %v7283
        %v7300 = vmul.f32 %v7284, %v7284
        %v7301 = vmul.f32 %v7285, %v7285
        %v7302 = vmul.f32 %v7286, %v7286
        %v7303 = vmul.f32 %v7287, %v7287
        %v7304 = vmul.f32 %v7288, %v7288
        %v7305 = vmul.f32 %v7289, %v7289
        %v7306 = vmul.f32 %v7290, %v7290
        %v7307 = vmul.f32 %v7291, %v7291
        %v7308 = vmul.f32 %v7292, %v7292
        %v7309 = vmul.f32 %v7293, %v7293
        %v7310 = vmul.f32 %v7294, %v7294
        %v7311 = vmul.f32 %v7295, %v7295
        %v7312 = vmul.f32 %v7296, %v7296
        %v7313 = vsel %vm2936, %v7297, 0.0
        %v7314 = vsel %vm2936, %v7298, 0.0
        %v7315 = vadd.f32 %v7313, %v7314
        %v7316 = vsel %vm2936, %v7299, 0.0
        %v7317 = vadd.f32 %v7315, %v7316
        %v7318 = vsel %vm2936, %v7300, 0.0
        %v7319 = vadd.f32 %v7317, %v7318
        %v7320 = vsel %vm2936, %v7301, 0.0
        %v7321 = vadd.f32 %v7319, %v7320
        %v7322 = vsel %vm2936, %v7302, 0.0
        %v7323 = vadd.f32 %v7321, %v7322
        %v7324 = vsel %vm2936, %v7303, 0.0
        %v7325 = vadd.f32 %v7323, %v7324
        %v7326 = vsel %vm2936, %v7304, 0.0
        %v7327 = vadd.f32 %v7325, %v7326
        %v7328 = vsel %vm2936, %v7305, 0.0
        %v7329 = vadd.f32 %v7327, %v7328
        %v7330 = vsel %vm2936, %v7306, 0.0
        %v7331 = vadd.f32 %v7329, %v7330
        %v7332 = vsel %vm2936, %v7307, 0.0
        %v7333 = vadd.f32 %v7331, %v7332
        %v7334 = vsel %vm2936, %v7308, 0.0
        %v7335 = vadd.f32 %v7333, %v7334
        %v7336 = vsel %vm2936, %v7309, 0.0
        %v7337 = vadd.f32 %v7335, %v7336
        %v7338 = vsel %vm2936, %v7310, 0.0
        %v7339 = vadd.f32 %v7337, %v7338
        %v7340 = vsel %vm2936, %v7311, 0.0
        %v7341 = vadd.f32 %v7339, %v7340
        %v7342 = vsel %vm2936, %v7312, 0.0
        %v7343 = vadd.f32 %v7341, %v7342
        %v7344 = vrot.slane %v7343, 4
        %v7345 = vadd.f32 %v7343, %v7344
        %v7346 = vrot.slane %v7345, 2
        %v7347 = vadd.f32 %v7345, %v7346
        %v7348 = vrot.slane %v7347, 1
        %v7349 = vadd.f32 %v7347, %v7348
        %v7350 = vmul.f32 %v7349, %v1321
        %v7351 = vadd.f32 %v7350, 1e-05
        %v7352 = vrsqrt.pop %v7351
        %v7353 = vmul.f32 %v7352, %v7351
        %v7354 = vmul.f32 %v7353, %v7352
        %v7355 = vmul.f32 0.5, %v7354
        %v7356 = vsub.f32 1.5, %v7355
        %v7357 = vmul.f32 %v7352, %v7356
        %vm7358 = vweird.f32 %v7351
        %vm7359 = vweird.f32 %v7352
        %vm7360 = vmor %vm7358, %vm7359
        %v7361 = vsel %vm7360, %v7352, %v7357
        %v7362 = vmul.f32 %v7281, %v7361
        %v7363 = vmul.f32 %v7282, %v7361
        %v7364 = vmul.f32 %v7283, %v7361
        %v7365 = vmul.f32 %v7284, %v7361
        %v7366 = vmul.f32 %v7285, %v7361
        %v7367 = vmul.f32 %v7286, %v7361
        %v7368 = vmul.f32 %v7287, %v7361
        %v7369 = vmul.f32 %v7288, %v7361
        %v7370 = vmul.f32 %v7289, %v7361
        %v7371 = vmul.f32 %v7290, %v7361
        %v7372 = vmul.f32 %v7291, %v7361
        %v7373 = vmul.f32 %v7292, %v7361
        %v7374 = vmul.f32 %v7293, %v7361
        %v7375 = vmul.f32 %v7294, %v7361
        %v7376 = vmul.f32 %v7295, %v7361
        %v7377 = vmul.f32 %v7296, %v7361
        %v7378 = vmax.f32 %v7362, 0.0
        %v7379 = vmax.f32 %v7363, 0.0
        %v7380 = vmax.f32 %v7364, 0.0
        %v7381 = vmax.f32 %v7365, 0.0
        %v7382 = vmax.f32 %v7366, 0.0
        %v7383 = vmax.f32 %v7367, 0.0
        %v7384 = vmax.f32 %v7368, 0.0
        %v7385 = vmax.f32 %v7369, 0.0
        %v7386 = vmax.f32 %v7370, 0.0
        %v7387 = vmax.f32 %v7371, 0.0
        %v7388 = vmax.f32 %v7372, 0.0
        %v7389 = vmax.f32 %v7373, 0.0
        %v7390 = vmax.f32 %v7374, 0.0
        %v7391 = vmax.f32 %v7375, 0.0
        %v7392 = vmax.f32 %v7376, 0.0
        %v7393 = vmax.f32 %v7377, 0.0
        %v7395 = vperm.slane %v7126, 0
        %7397 = vmatpush.msra.mxu0 0.0
        %7398 = vmatpush.msra.mxu0 0.0
        %7399 = vmatpush.msra.mxu0 0.0
        %7400 = vmatpush.msra.mxu0 0.0
        %7401 = vmatpush.msra.mxu0 0.0
        %7402 = vmatpush.msra.mxu0 0.0
        %7403 = vmatpush.msra.mxu0 0.0
        %7404 = vmatpush.msra.mxu0 0.0
        %7405 = vmatpush.msra.mxu0 0.0
        %7406 = vmatpush.msra.mxu0 0.0
        %7407 = vmatpush.msra.mxu0 0.0
        %7408 = vmatpush.msra.mxu0 0.0
        %7409 = vmatpush.msra.mxu0 %v7125
        %7410 = vmatpush.msra.mxu0 %v7124
        %7411 = vmatpush.msra.mxu0 %v7123
        %7412 = vmatpush.msra.mxu0 %v7122
        %7413 = vmatmul.f32.gmra.mxu0 %v7131
        %v7414 = vpop.f32.mrf.mxu0
        %v7415 = vadd.f32 %v7395, %v7414
        %7416 = vmatmul.f32.gmra.mxu0 %v7134
        %v7417 = vpop.f32.mrf.mxu0
        %v7418 = vadd.f32 %v7395, %v7417
        %7419 = vmatmul.f32.gmra.mxu0 %v7137
        %v7420 = vpop.f32.mrf.mxu0
        %v7421 = vadd.f32 %v7395, %v7420
        %7422 = vmatmul.f32.gmra.mxu0 %v7140
        %v7423 = vpop.f32.mrf.mxu0
        %v7424 = vadd.f32 %v7395, %v7423
        %7425 = vmatmul.f32.gmra.mxu0 %v7143
        %v7426 = vpop.f32.mrf.mxu0
        %v7427 = vadd.f32 %v7395, %v7426
        %7428 = vmatmul.f32.gmra.mxu0 %v7146
        %v7429 = vpop.f32.mrf.mxu0
        %v7430 = vadd.f32 %v7395, %v7429
        %7431 = vmatmul.f32.gmra.mxu0 %v7149
        %v7432 = vpop.f32.mrf.mxu0
        %v7433 = vadd.f32 %v7395, %v7432
        %7434 = vmatmul.f32.gmra.mxu0 %v7152
        %v7435 = vpop.f32.mrf.mxu0
        %v7436 = vadd.f32 %v7395, %v7435
        %7437 = vmatmul.f32.gmra.mxu0 %v7155
        %v7438 = vpop.f32.mrf.mxu0
        %v7439 = vadd.f32 %v7395, %v7438
        %7440 = vmatmul.f32.gmra.mxu0 %v7158
        %v7441 = vpop.f32.mrf.mxu0
        %v7442 = vadd.f32 %v7395, %v7441
        %7443 = vmatmul.f32.gmra.mxu0 %v7161
        %v7444 = vpop.f32.mrf.mxu0
        %v7445 = vadd.f32 %v7395, %v7444
        %7446 = vmatmul.f32.gmra.mxu0 %v7164
        %v7447 = vpop.f32.mrf.mxu0
        %v7448 = vadd.f32 %v7395, %v7447
        %7449 = vmatmul.f32.gmra.mxu0 %v7167
        %v7450 = vpop.f32.mrf.mxu0
        %v7451 = vadd.f32 %v7395, %v7450
        %7452 = vmatmul.f32.gmra.mxu0 %v7170
        %v7453 = vpop.f32.mrf.mxu0
        %v7454 = vadd.f32 %v7395, %v7453
        %7455 = vmatmul.f32.gmra.mxu0 %v7173
        %v7456 = vpop.f32.mrf.mxu0
        %v7457 = vadd.f32 %v7395, %v7456
        %7458 = vmatmul.f32.gmra.mxu0 %v7176
        %v7459 = vpop.f32.mrf.mxu0
        %v7460 = vadd.f32 %v7395, %v7459
        %7461 = vdwg.mxu0
        %v7462 = vadd.f32 %v7378, %v7415
        %v7463 = vadd.f32 %v7379, %v7418
        %v7464 = vadd.f32 %v7380, %v7421
        %v7465 = vadd.f32 %v7381, %v7424
        %v7466 = vadd.f32 %v7382, %v7427
        %v7467 = vadd.f32 %v7383, %v7430
        %v7468 = vadd.f32 %v7384, %v7433
        %v7469 = vadd.f32 %v7385, %v7436
        %v7470 = vadd.f32 %v7386, %v7439
        %v7471 = vadd.f32 %v7387, %v7442
        %v7472 = vadd.f32 %v7388, %v7445
        %v7473 = vadd.f32 %v7389, %v7448
        %v7474 = vadd.f32 %v7390, %v7451
        %v7475 = vadd.f32 %v7391, %v7454
        %v7476 = vadd.f32 %v7392, %v7457
        %v7477 = vadd.f32 %v7393, %v7460
        %v7478 = vld [vmem:[%s51] sm:$0xff]
        %v7479 = vld [vmem:[%s51 + $0x8] sm:$0xff]
        %v7480 = vld [vmem:[%s53] sm:$0x1]
        %v7482 = vperm.slane %v7480, 0
        %v7485 = vsel %vm2936, %v7462, 0
        %v7488 = vsel %vm2936, %v7463, 0
        %v7491 = vsel %vm2936, %v7464, 0
        %v7494 = vsel %vm2936, %v7465, 0
        %v7497 = vsel %vm2936, %v7466, 0
        %v7500 = vsel %vm2936, %v7467, 0
        %v7503 = vsel %vm2936, %v7468, 0
        %v7506 = vsel %vm2936, %v7469, 0
        %v7509 = vsel %vm2936, %v7470, 0
        %v7512 = vsel %vm2936, %v7471, 0
        %v7515 = vsel %vm2936, %v7472, 0
        %v7518 = vsel %vm2936, %v7473, 0
        %v7521 = vsel %vm2936, %v7474, 0
        %v7524 = vsel %vm2936, %v7475, 0
        %v7527 = vsel %vm2936, %v7476, 0
        %v7530 = vsel %vm2936, %v7477, 0
        %7532 = vmatpush.msra.mxu0 0.0
        %7533 = vmatpush.msra.mxu0 0.0
        %7534 = vmatpush.msra.mxu0 0.0
        %7535 = vmatpush.msra.mxu0 0.0
        %7536 = vmatpush.msra.mxu0 0.0
        %7537 = vmatpush.msra.mxu0 0.0
        %7538 = vmatpush.msra.mxu0 0.0
        %7539 = vmatpush.msra.mxu0 0.0
        %7540 = vmatpush.msra.mxu0 0.0
        %7541 = vmatpush.msra.mxu0 0.0
        %7542 = vmatpush.msra.mxu0 0.0
        %7543 = vmatpush.msra.mxu0 0.0
        %7544 = vmatpush.msra.mxu0 0.0
        %7545 = vmatpush.msra.mxu0 0.0
        %7546 = vmatpush.msra.mxu0 %v7479
        %7547 = vmatpush.msra.mxu0 %v7478
        %7548 = vmatmul.f32.gmra.mxu0 %v7485
        %v7549 = vpop.f32.mrf.mxu0
        %v7550 = vadd.f32 %v7482, %v7549
        %7551 = vmatmul.f32.gmra.mxu0 %v7488
        %v7552 = vpop.f32.mrf.mxu0
        %v7553 = vadd.f32 %v7482, %v7552
        %7554 = vmatmul.f32.gmra.mxu0 %v7491
        %v7555 = vpop.f32.mrf.mxu0
        %v7556 = vadd.f32 %v7482, %v7555
        %7557 = vmatmul.f32.gmra.mxu0 %v7494
        %v7558 = vpop.f32.mrf.mxu0
        %v7559 = vadd.f32 %v7482, %v7558
        %7560 = vmatmul.f32.gmra.mxu0 %v7497
        %v7561 = vpop.f32.mrf.mxu0
        %v7562 = vadd.f32 %v7482, %v7561
        %7563 = vmatmul.f32.gmra.mxu0 %v7500
        %v7564 = vpop.f32.mrf.mxu0
        %v7565 = vadd.f32 %v7482, %v7564
        %7566 = vmatmul.f32.gmra.mxu0 %v7503
        %v7567 = vpop.f32.mrf.mxu0
        %v7568 = vadd.f32 %v7482, %v7567
        %7569 = vmatmul.f32.gmra.mxu0 %v7506
        %v7570 = vpop.f32.mrf.mxu0
        %v7571 = vadd.f32 %v7482, %v7570
        %7572 = vmatmul.f32.gmra.mxu0 %v7509
        %v7573 = vpop.f32.mrf.mxu0
        %v7574 = vadd.f32 %v7482, %v7573
        %7575 = vmatmul.f32.gmra.mxu0 %v7512
        %v7576 = vpop.f32.mrf.mxu0
        %v7577 = vadd.f32 %v7482, %v7576
        %7578 = vmatmul.f32.gmra.mxu0 %v7515
        %v7579 = vpop.f32.mrf.mxu0
        %v7580 = vadd.f32 %v7482, %v7579
        %7581 = vmatmul.f32.gmra.mxu0 %v7518
        %v7582 = vpop.f32.mrf.mxu0
        %v7583 = vadd.f32 %v7482, %v7582
        %7584 = vmatmul.f32.gmra.mxu0 %v7521
        %v7585 = vpop.f32.mrf.mxu0
        %v7586 = vadd.f32 %v7482, %v7585
        %7587 = vmatmul.f32.gmra.mxu0 %v7524
        %v7588 = vpop.f32.mrf.mxu0
        %v7589 = vadd.f32 %v7482, %v7588
        %7590 = vmatmul.f32.gmra.mxu0 %v7527
        %v7591 = vpop.f32.mrf.mxu0
        %v7592 = vadd.f32 %v7482, %v7591
        %7593 = vmatmul.f32.gmra.mxu0 %v7530
        %v7594 = vpop.f32.mrf.mxu0
        %v7595 = vadd.f32 %v7482, %v7594
        %7596 = vdwg.mxu0
        %v7597 = vadd.f32 %v7550, %v7553
        %v7598 = vadd.f32 %v7597, %v7556
        %v7599 = vadd.f32 %v7598, %v7559
        %v7600 = vadd.f32 %v7599, %v7562
        %v7601 = vadd.f32 %v7600, %v7565
        %v7602 = vadd.f32 %v7601, %v7568
        %v7603 = vadd.f32 %v7602, %v7571
        %v7604 = vadd.f32 %v7603, %v7574
        %v7605 = vadd.f32 %v7604, %v7577
        %v7606 = vadd.f32 %v7605, %v7580
        %v7607 = vadd.f32 %v7606, %v7583
        %v7608 = vadd.f32 %v7607, %v7586
        %v7609 = vadd.f32 %v7608, %v7589
        %v7610 = vadd.f32 %v7609, %v7592
        %v7611 = vadd.f32 %v7610, %v7595
        %v7612 = vrot.slane %v7611, 4
        %v7613 = vadd.f32 %v7611, %v7612
        %v7614 = vrot.slane %v7613, 2
        %v7615 = vadd.f32 %v7613, %v7614
        %v7616 = vrot.slane %v7615, 1
        %v7617 = vadd.f32 %v7615, %v7616
        %v7618 = vmul.f32 %v7617, %v1321
        %v7619 = vsub.f32 %v7550, %v7618
        %v7620 = vsub.f32 %v7553, %v7618
        %v7621 = vsub.f32 %v7556, %v7618
        %v7622 = vsub.f32 %v7559, %v7618
        %v7623 = vsub.f32 %v7562, %v7618
        %v7624 = vsub.f32 %v7565, %v7618
        %v7625 = vsub.f32 %v7568, %v7618
        %v7626 = vsub.f32 %v7571, %v7618
        %v7627 = vsub.f32 %v7574, %v7618
        %v7628 = vsub.f32 %v7577, %v7618
        %v7629 = vsub.f32 %v7580, %v7618
        %v7630 = vsub.f32 %v7583, %v7618
        %v7631 = vsub.f32 %v7586, %v7618
        %v7632 = vsub.f32 %v7589, %v7618
        %v7633 = vsub.f32 %v7592, %v7618
        %v7634 = vsub.f32 %v7595, %v7618
        %v7635 = vld [vmem:[%s55] sm:$0xff]
        %v7636 = vld [vmem:[%s55 + $0x8] sm:$0xff]
        %v7637 = vld [vmem:[%s55 + $0x10] sm:$0xff]
        %v7638 = vld [vmem:[%s55 + $0x18] sm:$0xff]
        %v7639 = vld [vmem:[%s57] sm:$0x1]
        %v7641 = vperm.slane %v7639, 0
        %7643 = vmatpush.msra.mxu0 0.0
        %7644 = vmatpush.msra.mxu0 0.0
        %7645 = vmatpush.msra.mxu0 0.0
        %7646 = vmatpush.msra.mxu0 0.0
        %7647 = vmatpush.msra.mxu0 0.0
        %7648 = vmatpush.msra.mxu0 0.0
        %7649 = vmatpush.msra.mxu0 0.0
        %7650 = vmatpush.msra.mxu0 0.0
        %7651 = vmatpush.msra.mxu0 0.0
        %7652 = vmatpush.msra.mxu0 0.0
        %7653 = vmatpush.msra.mxu0 0.0
        %7654 = vmatpush.msra.mxu0 0.0
        %7655 = vmatpush.msra.mxu0 %v7638
        %7656 = vmatpush.msra.mxu0 %v7637
        %7657 = vmatpush.msra.mxu0 %v7636
        %7658 = vmatpush.msra.mxu0 %v7635
        %7659 = vmatmul.f32.gmra.mxu0 %v7131
        %v7660 = vpop.f32.mrf.mxu0
        %v7661 = vadd.f32 %v7641, %v7660
        %7662 = vmatmul.f32.gmra.mxu0 %v7134
        %v7663 = vpop.f32.mrf.mxu0
        %v7664 = vadd.f32 %v7641, %v7663
        %7665 = vmatmul.f32.gmra.mxu0 %v7137
        %v7666 = vpop.f32.mrf.mxu0
        %v7667 = vadd.f32 %v7641, %v7666
        %7668 = vmatmul.f32.gmra.mxu0 %v7140
        %v7669 = vpop.f32.mrf.mxu0
        %v7670 = vadd.f32 %v7641, %v7669
        %7671 = vmatmul.f32.gmra.mxu0 %v7143
        %v7672 = vpop.f32.mrf.mxu0
        %v7673 = vadd.f32 %v7641, %v7672
        %7674 = vmatmul.f32.gmra.mxu0 %v7146
        %v7675 = vpop.f32.mrf.mxu0
        %v7676 = vadd.f32 %v7641, %v7675
        %7677 = vmatmul.f32.gmra.mxu0 %v7149
        %v7678 = vpop.f32.mrf.mxu0
        %v7679 = vadd.f32 %v7641, %v7678
        %7680 = vmatmul.f32.gmra.mxu0 %v7152
        %v7681 = vpop.f32.mrf.mxu0
        %v7682 = vadd.f32 %v7641, %v7681
        %7683 = vmatmul.f32.gmra.mxu0 %v7155
        %v7684 = vpop.f32.mrf.mxu0
        %v7685 = vadd.f32 %v7641, %v7684
        %7686 = vmatmul.f32.gmra.mxu0 %v7158
        %v7687 = vpop.f32.mrf.mxu0
        %v7688 = vadd.f32 %v7641, %v7687
        %7689 = vmatmul.f32.gmra.mxu0 %v7161
        %v7690 = vpop.f32.mrf.mxu0
        %v7691 = vadd.f32 %v7641, %v7690
        %7692 = vmatmul.f32.gmra.mxu0 %v7164
        %v7693 = vpop.f32.mrf.mxu0
        %v7694 = vadd.f32 %v7641, %v7693
        %7695 = vmatmul.f32.gmra.mxu0 %v7167
        %v7696 = vpop.f32.mrf.mxu0
        %v7697 = vadd.f32 %v7641, %v7696
        %7698 = vmatmul.f32.gmra.mxu0 %v7170
        %v7699 = vpop.f32.mrf.mxu0
        %v7700 = vadd.f32 %v7641, %v7699
        %7701 = vmatmul.f32.gmra.mxu0 %v7173
        %v7702 = vpop.f32.mrf.mxu0
        %v7703 = vadd.f32 %v7641, %v7702
        %7704 = vmatmul.f32.gmra.mxu0 %v7176
        %v7705 = vpop.f32.mrf.mxu0
        %v7706 = vadd.f32 %v7641, %v7705
        %7707 = vdwg.mxu0
        %v7708 = vmax.f32 %v7661, 0.0
        %v7709 = vmax.f32 %v7664, 0.0
        %v7710 = vmax.f32 %v7667, 0.0
        %v7711 = vmax.f32 %v7670, 0.0
        %v7712 = vmax.f32 %v7673, 0.0
        %v7713 = vmax.f32 %v7676, 0.0
        %v7714 = vmax.f32 %v7679, 0.0
        %v7715 = vmax.f32 %v7682, 0.0
        %v7716 = vmax.f32 %v7685, 0.0
        %v7717 = vmax.f32 %v7688, 0.0
        %v7718 = vmax.f32 %v7691, 0.0
        %v7719 = vmax.f32 %v7694, 0.0
        %v7720 = vmax.f32 %v7697, 0.0
        %v7721 = vmax.f32 %v7700, 0.0
        %v7722 = vmax.f32 %v7703, 0.0
        %v7723 = vmax.f32 %v7706, 0.0
        %v7724 = vld [vmem:[%s59] sm:$0xff]
        %v7725 = vld [vmem:[%s59 + $0x8] sm:$0xff]
        %v7726 = vld [vmem:[%s59 + $0x10] sm:$0xff]
        %v7727 = vld [vmem:[%s59 + $0x18] sm:$0xff]
        %v7728 = vld [vmem:[%s61] sm:$0x1]
        %v7730 = vperm.slane %v7728, 0
        %v7733 = vsel %vm1277, %v7708, 0
        %v7736 = vsel %vm1277, %v7709, 0
        %v7739 = vsel %vm1277, %v7710, 0
        %v7742 = vsel %vm1277, %v7711, 0
        %v7745 = vsel %vm1277, %v7712, 0
        %v7748 = vsel %vm1277, %v7713, 0
        %v7751 = vsel %vm1277, %v7714, 0
        %v7754 = vsel %vm1277, %v7715, 0
        %v7757 = vsel %vm1277, %v7716, 0
        %v7760 = vsel %vm1277, %v7717, 0
        %v7763 = vsel %vm1277, %v7718, 0
        %v7766 = vsel %vm1277, %v7719, 0
        %v7769 = vsel %vm1277, %v7720, 0
        %v7772 = vsel %vm1277, %v7721, 0
        %v7775 = vsel %vm1277, %v7722, 0
        %v7778 = vsel %vm1277, %v7723, 0
        %7780 = vmatpush.msra.mxu0 0.0
        %7781 = vmatpush.msra.mxu0 0.0
        %7782 = vmatpush.msra.mxu0 0.0
        %7783 = vmatpush.msra.mxu0 0.0
        %7784 = vmatpush.msra.mxu0 0.0
        %7785 = vmatpush.msra.mxu0 0.0
        %7786 = vmatpush.msra.mxu0 0.0
        %7787 = vmatpush.msra.mxu0 0.0
        %7788 = vmatpush.msra.mxu0 0.0
        %7789 = vmatpush.msra.mxu0 0.0
        %7790 = vmatpush.msra.mxu0 0.0
        %7791 = vmatpush.msra.mxu0 0.0
        %7792 = vmatpush.msra.mxu0 %v7727
        %7793 = vmatpush.msra.mxu0 %v7726
        %7794 = vmatpush.msra.mxu0 %v7725
        %7795 = vmatpush.msra.mxu0 %v7724
        %7796 = vmatmul.f32.gmra.mxu0 %v7733
        %v7797 = vpop.f32.mrf.mxu0
        %v7798 = vadd.f32 %v7730, %v7797
        %7799 = vmatmul.f32.gmra.mxu0 %v7736
        %v7800 = vpop.f32.mrf.mxu0
        %v7801 = vadd.f32 %v7730, %v7800
        %7802 = vmatmul.f32.gmra.mxu0 %v7739
        %v7803 = vpop.f32.mrf.mxu0
        %v7804 = vadd.f32 %v7730, %v7803
        %7805 = vmatmul.f32.gmra.mxu0 %v7742
        %v7806 = vpop.f32.mrf.mxu0
        %v7807 = vadd.f32 %v7730, %v7806
        %7808 = vmatmul.f32.gmra.mxu0 %v7745
        %v7809 = vpop.f32.mrf.mxu0
        %v7810 = vadd.f32 %v7730, %v7809
        %7811 = vmatmul.f32.gmra.mxu0 %v7748
        %v7812 = vpop.f32.mrf.mxu0
        %v7813 = vadd.f32 %v7730, %v7812
        %7814 = vmatmul.f32.gmra.mxu0 %v7751
        %v7815 = vpop.f32.mrf.mxu0
        %v7816 = vadd.f32 %v7730, %v7815
        %7817 = vmatmul.f32.gmra.mxu0 %v7754
        %v7818 = vpop.f32.mrf.mxu0
        %v7819 = vadd.f32 %v7730, %v7818
        %7820 = vmatmul.f32.gmra.mxu0 %v7757
        %v7821 = vpop.f32.mrf.mxu0
        %v7822 = vadd.f32 %v7730, %v7821
        %7823 = vmatmul.f32.gmra.mxu0 %v7760
        %v7824 = vpop.f32.mrf.mxu0
        %v7825 = vadd.f32 %v7730, %v7824
        %7826 = vmatmul.f32.gmra.mxu0 %v7763
        %v7827 = vpop.f32.mrf.mxu0
        %v7828 = vadd.f32 %v7730, %v7827
        %7829 = vmatmul.f32.gmra.mxu0 %v7766
        %v7830 = vpop.f32.mrf.mxu0
        %v7831 = vadd.f32 %v7730, %v7830
        %7832 = vmatmul.f32.gmra.mxu0 %v7769
        %v7833 = vpop.f32.mrf.mxu0
        %v7834 = vadd.f32 %v7730, %v7833
        %7835 = vmatmul.f32.gmra.mxu0 %v7772
        %v7836 = vpop.f32.mrf.mxu0
        %v7837 = vadd.f32 %v7730, %v7836
        %7838 = vmatmul.f32.gmra.mxu0 %v7775
        %v7839 = vpop.f32.mrf.mxu0
        %v7840 = vadd.f32 %v7730, %v7839
        %7841 = vmatmul.f32.gmra.mxu0 %v7778
        %v7842 = vpop.f32.mrf.mxu0
        %v7843 = vadd.f32 %v7730, %v7842
        %7844 = vdwg.mxu0
        %v7845 = vmax.f32 %v7798, 0.0
        %v7846 = vmax.f32 %v7801, 0.0
        %v7847 = vmax.f32 %v7804, 0.0
        %v7848 = vmax.f32 %v7807, 0.0
        %v7849 = vmax.f32 %v7810, 0.0
        %v7850 = vmax.f32 %v7813, 0.0
        %v7851 = vmax.f32 %v7816, 0.0
        %v7852 = vmax.f32 %v7819, 0.0
        %v7853 = vmax.f32 %v7822, 0.0
        %v7854 = vmax.f32 %v7825, 0.0
        %v7855 = vmax.f32 %v7828, 0.0
        %v7856 = vmax.f32 %v7831, 0.0
        %v7857 = vmax.f32 %v7834, 0.0
        %v7858 = vmax.f32 %v7837, 0.0
        %v7859 = vmax.f32 %v7840, 0.0
        %v7860 = vmax.f32 %v7843, 0.0
        %v7861 = vld [vmem:[%s63] sm:$0xff]
        %v7862 = vld [vmem:[%s63 + $0x8] sm:$0xff]
        %v7863 = vld [vmem:[%s63 + $0x10] sm:$0xff]
        %v7864 = vld [vmem:[%s63 + $0x18] sm:$0xff]
        %v7865 = vld [vmem:[%s65] sm:$0x1]
        %v7867 = vperm.slane %v7865, 0
        %v7870 = vsel %vm1277, %v7845, 0
        %v7873 = vsel %vm1277, %v7846, 0
        %v7876 = vsel %vm1277, %v7847, 0
        %v7879 = vsel %vm1277, %v7848, 0
        %v7882 = vsel %vm1277, %v7849, 0
        %v7885 = vsel %vm1277, %v7850, 0
        %v7888 = vsel %vm1277, %v7851, 0
        %v7891 = vsel %vm1277, %v7852, 0
        %v7894 = vsel %vm1277, %v7853, 0
        %v7897 = vsel %vm1277, %v7854, 0
        %v7900 = vsel %vm1277, %v7855, 0
        %v7903 = vsel %vm1277, %v7856, 0
        %v7906 = vsel %vm1277, %v7857, 0
        %v7909 = vsel %vm1277, %v7858, 0
        %v7912 = vsel %vm1277, %v7859, 0
        %v7915 = vsel %vm1277, %v7860, 0
        %7917 = vmatpush.msra.mxu0 0.0
        %7918 = vmatpush.msra.mxu0 0.0
        %7919 = vmatpush.msra.mxu0 0.0
        %7920 = vmatpush.msra.mxu0 0.0
        %7921 = vmatpush.msra.mxu0 0.0
        %7922 = vmatpush.msra.mxu0 0.0
        %7923 = vmatpush.msra.mxu0 0.0
        %7924 = vmatpush.msra.mxu0 0.0
        %7925 = vmatpush.msra.mxu0 0.0
        %7926 = vmatpush.msra.mxu0 0.0
        %7927 = vmatpush.msra.mxu0 0.0
        %7928 = vmatpush.msra.mxu0 0.0
        %7929 = vmatpush.msra.mxu0 %v7864
        %7930 = vmatpush.msra.mxu0 %v7863
        %7931 = vmatpush.msra.mxu0 %v7862
        %7932 = vmatpush.msra.mxu0 %v7861
        %7933 = vmatmul.f32.gmra.mxu0 %v7870
        %v7934 = vpop.f32.mrf.mxu0
        %v7935 = vadd.f32 %v7867, %v7934
        %7936 = vmatmul.f32.gmra.mxu0 %v7873
        %v7937 = vpop.f32.mrf.mxu0
        %v7938 = vadd.f32 %v7867, %v7937
        %7939 = vmatmul.f32.gmra.mxu0 %v7876
        %v7940 = vpop.f32.mrf.mxu0
        %v7941 = vadd.f32 %v7867, %v7940
        %7942 = vmatmul.f32.gmra.mxu0 %v7879
        %v7943 = vpop.f32.mrf.mxu0
        %v7944 = vadd.f32 %v7867, %v7943
        %7945 = vmatmul.f32.gmra.mxu0 %v7882
        %v7946 = vpop.f32.mrf.mxu0
        %v7947 = vadd.f32 %v7867, %v7946
        %7948 = vmatmul.f32.gmra.mxu0 %v7885
        %v7949 = vpop.f32.mrf.mxu0
        %v7950 = vadd.f32 %v7867, %v7949
        %7951 = vmatmul.f32.gmra.mxu0 %v7888
        %v7952 = vpop.f32.mrf.mxu0
        %v7953 = vadd.f32 %v7867, %v7952
        %7954 = vmatmul.f32.gmra.mxu0 %v7891
        %v7955 = vpop.f32.mrf.mxu0
        %v7956 = vadd.f32 %v7867, %v7955
        %7957 = vmatmul.f32.gmra.mxu0 %v7894
        %v7958 = vpop.f32.mrf.mxu0
        %v7959 = vadd.f32 %v7867, %v7958
        %7960 = vmatmul.f32.gmra.mxu0 %v7897
        %v7961 = vpop.f32.mrf.mxu0
        %v7962 = vadd.f32 %v7867, %v7961
        %7963 = vmatmul.f32.gmra.mxu0 %v7900
        %v7964 = vpop.f32.mrf.mxu0
        %v7965 = vadd.f32 %v7867, %v7964
        %7966 = vmatmul.f32.gmra.mxu0 %v7903
        %v7967 = vpop.f32.mrf.mxu0
        %v7968 = vadd.f32 %v7867, %v7967
        %7969 = vmatmul.f32.gmra.mxu0 %v7906
        %v7970 = vpop.f32.mrf.mxu0
        %v7971 = vadd.f32 %v7867, %v7970
        %7972 = vmatmul.f32.gmra.mxu0 %v7909
        %v7973 = vpop.f32.mrf.mxu0
        %v7974 = vadd.f32 %v7867, %v7973
        %7975 = vmatmul.f32.gmra.mxu0 %v7912
        %v7976 = vpop.f32.mrf.mxu0
        %v7977 = vadd.f32 %v7867, %v7976
        %7978 = vmatmul.f32.gmra.mxu0 %v7915
        %v7979 = vpop.f32.mrf.mxu0
        %v7980 = vadd.f32 %v7867, %v7979
        %7981 = vdwg.mxu0
        %v7982 = vadd.f32 %v7619, %v7935
        %v7983 = vadd.f32 %v7620, %v7938
        %v7984 = vadd.f32 %v7621, %v7941
        %v7985 = vadd.f32 %v7622, %v7944
        %v7986 = vadd.f32 %v7623, %v7947
        %v7987 = vadd.f32 %v7624, %v7950
        %v7988 = vadd.f32 %v7625, %v7953
        %v7989 = vadd.f32 %v7626, %v7956
        %v7990 = vadd.f32 %v7627, %v7959
        %v7991 = vadd.f32 %v7628, %v7962
        %v7992 = vadd.f32 %v7629, %v7965
        %v7993 = vadd.f32 %v7630, %v7968
        %v7994 = vadd.f32 %v7631, %v7971
        %v7995 = vadd.f32 %v7632, %v7974
        %v7996 = vadd.f32 %v7633, %v7977
        %v7997 = vadd.f32 %v7634, %v7980
        %7998 = vst [vmem:[%s1097] sm:$0xff] %v7982
        %7999 = vst [vmem:[%s1097 + $0x8] sm:$0xff] %v7983
        %8000 = vst [vmem:[%s1097 + $0x10] sm:$0xff] %v7984
        %8001 = vst [vmem:[%s1097 + $0x18] sm:$0xff] %v7985
        %8002 = vst [vmem:[%s1097 + $0x20] sm:$0xff] %v7986
        %8003 = vst [vmem:[%s1097 + $0x28] sm:$0xff] %v7987
        %8004 = vst [vmem:[%s1097 + $0x30] sm:$0xff] %v7988
        %8005 = vst [vmem:[%s1097 + $0x38] sm:$0xff] %v7989
        %8006 = vst [vmem:[%s1097 + $0x40] sm:$0xff] %v7990
        %8007 = vst [vmem:[%s1097 + $0x48] sm:$0xff] %v7991
        %8008 = vst [vmem:[%s1097 + $0x50] sm:$0xff] %v7992
        %8009 = vst [vmem:[%s1097 + $0x58] sm:$0xff] %v7993
        %8010 = vst [vmem:[%s1097 + $0x60] sm:$0xff] %v7994
        %8011 = vst [vmem:[%s1097 + $0x68] sm:$0xff] %v7995
        %8012 = vst [vmem:[%s1097 + $0x70] sm:$0xff] %v7996
        %8013 = vst [vmem:[%s1097 + $0x78] sm:$0xff] %v7997
        %s8014 = sand.u32 %s817, 1
        %s8015 = scalar_lea.sflag [#allocation3], %s8014
        %s8016 = sand.u32 %s817, 1
        %s8017 = smul.addr %s8016, 128
        %s8018 = scalar_lea.vmem [#allocation2], %s8017
        // Predicated region
        $region153: #{tpu_custom_call.1} parent=151 // pred_check
          %p8019 = pneg %p827
        $region154: #{tpu_custom_call.1} parent=151 // pred_check_branch
          %8021 = sbr.rel (%p8019) target = $region156
        $region155: #{tpu_custom_call.1} parent=151 // pred_region
          %8023 = vsyncadd %s8015, 0
          %s8024 = smul.addr %s81, 16
          %s8025 = smul.addr %s8024, 8
          %s8026 = scalar_lea.hbm %s67, %s8025
          %s8027 = sshll.u32 %s8018, 4
          %s8028 = int_to_ptr.vmem [resolvable:$true] %s8027
          %s8029 = sshll.u32 %s8026, 4
          %s8030 = int_to_ptr.hbm [resolvable:$true] %s8029
          %8035 = dma.vmem_to_hbm [thread:$0]  %s8028, 2048, %s8030, %s8015, 128, 128, 8
        $region156: #{tpu_custom_call.1} parent=151 // pred_fallthru
          _
      $region152: #{tpu_custom_call.1} parent=5 // pred_fallthru
        _
      %p8036 = scmp.le.s32.totalorder 2, %s76
      // Predicated region
      $region157: #{tpu_custom_call.1} parent=5 // pred_check
        %p8037 = pneg %p8036
      $region158: #{tpu_custom_call.1} parent=5 // pred_check_branch
        %8039 = sbr.rel (%p8037) target = $region160
      $region159: #{tpu_custom_call.1} parent=5 // pred_region
        %s8040 = ssub.s32 %s76, 2
        // Predicated region
        $region161: #{tpu_custom_call.1} parent=159 // pred_check
          %p8041 = pneg %p833
        $region162: #{tpu_custom_call.1} parent=159 // pred_check_branch
          %8043 = sbr.rel (%p8041) target = $region164
        $region163: #{tpu_custom_call.1} parent=159 // pred_region
          %s8044 = sand.u32 %s818, 1
          %s8045 = scalar_lea.sflag [#allocation3], %s8044
          %s8046 = sand.u32 %s818, 1
          %s8047 = smul.addr %s8046, 128
          %s8048 = scalar_lea.vmem [#allocation2], %s8047
          %8050 = dma.done %s8045, 2048
        $region164: #{tpu_custom_call.1} parent=159 // pred_fallthru
          _
      $region160: #{tpu_custom_call.1} parent=5 // pred_fallthru
        _
    $region6: #{tpu_custom_call.1} parent=1 // loop_footer
      %s80 = sadd.s32 1, %s76
    $region7: #{tpu_custom_call.1} parent=1 // loop_footer_branch
      %75 = sbr.rel target = $region3
    $region8: #{tpu_custom_call.1} parent=1 // loop_exit
      _
    %8051 = vsyncpa [#allocation3], 1
    %s8052 = scalar_lea.sflag [#allocation3], 1
    %8053 = vsyncpa %s8052, 1

</llo_original>
